<compile_context>
chip_gen: v7x
topology: tpu7x:2x2x1
jax: 0.10.0
libtpu: 0.0.40
codegen_flags: <defaults>
</compile_context>

<pallas_src>
import functools

import jax
import jax.numpy as jnp
from jax.experimental import pallas as pl
from jax.experimental.pallas import tpu as pltpu


def _round_up(x, m):
    return (x + m - 1) // m * m


# ----------------------------- Pallas kernels --------------------------------
def _conv_gemm_kernel(w_ref, p_ref, b_ref, o_ref):
    """o[Cout, TM] = relu(W[Cout, K] @ P[K, TM] + b[Cout, 1]).

    W arrives pre-cast to bf16; the patch tile is cast to bf16 in-kernel so the
    MXU uses its bf16 path while accumulation / bias / ReLU stay in f32.
    """
    acc = jnp.dot(w_ref[...], p_ref[...].astype(jnp.bfloat16),
                  preferred_element_type=jnp.float32)
    o_ref[...] = jnp.maximum(acc + b_ref[...], 0.0)


def _fc_fused_kernel(x_ref, w1_ref, b1_ref, w2_ref, b2_ref, o_ref):
    """q = relu(x @ W1 + b1) @ W2 + b2 — the [TM, 512] hidden never leaves VMEM."""
    h = jnp.dot(x_ref[...].astype(jnp.bfloat16), w1_ref[...],
                preferred_element_type=jnp.float32)
    h = jnp.maximum(h + b1_ref[...], 0.0)
    q = jnp.dot(h.astype(jnp.bfloat16), w2_ref[...],
                preferred_element_type=jnp.float32)
    o_ref[...] = q + b2_ref[...]


# ----------------------------- Pallas wrappers --------------------------------
def conv_gemm_relu(w, b_col, patches_t, *, tm=512):
    """w: [Cout, K] bf16, b_col: [Cout, 1] f32, patches_t: [K, M] f32 -> [Cout, M]."""
    c_out, k = w.shape
    k2, m = patches_t.shape
    assert k == k2, (k, k2)
    if m > tm:
        tm_eff, grid_m = tm, pl.cdiv(m, tm)        # partial last tile is clipped
    else:
        tm_eff, grid_m = m, 1                      # single full-extent block
    return pl.pallas_call(
        _conv_gemm_kernel,
        out_shape=jax.ShapeDtypeStruct((c_out, m), jnp.float32),
        grid=(grid_m,),
        in_specs=[
            pl.BlockSpec((c_out, k), lambda i: (0, 0)),     # resident weight
            pl.BlockSpec((k, tm_eff), lambda i: (0, i)),    # M-tiled patches
            pl.BlockSpec((c_out, 1), lambda i: (0, 0)),     # resident bias
        ],
        out_specs=pl.BlockSpec((c_out, tm_eff), lambda i: (0, i)),
        compiler_params=pltpu.CompilerParams(
            dimension_semantics=("parallel",)),
    )(w, patches_t, b_col)


def fc_fused(x, w1, b1, w2, b2, *, tm=128):
    """x: [M, Kp] f32; w1: [Kp, H] bf16; w2: [H, Np] bf16 -> [M, Np] f32."""
    m, kp = x.shape
    kp2, h = w1.shape
    h2, np_ = w2.shape
    assert kp == kp2 and h == h2
    if m > tm:
        tm_eff, grid_m = tm, pl.cdiv(m, tm)
    else:
        tm_eff, grid_m = m, 1
    return pl.pallas_call(
        _fc_fused_kernel,
        out_shape=jax.ShapeDtypeStruct((m, np_), jnp.float32),
        grid=(grid_m,),
        in_specs=[
            pl.BlockSpec((tm_eff, kp), lambda i: (i, 0)),   # M-tiled activations
            pl.BlockSpec((kp, h), lambda i: (0, 0)),        # resident fc1 weight
            pl.BlockSpec((1, h), lambda i: (0, 0)),
            pl.BlockSpec((h, np_), lambda i: (0, 0)),       # resident fc2 weight
            pl.BlockSpec((1, np_), lambda i: (0, 0)),
        ],
        out_specs=pl.BlockSpec((tm_eff, np_), lambda i: (i, 0)),
        compiler_params=pltpu.CompilerParams(
            dimension_semantics=("parallel",)),
    )(x, w1, b1, w2, b2)


# ------------------------------- JAX glue ------------------------------------
def im2col_cmajor(act, k, s):
    """act: [C, B, H, W] -> patches^T [C*k*k, B*Oh*Ow].

    Row order is (c, kh, kw), which matches the flatten of a PyTorch
    [Cout, Cin, kh, kw] conv weight, so the weight prep is a pure reshape."""
    c, b, hgt, wid = act.shape
    oh = (hgt - k) // s + 1
    ow = (wid - k) // s + 1
    ih = jnp.arange(oh)[:, None] * s + jnp.arange(k)[None, :]   # [Oh, kh]
    iw = jnp.arange(ow)[:, None] * s + jnp.arange(k)[None, :]   # [Ow, kw]
    p = act[:, :, ih]                   # [C, B, Oh, kh, W]
    p = p[:, :, :, :, iw]               # [C, B, Oh, kh, Ow, kw]
    p = p.transpose(0, 3, 5, 1, 2, 4)   # [C, kh, kw, B, Oh, Ow]
    return p.reshape(c * k * k, b * oh * ow), (oh, ow)


def init_params(key, n_actions):
    """PyTorch-layout, PyTorch-default-style init."""
    ks = jax.random.split(key, 10)

    def u(k, shape, fan_in):
        bound = 1.0 / jnp.sqrt(fan_in)
        return jax.random.uniform(k, shape, jnp.float32, -bound, bound)

    return {
        "c1_w": u(ks[0], (32, 4, 8, 8), 4 * 8 * 8),
        "c1_b": u(ks[1], (32,), 4 * 8 * 8),
        "c2_w": u(ks[2], (64, 32, 4, 4), 32 * 4 * 4),
        "c2_b": u(ks[3], (64,), 32 * 4 * 4),
        "c3_w": u(ks[4], (64, 64, 3, 3), 64 * 3 * 3),
        "c3_b": u(ks[5], (64,), 64 * 3 * 3),
        "fc1_w": u(ks[6], (512, 3136), 3136),   # PyTorch Linear layout [out, in]
        "fc1_b": u(ks[7], (512,), 3136),
        "fc2_w": u(ks[8], (n_actions, 512), 512),
        "fc2_b": u(ks[9], (n_actions,), 512),
    }


def prepare_params(params):
    """One-time reshape / pad / bf16-cast so the forward has no weight shuffles."""
    def conv_w(w, scale=None):
        w2 = w.reshape(w.shape[0], -1)           # [Cout, Cin*k*k], (c, kh, kw) order
        if scale is not None:
            w2 = w2 * scale
        return w2.astype(jnp.bfloat16)

    def col_bias(b):
        return b.reshape(-1, 1).astype(jnp.float32)

    fc1_in = params["fc1_w"].shape[1]                # 3136
    fc1_in_p = _round_up(fc1_in, 128)                # 3200: lane-aligned K
    fc1_w = jnp.pad(params["fc1_w"].T, ((0, fc1_in_p - fc1_in), (0, 0)))

    n_actions = params["fc2_w"].shape[0]
    n_pad = _round_up(max(n_actions, 128), 128)      # lane-dense fc2 output
    fc2_w = jnp.pad(params["fc2_w"].T, ((0, 0), (0, n_pad - n_actions)))
    fc2_b = jnp.pad(params["fc2_b"], (0, n_pad - n_actions))

    return {
        # The /255 input scaling is folded into conv1's weight (bias unaffected).
        "c1_w": conv_w(params["c1_w"], 1.0 / 255.0), "c1_b": col_bias(params["c1_b"]),
        "c2_w": conv_w(params["c2_w"]),              "c2_b": col_bias(params["c2_b"]),
        "c3_w": conv_w(params["c3_w"]),              "c3_b": col_bias(params["c3_b"]),
        "fc1_w": fc1_w.astype(jnp.bfloat16),
        "fc1_b": params["fc1_b"].reshape(1, -1).astype(jnp.float32),
        "fc2_w": fc2_w.astype(jnp.bfloat16),
        "fc2_b": fc2_b.reshape(1, -1).astype(jnp.float32),
    }


@functools.partial(jax.jit, static_argnames=("n_actions",))
def qnetwork_forward(prepped, x, *, n_actions):
    """x: NCHW float [B, 4, 84, 84] in 0..255 range -> Q-values [B, n_actions] f32."""
    b = x.shape[0]
    act = x.astype(jnp.float32).transpose(1, 0, 2, 3)         # C-major [C, B, H, W]

    for name, ksz, stride in (("c1", 8, 4), ("c2", 4, 2), ("c3", 3, 1)):
        pt, (oh, ow) = im2col_cmajor(act, ksz, stride)        # [C*k*k, B*Oh*Ow]
        y = conv_gemm_relu(prepped[name + "_w"], prepped[name + "_b"], pt)
        act = y.reshape(y.shape[0], b, oh, ow)                # [Cout, B, Oh, Ow]

    # nn.Flatten order is (C, H, W): [C, B, Oh*Ow] -> [B, C*Oh*Ow] = [B, 3136]
    c_out = act.shape[0]
    h = act.reshape(c_out, b, -1).transpose(1, 0, 2).reshape(b, -1)
    h = jnp.pad(h, ((0, 0), (0, prepped["fc1_w"].shape[0] - h.shape[1])))  # K -> 3200
    q = fc_fused(h, prepped["fc1_w"], prepped["fc1_b"],
                 prepped["fc2_w"], prepped["fc2_b"])          # [B, 128]
    return q[:, :n_actions]


if __name__ == "__main__":
    key = jax.random.PRNGKey(0)
    k_param, k_x = jax.random.split(key)

    n_actions = 6                         # e.g. Atari Pong action space
    params = init_params(k_param, n_actions)
    prepped = prepare_params(params)

    # batch=2; spatial must be 84x84 so nn.Flatten yields 3136 = 64*7*7.
    x = jax.random.uniform(k_x, (2, 4, 84, 84), jnp.float32, 0.0, 255.0)

    q = qnetwork_forward(prepped, x, n_actions=n_actions)
    q = jax.block_until_ready(q)
    assert q.shape == (2, n_actions) and q.dtype == jnp.float32
    print("KERNEL_OK")
</pallas_src>

<mosaic_0001>
module attributes {stable_mosaic.version = 11 : i64} {
  func.func @_conv_gemm_kernel(%arg0: i32, %arg1: memref<32x256xbf16, #tpu.memory_space<vmem>>, %arg2: memref<256x512xf32, #tpu.memory_space<vmem>>, %arg3: memref<32x1xf32, #tpu.memory_space<vmem>>, %arg4: memref<32x512xf32, #tpu.memory_space<vmem>>) attributes {dimension_semantics = [#tpu.dimension_semantics<parallel>], iteration_bounds = array<i64: 2>, scalar_prefetch = 0 : i64, scratch_operands = 0 : i64, tpu.core_type = #tpu.core_type<tc>, window_params = [{pipeline_mode = #tpu.pipeline_mode<synchronous>, transform_indices = @transform_0, window_bounds = array<i64: 32, 256>}, {transform_indices = @transform_1, window_bounds = array<i64: 256, 512>}, {pipeline_mode = #tpu.pipeline_mode<synchronous>, transform_indices = @transform_2, window_bounds = array<i64: 32, 1>}, {transform_indices = @transform_3, window_bounds = array<i64: 32, 512>}]} {
    %c0 = arith.constant 0 : index
    %c0_0 = arith.constant 0 : index
    %0 = vector.load %arg1[%c0, %c0_0] : memref<32x256xbf16, #tpu.memory_space<vmem>>, vector<32x256xbf16>
    %c0_1 = arith.constant 0 : index
    %c0_2 = arith.constant 0 : index
    %1 = vector.load %arg2[%c0_1, %c0_2] : memref<256x512xf32, #tpu.memory_space<vmem>>, vector<256x512xf32>
    %2 = arith.truncf %1 : vector<256x512xf32> to vector<256x512xbf16>
    %cst = arith.constant dense<0.000000e+00> : vector<32x512xf32>
    %3 = tpu.matmul %0, %2, %cst {dimension_numbers = #tpu.dot_dimension_numbers<[1], [0], [0], [1], [0, 0, 1, 1], [], []>} : vector<32x256xbf16>, vector<256x512xbf16>, vector<32x512xf32> -> vector<32x512xf32>
    %c0_3 = arith.constant 0 : index
    %c0_4 = arith.constant 0 : index
    %4 = vector.load %arg3[%c0_3, %c0_4] : memref<32x1xf32, #tpu.memory_space<vmem>>, vector<32x1xf32>
    %5 = vector.broadcast %4 : vector<32x1xf32> to vector<32x512xf32>
    %6 = arith.addf %3, %5 : vector<32x512xf32>
    %cst_5 = arith.constant 0.000000e+00 : f32
    %7 = vector.broadcast %cst_5 : f32 to vector<32x512xf32>
    %8 = arith.maximumf %6, %7 : vector<32x512xf32>
    %c0_6 = arith.constant 0 : index
    %c0_7 = arith.constant 0 : index
    %9 = vector.load %arg4[%c0_6, %c0_7] : memref<32x512xf32, #tpu.memory_space<vmem>>, vector<32x512xf32>
    tpu.vector_store %arg4[%c0_6, %c0_7], %8 {strides = array<i32>} : memref<32x512xf32, #tpu.memory_space<vmem>>, vector<32x512xf32>,
    return
  }
  func.func @transform_0(%arg0: i32) -> (i32, i32) {
    %c0_i32 = arith.constant 0 : i32
    %c0_i32_0 = arith.constant 0 : i32
    %c0_i32_1 = arith.constant 0 : i32
    return %c0_i32, %c0_i32_0 : i32, i32
  }
  func.func @transform_1(%arg0: i32) -> (i32, i32) {
    %c0_i32 = arith.constant 0 : i32
    %c0_i32_0 = arith.constant 0 : i32
    return %c0_i32, %arg0 : i32, i32
  }
  func.func @transform_2(%arg0: i32) -> (i32, i32) {
    %c0_i32 = arith.constant 0 : i32
    %c0_i32_0 = arith.constant 0 : i32
    %c0_i32_1 = arith.constant 0 : i32
    return %c0_i32, %c0_i32_0 : i32, i32
  }
  func.func @transform_3(%arg0: i32) -> (i32, i32) {
    %c0_i32 = arith.constant 0 : i32
    %c0_i32_0 = arith.constant 0 : i32
    return %c0_i32, %arg0 : i32, i32
  }
}

module attributes {stable_mosaic.version = 11 : i64} {
  func.func @_conv_gemm_kernel(%arg0: i32, %arg1: memref<64x512xbf16, #tpu.memory_space<vmem>>, %arg2: memref<512x162xf32, #tpu.memory_space<vmem>>, %arg3: memref<64x1xf32, #tpu.memory_space<vmem>>, %arg4: memref<64x162xf32, #tpu.memory_space<vmem>>) attributes {dimension_semantics = [#tpu.dimension_semantics<parallel>], iteration_bounds = array<i64: 1>, scalar_prefetch = 0 : i64, scratch_operands = 0 : i64, tpu.core_type = #tpu.core_type<tc>, window_params = [{pipeline_mode = #tpu.pipeline_mode<synchronous>, transform_indices = @transform_0, window_bounds = array<i64: 64, 512>}, {transform_indices = @transform_1, window_bounds = array<i64: 512, 162>}, {pipeline_mode = #tpu.pipeline_mode<synchronous>, transform_indices = @transform_2, window_bounds = array<i64: 64, 1>}, {transform_indices = @transform_3, window_bounds = array<i64: 64, 162>}]} {
    %c0 = arith.constant 0 : index
    %c0_0 = arith.constant 0 : index
    %0 = vector.load %arg1[%c0, %c0_0] : memref<64x512xbf16, #tpu.memory_space<vmem>>, vector<64x512xbf16>
    %c0_1 = arith.constant 0 : index
    %c0_2 = arith.constant 0 : index
    %1 = vector.load %arg2[%c0_1, %c0_2] : memref<512x162xf32, #tpu.memory_space<vmem>>, vector<512x162xf32>
    %2 = arith.truncf %1 : vector<512x162xf32> to vector<512x162xbf16>
    %cst = arith.constant dense<0.000000e+00> : vector<64x162xf32>
    %3 = tpu.matmul %0, %2, %cst {dimension_numbers = #tpu.dot_dimension_numbers<[1], [0], [0], [1], [0, 0, 1, 1], [], []>} : vector<64x512xbf16>, vector<512x162xbf16>, vector<64x162xf32> -> vector<64x162xf32>
    %c0_3 = arith.constant 0 : index
    %c0_4 = arith.constant 0 : index
    %4 = vector.load %arg3[%c0_3, %c0_4] : memref<64x1xf32, #tpu.memory_space<vmem>>, vector<64x1xf32>
    %5 = vector.broadcast %4 : vector<64x1xf32> to vector<64x162xf32>
    %6 = arith.addf %3, %5 : vector<64x162xf32>
    %cst_5 = arith.constant 0.000000e+00 : f32
    %7 = vector.broadcast %cst_5 : f32 to vector<64x162xf32>
    %8 = arith.maximumf %6, %7 : vector<64x162xf32>
    %c0_6 = arith.constant 0 : index
    %c0_7 = arith.constant 0 : index
    %9 = vector.load %arg4[%c0_6, %c0_7] : memref<64x162xf32, #tpu.memory_space<vmem>>, vector<64x162xf32>
    tpu.vector_store %arg4[%c0_6, %c0_7], %8 {strides = array<i32>} : memref<64x162xf32, #tpu.memory_space<vmem>>, vector<64x162xf32>,
    return
  }
  func.func @transform_0(%arg0: i32) -> (i32, i32) {
    %c0_i32 = arith.constant 0 : i32
    %c0_i32_0 = arith.constant 0 : i32
    %c0_i32_1 = arith.constant 0 : i32
    return %c0_i32, %c0_i32_0 : i32, i32
  }
  func.func @transform_1(%arg0: i32) -> (i32, i32) {
    %c0_i32 = arith.constant 0 : i32
    %c0_i32_0 = arith.constant 0 : i32
    return %c0_i32, %arg0 : i32, i32
  }
  func.func @transform_2(%arg0: i32) -> (i32, i32) {
    %c0_i32 = arith.constant 0 : i32
    %c0_i32_0 = arith.constant 0 : i32
    %c0_i32_1 = arith.constant 0 : i32
    return %c0_i32, %c0_i32_0 : i32, i32
  }
  func.func @transform_3(%arg0: i32) -> (i32, i32) {
    %c0_i32 = arith.constant 0 : i32
    %c0_i32_0 = arith.constant 0 : i32
    return %c0_i32, %arg0 : i32, i32
  }
}

module attributes {stable_mosaic.version = 11 : i64} {
  func.func @_conv_gemm_kernel(%arg0: i32, %arg1: memref<64x576xbf16, #tpu.memory_space<vmem>>, %arg2: memref<576x98xf32, #tpu.memory_space<vmem>>, %arg3: memref<64x1xf32, #tpu.memory_space<vmem>>, %arg4: memref<64x98xf32, #tpu.memory_space<vmem>>) attributes {dimension_semantics = [#tpu.dimension_semantics<parallel>], iteration_bounds = array<i64: 1>, scalar_prefetch = 0 : i64, scratch_operands = 0 : i64, tpu.core_type = #tpu.core_type<tc>, window_params = [{pipeline_mode = #tpu.pipeline_mode<synchronous>, transform_indices = @transform_0, window_bounds = array<i64: 64, 576>}, {transform_indices = @transform_1, window_bounds = array<i64: 576, 98>}, {pipeline_mode = #tpu.pipeline_mode<synchronous>, transform_indices = @transform_2, window_bounds = array<i64: 64, 1>}, {transform_indices = @transform_3, window_bounds = array<i64: 64, 98>}]} {
    %c0 = arith.constant 0 : index
    %c0_0 = arith.constant 0 : index
    %0 = vector.load %arg1[%c0, %c0_0] : memref<64x576xbf16, #tpu.memory_space<vmem>>, vector<64x576xbf16>
    %c0_1 = arith.constant 0 : index
    %c0_2 = arith.constant 0 : index
    %1 = vector.load %arg2[%c0_1, %c0_2] : memref<576x98xf32, #tpu.memory_space<vmem>>, vector<576x98xf32>
    %2 = arith.truncf %1 : vector<576x98xf32> to vector<576x98xbf16>
    %cst = arith.constant dense<0.000000e+00> : vector<64x98xf32>
    %3 = tpu.matmul %0, %2, %cst {dimension_numbers = #tpu.dot_dimension_numbers<[1], [0], [0], [1], [0, 0, 1, 1], [], []>} : vector<64x576xbf16>, vector<576x98xbf16>, vector<64x98xf32> -> vector<64x98xf32>
    %c0_3 = arith.constant 0 : index
    %c0_4 = arith.constant 0 : index
    %4 = vector.load %arg3[%c0_3, %c0_4] : memref<64x1xf32, #tpu.memory_space<vmem>>, vector<64x1xf32>
    %5 = vector.broadcast %4 : vector<64x1xf32> to vector<64x98xf32>
    %6 = arith.addf %3, %5 : vector<64x98xf32>
    %cst_5 = arith.constant 0.000000e+00 : f32
    %7 = vector.broadcast %cst_5 : f32 to vector<64x98xf32>
    %8 = arith.maximumf %6, %7 : vector<64x98xf32>
    %c0_6 = arith.constant 0 : index
    %c0_7 = arith.constant 0 : index
    %9 = vector.load %arg4[%c0_6, %c0_7] : memref<64x98xf32, #tpu.memory_space<vmem>>, vector<64x98xf32>
    tpu.vector_store %arg4[%c0_6, %c0_7], %8 {strides = array<i32>} : memref<64x98xf32, #tpu.memory_space<vmem>>, vector<64x98xf32>,
    return
  }
  func.func @transform_0(%arg0: i32) -> (i32, i32) {
    %c0_i32 = arith.constant 0 : i32
    %c0_i32_0 = arith.constant 0 : i32
    %c0_i32_1 = arith.constant 0 : i32
    return %c0_i32, %c0_i32_0 : i32, i32
  }
  func.func @transform_1(%arg0: i32) -> (i32, i32) {
    %c0_i32 = arith.constant 0 : i32
    %c0_i32_0 = arith.constant 0 : i32
    return %c0_i32, %arg0 : i32, i32
  }
  func.func @transform_2(%arg0: i32) -> (i32, i32) {
    %c0_i32 = arith.constant 0 : i32
    %c0_i32_0 = arith.constant 0 : i32
    %c0_i32_1 = arith.constant 0 : i32
    return %c0_i32, %c0_i32_0 : i32, i32
  }
  func.func @transform_3(%arg0: i32) -> (i32, i32) {
    %c0_i32 = arith.constant 0 : i32
    %c0_i32_0 = arith.constant 0 : i32
    return %c0_i32, %arg0 : i32, i32
  }
}

module attributes {stable_mosaic.version = 11 : i64} {
  func.func @_fc_fused_kernel(%arg0: i32, %arg1: memref<2x3200xf32, #tpu.memory_space<vmem>>, %arg2: memref<3200x512xbf16, #tpu.memory_space<vmem>>, %arg3: memref<1x512xf32, #tpu.memory_space<vmem>>, %arg4: memref<512x128xbf16, #tpu.memory_space<vmem>>, %arg5: memref<1x128xf32, #tpu.memory_space<vmem>>, %arg6: memref<2x128xf32, #tpu.memory_space<vmem>>) attributes {dimension_semantics = [#tpu.dimension_semantics<parallel>], iteration_bounds = array<i64: 1>, scalar_prefetch = 0 : i64, scratch_operands = 0 : i64, tpu.core_type = #tpu.core_type<tc>, window_params = [{transform_indices = @transform_0, window_bounds = array<i64: 2, 3200>}, {pipeline_mode = #tpu.pipeline_mode<synchronous>, transform_indices = @transform_1, window_bounds = array<i64: 3200, 512>}, {pipeline_mode = #tpu.pipeline_mode<synchronous>, transform_indices = @transform_2, window_bounds = array<i64: 1, 512>}, {pipeline_mode = #tpu.pipeline_mode<synchronous>, transform_indices = @transform_3, window_bounds = array<i64: 512, 128>}, {pipeline_mode = #tpu.pipeline_mode<synchronous>, transform_indices = @transform_4, window_bounds = array<i64: 1, 128>}, {transform_indices = @transform_5, window_bounds = array<i64: 2, 128>}]} {
    %c0 = arith.constant 0 : index
    %c0_0 = arith.constant 0 : index
    %0 = vector.load %arg1[%c0, %c0_0] : memref<2x3200xf32, #tpu.memory_space<vmem>>, vector<2x3200xf32>
    %1 = arith.truncf %0 : vector<2x3200xf32> to vector<2x3200xbf16>
    %c0_1 = arith.constant 0 : index
    %c0_2 = arith.constant 0 : index
    %2 = vector.load %arg2[%c0_1, %c0_2] : memref<3200x512xbf16, #tpu.memory_space<vmem>>, vector<3200x512xbf16>
    %cst = arith.constant dense<0.000000e+00> : vector<2x512xf32>
    %3 = tpu.matmul %1, %2, %cst {dimension_numbers = #tpu.dot_dimension_numbers<[1], [0], [0], [1], [0, 0, 1, 1], [], []>} : vector<2x3200xbf16>, vector<3200x512xbf16>, vector<2x512xf32> -> vector<2x512xf32>
    %c0_3 = arith.constant 0 : index
    %c0_4 = arith.constant 0 : index
    %4 = vector.load %arg3[%c0_3, %c0_4] : memref<1x512xf32, #tpu.memory_space<vmem>>, vector<1x512xf32>
    %5 = vector.broadcast %4 : vector<1x512xf32> to vector<2x512xf32>
    %6 = arith.addf %3, %5 : vector<2x512xf32>
    %cst_5 = arith.constant 0.000000e+00 : f32
    %7 = vector.broadcast %cst_5 : f32 to vector<2x512xf32>
    %8 = arith.maximumf %6, %7 : vector<2x512xf32>
    %9 = arith.truncf %8 : vector<2x512xf32> to vector<2x512xbf16>
    %c0_6 = arith.constant 0 : index
    %c0_7 = arith.constant 0 : index
    %10 = vector.load %arg4[%c0_6, %c0_7] : memref<512x128xbf16, #tpu.memory_space<vmem>>, vector<512x128xbf16>
    %cst_8 = arith.constant dense<0.000000e+00> : vector<2x128xf32>
    %11 = tpu.matmul %9, %10, %cst_8 {dimension_numbers = #tpu.dot_dimension_numbers<[1], [0], [0], [1], [0, 0, 1, 1], [], []>} : vector<2x512xbf16>, vector<512x128xbf16>, vector<2x128xf32> -> vector<2x128xf32>
    %c0_9 = arith.constant 0 : index
    %c0_10 = arith.constant 0 : index
    %12 = vector.load %arg5[%c0_9, %c0_10] : memref<1x128xf32, #tpu.memory_space<vmem>>, vector<1x128xf32>
    %13 = vector.broadcast %12 : vector<1x128xf32> to vector<2x128xf32>
    %14 = arith.addf %11, %13 : vector<2x128xf32>
    %c0_11 = arith.constant 0 : index
    %c0_12 = arith.constant 0 : index
    %15 = vector.load %arg6[%c0_11, %c0_12] : memref<2x128xf32, #tpu.memory_space<vmem>>, vector<2x128xf32>
    tpu.vector_store %arg6[%c0_11, %c0_12], %14 {strides = array<i32>} : memref<2x128xf32, #tpu.memory_space<vmem>>, vector<2x128xf32>,
    return
  }
  func.func @transform_0(%arg0: i32) -> (i32, i32) {
    %c0_i32 = arith.constant 0 : i32
    %c0_i32_0 = arith.constant 0 : i32
    return %arg0, %c0_i32 : i32, i32
  }
  func.func @transform_1(%arg0: i32) -> (i32, i32) {
    %c0_i32 = arith.constant 0 : i32
    %c0_i32_0 = arith.constant 0 : i32
    %c0_i32_1 = arith.constant 0 : i32
    return %c0_i32, %c0_i32_0 : i32, i32
  }
  func.func @transform_2(%arg0: i32) -> (i32, i32) {
    %c0_i32 = arith.constant 0 : i32
    %c0_i32_0 = arith.constant 0 : i32
    %c0_i32_1 = arith.constant 0 : i32
    return %c0_i32, %c0_i32_0 : i32, i32
  }
  func.func @transform_3(%arg0: i32) -> (i32, i32) {
    %c0_i32 = arith.constant 0 : i32
    %c0_i32_0 = arith.constant 0 : i32
    %c0_i32_1 = arith.constant 0 : i32
    return %c0_i32, %c0_i32_0 : i32, i32
  }
  func.func @transform_4(%arg0: i32) -> (i32, i32) {
    %c0_i32 = arith.constant 0 : i32
    %c0_i32_0 = arith.constant 0 : i32
    %c0_i32_1 = arith.constant 0 : i32
    return %c0_i32, %c0_i32_0 : i32, i32
  }
  func.func @transform_5(%arg0: i32) -> (i32, i32) {
    %c0_i32 = arith.constant 0 : i32
    %c0_i32_0 = arith.constant 0 : i32
    return %arg0, %c0_i32 : i32, i32
  }
}

</mosaic_0001>

<llo_original>
// kernel: qnetwork_forward.4
$region0: #{qnetwork_forward.4}
  #allocation0 [shape = 'u32[]', space=smem, size = 0x4, offset = 0x4, fixed_abs, tag = 'smem constant byte address 0x4 - core index']
  #allocation1 [shape = 'u32[144,128]{1,0:T(1,128)}', space=vmem, size = 0x12000, scoped, tag = 'internal scratch']
  %s0 = inlined_call_operand.vmem [shape: bf16[32,256], index: 0, kind: input, shape index: {}]
  %s1 = inlined_call_operand.vmem [shape: f32[256,800], index: 1, kind: input, shape index: {}]
  %s2 = inlined_call_operand.vmem [shape: f32[32,1], index: 2, kind: input, shape index: {}]
  %s3 = inlined_call_operand.vmem [shape: f32[32,800], index: 3, kind: output, shape index: {}]
  %s4 = sld [smem:[#allocation0]]
  $region173: #{qnetwork_forward.4} parent=0
    _
  %s6 = ssub.s32 1, %s4
  %s7 = scalar_select 0, %s6, %s4
  $region1: #{qnetwork_forward.4} parent=0
    #allocation2 [shape = 'u8[1048576]{0}', space=vmem, size = 0x100000, scoped, tag = 'input window, operand 1']
    #allocation3 [shape = 'u8[131072]{0}', space=vmem, size = 0x20000, scoped, tag = 'output window, operand 0']
    loop: start=0, step=1, limit=4
    $region2: #{qnetwork_forward.4} parent=1 // loop_pre_header
      _
    $region3: #{qnetwork_forward.4} parent=1 // loop_header
      %s9 = sphi 0, %s13
      %p10 = scmp.ge.s32.totalorder %s9, 4
      %s17 = sphi 0, %s17
      %s19 = sphi 0, %s17
      %s20 = sphi 0, %s19
      %s34 = sphi 0, %s20
      %s40 = sphi 0, %s42
      %s43 = sphi 0, %s40
      %s44 = sphi 0, %s43
      %s60 = sphi 0, %s44
      %s64 = sphi 0, %s64
      %s66 = sphi 0, %s64
      %s67 = sphi 0, %s66
      %s81 = sphi 0, %s67
      %s87 = sphi 0, %s89
      %s90 = sphi 0, %s87
      %s91 = sphi 0, %s90
      %s107 = sphi 0, %s91
    $region4: #{qnetwork_forward.4} parent=1 // loop_header_branch
      %12 = sbr.rel (%p10) target = $region8
    $region5: #{qnetwork_forward.4} parent=1 // loop_body
      %s14 = ssub.s32 %s9, 1
      %s15 = ssub.s32 %s9, 2
      %s16 = sadd.s32 %s9, 1
      %s18 = sadd.s32 %s17, 1
      %p21 = scmp.eq.s32.totalorder %s9, 1
      %p22 = scmp.ne.s32.totalorder %s17, %s19
      %p23 = scmp.eq.s32.totalorder %s9, 0
      %p24 = por %p22, %p23
      %p25 = scmp.ne.s32.totalorder %s17, %s19
      %p26 = scmp.eq.s32.totalorder %s14, 1
      %p27 = por %p25, %p26
      %p28 = scmp.ne.s32.totalorder %s19, %s20
      %p29 = scmp.eq.s32.totalorder %s14, 0
      %p30 = por %p28, %p29
      %p31 = scmp.ne.s32.totalorder %s19, %s20
      %p32 = scmp.eq.s32.totalorder %s15, 1
      %p33 = por %p31, %p32
      %p35 = scmp.ne.s32.totalorder %s20, %s34
      %p36 = scmp.eq.s32.totalorder %s15, 0
      %p37 = por %p35, %p36
      %s38 = ssub.s32 %s9, %s16
      %p39 = scmp.eq.s32.totalorder %s38, 0
      %s41 = sadd.s32 %s40, 1
      %s42 = scalar_select %p39, %s40, %s41
      %p45 = pneg %p39
      %p46 = scmp.eq.s32.totalorder %s9, 1
      %p47 = por %p45, %p46
      %p48 = scmp.ne.s32.totalorder %s40, %s43
      %p49 = scmp.eq.s32.totalorder %s9, 0
      %p50 = por %p48, %p49
      %p51 = scmp.ne.s32.totalorder %s40, %s43
      %p52 = scmp.eq.s32.totalorder %s14, 1
      %p53 = por %p51, %p52
      %p54 = scmp.ne.s32.totalorder %s43, %s44
      %p55 = scmp.eq.s32.totalorder %s14, 0
      %p56 = por %p54, %p55
      %p57 = scmp.ne.s32.totalorder %s43, %s44
      %p58 = scmp.eq.s32.totalorder %s15, 1
      %p59 = por %p57, %p58
      %p61 = scmp.ne.s32.totalorder %s44, %s60
      %p62 = scmp.eq.s32.totalorder %s15, 0
      %p63 = por %p61, %p62
      %s65 = sadd.s32 %s64, 1
      %p68 = scmp.eq.s32.totalorder %s9, 1
      %p69 = scmp.ne.s32.totalorder %s64, %s66
      %p70 = scmp.eq.s32.totalorder %s9, 0
      %p71 = por %p69, %p70
      %p72 = scmp.ne.s32.totalorder %s64, %s66
      %p73 = scmp.eq.s32.totalorder %s14, 1
      %p74 = por %p72, %p73
      %p75 = scmp.ne.s32.totalorder %s66, %s67
      %p76 = scmp.eq.s32.totalorder %s14, 0
      %p77 = por %p75, %p76
      %p78 = scmp.ne.s32.totalorder %s66, %s67
      %p79 = scmp.eq.s32.totalorder %s15, 1
      %p80 = por %p78, %p79
      %p82 = scmp.ne.s32.totalorder %s67, %s81
      %p83 = scmp.eq.s32.totalorder %s15, 0
      %p84 = por %p82, %p83
      %s85 = ssub.s32 %s9, %s16
      %p86 = scmp.eq.s32.totalorder %s85, 0
      %s88 = sadd.s32 %s87, 1
      %s89 = scalar_select %p86, %s87, %s88
      %p92 = pneg %p86
      %p93 = scmp.eq.s32.totalorder %s9, 1
      %p94 = por %p92, %p93
      %p95 = scmp.ne.s32.totalorder %s87, %s90
      %p96 = scmp.eq.s32.totalorder %s9, 0
      %p97 = por %p95, %p96
      %p98 = scmp.ne.s32.totalorder %s87, %s90
      %p99 = scmp.eq.s32.totalorder %s14, 1
      %p100 = por %p98, %p99
      %p101 = scmp.ne.s32.totalorder %s90, %s91
      %p102 = scmp.eq.s32.totalorder %s14, 0
      %p103 = por %p101, %p102
      %p104 = scmp.ne.s32.totalorder %s90, %s91
      %p105 = scmp.eq.s32.totalorder %s15, 1
      %p106 = por %p104, %p105
      %p108 = scmp.ne.s32.totalorder %s91, %s107
      %p109 = scmp.eq.s32.totalorder %s15, 0
      %p110 = por %p108, %p109
      %p111 = scmp.le.s32.totalorder 1, %s9
      %p112 = scmp.lt.s32.totalorder %s9, 3
      %p113 = pnand %p111, %p112
      %p114 = pneg %p113
      // Predicated region
      $region9: #{qnetwork_forward.4} parent=5 // pred_check
        _
      $region10: #{qnetwork_forward.4} parent=5 // pred_check_branch
        %116 = sbr.rel (%p113) target = $region12
      $region11: #{qnetwork_forward.4} parent=5 // pred_region
        %s117 = ssub.s32 %s9, 1
        // Predicated region
        $region13: #{qnetwork_forward.4} parent=11 // pred_check
          %p118 = pneg %p30
        $region14: #{qnetwork_forward.4} parent=11 // pred_check_branch
          %120 = sbr.rel (%p118) target = $region16
        $region15: #{qnetwork_forward.4} parent=11 // pred_region
          _
        $region16: #{qnetwork_forward.4} parent=11 // pred_fallthru
          _
        // Predicated region
        $region17: #{qnetwork_forward.4} parent=11 // pred_check
          %p121 = pneg %p77
        $region18: #{qnetwork_forward.4} parent=11 // pred_check_branch
          %123 = sbr.rel (%p121) target = $region20
        $region19: #{qnetwork_forward.4} parent=11 // pred_region
          _
        $region20: #{qnetwork_forward.4} parent=11 // pred_fallthru
          _
      $region12: #{qnetwork_forward.4} parent=5 // pred_fallthru
        _
      %p124 = scmp.lt.s32.totalorder %s9, 2
      // Predicated region
      $region21: #{qnetwork_forward.4} parent=5 // pred_check
        %p125 = pneg %p124
      $region22: #{qnetwork_forward.4} parent=5 // pred_check_branch
        %127 = sbr.rel (%p125) target = $region24
      $region23: #{qnetwork_forward.4} parent=5 // pred_region
        // Predicated region
        $region25: #{qnetwork_forward.4} parent=23 // pred_check
          %p128 = pneg %p50
        $region26: #{qnetwork_forward.4} parent=23 // pred_check_branch
          %130 = sbr.rel (%p128) target = $region28
        $region27: #{qnetwork_forward.4} parent=23 // pred_region
          %s131 = sand.u32 %s40, 1
          %s132 = sand.u32 %s40, 1
          %s133 = smul.addr %s132, 1024
          %s134 = scalar_lea.vmem [#allocation2], %s133
          %s135 = smul.u32 4, %s9
          %s136 = ssub.s32 7, %s135
          %p137 = scmp.lt.s32.totalorder %s136, 4
          %s138 = scalar_select %p137, %s136, 4
          %s139 = smul.u32 4096, %s138
          %p140 = scmp.ne.s32.totalorder 0, %s139
          %s141 = smul.addr %s135, 8
          %s142 = scalar_lea.vmem %s1, %s141
          %s143 = smul.u32 %s138, 8
          // Predicated region
          $region29: #{qnetwork_forward.4} parent=27 // pred_check
            %p144 = pneg %p140
          $region30: #{qnetwork_forward.4} parent=27 // pred_check_branch
            %146 = sbr.rel (%p144) target = $region32
          $region31: #{qnetwork_forward.4} parent=27 // pred_region
            %p147 = scmp.lt.u32.totalorder %s143, 8
            %p148 = pneg %p147
            // Predicated region
            $region33: #{qnetwork_forward.4} parent=31 // pred_check
              _
            $region34: #{qnetwork_forward.4} parent=31 // pred_check_branch
              %150 = sbr.rel (%p147) target = $region36
            $region35: #{qnetwork_forward.4} parent=31 // pred_region
              %s227 = sand.u32 %s143, 7
              %p228 = scmp.eq.s32.totalorder %s227, 0
              // Predicated region
              $region48: #{qnetwork_forward.4} parent=35 // pred_check
                %p229 = pneg %p228
              $region49: #{qnetwork_forward.4} parent=35 // pred_check_branch
                %231 = sbr.rel (%p229) target = $region51
              $region50: #{qnetwork_forward.4} parent=35 // pred_region
                %s232 = sshrl.u32 %s143, 3
                %s233 = sshrl.u32 %s232, 1
                // While loop
                $region52: #{qnetwork_forward.4} parent=50 // loop_pre_header
                  _
                $region53: #{qnetwork_forward.4} parent=50 // loop_header
                  %s237 = sphi 0, %s239
                  %p238 = scmp.ge.s32.totalorder %s237, %s233
                  %s242 = sphi 0, %s375
                  %s243 = sphi %s142, %s378
                  %s244 = sphi %s134, %s379
                $region54: #{qnetwork_forward.4} parent=50 // loop_header_branch
                  %241 = sbr.rel (%p238) target = $region58
                $region55: #{qnetwork_forward.4} parent=50 // loop_body
                  %v245 = vld [vmem:[%s243] sm:$0xff]
                  %246 = vst [vmem:[%s244] sm:$0xff] %v245
                  %v247 = vld [vmem:[%s243 + $0x8] sm:$0xff]
                  %248 = vst [vmem:[%s244 + $0x8] sm:$0xff] %v247
                  %v249 = vld [vmem:[%s243 + $0x38] sm:$0xff]
                  %250 = vst [vmem:[%s244 + $0x20] sm:$0xff] %v249
                  %v251 = vld [vmem:[%s243 + $0x40] sm:$0xff]
                  %252 = vst [vmem:[%s244 + $0x28] sm:$0xff] %v251
                  %v253 = vld [vmem:[%s243 + $0x70] sm:$0xff]
                  %254 = vst [vmem:[%s244 + $0x40] sm:$0xff] %v253
                  %v255 = vld [vmem:[%s243 + $0x78] sm:$0xff]
                  %256 = vst [vmem:[%s244 + $0x48] sm:$0xff] %v255
                  %v257 = vld [vmem:[%s243 + $0xa8] sm:$0xff]
                  %258 = vst [vmem:[%s244 + $0x60] sm:$0xff] %v257
                  %v259 = vld [vmem:[%s243 + $0xb0] sm:$0xff]
                  %260 = vst [vmem:[%s244 + $0x68] sm:$0xff] %v259
                  %v261 = vld [vmem:[%s243 + $0xe0] sm:$0xff]
                  %262 = vst [vmem:[%s244 + $0x80] sm:$0xff] %v261
                  %v263 = vld [vmem:[%s243 + $0xe8] sm:$0xff]
                  %264 = vst [vmem:[%s244 + $0x88] sm:$0xff] %v263
                  %v265 = vld [vmem:[%s243 + $0x118] sm:$0xff]
                  %266 = vst [vmem:[%s244 + $0xa0] sm:$0xff] %v265
                  %v267 = vld [vmem:[%s243 + $0x120] sm:$0xff]
                  %268 = vst [vmem:[%s244 + $0xa8] sm:$0xff] %v267
                  %v269 = vld [vmem:[%s243 + $0x150] sm:$0xff]
                  %270 = vst [vmem:[%s244 + $0xc0] sm:$0xff] %v269
                  %v271 = vld [vmem:[%s243 + $0x158] sm:$0xff]
                  %272 = vst [vmem:[%s244 + $0xc8] sm:$0xff] %v271
                  %v273 = vld [vmem:[%s243 + $0x188] sm:$0xff]
                  %274 = vst [vmem:[%s244 + $0xe0] sm:$0xff] %v273
                  %v275 = vld [vmem:[%s243 + $0x190] sm:$0xff]
                  %276 = vst [vmem:[%s244 + $0xe8] sm:$0xff] %v275
                  %v277 = vld [vmem:[%s243 + $0x1c0] sm:$0xff]
                  %278 = vst [vmem:[%s244 + $0x100] sm:$0xff] %v277
                  %v279 = vld [vmem:[%s243 + $0x1c8] sm:$0xff]
                  %280 = vst [vmem:[%s244 + $0x108] sm:$0xff] %v279
                  %v281 = vld [vmem:[%s243 + $0x1f8] sm:$0xff]
                  %282 = vst [vmem:[%s244 + $0x120] sm:$0xff] %v281
                  %v283 = vld [vmem:[%s243 + $0x200] sm:$0xff]
                  %284 = vst [vmem:[%s244 + $0x128] sm:$0xff] %v283
                  %v285 = vld [vmem:[%s243 + $0x230] sm:$0xff]
                  %286 = vst [vmem:[%s244 + $0x140] sm:$0xff] %v285
                  %v287 = vld [vmem:[%s243 + $0x238] sm:$0xff]
                  %288 = vst [vmem:[%s244 + $0x148] sm:$0xff] %v287
                  %v289 = vld [vmem:[%s243 + $0x268] sm:$0xff]
                  %290 = vst [vmem:[%s244 + $0x160] sm:$0xff] %v289
                  %v291 = vld [vmem:[%s243 + $0x270] sm:$0xff]
                  %292 = vst [vmem:[%s244 + $0x168] sm:$0xff] %v291
                  %v293 = vld [vmem:[%s243 + $0x2a0] sm:$0xff]
                  %294 = vst [vmem:[%s244 + $0x180] sm:$0xff] %v293
                  %v295 = vld [vmem:[%s243 + $0x2a8] sm:$0xff]
                  %296 = vst [vmem:[%s244 + $0x188] sm:$0xff] %v295
                  %v297 = vld [vmem:[%s243 + $0x2d8] sm:$0xff]
                  %298 = vst [vmem:[%s244 + $0x1a0] sm:$0xff] %v297
                  %v299 = vld [vmem:[%s243 + $0x2e0] sm:$0xff]
                  %300 = vst [vmem:[%s244 + $0x1a8] sm:$0xff] %v299
                  %v301 = vld [vmem:[%s243 + $0x310] sm:$0xff]
                  %302 = vst [vmem:[%s244 + $0x1c0] sm:$0xff] %v301
                  %v303 = vld [vmem:[%s243 + $0x318] sm:$0xff]
                  %304 = vst [vmem:[%s244 + $0x1c8] sm:$0xff] %v303
                  %v305 = vld [vmem:[%s243 + $0x348] sm:$0xff]
                  %306 = vst [vmem:[%s244 + $0x1e0] sm:$0xff] %v305
                  %v307 = vld [vmem:[%s243 + $0x350] sm:$0xff]
                  %308 = vst [vmem:[%s244 + $0x1e8] sm:$0xff] %v307
                  %v309 = vld [vmem:[%s243 + $0x380] sm:$0xff]
                  %310 = vst [vmem:[%s244 + $0x200] sm:$0xff] %v309
                  %v311 = vld [vmem:[%s243 + $0x388] sm:$0xff]
                  %312 = vst [vmem:[%s244 + $0x208] sm:$0xff] %v311
                  %v313 = vld [vmem:[%s243 + $0x3b8] sm:$0xff]
                  %314 = vst [vmem:[%s244 + $0x220] sm:$0xff] %v313
                  %v315 = vld [vmem:[%s243 + $0x3c0] sm:$0xff]
                  %316 = vst [vmem:[%s244 + $0x228] sm:$0xff] %v315
                  %v317 = vld [vmem:[%s243 + $0x3f0] sm:$0xff]
                  %318 = vst [vmem:[%s244 + $0x240] sm:$0xff] %v317
                  %v319 = vld [vmem:[%s243 + $0x3f8] sm:$0xff]
                  %320 = vst [vmem:[%s244 + $0x248] sm:$0xff] %v319
                  %v321 = vld [vmem:[%s243 + $0x428] sm:$0xff]
                  %322 = vst [vmem:[%s244 + $0x260] sm:$0xff] %v321
                  %v323 = vld [vmem:[%s243 + $0x430] sm:$0xff]
                  %324 = vst [vmem:[%s244 + $0x268] sm:$0xff] %v323
                  %v325 = vld [vmem:[%s243 + $0x460] sm:$0xff]
                  %326 = vst [vmem:[%s244 + $0x280] sm:$0xff] %v325
                  %v327 = vld [vmem:[%s243 + $0x468] sm:$0xff]
                  %328 = vst [vmem:[%s244 + $0x288] sm:$0xff] %v327
                  %v329 = vld [vmem:[%s243 + $0x498] sm:$0xff]
                  %330 = vst [vmem:[%s244 + $0x2a0] sm:$0xff] %v329
                  %v331 = vld [vmem:[%s243 + $0x4a0] sm:$0xff]
                  %332 = vst [vmem:[%s244 + $0x2a8] sm:$0xff] %v331
                  %v333 = vld [vmem:[%s243 + $0x4d0] sm:$0xff]
                  %334 = vst [vmem:[%s244 + $0x2c0] sm:$0xff] %v333
                  %v335 = vld [vmem:[%s243 + $0x4d8] sm:$0xff]
                  %336 = vst [vmem:[%s244 + $0x2c8] sm:$0xff] %v335
                  %v337 = vld [vmem:[%s243 + $0x508] sm:$0xff]
                  %338 = vst [vmem:[%s244 + $0x2e0] sm:$0xff] %v337
                  %v339 = vld [vmem:[%s243 + $0x510] sm:$0xff]
                  %340 = vst [vmem:[%s244 + $0x2e8] sm:$0xff] %v339
                  %v341 = vld [vmem:[%s243 + $0x540] sm:$0xff]
                  %342 = vst [vmem:[%s244 + $0x300] sm:$0xff] %v341
                  %v343 = vld [vmem:[%s243 + $0x548] sm:$0xff]
                  %344 = vst [vmem:[%s244 + $0x308] sm:$0xff] %v343
                  %v345 = vld [vmem:[%s243 + $0x578] sm:$0xff]
                  %346 = vst [vmem:[%s244 + $0x320] sm:$0xff] %v345
                  %v347 = vld [vmem:[%s243 + $0x580] sm:$0xff]
                  %348 = vst [vmem:[%s244 + $0x328] sm:$0xff] %v347
                  %v349 = vld [vmem:[%s243 + $0x5b0] sm:$0xff]
                  %350 = vst [vmem:[%s244 + $0x340] sm:$0xff] %v349
                  %v351 = vld [vmem:[%s243 + $0x5b8] sm:$0xff]
                  %352 = vst [vmem:[%s244 + $0x348] sm:$0xff] %v351
                  %v353 = vld [vmem:[%s243 + $0x5e8] sm:$0xff]
                  %354 = vst [vmem:[%s244 + $0x360] sm:$0xff] %v353
                  %v355 = vld [vmem:[%s243 + $0x5f0] sm:$0xff]
                  %356 = vst [vmem:[%s244 + $0x368] sm:$0xff] %v355
                  %v357 = vld [vmem:[%s243 + $0x620] sm:$0xff]
                  %358 = vst [vmem:[%s244 + $0x380] sm:$0xff] %v357
                  %v359 = vld [vmem:[%s243 + $0x628] sm:$0xff]
                  %360 = vst [vmem:[%s244 + $0x388] sm:$0xff] %v359
                  %v361 = vld [vmem:[%s243 + $0x658] sm:$0xff]
                  %362 = vst [vmem:[%s244 + $0x3a0] sm:$0xff] %v361
                  %v363 = vld [vmem:[%s243 + $0x660] sm:$0xff]
                  %364 = vst [vmem:[%s244 + $0x3a8] sm:$0xff] %v363
                  %v365 = vld [vmem:[%s243 + $0x690] sm:$0xff]
                  %366 = vst [vmem:[%s244 + $0x3c0] sm:$0xff] %v365
                  %v367 = vld [vmem:[%s243 + $0x698] sm:$0xff]
                  %368 = vst [vmem:[%s244 + $0x3c8] sm:$0xff] %v367
                  %v369 = vld [vmem:[%s243 + $0x6c8] sm:$0xff]
                  %370 = vst [vmem:[%s244 + $0x3e0] sm:$0xff] %v369
                  %v371 = vld [vmem:[%s243 + $0x6d0] sm:$0xff]
                  %372 = vst [vmem:[%s244 + $0x3e8] sm:$0xff] %v371
                  %s373 = sadd.s32 1, %s242
                  %p374 = scmp.ge.s32.totalorder %s373, %s233
                  %s375 = scalar_select %p374, 0, %s373
                  %s376 = smul.u32 %s375, 16
                  %s377 = smul.u32 %s375, 16
                  %s378 = scalar_lea.vmem %s142, %s376
                  %s379 = scalar_lea.vmem %s134, %s377 [#allocation2]
                $region56: #{qnetwork_forward.4} parent=50 // loop_footer
                  %s239 = sadd.s32 %s237, 1
                $region57: #{qnetwork_forward.4} parent=50 // loop_footer_branch
                  %236 = sbr.rel target = $region53
                $region58: #{qnetwork_forward.4} parent=50 // loop_exit
                  _
                %s380 = sshrl.u32 %s232, 1
                %s381 = sand.u32 %s232, 1
                %s382 = smul.u32 %s380, 2
                %s383 = smul.u32 128, %s382
                %s384 = sshra.s32 %s383, 4
                %s385 = scalar_lea.vmem %s142, %s384
                %s386 = smul.u32 128, %s382
                %s387 = sshra.s32 %s386, 4
                %s388 = scalar_lea.vmem %s134, %s387 [#allocation2]
                // While loop
                $region59: #{qnetwork_forward.4} parent=50 // loop_pre_header
                  _
                $region60: #{qnetwork_forward.4} parent=50 // loop_header
                  %s392 = sphi 0, %s394
                  %p393 = scmp.ge.s32.totalorder %s392, %s381
                  %s397 = sphi 0, %s466
                  %s398 = sphi %s385, %s469
                  %s399 = sphi %s388, %s470
                $region61: #{qnetwork_forward.4} parent=50 // loop_header_branch
                  %396 = sbr.rel (%p393) target = $region65
                $region62: #{qnetwork_forward.4} parent=50 // loop_body
                  %v400 = vld [vmem:[%s398] sm:$0xff]
                  %401 = vst [vmem:[%s399] sm:$0xff] %v400
                  %v402 = vld [vmem:[%s398 + $0x38] sm:$0xff]
                  %403 = vst [vmem:[%s399 + $0x20] sm:$0xff] %v402
                  %v404 = vld [vmem:[%s398 + $0x70] sm:$0xff]
                  %405 = vst [vmem:[%s399 + $0x40] sm:$0xff] %v404
                  %v406 = vld [vmem:[%s398 + $0xa8] sm:$0xff]
                  %407 = vst [vmem:[%s399 + $0x60] sm:$0xff] %v406
                  %v408 = vld [vmem:[%s398 + $0xe0] sm:$0xff]
                  %409 = vst [vmem:[%s399 + $0x80] sm:$0xff] %v408
                  %v410 = vld [vmem:[%s398 + $0x118] sm:$0xff]
                  %411 = vst [vmem:[%s399 + $0xa0] sm:$0xff] %v410
                  %v412 = vld [vmem:[%s398 + $0x150] sm:$0xff]
                  %413 = vst [vmem:[%s399 + $0xc0] sm:$0xff] %v412
                  %v414 = vld [vmem:[%s398 + $0x188] sm:$0xff]
                  %415 = vst [vmem:[%s399 + $0xe0] sm:$0xff] %v414
                  %v416 = vld [vmem:[%s398 + $0x1c0] sm:$0xff]
                  %417 = vst [vmem:[%s399 + $0x100] sm:$0xff] %v416
                  %v418 = vld [vmem:[%s398 + $0x1f8] sm:$0xff]
                  %419 = vst [vmem:[%s399 + $0x120] sm:$0xff] %v418
                  %v420 = vld [vmem:[%s398 + $0x230] sm:$0xff]
                  %421 = vst [vmem:[%s399 + $0x140] sm:$0xff] %v420
                  %v422 = vld [vmem:[%s398 + $0x268] sm:$0xff]
                  %423 = vst [vmem:[%s399 + $0x160] sm:$0xff] %v422
                  %v424 = vld [vmem:[%s398 + $0x2a0] sm:$0xff]
                  %425 = vst [vmem:[%s399 + $0x180] sm:$0xff] %v424
                  %v426 = vld [vmem:[%s398 + $0x2d8] sm:$0xff]
                  %427 = vst [vmem:[%s399 + $0x1a0] sm:$0xff] %v426
                  %v428 = vld [vmem:[%s398 + $0x310] sm:$0xff]
                  %429 = vst [vmem:[%s399 + $0x1c0] sm:$0xff] %v428
                  %v430 = vld [vmem:[%s398 + $0x348] sm:$0xff]
                  %431 = vst [vmem:[%s399 + $0x1e0] sm:$0xff] %v430
                  %v432 = vld [vmem:[%s398 + $0x380] sm:$0xff]
                  %433 = vst [vmem:[%s399 + $0x200] sm:$0xff] %v432
                  %v434 = vld [vmem:[%s398 + $0x3b8] sm:$0xff]
                  %435 = vst [vmem:[%s399 + $0x220] sm:$0xff] %v434
                  %v436 = vld [vmem:[%s398 + $0x3f0] sm:$0xff]
                  %437 = vst [vmem:[%s399 + $0x240] sm:$0xff] %v436
                  %v438 = vld [vmem:[%s398 + $0x428] sm:$0xff]
                  %439 = vst [vmem:[%s399 + $0x260] sm:$0xff] %v438
                  %v440 = vld [vmem:[%s398 + $0x460] sm:$0xff]
                  %441 = vst [vmem:[%s399 + $0x280] sm:$0xff] %v440
                  %v442 = vld [vmem:[%s398 + $0x498] sm:$0xff]
                  %443 = vst [vmem:[%s399 + $0x2a0] sm:$0xff] %v442
                  %v444 = vld [vmem:[%s398 + $0x4d0] sm:$0xff]
                  %445 = vst [vmem:[%s399 + $0x2c0] sm:$0xff] %v444
                  %v446 = vld [vmem:[%s398 + $0x508] sm:$0xff]
                  %447 = vst [vmem:[%s399 + $0x2e0] sm:$0xff] %v446
                  %v448 = vld [vmem:[%s398 + $0x540] sm:$0xff]
                  %449 = vst [vmem:[%s399 + $0x300] sm:$0xff] %v448
                  %v450 = vld [vmem:[%s398 + $0x578] sm:$0xff]
                  %451 = vst [vmem:[%s399 + $0x320] sm:$0xff] %v450
                  %v452 = vld [vmem:[%s398 + $0x5b0] sm:$0xff]
                  %453 = vst [vmem:[%s399 + $0x340] sm:$0xff] %v452
                  %v454 = vld [vmem:[%s398 + $0x5e8] sm:$0xff]
                  %455 = vst [vmem:[%s399 + $0x360] sm:$0xff] %v454
                  %v456 = vld [vmem:[%s398 + $0x620] sm:$0xff]
                  %457 = vst [vmem:[%s399 + $0x380] sm:$0xff] %v456
                  %v458 = vld [vmem:[%s398 + $0x658] sm:$0xff]
                  %459 = vst [vmem:[%s399 + $0x3a0] sm:$0xff] %v458
                  %v460 = vld [vmem:[%s398 + $0x690] sm:$0xff]
                  %461 = vst [vmem:[%s399 + $0x3c0] sm:$0xff] %v460
                  %v462 = vld [vmem:[%s398 + $0x6c8] sm:$0xff]
                  %463 = vst [vmem:[%s399 + $0x3e0] sm:$0xff] %v462
                  %s464 = sadd.s32 1, %s397
                  %p465 = scmp.ge.s32.totalorder %s464, %s381
                  %s466 = scalar_select %p465, 0, %s464
                  %s467 = smul.u32 %s466, 8
                  %s468 = smul.u32 %s466, 8
                  %s469 = scalar_lea.vmem %s385, %s467
                  %s470 = scalar_lea.vmem %s388, %s468 [#allocation2]
                $region63: #{qnetwork_forward.4} parent=50 // loop_footer
                  %s394 = sadd.s32 %s392, 1
                $region64: #{qnetwork_forward.4} parent=50 // loop_footer_branch
                  %391 = sbr.rel target = $region60
                $region65: #{qnetwork_forward.4} parent=50 // loop_exit
                  _
              $region51: #{qnetwork_forward.4} parent=35 // pred_fallthru
                _
              %p471 = pneg %p228
              // Predicated region
              $region66: #{qnetwork_forward.4} parent=35 // pred_check
                _
              $region67: #{qnetwork_forward.4} parent=35 // pred_check_branch
                %473 = sbr.rel (%p228) target = $region69
              $region68: #{qnetwork_forward.4} parent=35 // pred_region
                %s474 = sand.u32 %s143, 7
                %s475 = ssub.s32 %s143, %s474
                %s476 = scalar_lea.vmem %s142, %s475
                %s477 = ssub.s32 %s143, %s474
                %s478 = scalar_lea.vmem %s134, %s477 [#allocation2]
                %s479 = sshrl.u32 %s143, 3
                %s480 = sshrl.u32 %s479, 1
                // While loop
                $region70: #{qnetwork_forward.4} parent=68 // loop_pre_header
                  _
                $region71: #{qnetwork_forward.4} parent=68 // loop_header
                  %s484 = sphi 0, %s486
                  %p485 = scmp.ge.s32.totalorder %s484, %s480
                  %s489 = sphi 0, %s622
                  %s490 = sphi %s142, %s625
                  %s491 = sphi %s134, %s626
                $region72: #{qnetwork_forward.4} parent=68 // loop_header_branch
                  %488 = sbr.rel (%p485) target = $region76
                $region73: #{qnetwork_forward.4} parent=68 // loop_body
                  %v492 = vld [vmem:[%s490] sm:$0xff]
                  %493 = vst [vmem:[%s491] sm:$0xff] %v492
                  %v494 = vld [vmem:[%s490 + $0x8] sm:$0xff]
                  %495 = vst [vmem:[%s491 + $0x8] sm:$0xff] %v494
                  %v496 = vld [vmem:[%s490 + $0x38] sm:$0xff]
                  %497 = vst [vmem:[%s491 + $0x20] sm:$0xff] %v496
                  %v498 = vld [vmem:[%s490 + $0x40] sm:$0xff]
                  %499 = vst [vmem:[%s491 + $0x28] sm:$0xff] %v498
                  %v500 = vld [vmem:[%s490 + $0x70] sm:$0xff]
                  %501 = vst [vmem:[%s491 + $0x40] sm:$0xff] %v500
                  %v502 = vld [vmem:[%s490 + $0x78] sm:$0xff]
                  %503 = vst [vmem:[%s491 + $0x48] sm:$0xff] %v502
                  %v504 = vld [vmem:[%s490 + $0xa8] sm:$0xff]
                  %505 = vst [vmem:[%s491 + $0x60] sm:$0xff] %v504
                  %v506 = vld [vmem:[%s490 + $0xb0] sm:$0xff]
                  %507 = vst [vmem:[%s491 + $0x68] sm:$0xff] %v506
                  %v508 = vld [vmem:[%s490 + $0xe0] sm:$0xff]
                  %509 = vst [vmem:[%s491 + $0x80] sm:$0xff] %v508
                  %v510 = vld [vmem:[%s490 + $0xe8] sm:$0xff]
                  %511 = vst [vmem:[%s491 + $0x88] sm:$0xff] %v510
                  %v512 = vld [vmem:[%s490 + $0x118] sm:$0xff]
                  %513 = vst [vmem:[%s491 + $0xa0] sm:$0xff] %v512
                  %v514 = vld [vmem:[%s490 + $0x120] sm:$0xff]
                  %515 = vst [vmem:[%s491 + $0xa8] sm:$0xff] %v514
                  %v516 = vld [vmem:[%s490 + $0x150] sm:$0xff]
                  %517 = vst [vmem:[%s491 + $0xc0] sm:$0xff] %v516
                  %v518 = vld [vmem:[%s490 + $0x158] sm:$0xff]
                  %519 = vst [vmem:[%s491 + $0xc8] sm:$0xff] %v518
                  %v520 = vld [vmem:[%s490 + $0x188] sm:$0xff]
                  %521 = vst [vmem:[%s491 + $0xe0] sm:$0xff] %v520
                  %v522 = vld [vmem:[%s490 + $0x190] sm:$0xff]
                  %523 = vst [vmem:[%s491 + $0xe8] sm:$0xff] %v522
                  %v524 = vld [vmem:[%s490 + $0x1c0] sm:$0xff]
                  %525 = vst [vmem:[%s491 + $0x100] sm:$0xff] %v524
                  %v526 = vld [vmem:[%s490 + $0x1c8] sm:$0xff]
                  %527 = vst [vmem:[%s491 + $0x108] sm:$0xff] %v526
                  %v528 = vld [vmem:[%s490 + $0x1f8] sm:$0xff]
                  %529 = vst [vmem:[%s491 + $0x120] sm:$0xff] %v528
                  %v530 = vld [vmem:[%s490 + $0x200] sm:$0xff]
                  %531 = vst [vmem:[%s491 + $0x128] sm:$0xff] %v530
                  %v532 = vld [vmem:[%s490 + $0x230] sm:$0xff]
                  %533 = vst [vmem:[%s491 + $0x140] sm:$0xff] %v532
                  %v534 = vld [vmem:[%s490 + $0x238] sm:$0xff]
                  %535 = vst [vmem:[%s491 + $0x148] sm:$0xff] %v534
                  %v536 = vld [vmem:[%s490 + $0x268] sm:$0xff]
                  %537 = vst [vmem:[%s491 + $0x160] sm:$0xff] %v536
                  %v538 = vld [vmem:[%s490 + $0x270] sm:$0xff]
                  %539 = vst [vmem:[%s491 + $0x168] sm:$0xff] %v538
                  %v540 = vld [vmem:[%s490 + $0x2a0] sm:$0xff]
                  %541 = vst [vmem:[%s491 + $0x180] sm:$0xff] %v540
                  %v542 = vld [vmem:[%s490 + $0x2a8] sm:$0xff]
                  %543 = vst [vmem:[%s491 + $0x188] sm:$0xff] %v542
                  %v544 = vld [vmem:[%s490 + $0x2d8] sm:$0xff]
                  %545 = vst [vmem:[%s491 + $0x1a0] sm:$0xff] %v544
                  %v546 = vld [vmem:[%s490 + $0x2e0] sm:$0xff]
                  %547 = vst [vmem:[%s491 + $0x1a8] sm:$0xff] %v546
                  %v548 = vld [vmem:[%s490 + $0x310] sm:$0xff]
                  %549 = vst [vmem:[%s491 + $0x1c0] sm:$0xff] %v548
                  %v550 = vld [vmem:[%s490 + $0x318] sm:$0xff]
                  %551 = vst [vmem:[%s491 + $0x1c8] sm:$0xff] %v550
                  %v552 = vld [vmem:[%s490 + $0x348] sm:$0xff]
                  %553 = vst [vmem:[%s491 + $0x1e0] sm:$0xff] %v552
                  %v554 = vld [vmem:[%s490 + $0x350] sm:$0xff]
                  %555 = vst [vmem:[%s491 + $0x1e8] sm:$0xff] %v554
                  %v556 = vld [vmem:[%s490 + $0x380] sm:$0xff]
                  %557 = vst [vmem:[%s491 + $0x200] sm:$0xff] %v556
                  %v558 = vld [vmem:[%s490 + $0x388] sm:$0xff]
                  %559 = vst [vmem:[%s491 + $0x208] sm:$0xff] %v558
                  %v560 = vld [vmem:[%s490 + $0x3b8] sm:$0xff]
                  %561 = vst [vmem:[%s491 + $0x220] sm:$0xff] %v560
                  %v562 = vld [vmem:[%s490 + $0x3c0] sm:$0xff]
                  %563 = vst [vmem:[%s491 + $0x228] sm:$0xff] %v562
                  %v564 = vld [vmem:[%s490 + $0x3f0] sm:$0xff]
                  %565 = vst [vmem:[%s491 + $0x240] sm:$0xff] %v564
                  %v566 = vld [vmem:[%s490 + $0x3f8] sm:$0xff]
                  %567 = vst [vmem:[%s491 + $0x248] sm:$0xff] %v566
                  %v568 = vld [vmem:[%s490 + $0x428] sm:$0xff]
                  %569 = vst [vmem:[%s491 + $0x260] sm:$0xff] %v568
                  %v570 = vld [vmem:[%s490 + $0x430] sm:$0xff]
                  %571 = vst [vmem:[%s491 + $0x268] sm:$0xff] %v570
                  %v572 = vld [vmem:[%s490 + $0x460] sm:$0xff]
                  %573 = vst [vmem:[%s491 + $0x280] sm:$0xff] %v572
                  %v574 = vld [vmem:[%s490 + $0x468] sm:$0xff]
                  %575 = vst [vmem:[%s491 + $0x288] sm:$0xff] %v574
                  %v576 = vld [vmem:[%s490 + $0x498] sm:$0xff]
                  %577 = vst [vmem:[%s491 + $0x2a0] sm:$0xff] %v576
                  %v578 = vld [vmem:[%s490 + $0x4a0] sm:$0xff]
                  %579 = vst [vmem:[%s491 + $0x2a8] sm:$0xff] %v578
                  %v580 = vld [vmem:[%s490 + $0x4d0] sm:$0xff]
                  %581 = vst [vmem:[%s491 + $0x2c0] sm:$0xff] %v580
                  %v582 = vld [vmem:[%s490 + $0x4d8] sm:$0xff]
                  %583 = vst [vmem:[%s491 + $0x2c8] sm:$0xff] %v582
                  %v584 = vld [vmem:[%s490 + $0x508] sm:$0xff]
                  %585 = vst [vmem:[%s491 + $0x2e0] sm:$0xff] %v584
                  %v586 = vld [vmem:[%s490 + $0x510] sm:$0xff]
                  %587 = vst [vmem:[%s491 + $0x2e8] sm:$0xff] %v586
                  %v588 = vld [vmem:[%s490 + $0x540] sm:$0xff]
                  %589 = vst [vmem:[%s491 + $0x300] sm:$0xff] %v588
                  %v590 = vld [vmem:[%s490 + $0x548] sm:$0xff]
                  %591 = vst [vmem:[%s491 + $0x308] sm:$0xff] %v590
                  %v592 = vld [vmem:[%s490 + $0x578] sm:$0xff]
                  %593 = vst [vmem:[%s491 + $0x320] sm:$0xff] %v592
                  %v594 = vld [vmem:[%s490 + $0x580] sm:$0xff]
                  %595 = vst [vmem:[%s491 + $0x328] sm:$0xff] %v594
                  %v596 = vld [vmem:[%s490 + $0x5b0] sm:$0xff]
                  %597 = vst [vmem:[%s491 + $0x340] sm:$0xff] %v596
                  %v598 = vld [vmem:[%s490 + $0x5b8] sm:$0xff]
                  %599 = vst [vmem:[%s491 + $0x348] sm:$0xff] %v598
                  %v600 = vld [vmem:[%s490 + $0x5e8] sm:$0xff]
                  %601 = vst [vmem:[%s491 + $0x360] sm:$0xff] %v600
                  %v602 = vld [vmem:[%s490 + $0x5f0] sm:$0xff]
                  %603 = vst [vmem:[%s491 + $0x368] sm:$0xff] %v602
                  %v604 = vld [vmem:[%s490 + $0x620] sm:$0xff]
                  %605 = vst [vmem:[%s491 + $0x380] sm:$0xff] %v604
                  %v606 = vld [vmem:[%s490 + $0x628] sm:$0xff]
                  %607 = vst [vmem:[%s491 + $0x388] sm:$0xff] %v606
                  %v608 = vld [vmem:[%s490 + $0x658] sm:$0xff]
                  %609 = vst [vmem:[%s491 + $0x3a0] sm:$0xff] %v608
                  %v610 = vld [vmem:[%s490 + $0x660] sm:$0xff]
                  %611 = vst [vmem:[%s491 + $0x3a8] sm:$0xff] %v610
                  %v612 = vld [vmem:[%s490 + $0x690] sm:$0xff]
                  %613 = vst [vmem:[%s491 + $0x3c0] sm:$0xff] %v612
                  %v614 = vld [vmem:[%s490 + $0x698] sm:$0xff]
                  %615 = vst [vmem:[%s491 + $0x3c8] sm:$0xff] %v614
                  %v616 = vld [vmem:[%s490 + $0x6c8] sm:$0xff]
                  %617 = vst [vmem:[%s491 + $0x3e0] sm:$0xff] %v616
                  %v618 = vld [vmem:[%s490 + $0x6d0] sm:$0xff]
                  %619 = vst [vmem:[%s491 + $0x3e8] sm:$0xff] %v618
                  %s620 = sadd.s32 1, %s489
                  %p621 = scmp.ge.s32.totalorder %s620, %s480
                  %s622 = scalar_select %p621, 0, %s620
                  %s623 = smul.u32 %s622, 16
                  %s624 = smul.u32 %s622, 16
                  %s625 = scalar_lea.vmem %s142, %s623
                  %s626 = scalar_lea.vmem %s134, %s624 [#allocation2]
                $region74: #{qnetwork_forward.4} parent=68 // loop_footer
                  %s486 = sadd.s32 %s484, 1
                $region75: #{qnetwork_forward.4} parent=68 // loop_footer_branch
                  %483 = sbr.rel target = $region71
                $region76: #{qnetwork_forward.4} parent=68 // loop_exit
                  _
                %s627 = sshrl.u32 %s479, 1
                %s628 = sand.u32 %s479, 1
                %s629 = smul.u32 %s627, 2
                %s630 = smul.u32 128, %s629
                %s631 = sshra.s32 %s630, 4
                %s632 = scalar_lea.vmem %s142, %s631
                %s633 = smul.u32 128, %s629
                %s634 = sshra.s32 %s633, 4
                %s635 = scalar_lea.vmem %s134, %s634 [#allocation2]
                // While loop
                $region77: #{qnetwork_forward.4} parent=68 // loop_pre_header
                  _
                $region78: #{qnetwork_forward.4} parent=68 // loop_header
                  %s639 = sphi 0, %s641
                  %p640 = scmp.ge.s32.totalorder %s639, %s628
                  %s644 = sphi 0, %s713
                  %s645 = sphi %s632, %s716
                  %s646 = sphi %s635, %s717
                $region79: #{qnetwork_forward.4} parent=68 // loop_header_branch
                  %643 = sbr.rel (%p640) target = $region83
                $region80: #{qnetwork_forward.4} parent=68 // loop_body
                  %v647 = vld [vmem:[%s645] sm:$0xff]
                  %648 = vst [vmem:[%s646] sm:$0xff] %v647
                  %v649 = vld [vmem:[%s645 + $0x38] sm:$0xff]
                  %650 = vst [vmem:[%s646 + $0x20] sm:$0xff] %v649
                  %v651 = vld [vmem:[%s645 + $0x70] sm:$0xff]
                  %652 = vst [vmem:[%s646 + $0x40] sm:$0xff] %v651
                  %v653 = vld [vmem:[%s645 + $0xa8] sm:$0xff]
                  %654 = vst [vmem:[%s646 + $0x60] sm:$0xff] %v653
                  %v655 = vld [vmem:[%s645 + $0xe0] sm:$0xff]
                  %656 = vst [vmem:[%s646 + $0x80] sm:$0xff] %v655
                  %v657 = vld [vmem:[%s645 + $0x118] sm:$0xff]
                  %658 = vst [vmem:[%s646 + $0xa0] sm:$0xff] %v657
                  %v659 = vld [vmem:[%s645 + $0x150] sm:$0xff]
                  %660 = vst [vmem:[%s646 + $0xc0] sm:$0xff] %v659
                  %v661 = vld [vmem:[%s645 + $0x188] sm:$0xff]
                  %662 = vst [vmem:[%s646 + $0xe0] sm:$0xff] %v661
                  %v663 = vld [vmem:[%s645 + $0x1c0] sm:$0xff]
                  %664 = vst [vmem:[%s646 + $0x100] sm:$0xff] %v663
                  %v665 = vld [vmem:[%s645 + $0x1f8] sm:$0xff]
                  %666 = vst [vmem:[%s646 + $0x120] sm:$0xff] %v665
                  %v667 = vld [vmem:[%s645 + $0x230] sm:$0xff]
                  %668 = vst [vmem:[%s646 + $0x140] sm:$0xff] %v667
                  %v669 = vld [vmem:[%s645 + $0x268] sm:$0xff]
                  %670 = vst [vmem:[%s646 + $0x160] sm:$0xff] %v669
                  %v671 = vld [vmem:[%s645 + $0x2a0] sm:$0xff]
                  %672 = vst [vmem:[%s646 + $0x180] sm:$0xff] %v671
                  %v673 = vld [vmem:[%s645 + $0x2d8] sm:$0xff]
                  %674 = vst [vmem:[%s646 + $0x1a0] sm:$0xff] %v673
                  %v675 = vld [vmem:[%s645 + $0x310] sm:$0xff]
                  %676 = vst [vmem:[%s646 + $0x1c0] sm:$0xff] %v675
                  %v677 = vld [vmem:[%s645 + $0x348] sm:$0xff]
                  %678 = vst [vmem:[%s646 + $0x1e0] sm:$0xff] %v677
                  %v679 = vld [vmem:[%s645 + $0x380] sm:$0xff]
                  %680 = vst [vmem:[%s646 + $0x200] sm:$0xff] %v679
                  %v681 = vld [vmem:[%s645 + $0x3b8] sm:$0xff]
                  %682 = vst [vmem:[%s646 + $0x220] sm:$0xff] %v681
                  %v683 = vld [vmem:[%s645 + $0x3f0] sm:$0xff]
                  %684 = vst [vmem:[%s646 + $0x240] sm:$0xff] %v683
                  %v685 = vld [vmem:[%s645 + $0x428] sm:$0xff]
                  %686 = vst [vmem:[%s646 + $0x260] sm:$0xff] %v685
                  %v687 = vld [vmem:[%s645 + $0x460] sm:$0xff]
                  %688 = vst [vmem:[%s646 + $0x280] sm:$0xff] %v687
                  %v689 = vld [vmem:[%s645 + $0x498] sm:$0xff]
                  %690 = vst [vmem:[%s646 + $0x2a0] sm:$0xff] %v689
                  %v691 = vld [vmem:[%s645 + $0x4d0] sm:$0xff]
                  %692 = vst [vmem:[%s646 + $0x2c0] sm:$0xff] %v691
                  %v693 = vld [vmem:[%s645 + $0x508] sm:$0xff]
                  %694 = vst [vmem:[%s646 + $0x2e0] sm:$0xff] %v693
                  %v695 = vld [vmem:[%s645 + $0x540] sm:$0xff]
                  %696 = vst [vmem:[%s646 + $0x300] sm:$0xff] %v695
                  %v697 = vld [vmem:[%s645 + $0x578] sm:$0xff]
                  %698 = vst [vmem:[%s646 + $0x320] sm:$0xff] %v697
                  %v699 = vld [vmem:[%s645 + $0x5b0] sm:$0xff]
                  %700 = vst [vmem:[%s646 + $0x340] sm:$0xff] %v699
                  %v701 = vld [vmem:[%s645 + $0x5e8] sm:$0xff]
                  %702 = vst [vmem:[%s646 + $0x360] sm:$0xff] %v701
                  %v703 = vld [vmem:[%s645 + $0x620] sm:$0xff]
                  %704 = vst [vmem:[%s646 + $0x380] sm:$0xff] %v703
                  %v705 = vld [vmem:[%s645 + $0x658] sm:$0xff]
                  %706 = vst [vmem:[%s646 + $0x3a0] sm:$0xff] %v705
                  %v707 = vld [vmem:[%s645 + $0x690] sm:$0xff]
                  %708 = vst [vmem:[%s646 + $0x3c0] sm:$0xff] %v707
                  %v709 = vld [vmem:[%s645 + $0x6c8] sm:$0xff]
                  %710 = vst [vmem:[%s646 + $0x3e0] sm:$0xff] %v709
                  %s711 = sadd.s32 1, %s644
                  %p712 = scmp.ge.s32.totalorder %s711, %s628
                  %s713 = scalar_select %p712, 0, %s711
                  %s714 = smul.u32 %s713, 8
                  %s715 = smul.u32 %s713, 8
                  %s716 = scalar_lea.vmem %s632, %s714
                  %s717 = scalar_lea.vmem %s635, %s715 [#allocation2]
                $region81: #{qnetwork_forward.4} parent=68 // loop_footer
                  %s641 = sadd.s32 %s639, 1
                $region82: #{qnetwork_forward.4} parent=68 // loop_footer_branch
                  %638 = sbr.rel target = $region78
                $region83: #{qnetwork_forward.4} parent=68 // loop_exit
                  _
                %s718 = sshllo.u32 0, %s474
                loop: start=0, step=1, limit=1
                $region84: #{qnetwork_forward.4} parent=68 // loop_pre_header
                  _
                $region85: #{qnetwork_forward.4} parent=68 // loop_header
                  %s720 = sphi 0, %s724
                  %p721 = scmp.ge.s32.totalorder %s720, 1
                  %s725 = sphi %s476, %s476
                  %s726 = sphi %s478, %s478
                $region86: #{qnetwork_forward.4} parent=68 // loop_header_branch
                  %723 = sbr.rel (%p721) target = $region90
                $region87: #{qnetwork_forward.4} parent=68 // loop_body
                  %v727 = vld [vmem:[%s725] sm:%s718]
                  %728 = vst [vmem:[%s726] sm:%s718] %v727
                  %v729 = vld [vmem:[%s725 + $0x38] sm:%s718]
                  %730 = vst [vmem:[%s726 + $0x20] sm:%s718] %v729
                  %v731 = vld [vmem:[%s725 + $0x70] sm:%s718]
                  %732 = vst [vmem:[%s726 + $0x40] sm:%s718] %v731
                  %v733 = vld [vmem:[%s725 + $0xa8] sm:%s718]
                  %734 = vst [vmem:[%s726 + $0x60] sm:%s718] %v733
                  %v735 = vld [vmem:[%s725 + $0xe0] sm:%s718]
                  %736 = vst [vmem:[%s726 + $0x80] sm:%s718] %v735
                  %v737 = vld [vmem:[%s725 + $0x118] sm:%s718]
                  %738 = vst [vmem:[%s726 + $0xa0] sm:%s718] %v737
                  %v739 = vld [vmem:[%s725 + $0x150] sm:%s718]
                  %740 = vst [vmem:[%s726 + $0xc0] sm:%s718] %v739
                  %v741 = vld [vmem:[%s725 + $0x188] sm:%s718]
                  %742 = vst [vmem:[%s726 + $0xe0] sm:%s718] %v741
                  %v743 = vld [vmem:[%s725 + $0x1c0] sm:%s718]
                  %744 = vst [vmem:[%s726 + $0x100] sm:%s718] %v743
                  %v745 = vld [vmem:[%s725 + $0x1f8] sm:%s718]
                  %746 = vst [vmem:[%s726 + $0x120] sm:%s718] %v745
                  %v747 = vld [vmem:[%s725 + $0x230] sm:%s718]
                  %748 = vst [vmem:[%s726 + $0x140] sm:%s718] %v747
                  %v749 = vld [vmem:[%s725 + $0x268] sm:%s718]
                  %750 = vst [vmem:[%s726 + $0x160] sm:%s718] %v749
                  %v751 = vld [vmem:[%s725 + $0x2a0] sm:%s718]
                  %752 = vst [vmem:[%s726 + $0x180] sm:%s718] %v751
                  %v753 = vld [vmem:[%s725 + $0x2d8] sm:%s718]
                  %754 = vst [vmem:[%s726 + $0x1a0] sm:%s718] %v753
                  %v755 = vld [vmem:[%s725 + $0x310] sm:%s718]
                  %756 = vst [vmem:[%s726 + $0x1c0] sm:%s718] %v755
                  %v757 = vld [vmem:[%s725 + $0x348] sm:%s718]
                  %758 = vst [vmem:[%s726 + $0x1e0] sm:%s718] %v757
                  %v759 = vld [vmem:[%s725 + $0x380] sm:%s718]
                  %760 = vst [vmem:[%s726 + $0x200] sm:%s718] %v759
                  %v761 = vld [vmem:[%s725 + $0x3b8] sm:%s718]
                  %762 = vst [vmem:[%s726 + $0x220] sm:%s718] %v761
                  %v763 = vld [vmem:[%s725 + $0x3f0] sm:%s718]
                  %764 = vst [vmem:[%s726 + $0x240] sm:%s718] %v763
                  %v765 = vld [vmem:[%s725 + $0x428] sm:%s718]
                  %766 = vst [vmem:[%s726 + $0x260] sm:%s718] %v765
                  %v767 = vld [vmem:[%s725 + $0x460] sm:%s718]
                  %768 = vst [vmem:[%s726 + $0x280] sm:%s718] %v767
                  %v769 = vld [vmem:[%s725 + $0x498] sm:%s718]
                  %770 = vst [vmem:[%s726 + $0x2a0] sm:%s718] %v769
                  %v771 = vld [vmem:[%s725 + $0x4d0] sm:%s718]
                  %772 = vst [vmem:[%s726 + $0x2c0] sm:%s718] %v771
                  %v773 = vld [vmem:[%s725 + $0x508] sm:%s718]
                  %774 = vst [vmem:[%s726 + $0x2e0] sm:%s718] %v773
                  %v775 = vld [vmem:[%s725 + $0x540] sm:%s718]
                  %776 = vst [vmem:[%s726 + $0x300] sm:%s718] %v775
                  %v777 = vld [vmem:[%s725 + $0x578] sm:%s718]
                  %778 = vst [vmem:[%s726 + $0x320] sm:%s718] %v777
                  %v779 = vld [vmem:[%s725 + $0x5b0] sm:%s718]
                  %780 = vst [vmem:[%s726 + $0x340] sm:%s718] %v779
                  %v781 = vld [vmem:[%s725 + $0x5e8] sm:%s718]
                  %782 = vst [vmem:[%s726 + $0x360] sm:%s718] %v781
                  %v783 = vld [vmem:[%s725 + $0x620] sm:%s718]
                  %784 = vst [vmem:[%s726 + $0x380] sm:%s718] %v783
                  %v785 = vld [vmem:[%s725 + $0x658] sm:%s718]
                  %786 = vst [vmem:[%s726 + $0x3a0] sm:%s718] %v785
                  %v787 = vld [vmem:[%s725 + $0x690] sm:%s718]
                  %788 = vst [vmem:[%s726 + $0x3c0] sm:%s718] %v787
                  %v789 = vld [vmem:[%s725 + $0x6c8] sm:%s718]
                  %790 = vst [vmem:[%s726 + $0x3e0] sm:%s718] %v789
                $region88: #{qnetwork_forward.4} parent=68 // loop_footer
                  %s724 = sadd.s32 1, %s720
                $region89: #{qnetwork_forward.4} parent=68 // loop_footer_branch
                  %719 = sbr.rel target = $region85
                $region90: #{qnetwork_forward.4} parent=68 // loop_exit
                  _
              $region69: #{qnetwork_forward.4} parent=35 // pred_fallthru
                _
            $region36: #{qnetwork_forward.4} parent=31 // pred_fallthru
              _
            // Predicated region
            $region37: #{qnetwork_forward.4} parent=31 // pred_check
              %p151 = pneg %p147
            $region38: #{qnetwork_forward.4} parent=31 // pred_check_branch
              %153 = sbr.rel (%p151) target = $region40
            $region39: #{qnetwork_forward.4} parent=31 // pred_region
              %s154 = sshllo.u32 0, %s143
              loop: start=0, step=1, limit=1
              $region41: #{qnetwork_forward.4} parent=39 // loop_pre_header
                _
              $region42: #{qnetwork_forward.4} parent=39 // loop_header
                %s156 = sphi 0, %s160
                %p157 = scmp.ge.s32.totalorder %s156, 1
                %s161 = sphi %s142, %s142
                %s162 = sphi %s134, %s134
              $region43: #{qnetwork_forward.4} parent=39 // loop_header_branch
                %159 = sbr.rel (%p157) target = $region47
              $region44: #{qnetwork_forward.4} parent=39 // loop_body
                %v163 = vld [vmem:[%s161] sm:%s154]
                %164 = vst [vmem:[%s162] sm:%s154] %v163
                %v165 = vld [vmem:[%s161 + $0x38] sm:%s154]
                %166 = vst [vmem:[%s162 + $0x20] sm:%s154] %v165
                %v167 = vld [vmem:[%s161 + $0x70] sm:%s154]
                %168 = vst [vmem:[%s162 + $0x40] sm:%s154] %v167
                %v169 = vld [vmem:[%s161 + $0xa8] sm:%s154]
                %170 = vst [vmem:[%s162 + $0x60] sm:%s154] %v169
                %v171 = vld [vmem:[%s161 + $0xe0] sm:%s154]
                %172 = vst [vmem:[%s162 + $0x80] sm:%s154] %v171
                %v173 = vld [vmem:[%s161 + $0x118] sm:%s154]
                %174 = vst [vmem:[%s162 + $0xa0] sm:%s154] %v173
                %v175 = vld [vmem:[%s161 + $0x150] sm:%s154]
                %176 = vst [vmem:[%s162 + $0xc0] sm:%s154] %v175
                %v177 = vld [vmem:[%s161 + $0x188] sm:%s154]
                %178 = vst [vmem:[%s162 + $0xe0] sm:%s154] %v177
                %v179 = vld [vmem:[%s161 + $0x1c0] sm:%s154]
                %180 = vst [vmem:[%s162 + $0x100] sm:%s154] %v179
                %v181 = vld [vmem:[%s161 + $0x1f8] sm:%s154]
                %182 = vst [vmem:[%s162 + $0x120] sm:%s154] %v181
                %v183 = vld [vmem:[%s161 + $0x230] sm:%s154]
                %184 = vst [vmem:[%s162 + $0x140] sm:%s154] %v183
                %v185 = vld [vmem:[%s161 + $0x268] sm:%s154]
                %186 = vst [vmem:[%s162 + $0x160] sm:%s154] %v185
                %v187 = vld [vmem:[%s161 + $0x2a0] sm:%s154]
                %188 = vst [vmem:[%s162 + $0x180] sm:%s154] %v187
                %v189 = vld [vmem:[%s161 + $0x2d8] sm:%s154]
                %190 = vst [vmem:[%s162 + $0x1a0] sm:%s154] %v189
                %v191 = vld [vmem:[%s161 + $0x310] sm:%s154]
                %192 = vst [vmem:[%s162 + $0x1c0] sm:%s154] %v191
                %v193 = vld [vmem:[%s161 + $0x348] sm:%s154]
                %194 = vst [vmem:[%s162 + $0x1e0] sm:%s154] %v193
                %v195 = vld [vmem:[%s161 + $0x380] sm:%s154]
                %196 = vst [vmem:[%s162 + $0x200] sm:%s154] %v195
                %v197 = vld [vmem:[%s161 + $0x3b8] sm:%s154]
                %198 = vst [vmem:[%s162 + $0x220] sm:%s154] %v197
                %v199 = vld [vmem:[%s161 + $0x3f0] sm:%s154]
                %200 = vst [vmem:[%s162 + $0x240] sm:%s154] %v199
                %v201 = vld [vmem:[%s161 + $0x428] sm:%s154]
                %202 = vst [vmem:[%s162 + $0x260] sm:%s154] %v201
                %v203 = vld [vmem:[%s161 + $0x460] sm:%s154]
                %204 = vst [vmem:[%s162 + $0x280] sm:%s154] %v203
                %v205 = vld [vmem:[%s161 + $0x498] sm:%s154]
                %206 = vst [vmem:[%s162 + $0x2a0] sm:%s154] %v205
                %v207 = vld [vmem:[%s161 + $0x4d0] sm:%s154]
                %208 = vst [vmem:[%s162 + $0x2c0] sm:%s154] %v207
                %v209 = vld [vmem:[%s161 + $0x508] sm:%s154]
                %210 = vst [vmem:[%s162 + $0x2e0] sm:%s154] %v209
                %v211 = vld [vmem:[%s161 + $0x540] sm:%s154]
                %212 = vst [vmem:[%s162 + $0x300] sm:%s154] %v211
                %v213 = vld [vmem:[%s161 + $0x578] sm:%s154]
                %214 = vst [vmem:[%s162 + $0x320] sm:%s154] %v213
                %v215 = vld [vmem:[%s161 + $0x5b0] sm:%s154]
                %216 = vst [vmem:[%s162 + $0x340] sm:%s154] %v215
                %v217 = vld [vmem:[%s161 + $0x5e8] sm:%s154]
                %218 = vst [vmem:[%s162 + $0x360] sm:%s154] %v217
                %v219 = vld [vmem:[%s161 + $0x620] sm:%s154]
                %220 = vst [vmem:[%s162 + $0x380] sm:%s154] %v219
                %v221 = vld [vmem:[%s161 + $0x658] sm:%s154]
                %222 = vst [vmem:[%s162 + $0x3a0] sm:%s154] %v221
                %v223 = vld [vmem:[%s161 + $0x690] sm:%s154]
                %224 = vst [vmem:[%s162 + $0x3c0] sm:%s154] %v223
                %v225 = vld [vmem:[%s161 + $0x6c8] sm:%s154]
                %226 = vst [vmem:[%s162 + $0x3e0] sm:%s154] %v225
              $region45: #{qnetwork_forward.4} parent=39 // loop_footer
                %s160 = sadd.s32 1, %s156
              $region46: #{qnetwork_forward.4} parent=39 // loop_footer_branch
                %155 = sbr.rel target = $region42
              $region47: #{qnetwork_forward.4} parent=39 // loop_exit
                _
            $region40: #{qnetwork_forward.4} parent=31 // pred_fallthru
              _
          $region32: #{qnetwork_forward.4} parent=27 // pred_fallthru
            _
          %791 = vnop
        $region28: #{qnetwork_forward.4} parent=23 // pred_fallthru
          _
      $region24: #{qnetwork_forward.4} parent=5 // pred_fallthru
        _
      %p792 = scmp.le.s32.totalorder 1, %s9
      %p793 = scmp.lt.s32.totalorder %s9, 3
      %p794 = pnand %p792, %p793
      %p795 = pneg %p794
      // Predicated region
      $region91: #{qnetwork_forward.4} parent=5 // pred_check
        _
      $region92: #{qnetwork_forward.4} parent=5 // pred_check_branch
        %797 = sbr.rel (%p794) target = $region94
      $region93: #{qnetwork_forward.4} parent=5 // pred_region
        %s798 = ssub.s32 %s9, 1
        %s799 = sand.u32 %s43, 1
        %s800 = sand.u32 %s43, 1
        %s801 = smul.addr %s800, 1024
        %s802 = scalar_lea.vmem [#allocation2], %s801
        // Predicated region
        $region95: #{qnetwork_forward.4} parent=93 // pred_check
          %p803 = pneg %p56
        $region96: #{qnetwork_forward.4} parent=93 // pred_check_branch
          %805 = sbr.rel (%p803) target = $region98
        $region97: #{qnetwork_forward.4} parent=93 // pred_region
          _
        $region98: #{qnetwork_forward.4} parent=93 // pred_fallthru
          _
        %p806 = pneg %p30
        %p807 = pneg %p27
        %s808 = sand.u32 %s43, 1
        %s809 = sand.u32 %s43, 1
        %s810 = smul.addr %s809, 1024
        %s811 = scalar_lea.vmem [#allocation2], %s810
        %p812 = pneg %p56
        %p813 = pneg %p53
        %p814 = pneg %p77
        %p815 = pneg %p74
        %p816 = pneg %p103
        %p817 = pneg %p100
        %s818 = sand.u32 %s90, 1
        %s819 = sand.u32 %s90, 1
        %s820 = smul.addr %s819, 128
        %s821 = scalar_lea.vmem [#allocation3], %s820
        %s822 = smul.u32 4, %s14
        %s823 = ssub.s32 7, %s822
        %p824 = scmp.lt.s32.totalorder %s823, 4
        %s825 = scalar_select %p824, %s823, 4
        %s826 = smul.u32 4096, %s825
        %s827 = smul.u32 4, %s14
        %s828 = ssub.s32 7, %s827
        %p829 = scmp.lt.s32.totalorder %s828, 4
        %s830 = scalar_select %p829, %s828, 4
        %s831 = smul.u32 512, %s830
        %v832 = vld [vmem:[%s0] sm:$0xff]
        %v833 = vld [vmem:[%s0 + $0x8] sm:$0xff]
        %v834 = vld [vmem:[%s0 + $0x10] sm:$0xff]
        %v835 = vld [vmem:[%s0 + $0x18] sm:$0xff]
        %v836 = vld [vmem:[%s802] sm:$0xff]
        %v837 = vld [vmem:[%s802 + $0x8] sm:$0xff]
        %v838 = vld [vmem:[%s802 + $0x10] sm:$0xff]
        %v839 = vld [vmem:[%s802 + $0x18] sm:$0xff]
        %v840 = vld [vmem:[%s802 + $0x20] sm:$0xff]
        %v841 = vld [vmem:[%s802 + $0x28] sm:$0xff]
        %v842 = vld [vmem:[%s802 + $0x30] sm:$0xff]
        %v843 = vld [vmem:[%s802 + $0x38] sm:$0xff]
        %v844 = vld [vmem:[%s802 + $0x40] sm:$0xff]
        %v845 = vld [vmem:[%s802 + $0x48] sm:$0xff]
        %v846 = vld [vmem:[%s802 + $0x50] sm:$0xff]
        %v847 = vld [vmem:[%s802 + $0x58] sm:$0xff]
        %v848 = vld [vmem:[%s802 + $0x60] sm:$0xff]
        %v849 = vld [vmem:[%s802 + $0x68] sm:$0xff]
        %v850 = vld [vmem:[%s802 + $0x70] sm:$0xff]
        %v851 = vld [vmem:[%s802 + $0x78] sm:$0xff]
        %v852 = vld [vmem:[%s802 + $0x80] sm:$0xff]
        %v853 = vld [vmem:[%s802 + $0x88] sm:$0xff]
        %v854 = vld [vmem:[%s802 + $0x90] sm:$0xff]
        %v855 = vld [vmem:[%s802 + $0x98] sm:$0xff]
        %v856 = vld [vmem:[%s802 + $0xa0] sm:$0xff]
        %v857 = vld [vmem:[%s802 + $0xa8] sm:$0xff]
        %v858 = vld [vmem:[%s802 + $0xb0] sm:$0xff]
        %v859 = vld [vmem:[%s802 + $0xb8] sm:$0xff]
        %v860 = vld [vmem:[%s802 + $0xc0] sm:$0xff]
        %v861 = vld [vmem:[%s802 + $0xc8] sm:$0xff]
        %v862 = vld [vmem:[%s802 + $0xd0] sm:$0xff]
        %v863 = vld [vmem:[%s802 + $0xd8] sm:$0xff]
        %v864 = vld [vmem:[%s802 + $0xe0] sm:$0xff]
        %v865 = vld [vmem:[%s802 + $0xe8] sm:$0xff]
        %v866 = vld [vmem:[%s802 + $0xf0] sm:$0xff]
        %v867 = vld [vmem:[%s802 + $0xf8] sm:$0xff]
        %v868 = vld [vmem:[%s802 + $0x100] sm:$0xff]
        %v869 = vld [vmem:[%s802 + $0x108] sm:$0xff]
        %v870 = vld [vmem:[%s802 + $0x110] sm:$0xff]
        %v871 = vld [vmem:[%s802 + $0x118] sm:$0xff]
        %v872 = vld [vmem:[%s802 + $0x120] sm:$0xff]
        %v873 = vld [vmem:[%s802 + $0x128] sm:$0xff]
        %v874 = vld [vmem:[%s802 + $0x130] sm:$0xff]
        %v875 = vld [vmem:[%s802 + $0x138] sm:$0xff]
        %v876 = vld [vmem:[%s802 + $0x140] sm:$0xff]
        %v877 = vld [vmem:[%s802 + $0x148] sm:$0xff]
        %v878 = vld [vmem:[%s802 + $0x150] sm:$0xff]
        %v879 = vld [vmem:[%s802 + $0x158] sm:$0xff]
        %v880 = vld [vmem:[%s802 + $0x160] sm:$0xff]
        %v881 = vld [vmem:[%s802 + $0x168] sm:$0xff]
        %v882 = vld [vmem:[%s802 + $0x170] sm:$0xff]
        %v883 = vld [vmem:[%s802 + $0x178] sm:$0xff]
        %v884 = vld [vmem:[%s802 + $0x180] sm:$0xff]
        %v885 = vld [vmem:[%s802 + $0x188] sm:$0xff]
        %v886 = vld [vmem:[%s802 + $0x190] sm:$0xff]
        %v887 = vld [vmem:[%s802 + $0x198] sm:$0xff]
        %v888 = vld [vmem:[%s802 + $0x1a0] sm:$0xff]
        %v889 = vld [vmem:[%s802 + $0x1a8] sm:$0xff]
        %v890 = vld [vmem:[%s802 + $0x1b0] sm:$0xff]
        %v891 = vld [vmem:[%s802 + $0x1b8] sm:$0xff]
        %v892 = vld [vmem:[%s802 + $0x1c0] sm:$0xff]
        %v893 = vld [vmem:[%s802 + $0x1c8] sm:$0xff]
        %v894 = vld [vmem:[%s802 + $0x1d0] sm:$0xff]
        %v895 = vld [vmem:[%s802 + $0x1d8] sm:$0xff]
        %v896 = vld [vmem:[%s802 + $0x1e0] sm:$0xff]
        %v897 = vld [vmem:[%s802 + $0x1e8] sm:$0xff]
        %v898 = vld [vmem:[%s802 + $0x1f0] sm:$0xff]
        %v899 = vld [vmem:[%s802 + $0x1f8] sm:$0xff]
        %v900 = vld [vmem:[%s802 + $0x200] sm:$0xff]
        %v901 = vld [vmem:[%s802 + $0x208] sm:$0xff]
        %v902 = vld [vmem:[%s802 + $0x210] sm:$0xff]
        %v903 = vld [vmem:[%s802 + $0x218] sm:$0xff]
        %v904 = vld [vmem:[%s802 + $0x220] sm:$0xff]
        %v905 = vld [vmem:[%s802 + $0x228] sm:$0xff]
        %v906 = vld [vmem:[%s802 + $0x230] sm:$0xff]
        %v907 = vld [vmem:[%s802 + $0x238] sm:$0xff]
        %v908 = vld [vmem:[%s802 + $0x240] sm:$0xff]
        %v909 = vld [vmem:[%s802 + $0x248] sm:$0xff]
        %v910 = vld [vmem:[%s802 + $0x250] sm:$0xff]
        %v911 = vld [vmem:[%s802 + $0x258] sm:$0xff]
        %v912 = vld [vmem:[%s802 + $0x260] sm:$0xff]
        %v913 = vld [vmem:[%s802 + $0x268] sm:$0xff]
        %v914 = vld [vmem:[%s802 + $0x270] sm:$0xff]
        %v915 = vld [vmem:[%s802 + $0x278] sm:$0xff]
        %v916 = vld [vmem:[%s802 + $0x280] sm:$0xff]
        %v917 = vld [vmem:[%s802 + $0x288] sm:$0xff]
        %v918 = vld [vmem:[%s802 + $0x290] sm:$0xff]
        %v919 = vld [vmem:[%s802 + $0x298] sm:$0xff]
        %v920 = vld [vmem:[%s802 + $0x2a0] sm:$0xff]
        %v921 = vld [vmem:[%s802 + $0x2a8] sm:$0xff]
        %v922 = vld [vmem:[%s802 + $0x2b0] sm:$0xff]
        %v923 = vld [vmem:[%s802 + $0x2b8] sm:$0xff]
        %v924 = vld [vmem:[%s802 + $0x2c0] sm:$0xff]
        %v925 = vld [vmem:[%s802 + $0x2c8] sm:$0xff]
        %v926 = vld [vmem:[%s802 + $0x2d0] sm:$0xff]
        %v927 = vld [vmem:[%s802 + $0x2d8] sm:$0xff]
        %v928 = vld [vmem:[%s802 + $0x2e0] sm:$0xff]
        %v929 = vld [vmem:[%s802 + $0x2e8] sm:$0xff]
        %v930 = vld [vmem:[%s802 + $0x2f0] sm:$0xff]
        %v931 = vld [vmem:[%s802 + $0x2f8] sm:$0xff]
        %v932 = vld [vmem:[%s802 + $0x300] sm:$0xff]
        %v933 = vld [vmem:[%s802 + $0x308] sm:$0xff]
        %v934 = vld [vmem:[%s802 + $0x310] sm:$0xff]
        %v935 = vld [vmem:[%s802 + $0x318] sm:$0xff]
        %v936 = vld [vmem:[%s802 + $0x320] sm:$0xff]
        %v937 = vld [vmem:[%s802 + $0x328] sm:$0xff]
        %v938 = vld [vmem:[%s802 + $0x330] sm:$0xff]
        %v939 = vld [vmem:[%s802 + $0x338] sm:$0xff]
        %v940 = vld [vmem:[%s802 + $0x340] sm:$0xff]
        %v941 = vld [vmem:[%s802 + $0x348] sm:$0xff]
        %v942 = vld [vmem:[%s802 + $0x350] sm:$0xff]
        %v943 = vld [vmem:[%s802 + $0x358] sm:$0xff]
        %v944 = vld [vmem:[%s802 + $0x360] sm:$0xff]
        %v945 = vld [vmem:[%s802 + $0x368] sm:$0xff]
        %v946 = vld [vmem:[%s802 + $0x370] sm:$0xff]
        %v947 = vld [vmem:[%s802 + $0x378] sm:$0xff]
        %v948 = vld [vmem:[%s802 + $0x380] sm:$0xff]
        %v949 = vld [vmem:[%s802 + $0x388] sm:$0xff]
        %v950 = vld [vmem:[%s802 + $0x390] sm:$0xff]
        %v951 = vld [vmem:[%s802 + $0x398] sm:$0xff]
        %v952 = vld [vmem:[%s802 + $0x3a0] sm:$0xff]
        %v953 = vld [vmem:[%s802 + $0x3a8] sm:$0xff]
        %v954 = vld [vmem:[%s802 + $0x3b0] sm:$0xff]
        %v955 = vld [vmem:[%s802 + $0x3b8] sm:$0xff]
        %v956 = vld [vmem:[%s802 + $0x3c0] sm:$0xff]
        %v957 = vld [vmem:[%s802 + $0x3c8] sm:$0xff]
        %v958 = vld [vmem:[%s802 + $0x3d0] sm:$0xff]
        %v959 = vld [vmem:[%s802 + $0x3d8] sm:$0xff]
        %v960 = vld [vmem:[%s802 + $0x3e0] sm:$0xff]
        %v961 = vld [vmem:[%s802 + $0x3e8] sm:$0xff]
        %v962 = vld [vmem:[%s802 + $0x3f0] sm:$0xff]
        %v963 = vld [vmem:[%s802 + $0x3f8] sm:$0xff]
        %v964 = vpack.c.bf16 %v840, %v836
        %v965 = vpack.c.bf16 %v841, %v837
        %v966 = vpack.c.bf16 %v842, %v838
        %v967 = vpack.c.bf16 %v843, %v839
        %v968 = vpack.c.bf16 %v848, %v844
        %v969 = vpack.c.bf16 %v849, %v845
        %v970 = vpack.c.bf16 %v850, %v846
        %v971 = vpack.c.bf16 %v851, %v847
        %v972 = vpack.c.bf16 %v856, %v852
        %v973 = vpack.c.bf16 %v857, %v853
        %v974 = vpack.c.bf16 %v858, %v854
        %v975 = vpack.c.bf16 %v859, %v855
        %v976 = vpack.c.bf16 %v864, %v860
        %v977 = vpack.c.bf16 %v865, %v861
        %v978 = vpack.c.bf16 %v866, %v862
        %v979 = vpack.c.bf16 %v867, %v863
        %v980 = vpack.c.bf16 %v872, %v868
        %v981 = vpack.c.bf16 %v873, %v869
        %v982 = vpack.c.bf16 %v874, %v870
        %v983 = vpack.c.bf16 %v875, %v871
        %v984 = vpack.c.bf16 %v880, %v876
        %v985 = vpack.c.bf16 %v881, %v877
        %v986 = vpack.c.bf16 %v882, %v878
        %v987 = vpack.c.bf16 %v883, %v879
        %v988 = vpack.c.bf16 %v888, %v884
        %v989 = vpack.c.bf16 %v889, %v885
        %v990 = vpack.c.bf16 %v890, %v886
        %v991 = vpack.c.bf16 %v891, %v887
        %v992 = vpack.c.bf16 %v896, %v892
        %v993 = vpack.c.bf16 %v897, %v893
        %v994 = vpack.c.bf16 %v898, %v894
        %v995 = vpack.c.bf16 %v899, %v895
        %v996 = vpack.c.bf16 %v904, %v900
        %v997 = vpack.c.bf16 %v905, %v901
        %v998 = vpack.c.bf16 %v906, %v902
        %v999 = vpack.c.bf16 %v907, %v903
        %v1000 = vpack.c.bf16 %v912, %v908
        %v1001 = vpack.c.bf16 %v913, %v909
        %v1002 = vpack.c.bf16 %v914, %v910
        %v1003 = vpack.c.bf16 %v915, %v911
        %v1004 = vpack.c.bf16 %v920, %v916
        %v1005 = vpack.c.bf16 %v921, %v917
        %v1006 = vpack.c.bf16 %v922, %v918
        %v1007 = vpack.c.bf16 %v923, %v919
        %v1008 = vpack.c.bf16 %v928, %v924
        %v1009 = vpack.c.bf16 %v929, %v925
        %v1010 = vpack.c.bf16 %v930, %v926
        %v1011 = vpack.c.bf16 %v931, %v927
        %v1012 = vpack.c.bf16 %v936, %v932
        %v1013 = vpack.c.bf16 %v937, %v933
        %v1014 = vpack.c.bf16 %v938, %v934
        %v1015 = vpack.c.bf16 %v939, %v935
        %v1016 = vpack.c.bf16 %v944, %v940
        %v1017 = vpack.c.bf16 %v945, %v941
        %v1018 = vpack.c.bf16 %v946, %v942
        %v1019 = vpack.c.bf16 %v947, %v943
        %v1020 = vpack.c.bf16 %v952, %v948
        %v1021 = vpack.c.bf16 %v953, %v949
        %v1022 = vpack.c.bf16 %v954, %v950
        %v1023 = vpack.c.bf16 %v955, %v951
        %v1024 = vpack.c.bf16 %v960, %v956
        %v1025 = vpack.c.bf16 %v961, %v957
        %v1026 = vpack.c.bf16 %v962, %v958
        %v1027 = vpack.c.bf16 %v963, %v959
        %v1028 = vld [vmem:[%s2] sm:$0xff]
        %v1029 = vld [vmem:[%s2 + $0x8] sm:$0xff]
        %v1030 = vld [vmem:[%s2 + $0x10] sm:$0xff]
        %v1031 = vld [vmem:[%s2 + $0x18] sm:$0xff]
        %1033 = vset.pattern.permute.xlu0 0
        %1034 = vperm.xlu0 %1033, %v1028
        %v1035 = vpop.permute.xlu0 %1034
        %1038 = vset.pattern.permute.xlu0 0
        %1039 = vperm.xlu0 %1038, %v1029
        %v1040 = vpop.permute.xlu0 %1039
        %1043 = vset.pattern.permute.xlu0 0
        %1044 = vperm.xlu0 %1043, %v1030
        %v1045 = vpop.permute.xlu0 %1044
        %1048 = vset.pattern.permute.xlu0 0
        %1049 = vperm.xlu0 %1048, %v1031
        %v1050 = vpop.permute.xlu0 %1049
        %v1056 = vunpack.c.l.b16 %v832
        %v1057 = vunpack.c.h.b16 %v832
        %v1058 = vunpack.c.l.b16 %v833
        %v1059 = vunpack.c.h.b16 %v833
        %v1060 = vunpack.c.l.b16 %v834
        %v1061 = vunpack.c.h.b16 %v834
        %v1062 = vunpack.c.l.b16 %v835
        %v1063 = vunpack.c.h.b16 %v835
        %v1064 = vpack.c.b16 %v1058, %v1056
        %v1065 = vpack.c.b16 %v1059, %v1057
        %v1066 = vpack.c.b16 %v1062, %v1060
        %v1067 = vpack.c.b16 %v1063, %v1061
        %1072 = vmatprep.subr.bf16.mxu0 %v965
        %1073 = vmatpush1.bf16.msra.mxu0 %v964
        %1074 = vmatprep.subr.bf16.mxu0 %v969
        %1075 = vmatpush1.bf16.msra.mxu0 %v968
        %1076 = vmatprep.subr.bf16.mxu0 %v973
        %1077 = vmatpush1.bf16.msra.mxu0 %v972
        %1078 = vmatprep.subr.bf16.mxu0 %v977
        %1079 = vmatpush1.bf16.msra.mxu0 %v976
        %1080 = vmatprep.subr.bf16.mxu0 %v981
        %1081 = vmatpush1.bf16.msra.mxu0 %v980
        %1082 = vmatprep.subr.bf16.mxu0 %v985
        %1083 = vmatpush1.bf16.msra.mxu0 %v984
        %1084 = vmatprep.subr.bf16.mxu0 %v989
        %1085 = vmatpush1.bf16.msra.mxu0 %v988
        %1086 = vmatprep.subr.bf16.mxu0 %v993
        %1087 = vmatpush1.bf16.msra.mxu0 %v992
        %1088 = vmatprep.subr.bf16.mxu0 %v997
        %1089 = vmatpush1.bf16.msra.mxu0 %v996
        %1090 = vmatprep.subr.bf16.mxu0 %v1001
        %1091 = vmatpush1.bf16.msra.mxu0 %v1000
        %1092 = vmatprep.subr.bf16.mxu0 %v1005
        %1093 = vmatpush1.bf16.msra.mxu0 %v1004
        %1094 = vmatprep.subr.bf16.mxu0 %v1009
        %1095 = vmatpush1.bf16.msra.mxu0 %v1008
        %1096 = vmatprep.subr.bf16.mxu0 %v1013
        %1097 = vmatpush1.bf16.msra.mxu0 %v1012
        %1098 = vmatprep.subr.bf16.mxu0 %v1017
        %1099 = vmatpush1.bf16.msra.mxu0 %v1016
        %1100 = vmatprep.subr.bf16.mxu0 %v1021
        %1101 = vmatpush1.bf16.msra.mxu0 %v1020
        %1102 = vmatprep.subr.bf16.mxu0 %v1025
        %1103 = vmatpush1.bf16.msra.mxu0 %v1024
        %1104 = vmatprep.mubr.bf16.mxu0 %v1065
        %1105 = vmatmul.mubr.bf16.gmra.mrb[0].mxu0 %v1064
        %v1106 = vpop.f32.mrb[0].mxu0
        %v1107 = vadd.f32 %v1035, %v1106
        %v1108 = vpop.f32.mrb[0].mxu0
        %v1109 = vadd.f32 %v1035, %v1108
        %v1110 = vpop.f32.mrb[0].mxu0
        %v1111 = vadd.f32 %v1040, %v1110
        %v1112 = vpop.f32.mrb[0].mxu0
        %v1113 = vadd.f32 %v1040, %v1112
        %1114 = vmatprep.mubr.bf16.mxu0 %v1067
        %1115 = vmatmul.mubr.bf16.gmra.mrb[0].mxu0 %v1066
        %v1116 = vpop.f32.mrb[0].mxu0
        %v1117 = vadd.f32 %v1045, %v1116
        %v1118 = vpop.f32.mrb[0].mxu0
        %v1119 = vadd.f32 %v1045, %v1118
        %v1120 = vpop.f32.mrb[0].mxu0
        %v1121 = vadd.f32 %v1050, %v1120
        %v1122 = vpop.f32.mrb[0].mxu0
        %v1123 = vadd.f32 %v1050, %v1122
        %1124 = vdwg.mxu0
        %1125 = vmatprep.subr.bf16.mxu0 %v967
        %1126 = vmatpush1.bf16.msra.mxu0 %v966
        %1127 = vmatprep.subr.bf16.mxu0 %v971
        %1128 = vmatpush1.bf16.msra.mxu0 %v970
        %1129 = vmatprep.subr.bf16.mxu0 %v975
        %1130 = vmatpush1.bf16.msra.mxu0 %v974
        %1131 = vmatprep.subr.bf16.mxu0 %v979
        %1132 = vmatpush1.bf16.msra.mxu0 %v978
        %1133 = vmatprep.subr.bf16.mxu0 %v983
        %1134 = vmatpush1.bf16.msra.mxu0 %v982
        %1135 = vmatprep.subr.bf16.mxu0 %v987
        %1136 = vmatpush1.bf16.msra.mxu0 %v986
        %1137 = vmatprep.subr.bf16.mxu0 %v991
        %1138 = vmatpush1.bf16.msra.mxu0 %v990
        %1139 = vmatprep.subr.bf16.mxu0 %v995
        %1140 = vmatpush1.bf16.msra.mxu0 %v994
        %1141 = vmatprep.subr.bf16.mxu0 %v999
        %1142 = vmatpush1.bf16.msra.mxu0 %v998
        %1143 = vmatprep.subr.bf16.mxu0 %v1003
        %1144 = vmatpush1.bf16.msra.mxu0 %v1002
        %1145 = vmatprep.subr.bf16.mxu0 %v1007
        %1146 = vmatpush1.bf16.msra.mxu0 %v1006
        %1147 = vmatprep.subr.bf16.mxu0 %v1011
        %1148 = vmatpush1.bf16.msra.mxu0 %v1010
        %1149 = vmatprep.subr.bf16.mxu0 %v1015
        %1150 = vmatpush1.bf16.msra.mxu0 %v1014
        %1151 = vmatprep.subr.bf16.mxu0 %v1019
        %1152 = vmatpush1.bf16.msra.mxu0 %v1018
        %1153 = vmatprep.subr.bf16.mxu0 %v1023
        %1154 = vmatpush1.bf16.msra.mxu0 %v1022
        %1155 = vmatprep.subr.bf16.mxu0 %v1027
        %1156 = vmatpush1.bf16.msra.mxu0 %v1026
        %1157 = vmatprep.mubr.bf16.mxu0 %v1065
        %1158 = vmatmul.mubr.bf16.gmra.mrb[0].mxu0 %v1064
        %v1159 = vpop.f32.mrb[0].mxu0
        %v1160 = vadd.f32 %v1035, %v1159
        %v1161 = vpop.f32.mrb[0].mxu0
        %v1162 = vadd.f32 %v1035, %v1161
        %v1163 = vpop.f32.mrb[0].mxu0
        %v1164 = vadd.f32 %v1040, %v1163
        %v1165 = vpop.f32.mrb[0].mxu0
        %v1166 = vadd.f32 %v1040, %v1165
        %1167 = vmatprep.mubr.bf16.mxu0 %v1067
        %1168 = vmatmul.mubr.bf16.gmra.mrb[0].mxu0 %v1066
        %v1169 = vpop.f32.mrb[0].mxu0
        %v1170 = vadd.f32 %v1045, %v1169
        %v1171 = vpop.f32.mrb[0].mxu0
        %v1172 = vadd.f32 %v1045, %v1171
        %v1173 = vpop.f32.mrb[0].mxu0
        %v1174 = vadd.f32 %v1050, %v1173
        %v1175 = vpop.f32.mrb[0].mxu0
        %v1176 = vadd.f32 %v1050, %v1175
        %1177 = vdwg.mxu0
        %v1178 = vmax.f32 %v1107, 0.0
        %v1179 = vmax.f32 %v1109, 0.0
        %v1180 = vmax.f32 %v1160, 0.0
        %v1181 = vmax.f32 %v1162, 0.0
        %v1182 = vmax.f32 %v1111, 0.0
        %v1183 = vmax.f32 %v1113, 0.0
        %v1184 = vmax.f32 %v1164, 0.0
        %v1185 = vmax.f32 %v1166, 0.0
        %v1186 = vmax.f32 %v1117, 0.0
        %v1187 = vmax.f32 %v1119, 0.0
        %v1188 = vmax.f32 %v1170, 0.0
        %v1189 = vmax.f32 %v1172, 0.0
        %v1190 = vmax.f32 %v1121, 0.0
        %v1191 = vmax.f32 %v1123, 0.0
        %v1192 = vmax.f32 %v1174, 0.0
        %v1193 = vmax.f32 %v1176, 0.0
        %1194 = vst [vmem:[%s821] sm:$0xff] %v1178
        %1195 = vst [vmem:[%s821 + $0x8] sm:$0xff] %v1179
        %1196 = vst [vmem:[%s821 + $0x10] sm:$0xff] %v1180
        %1197 = vst [vmem:[%s821 + $0x18] sm:$0xff] %v1181
        %1198 = vst [vmem:[%s821 + $0x20] sm:$0xff] %v1182
        %1199 = vst [vmem:[%s821 + $0x28] sm:$0xff] %v1183
        %1200 = vst [vmem:[%s821 + $0x30] sm:$0xff] %v1184
        %1201 = vst [vmem:[%s821 + $0x38] sm:$0xff] %v1185
        %1202 = vst [vmem:[%s821 + $0x40] sm:$0xff] %v1186
        %1203 = vst [vmem:[%s821 + $0x48] sm:$0xff] %v1187
        %1204 = vst [vmem:[%s821 + $0x50] sm:$0xff] %v1188
        %1205 = vst [vmem:[%s821 + $0x58] sm:$0xff] %v1189
        %1206 = vst [vmem:[%s821 + $0x60] sm:$0xff] %v1190
        %1207 = vst [vmem:[%s821 + $0x68] sm:$0xff] %v1191
        %1208 = vst [vmem:[%s821 + $0x70] sm:$0xff] %v1192
        %1209 = vst [vmem:[%s821 + $0x78] sm:$0xff] %v1193
        %s1210 = sand.u32 %s90, 1
        %s1211 = sand.u32 %s90, 1
        %s1212 = smul.addr %s1211, 128
        %s1213 = scalar_lea.vmem [#allocation3], %s1212
        // Predicated region
        $region99: #{qnetwork_forward.4} parent=93 // pred_check
          %p1214 = pneg %p100
        $region100: #{qnetwork_forward.4} parent=93 // pred_check_branch
          %1216 = sbr.rel (%p1214) target = $region102
        $region101: #{qnetwork_forward.4} parent=93 // pred_region
          %s1217 = smul.u32 4, %s14
          %s1218 = ssub.s32 7, %s1217
          %p1219 = scmp.lt.s32.totalorder %s1218, 4
          %s1220 = scalar_select %p1219, %s1218, 4
          %s1221 = smul.u32 512, %s1220
          %p1222 = scmp.ne.s32.totalorder 0, %s1221
          %s1223 = smul.addr %s1217, 8
          %s1224 = scalar_lea.vmem %s3, %s1223
          %s1225 = smul.u32 %s1220, 8
          // Predicated region
          $region103: #{qnetwork_forward.4} parent=101 // pred_check
            %p1226 = pneg %p1222
          $region104: #{qnetwork_forward.4} parent=101 // pred_check_branch
            %1228 = sbr.rel (%p1226) target = $region106
          $region105: #{qnetwork_forward.4} parent=101 // pred_region
            %p1229 = scmp.lt.u32.totalorder %s1225, 8
            %p1230 = pneg %p1229
            // Predicated region
            $region107: #{qnetwork_forward.4} parent=105 // pred_check
              _
            $region108: #{qnetwork_forward.4} parent=105 // pred_check_branch
              %1232 = sbr.rel (%p1229) target = $region110
            $region109: #{qnetwork_forward.4} parent=105 // pred_region
              %s1253 = sand.u32 %s1225, 7
              %p1254 = scmp.eq.s32.totalorder %s1253, 0
              // Predicated region
              $region122: #{qnetwork_forward.4} parent=109 // pred_check
                %p1255 = pneg %p1254
              $region123: #{qnetwork_forward.4} parent=109 // pred_check_branch
                %1257 = sbr.rel (%p1255) target = $region125
              $region124: #{qnetwork_forward.4} parent=109 // pred_region
                %s1258 = sshrl.u32 %s1225, 3
                %s1259 = sshrl.u32 %s1258, 4
                // While loop
                $region126: #{qnetwork_forward.4} parent=124 // loop_pre_header
                  _
                $region127: #{qnetwork_forward.4} parent=124 // loop_header
                  %s1263 = sphi 0, %s1265
                  %p1264 = scmp.ge.s32.totalorder %s1263, %s1259
                  %s1268 = sphi 0, %s1401
                  %s1269 = sphi %s1213, %s1404
                  %s1270 = sphi %s1224, %s1405
                $region128: #{qnetwork_forward.4} parent=124 // loop_header_branch
                  %1267 = sbr.rel (%p1264) target = $region132
                $region129: #{qnetwork_forward.4} parent=124 // loop_body
                  %v1271 = vld [vmem:[%s1269] sm:$0xff]
                  %1272 = vst [vmem:[%s1270] sm:$0xff] %v1271
                  %v1273 = vld [vmem:[%s1269 + $0x8] sm:$0xff]
                  %1274 = vst [vmem:[%s1270 + $0x8] sm:$0xff] %v1273
                  %v1275 = vld [vmem:[%s1269 + $0x10] sm:$0xff]
                  %1276 = vst [vmem:[%s1270 + $0x10] sm:$0xff] %v1275
                  %v1277 = vld [vmem:[%s1269 + $0x18] sm:$0xff]
                  %1278 = vst [vmem:[%s1270 + $0x18] sm:$0xff] %v1277
                  %v1279 = vld [vmem:[%s1269 + $0x20] sm:$0xff]
                  %1280 = vst [vmem:[%s1270 + $0x20] sm:$0xff] %v1279
                  %v1281 = vld [vmem:[%s1269 + $0x28] sm:$0xff]
                  %1282 = vst [vmem:[%s1270 + $0x28] sm:$0xff] %v1281
                  %v1283 = vld [vmem:[%s1269 + $0x30] sm:$0xff]
                  %1284 = vst [vmem:[%s1270 + $0x30] sm:$0xff] %v1283
                  %v1285 = vld [vmem:[%s1269 + $0x38] sm:$0xff]
                  %1286 = vst [vmem:[%s1270 + $0x38] sm:$0xff] %v1285
                  %v1287 = vld [vmem:[%s1269 + $0x40] sm:$0xff]
                  %1288 = vst [vmem:[%s1270 + $0x40] sm:$0xff] %v1287
                  %v1289 = vld [vmem:[%s1269 + $0x48] sm:$0xff]
                  %1290 = vst [vmem:[%s1270 + $0x48] sm:$0xff] %v1289
                  %v1291 = vld [vmem:[%s1269 + $0x50] sm:$0xff]
                  %1292 = vst [vmem:[%s1270 + $0x50] sm:$0xff] %v1291
                  %v1293 = vld [vmem:[%s1269 + $0x58] sm:$0xff]
                  %1294 = vst [vmem:[%s1270 + $0x58] sm:$0xff] %v1293
                  %v1295 = vld [vmem:[%s1269 + $0x60] sm:$0xff]
                  %1296 = vst [vmem:[%s1270 + $0x60] sm:$0xff] %v1295
                  %v1297 = vld [vmem:[%s1269 + $0x68] sm:$0xff]
                  %1298 = vst [vmem:[%s1270 + $0x68] sm:$0xff] %v1297
                  %v1299 = vld [vmem:[%s1269 + $0x70] sm:$0xff]
                  %1300 = vst [vmem:[%s1270 + $0x70] sm:$0xff] %v1299
                  %v1301 = vld [vmem:[%s1269 + $0x78] sm:$0xff]
                  %1302 = vst [vmem:[%s1270 + $0x78] sm:$0xff] %v1301
                  %v1303 = vld [vmem:[%s1269 + $0x20] sm:$0xff]
                  %1304 = vst [vmem:[%s1270 + $0x38] sm:$0xff] %v1303
                  %v1305 = vld [vmem:[%s1269 + $0x28] sm:$0xff]
                  %1306 = vst [vmem:[%s1270 + $0x40] sm:$0xff] %v1305
                  %v1307 = vld [vmem:[%s1269 + $0x30] sm:$0xff]
                  %1308 = vst [vmem:[%s1270 + $0x48] sm:$0xff] %v1307
                  %v1309 = vld [vmem:[%s1269 + $0x38] sm:$0xff]
                  %1310 = vst [vmem:[%s1270 + $0x50] sm:$0xff] %v1309
                  %v1311 = vld [vmem:[%s1269 + $0x40] sm:$0xff]
                  %1312 = vst [vmem:[%s1270 + $0x58] sm:$0xff] %v1311
                  %v1313 = vld [vmem:[%s1269 + $0x48] sm:$0xff]
                  %1314 = vst [vmem:[%s1270 + $0x60] sm:$0xff] %v1313
                  %v1315 = vld [vmem:[%s1269 + $0x50] sm:$0xff]
                  %1316 = vst [vmem:[%s1270 + $0x68] sm:$0xff] %v1315
                  %v1317 = vld [vmem:[%s1269 + $0x58] sm:$0xff]
                  %1318 = vst [vmem:[%s1270 + $0x70] sm:$0xff] %v1317
                  %v1319 = vld [vmem:[%s1269 + $0x60] sm:$0xff]
                  %1320 = vst [vmem:[%s1270 + $0x78] sm:$0xff] %v1319
                  %v1321 = vld [vmem:[%s1269 + $0x68] sm:$0xff]
                  %1322 = vst [vmem:[%s1270 + $0x80] sm:$0xff] %v1321
                  %v1323 = vld [vmem:[%s1269 + $0x70] sm:$0xff]
                  %1324 = vst [vmem:[%s1270 + $0x88] sm:$0xff] %v1323
                  %v1325 = vld [vmem:[%s1269 + $0x78] sm:$0xff]
                  %1326 = vst [vmem:[%s1270 + $0x90] sm:$0xff] %v1325
                  %v1327 = vld [vmem:[%s1269 + $0x80] sm:$0xff]
                  %1328 = vst [vmem:[%s1270 + $0x98] sm:$0xff] %v1327
                  %v1329 = vld [vmem:[%s1269 + $0x88] sm:$0xff]
                  %1330 = vst [vmem:[%s1270 + $0xa0] sm:$0xff] %v1329
                  %v1331 = vld [vmem:[%s1269 + $0x90] sm:$0xff]
                  %1332 = vst [vmem:[%s1270 + $0xa8] sm:$0xff] %v1331
                  %v1333 = vld [vmem:[%s1269 + $0x98] sm:$0xff]
                  %1334 = vst [vmem:[%s1270 + $0xb0] sm:$0xff] %v1333
                  %v1335 = vld [vmem:[%s1269 + $0x40] sm:$0xff]
                  %1336 = vst [vmem:[%s1270 + $0x70] sm:$0xff] %v1335
                  %v1337 = vld [vmem:[%s1269 + $0x48] sm:$0xff]
                  %1338 = vst [vmem:[%s1270 + $0x78] sm:$0xff] %v1337
                  %v1339 = vld [vmem:[%s1269 + $0x50] sm:$0xff]
                  %1340 = vst [vmem:[%s1270 + $0x80] sm:$0xff] %v1339
                  %v1341 = vld [vmem:[%s1269 + $0x58] sm:$0xff]
                  %1342 = vst [vmem:[%s1270 + $0x88] sm:$0xff] %v1341
                  %v1343 = vld [vmem:[%s1269 + $0x60] sm:$0xff]
                  %1344 = vst [vmem:[%s1270 + $0x90] sm:$0xff] %v1343
                  %v1345 = vld [vmem:[%s1269 + $0x68] sm:$0xff]
                  %1346 = vst [vmem:[%s1270 + $0x98] sm:$0xff] %v1345
                  %v1347 = vld [vmem:[%s1269 + $0x70] sm:$0xff]
                  %1348 = vst [vmem:[%s1270 + $0xa0] sm:$0xff] %v1347
                  %v1349 = vld [vmem:[%s1269 + $0x78] sm:$0xff]
                  %1350 = vst [vmem:[%s1270 + $0xa8] sm:$0xff] %v1349
                  %v1351 = vld [vmem:[%s1269 + $0x80] sm:$0xff]
                  %1352 = vst [vmem:[%s1270 + $0xb0] sm:$0xff] %v1351
                  %v1353 = vld [vmem:[%s1269 + $0x88] sm:$0xff]
                  %1354 = vst [vmem:[%s1270 + $0xb8] sm:$0xff] %v1353
                  %v1355 = vld [vmem:[%s1269 + $0x90] sm:$0xff]
                  %1356 = vst [vmem:[%s1270 + $0xc0] sm:$0xff] %v1355
                  %v1357 = vld [vmem:[%s1269 + $0x98] sm:$0xff]
                  %1358 = vst [vmem:[%s1270 + $0xc8] sm:$0xff] %v1357
                  %v1359 = vld [vmem:[%s1269 + $0xa0] sm:$0xff]
                  %1360 = vst [vmem:[%s1270 + $0xd0] sm:$0xff] %v1359
                  %v1361 = vld [vmem:[%s1269 + $0xa8] sm:$0xff]
                  %1362 = vst [vmem:[%s1270 + $0xd8] sm:$0xff] %v1361
                  %v1363 = vld [vmem:[%s1269 + $0xb0] sm:$0xff]
                  %1364 = vst [vmem:[%s1270 + $0xe0] sm:$0xff] %v1363
                  %v1365 = vld [vmem:[%s1269 + $0xb8] sm:$0xff]
                  %1366 = vst [vmem:[%s1270 + $0xe8] sm:$0xff] %v1365
                  %v1367 = vld [vmem:[%s1269 + $0x60] sm:$0xff]
                  %1368 = vst [vmem:[%s1270 + $0xa8] sm:$0xff] %v1367
                  %v1369 = vld [vmem:[%s1269 + $0x68] sm:$0xff]
                  %1370 = vst [vmem:[%s1270 + $0xb0] sm:$0xff] %v1369
                  %v1371 = vld [vmem:[%s1269 + $0x70] sm:$0xff]
                  %1372 = vst [vmem:[%s1270 + $0xb8] sm:$0xff] %v1371
                  %v1373 = vld [vmem:[%s1269 + $0x78] sm:$0xff]
                  %1374 = vst [vmem:[%s1270 + $0xc0] sm:$0xff] %v1373
                  %v1375 = vld [vmem:[%s1269 + $0x80] sm:$0xff]
                  %1376 = vst [vmem:[%s1270 + $0xc8] sm:$0xff] %v1375
                  %v1377 = vld [vmem:[%s1269 + $0x88] sm:$0xff]
                  %1378 = vst [vmem:[%s1270 + $0xd0] sm:$0xff] %v1377
                  %v1379 = vld [vmem:[%s1269 + $0x90] sm:$0xff]
                  %1380 = vst [vmem:[%s1270 + $0xd8] sm:$0xff] %v1379
                  %v1381 = vld [vmem:[%s1269 + $0x98] sm:$0xff]
                  %1382 = vst [vmem:[%s1270 + $0xe0] sm:$0xff] %v1381
                  %v1383 = vld [vmem:[%s1269 + $0xa0] sm:$0xff]
                  %1384 = vst [vmem:[%s1270 + $0xe8] sm:$0xff] %v1383
                  %v1385 = vld [vmem:[%s1269 + $0xa8] sm:$0xff]
                  %1386 = vst [vmem:[%s1270 + $0xf0] sm:$0xff] %v1385
                  %v1387 = vld [vmem:[%s1269 + $0xb0] sm:$0xff]
                  %1388 = vst [vmem:[%s1270 + $0xf8] sm:$0xff] %v1387
                  %v1389 = vld [vmem:[%s1269 + $0xb8] sm:$0xff]
                  %1390 = vst [vmem:[%s1270 + $0x100] sm:$0xff] %v1389
                  %v1391 = vld [vmem:[%s1269 + $0xc0] sm:$0xff]
                  %1392 = vst [vmem:[%s1270 + $0x108] sm:$0xff] %v1391
                  %v1393 = vld [vmem:[%s1269 + $0xc8] sm:$0xff]
                  %1394 = vst [vmem:[%s1270 + $0x110] sm:$0xff] %v1393
                  %v1395 = vld [vmem:[%s1269 + $0xd0] sm:$0xff]
                  %1396 = vst [vmem:[%s1270 + $0x118] sm:$0xff] %v1395
                  %v1397 = vld [vmem:[%s1269 + $0xd8] sm:$0xff]
                  %1398 = vst [vmem:[%s1270 + $0x120] sm:$0xff] %v1397
                  %s1399 = sadd.s32 1, %s1268
                  %p1400 = scmp.ge.s32.totalorder %s1399, %s1259
                  %s1401 = scalar_select %p1400, 0, %s1399
                  %s1402 = smul.u32 %s1401, 128
                  %s1403 = smul.u32 %s1401, 128
                  %s1404 = scalar_lea.vmem %s1213, %s1402 [#allocation3]
                  %s1405 = scalar_lea.vmem %s1224, %s1403
                $region130: #{qnetwork_forward.4} parent=124 // loop_footer
                  %s1265 = sadd.s32 %s1263, 1
                $region131: #{qnetwork_forward.4} parent=124 // loop_footer_branch
                  %1262 = sbr.rel target = $region127
                $region132: #{qnetwork_forward.4} parent=124 // loop_exit
                  _
                %s1406 = sshrl.u32 %s1258, 4
                %s1407 = sand.u32 %s1258, 15
                %s1408 = smul.u32 %s1406, 16
                %s1409 = smul.u32 128, %s1408
                %s1410 = sshra.s32 %s1409, 4
                %s1411 = scalar_lea.vmem %s1213, %s1410 [#allocation3]
                %s1412 = smul.u32 128, %s1408
                %s1413 = sshra.s32 %s1412, 4
                %s1414 = scalar_lea.vmem %s1224, %s1413
                // While loop
                $region133: #{qnetwork_forward.4} parent=124 // loop_pre_header
                  _
                $region134: #{qnetwork_forward.4} parent=124 // loop_header
                  %s1418 = sphi 0, %s1420
                  %p1419 = scmp.ge.s32.totalorder %s1418, %s1407
                  %s1423 = sphi 0, %s1436
                  %s1424 = sphi %s1411, %s1439
                  %s1425 = sphi %s1414, %s1440
                $region135: #{qnetwork_forward.4} parent=124 // loop_header_branch
                  %1422 = sbr.rel (%p1419) target = $region139
                $region136: #{qnetwork_forward.4} parent=124 // loop_body
                  %v1426 = vld [vmem:[%s1424] sm:$0xff]
                  %1427 = vst [vmem:[%s1425] sm:$0xff] %v1426
                  %v1428 = vld [vmem:[%s1424 + $0x20] sm:$0xff]
                  %1429 = vst [vmem:[%s1425 + $0x38] sm:$0xff] %v1428
                  %v1430 = vld [vmem:[%s1424 + $0x40] sm:$0xff]
                  %1431 = vst [vmem:[%s1425 + $0x70] sm:$0xff] %v1430
                  %v1432 = vld [vmem:[%s1424 + $0x60] sm:$0xff]
                  %1433 = vst [vmem:[%s1425 + $0xa8] sm:$0xff] %v1432
                  %s1434 = sadd.s32 1, %s1423
                  %p1435 = scmp.ge.s32.totalorder %s1434, %s1407
                  %s1436 = scalar_select %p1435, 0, %s1434
                  %s1437 = smul.u32 %s1436, 8
                  %s1438 = smul.u32 %s1436, 8
                  %s1439 = scalar_lea.vmem %s1411, %s1437 [#allocation3]
                  %s1440 = scalar_lea.vmem %s1414, %s1438
                $region137: #{qnetwork_forward.4} parent=124 // loop_footer
                  %s1420 = sadd.s32 %s1418, 1
                $region138: #{qnetwork_forward.4} parent=124 // loop_footer_branch
                  %1417 = sbr.rel target = $region134
                $region139: #{qnetwork_forward.4} parent=124 // loop_exit
                  _
              $region125: #{qnetwork_forward.4} parent=109 // pred_fallthru
                _
              %p1441 = pneg %p1254
              // Predicated region
              $region140: #{qnetwork_forward.4} parent=109 // pred_check
                _
              $region141: #{qnetwork_forward.4} parent=109 // pred_check_branch
                %1443 = sbr.rel (%p1254) target = $region143
              $region142: #{qnetwork_forward.4} parent=109 // pred_region
                %s1444 = sand.u32 %s1225, 7
                %s1445 = ssub.s32 %s1225, %s1444
                %s1446 = scalar_lea.vmem %s1213, %s1445 [#allocation3]
                %s1447 = ssub.s32 %s1225, %s1444
                %s1448 = scalar_lea.vmem %s1224, %s1447
                %s1449 = sshrl.u32 %s1225, 3
                %s1450 = sshrl.u32 %s1449, 4
                // While loop
                $region144: #{qnetwork_forward.4} parent=142 // loop_pre_header
                  _
                $region145: #{qnetwork_forward.4} parent=142 // loop_header
                  %s1454 = sphi 0, %s1456
                  %p1455 = scmp.ge.s32.totalorder %s1454, %s1450
                  %s1459 = sphi 0, %s1592
                  %s1460 = sphi %s1213, %s1595
                  %s1461 = sphi %s1224, %s1596
                $region146: #{qnetwork_forward.4} parent=142 // loop_header_branch
                  %1458 = sbr.rel (%p1455) target = $region150
                $region147: #{qnetwork_forward.4} parent=142 // loop_body
                  %v1462 = vld [vmem:[%s1460] sm:$0xff]
                  %1463 = vst [vmem:[%s1461] sm:$0xff] %v1462
                  %v1464 = vld [vmem:[%s1460 + $0x8] sm:$0xff]
                  %1465 = vst [vmem:[%s1461 + $0x8] sm:$0xff] %v1464
                  %v1466 = vld [vmem:[%s1460 + $0x10] sm:$0xff]
                  %1467 = vst [vmem:[%s1461 + $0x10] sm:$0xff] %v1466
                  %v1468 = vld [vmem:[%s1460 + $0x18] sm:$0xff]
                  %1469 = vst [vmem:[%s1461 + $0x18] sm:$0xff] %v1468
                  %v1470 = vld [vmem:[%s1460 + $0x20] sm:$0xff]
                  %1471 = vst [vmem:[%s1461 + $0x20] sm:$0xff] %v1470
                  %v1472 = vld [vmem:[%s1460 + $0x28] sm:$0xff]
                  %1473 = vst [vmem:[%s1461 + $0x28] sm:$0xff] %v1472
                  %v1474 = vld [vmem:[%s1460 + $0x30] sm:$0xff]
                  %1475 = vst [vmem:[%s1461 + $0x30] sm:$0xff] %v1474
                  %v1476 = vld [vmem:[%s1460 + $0x38] sm:$0xff]
                  %1477 = vst [vmem:[%s1461 + $0x38] sm:$0xff] %v1476
                  %v1478 = vld [vmem:[%s1460 + $0x40] sm:$0xff]
                  %1479 = vst [vmem:[%s1461 + $0x40] sm:$0xff] %v1478
                  %v1480 = vld [vmem:[%s1460 + $0x48] sm:$0xff]
                  %1481 = vst [vmem:[%s1461 + $0x48] sm:$0xff] %v1480
                  %v1482 = vld [vmem:[%s1460 + $0x50] sm:$0xff]
                  %1483 = vst [vmem:[%s1461 + $0x50] sm:$0xff] %v1482
                  %v1484 = vld [vmem:[%s1460 + $0x58] sm:$0xff]
                  %1485 = vst [vmem:[%s1461 + $0x58] sm:$0xff] %v1484
                  %v1486 = vld [vmem:[%s1460 + $0x60] sm:$0xff]
                  %1487 = vst [vmem:[%s1461 + $0x60] sm:$0xff] %v1486
                  %v1488 = vld [vmem:[%s1460 + $0x68] sm:$0xff]
                  %1489 = vst [vmem:[%s1461 + $0x68] sm:$0xff] %v1488
                  %v1490 = vld [vmem:[%s1460 + $0x70] sm:$0xff]
                  %1491 = vst [vmem:[%s1461 + $0x70] sm:$0xff] %v1490
                  %v1492 = vld [vmem:[%s1460 + $0x78] sm:$0xff]
                  %1493 = vst [vmem:[%s1461 + $0x78] sm:$0xff] %v1492
                  %v1494 = vld [vmem:[%s1460 + $0x20] sm:$0xff]
                  %1495 = vst [vmem:[%s1461 + $0x38] sm:$0xff] %v1494
                  %v1496 = vld [vmem:[%s1460 + $0x28] sm:$0xff]
                  %1497 = vst [vmem:[%s1461 + $0x40] sm:$0xff] %v1496
                  %v1498 = vld [vmem:[%s1460 + $0x30] sm:$0xff]
                  %1499 = vst [vmem:[%s1461 + $0x48] sm:$0xff] %v1498
                  %v1500 = vld [vmem:[%s1460 + $0x38] sm:$0xff]
                  %1501 = vst [vmem:[%s1461 + $0x50] sm:$0xff] %v1500
                  %v1502 = vld [vmem:[%s1460 + $0x40] sm:$0xff]
                  %1503 = vst [vmem:[%s1461 + $0x58] sm:$0xff] %v1502
                  %v1504 = vld [vmem:[%s1460 + $0x48] sm:$0xff]
                  %1505 = vst [vmem:[%s1461 + $0x60] sm:$0xff] %v1504
                  %v1506 = vld [vmem:[%s1460 + $0x50] sm:$0xff]
                  %1507 = vst [vmem:[%s1461 + $0x68] sm:$0xff] %v1506
                  %v1508 = vld [vmem:[%s1460 + $0x58] sm:$0xff]
                  %1509 = vst [vmem:[%s1461 + $0x70] sm:$0xff] %v1508
                  %v1510 = vld [vmem:[%s1460 + $0x60] sm:$0xff]
                  %1511 = vst [vmem:[%s1461 + $0x78] sm:$0xff] %v1510
                  %v1512 = vld [vmem:[%s1460 + $0x68] sm:$0xff]
                  %1513 = vst [vmem:[%s1461 + $0x80] sm:$0xff] %v1512
                  %v1514 = vld [vmem:[%s1460 + $0x70] sm:$0xff]
                  %1515 = vst [vmem:[%s1461 + $0x88] sm:$0xff] %v1514
                  %v1516 = vld [vmem:[%s1460 + $0x78] sm:$0xff]
                  %1517 = vst [vmem:[%s1461 + $0x90] sm:$0xff] %v1516
                  %v1518 = vld [vmem:[%s1460 + $0x80] sm:$0xff]
                  %1519 = vst [vmem:[%s1461 + $0x98] sm:$0xff] %v1518
                  %v1520 = vld [vmem:[%s1460 + $0x88] sm:$0xff]
                  %1521 = vst [vmem:[%s1461 + $0xa0] sm:$0xff] %v1520
                  %v1522 = vld [vmem:[%s1460 + $0x90] sm:$0xff]
                  %1523 = vst [vmem:[%s1461 + $0xa8] sm:$0xff] %v1522
                  %v1524 = vld [vmem:[%s1460 + $0x98] sm:$0xff]
                  %1525 = vst [vmem:[%s1461 + $0xb0] sm:$0xff] %v1524
                  %v1526 = vld [vmem:[%s1460 + $0x40] sm:$0xff]
                  %1527 = vst [vmem:[%s1461 + $0x70] sm:$0xff] %v1526
                  %v1528 = vld [vmem:[%s1460 + $0x48] sm:$0xff]
                  %1529 = vst [vmem:[%s1461 + $0x78] sm:$0xff] %v1528
                  %v1530 = vld [vmem:[%s1460 + $0x50] sm:$0xff]
                  %1531 = vst [vmem:[%s1461 + $0x80] sm:$0xff] %v1530
                  %v1532 = vld [vmem:[%s1460 + $0x58] sm:$0xff]
                  %1533 = vst [vmem:[%s1461 + $0x88] sm:$0xff] %v1532
                  %v1534 = vld [vmem:[%s1460 + $0x60] sm:$0xff]
                  %1535 = vst [vmem:[%s1461 + $0x90] sm:$0xff] %v1534
                  %v1536 = vld [vmem:[%s1460 + $0x68] sm:$0xff]
                  %1537 = vst [vmem:[%s1461 + $0x98] sm:$0xff] %v1536
                  %v1538 = vld [vmem:[%s1460 + $0x70] sm:$0xff]
                  %1539 = vst [vmem:[%s1461 + $0xa0] sm:$0xff] %v1538
                  %v1540 = vld [vmem:[%s1460 + $0x78] sm:$0xff]
                  %1541 = vst [vmem:[%s1461 + $0xa8] sm:$0xff] %v1540
                  %v1542 = vld [vmem:[%s1460 + $0x80] sm:$0xff]
                  %1543 = vst [vmem:[%s1461 + $0xb0] sm:$0xff] %v1542
                  %v1544 = vld [vmem:[%s1460 + $0x88] sm:$0xff]
                  %1545 = vst [vmem:[%s1461 + $0xb8] sm:$0xff] %v1544
                  %v1546 = vld [vmem:[%s1460 + $0x90] sm:$0xff]
                  %1547 = vst [vmem:[%s1461 + $0xc0] sm:$0xff] %v1546
                  %v1548 = vld [vmem:[%s1460 + $0x98] sm:$0xff]
                  %1549 = vst [vmem:[%s1461 + $0xc8] sm:$0xff] %v1548
                  %v1550 = vld [vmem:[%s1460 + $0xa0] sm:$0xff]
                  %1551 = vst [vmem:[%s1461 + $0xd0] sm:$0xff] %v1550
                  %v1552 = vld [vmem:[%s1460 + $0xa8] sm:$0xff]
                  %1553 = vst [vmem:[%s1461 + $0xd8] sm:$0xff] %v1552
                  %v1554 = vld [vmem:[%s1460 + $0xb0] sm:$0xff]
                  %1555 = vst [vmem:[%s1461 + $0xe0] sm:$0xff] %v1554
                  %v1556 = vld [vmem:[%s1460 + $0xb8] sm:$0xff]
                  %1557 = vst [vmem:[%s1461 + $0xe8] sm:$0xff] %v1556
                  %v1558 = vld [vmem:[%s1460 + $0x60] sm:$0xff]
                  %1559 = vst [vmem:[%s1461 + $0xa8] sm:$0xff] %v1558
                  %v1560 = vld [vmem:[%s1460 + $0x68] sm:$0xff]
                  %1561 = vst [vmem:[%s1461 + $0xb0] sm:$0xff] %v1560
                  %v1562 = vld [vmem:[%s1460 + $0x70] sm:$0xff]
                  %1563 = vst [vmem:[%s1461 + $0xb8] sm:$0xff] %v1562
                  %v1564 = vld [vmem:[%s1460 + $0x78] sm:$0xff]
                  %1565 = vst [vmem:[%s1461 + $0xc0] sm:$0xff] %v1564
                  %v1566 = vld [vmem:[%s1460 + $0x80] sm:$0xff]
                  %1567 = vst [vmem:[%s1461 + $0xc8] sm:$0xff] %v1566
                  %v1568 = vld [vmem:[%s1460 + $0x88] sm:$0xff]
                  %1569 = vst [vmem:[%s1461 + $0xd0] sm:$0xff] %v1568
                  %v1570 = vld [vmem:[%s1460 + $0x90] sm:$0xff]
                  %1571 = vst [vmem:[%s1461 + $0xd8] sm:$0xff] %v1570
                  %v1572 = vld [vmem:[%s1460 + $0x98] sm:$0xff]
                  %1573 = vst [vmem:[%s1461 + $0xe0] sm:$0xff] %v1572
                  %v1574 = vld [vmem:[%s1460 + $0xa0] sm:$0xff]
                  %1575 = vst [vmem:[%s1461 + $0xe8] sm:$0xff] %v1574
                  %v1576 = vld [vmem:[%s1460 + $0xa8] sm:$0xff]
                  %1577 = vst [vmem:[%s1461 + $0xf0] sm:$0xff] %v1576
                  %v1578 = vld [vmem:[%s1460 + $0xb0] sm:$0xff]
                  %1579 = vst [vmem:[%s1461 + $0xf8] sm:$0xff] %v1578
                  %v1580 = vld [vmem:[%s1460 + $0xb8] sm:$0xff]
                  %1581 = vst [vmem:[%s1461 + $0x100] sm:$0xff] %v1580
                  %v1582 = vld [vmem:[%s1460 + $0xc0] sm:$0xff]
                  %1583 = vst [vmem:[%s1461 + $0x108] sm:$0xff] %v1582
                  %v1584 = vld [vmem:[%s1460 + $0xc8] sm:$0xff]
                  %1585 = vst [vmem:[%s1461 + $0x110] sm:$0xff] %v1584
                  %v1586 = vld [vmem:[%s1460 + $0xd0] sm:$0xff]
                  %1587 = vst [vmem:[%s1461 + $0x118] sm:$0xff] %v1586
                  %v1588 = vld [vmem:[%s1460 + $0xd8] sm:$0xff]
                  %1589 = vst [vmem:[%s1461 + $0x120] sm:$0xff] %v1588
                  %s1590 = sadd.s32 1, %s1459
                  %p1591 = scmp.ge.s32.totalorder %s1590, %s1450
                  %s1592 = scalar_select %p1591, 0, %s1590
                  %s1593 = smul.u32 %s1592, 128
                  %s1594 = smul.u32 %s1592, 128
                  %s1595 = scalar_lea.vmem %s1213, %s1593 [#allocation3]
                  %s1596 = scalar_lea.vmem %s1224, %s1594
                $region148: #{qnetwork_forward.4} parent=142 // loop_footer
                  %s1456 = sadd.s32 %s1454, 1
                $region149: #{qnetwork_forward.4} parent=142 // loop_footer_branch
                  %1453 = sbr.rel target = $region145
                $region150: #{qnetwork_forward.4} parent=142 // loop_exit
                  _
                %s1597 = sshrl.u32 %s1449, 4
                %s1598 = sand.u32 %s1449, 15
                %s1599 = smul.u32 %s1597, 16
                %s1600 = smul.u32 128, %s1599
                %s1601 = sshra.s32 %s1600, 4
                %s1602 = scalar_lea.vmem %s1213, %s1601 [#allocation3]
                %s1603 = smul.u32 128, %s1599
                %s1604 = sshra.s32 %s1603, 4
                %s1605 = scalar_lea.vmem %s1224, %s1604
                // While loop
                $region151: #{qnetwork_forward.4} parent=142 // loop_pre_header
                  _
                $region152: #{qnetwork_forward.4} parent=142 // loop_header
                  %s1609 = sphi 0, %s1611
                  %p1610 = scmp.ge.s32.totalorder %s1609, %s1598
                  %s1614 = sphi 0, %s1627
                  %s1615 = sphi %s1602, %s1630
                  %s1616 = sphi %s1605, %s1631
                $region153: #{qnetwork_forward.4} parent=142 // loop_header_branch
                  %1613 = sbr.rel (%p1610) target = $region157
                $region154: #{qnetwork_forward.4} parent=142 // loop_body
                  %v1617 = vld [vmem:[%s1615] sm:$0xff]
                  %1618 = vst [vmem:[%s1616] sm:$0xff] %v1617
                  %v1619 = vld [vmem:[%s1615 + $0x20] sm:$0xff]
                  %1620 = vst [vmem:[%s1616 + $0x38] sm:$0xff] %v1619
                  %v1621 = vld [vmem:[%s1615 + $0x40] sm:$0xff]
                  %1622 = vst [vmem:[%s1616 + $0x70] sm:$0xff] %v1621
                  %v1623 = vld [vmem:[%s1615 + $0x60] sm:$0xff]
                  %1624 = vst [vmem:[%s1616 + $0xa8] sm:$0xff] %v1623
                  %s1625 = sadd.s32 1, %s1614
                  %p1626 = scmp.ge.s32.totalorder %s1625, %s1598
                  %s1627 = scalar_select %p1626, 0, %s1625
                  %s1628 = smul.u32 %s1627, 8
                  %s1629 = smul.u32 %s1627, 8
                  %s1630 = scalar_lea.vmem %s1602, %s1628 [#allocation3]
                  %s1631 = scalar_lea.vmem %s1605, %s1629
                $region155: #{qnetwork_forward.4} parent=142 // loop_footer
                  %s1611 = sadd.s32 %s1609, 1
                $region156: #{qnetwork_forward.4} parent=142 // loop_footer_branch
                  %1608 = sbr.rel target = $region152
                $region157: #{qnetwork_forward.4} parent=142 // loop_exit
                  _
                %s1632 = sshllo.u32 0, %s1444
                loop: start=0, step=1, limit=1
                $region158: #{qnetwork_forward.4} parent=142 // loop_pre_header
                  _
                $region159: #{qnetwork_forward.4} parent=142 // loop_header
                  %s1634 = sphi 0, %s1638
                  %p1635 = scmp.ge.s32.totalorder %s1634, 1
                  %s1639 = sphi %s1446, %s1446
                  %s1640 = sphi %s1448, %s1448
                $region160: #{qnetwork_forward.4} parent=142 // loop_header_branch
                  %1637 = sbr.rel (%p1635) target = $region164
                $region161: #{qnetwork_forward.4} parent=142 // loop_body
                  %v1641 = vld [vmem:[%s1639] sm:%s1632]
                  %1642 = vst [vmem:[%s1640] sm:%s1632] %v1641
                  %v1643 = vld [vmem:[%s1639 + $0x20] sm:%s1632]
                  %1644 = vst [vmem:[%s1640 + $0x38] sm:%s1632] %v1643
                  %v1645 = vld [vmem:[%s1639 + $0x40] sm:%s1632]
                  %1646 = vst [vmem:[%s1640 + $0x70] sm:%s1632] %v1645
                  %v1647 = vld [vmem:[%s1639 + $0x60] sm:%s1632]
                  %1648 = vst [vmem:[%s1640 + $0xa8] sm:%s1632] %v1647
                $region162: #{qnetwork_forward.4} parent=142 // loop_footer
                  %s1638 = sadd.s32 1, %s1634
                $region163: #{qnetwork_forward.4} parent=142 // loop_footer_branch
                  %1633 = sbr.rel target = $region159
                $region164: #{qnetwork_forward.4} parent=142 // loop_exit
                  _
              $region143: #{qnetwork_forward.4} parent=109 // pred_fallthru
                _
            $region110: #{qnetwork_forward.4} parent=105 // pred_fallthru
              _
            // Predicated region
            $region111: #{qnetwork_forward.4} parent=105 // pred_check
              %p1233 = pneg %p1229
            $region112: #{qnetwork_forward.4} parent=105 // pred_check_branch
              %1235 = sbr.rel (%p1233) target = $region114
            $region113: #{qnetwork_forward.4} parent=105 // pred_region
              %s1236 = sshllo.u32 0, %s1225
              loop: start=0, step=1, limit=1
              $region115: #{qnetwork_forward.4} parent=113 // loop_pre_header
                _
              $region116: #{qnetwork_forward.4} parent=113 // loop_header
                %s1238 = sphi 0, %s1242
                %p1239 = scmp.ge.s32.totalorder %s1238, 1
                %s1243 = sphi %s1213, %s1213
                %s1244 = sphi %s1224, %s1224
              $region117: #{qnetwork_forward.4} parent=113 // loop_header_branch
                %1241 = sbr.rel (%p1239) target = $region121
              $region118: #{qnetwork_forward.4} parent=113 // loop_body
                %v1245 = vld [vmem:[%s1243] sm:%s1236]
                %1246 = vst [vmem:[%s1244] sm:%s1236] %v1245
                %v1247 = vld [vmem:[%s1243 + $0x20] sm:%s1236]
                %1248 = vst [vmem:[%s1244 + $0x38] sm:%s1236] %v1247
                %v1249 = vld [vmem:[%s1243 + $0x40] sm:%s1236]
                %1250 = vst [vmem:[%s1244 + $0x70] sm:%s1236] %v1249
                %v1251 = vld [vmem:[%s1243 + $0x60] sm:%s1236]
                %1252 = vst [vmem:[%s1244 + $0xa8] sm:%s1236] %v1251
              $region119: #{qnetwork_forward.4} parent=113 // loop_footer
                %s1242 = sadd.s32 1, %s1238
              $region120: #{qnetwork_forward.4} parent=113 // loop_footer_branch
                %1237 = sbr.rel target = $region116
              $region121: #{qnetwork_forward.4} parent=113 // loop_exit
                _
            $region114: #{qnetwork_forward.4} parent=105 // pred_fallthru
              _
          $region106: #{qnetwork_forward.4} parent=101 // pred_fallthru
            _
          %1649 = vnop
        $region102: #{qnetwork_forward.4} parent=93 // pred_fallthru
          _
      $region94: #{qnetwork_forward.4} parent=5 // pred_fallthru
        _
      %p1650 = scmp.le.s32.totalorder 2, %s9
      // Predicated region
      $region165: #{qnetwork_forward.4} parent=5 // pred_check
        %p1651 = pneg %p1650
      $region166: #{qnetwork_forward.4} parent=5 // pred_check_branch
        %1653 = sbr.rel (%p1651) target = $region168
      $region167: #{qnetwork_forward.4} parent=5 // pred_region
        %s1654 = ssub.s32 %s9, 2
        // Predicated region
        $region169: #{qnetwork_forward.4} parent=167 // pred_check
          %p1655 = pneg %p106
        $region170: #{qnetwork_forward.4} parent=167 // pred_check_branch
          %1657 = sbr.rel (%p1655) target = $region172
        $region171: #{qnetwork_forward.4} parent=167 // pred_region
          %s1658 = sand.u32 %s91, 1
          %s1659 = sand.u32 %s91, 1
          %s1660 = smul.addr %s1659, 128
          %s1661 = scalar_lea.vmem [#allocation3], %s1660
        $region172: #{qnetwork_forward.4} parent=167 // pred_fallthru
          _
      $region168: #{qnetwork_forward.4} parent=5 // pred_fallthru
        _
    $region6: #{qnetwork_forward.4} parent=1 // loop_footer
      %s13 = sadd.s32 1, %s9
    $region7: #{qnetwork_forward.4} parent=1 // loop_footer_branch
      %8 = sbr.rel target = $region3
    $region8: #{qnetwork_forward.4} parent=1 // loop_exit
      _

// kernel: qnetwork_forward.5
$region0: #{qnetwork_forward.5}
  #allocation0 [shape = 'u32[]', space=smem, size = 0x4, offset = 0x4, fixed_abs, tag = 'smem constant byte address 0x4 - core index']
  #allocation1 [shape = 'u32[144,128]{1,0:T(1,128)}', space=vmem, size = 0x12000, scoped, tag = 'internal scratch']
  %s0 = inlined_call_operand.vmem [shape: bf16[64,512], index: 0, kind: input, shape index: {}]
  %s1 = inlined_call_operand.vmem [shape: f32[512,162], index: 1, kind: input, shape index: {}]
  %s2 = inlined_call_operand.vmem [shape: f32[64,1], index: 2, kind: input, shape index: {}]
  %s3 = inlined_call_operand.vmem [shape: f32[64,162], index: 3, kind: output, shape index: {}]
  %s4 = sld [smem:[#allocation0]]
  $region22: #{qnetwork_forward.5} parent=0
    _
  %s6 = ssub.s32 1, %s4
  %s7 = scalar_select 0, %s6, %s4
  // Predicated region
  $region2: #{qnetwork_forward.5} parent=0 // pred_check
    _
  $region3: #{qnetwork_forward.5} parent=0 // pred_check_branch
    %9 = sbr.rel (0) target = $region5
  $region4: #{qnetwork_forward.5} parent=0 // pred_region
    _
  $region5: #{qnetwork_forward.5} parent=0 // pred_fallthru
    _
  // Predicated region
  $region6: #{qnetwork_forward.5} parent=0 // pred_check
    _
  $region7: #{qnetwork_forward.5} parent=0 // pred_check_branch
    %11 = sbr.rel (0) target = $region9
  $region8: #{qnetwork_forward.5} parent=0 // pred_region
    _
  $region9: #{qnetwork_forward.5} parent=0 // pred_fallthru
    _
  // Predicated region
  $region10: #{qnetwork_forward.5} parent=0 // pred_check
    _
  $region11: #{qnetwork_forward.5} parent=0 // pred_check_branch
    %13 = sbr.rel (0) target = $region13
  $region12: #{qnetwork_forward.5} parent=0 // pred_region
    _
  $region13: #{qnetwork_forward.5} parent=0 // pred_fallthru
    _
  %v14 = vld [vmem:[%s0] sm:$0xff]
  %v15 = vld [vmem:[%s0 + $0x8] sm:$0xff]
  %v16 = vld [vmem:[%s0 + $0x10] sm:$0xff]
  %v17 = vld [vmem:[%s0 + $0x18] sm:$0xff]
  %v18 = vld [vmem:[%s0 + $0x20] sm:$0xff]
  %v19 = vld [vmem:[%s0 + $0x28] sm:$0xff]
  %v20 = vld [vmem:[%s0 + $0x30] sm:$0xff]
  %v21 = vld [vmem:[%s0 + $0x38] sm:$0xff]
  %v22 = vld [vmem:[%s0 + $0x40] sm:$0xff]
  %v23 = vld [vmem:[%s0 + $0x48] sm:$0xff]
  %v24 = vld [vmem:[%s0 + $0x50] sm:$0xff]
  %v25 = vld [vmem:[%s0 + $0x58] sm:$0xff]
  %v26 = vld [vmem:[%s0 + $0x60] sm:$0xff]
  %v27 = vld [vmem:[%s0 + $0x68] sm:$0xff]
  %v28 = vld [vmem:[%s0 + $0x70] sm:$0xff]
  %v29 = vld [vmem:[%s0 + $0x78] sm:$0xff]
  %v30 = vld [vmem:[%s1] sm:$0xff]
  %v31 = vld [vmem:[%s1 + $0x8] sm:$0xff]
  %v32 = vld [vmem:[%s1 + $0x10] sm:$0xff]
  %v33 = vld [vmem:[%s1 + $0x18] sm:$0xff]
  %v34 = vld [vmem:[%s1 + $0x20] sm:$0xff]
  %v35 = vld [vmem:[%s1 + $0x28] sm:$0xff]
  %v36 = vld [vmem:[%s1 + $0x30] sm:$0xff]
  %v37 = vld [vmem:[%s1 + $0x38] sm:$0xff]
  %v38 = vld [vmem:[%s1 + $0x40] sm:$0xff]
  %v39 = vld [vmem:[%s1 + $0x48] sm:$0xff]
  %v40 = vld [vmem:[%s1 + $0x50] sm:$0xff]
  %v41 = vld [vmem:[%s1 + $0x58] sm:$0xff]
  %v42 = vld [vmem:[%s1 + $0x60] sm:$0xff]
  %v43 = vld [vmem:[%s1 + $0x68] sm:$0xff]
  %v44 = vld [vmem:[%s1 + $0x70] sm:$0xff]
  %v45 = vld [vmem:[%s1 + $0x78] sm:$0xff]
  %v46 = vld [vmem:[%s1 + $0x80] sm:$0xff]
  %v47 = vld [vmem:[%s1 + $0x88] sm:$0xff]
  %v48 = vld [vmem:[%s1 + $0x90] sm:$0xff]
  %v49 = vld [vmem:[%s1 + $0x98] sm:$0xff]
  %v50 = vld [vmem:[%s1 + $0xa0] sm:$0xff]
  %v51 = vld [vmem:[%s1 + $0xa8] sm:$0xff]
  %v52 = vld [vmem:[%s1 + $0xb0] sm:$0xff]
  %v53 = vld [vmem:[%s1 + $0xb8] sm:$0xff]
  %v54 = vld [vmem:[%s1 + $0xc0] sm:$0xff]
  %v55 = vld [vmem:[%s1 + $0xc8] sm:$0xff]
  %v56 = vld [vmem:[%s1 + $0xd0] sm:$0xff]
  %v57 = vld [vmem:[%s1 + $0xd8] sm:$0xff]
  %v58 = vld [vmem:[%s1 + $0xe0] sm:$0xff]
  %v59 = vld [vmem:[%s1 + $0xe8] sm:$0xff]
  %v60 = vld [vmem:[%s1 + $0xf0] sm:$0xff]
  %v61 = vld [vmem:[%s1 + $0xf8] sm:$0xff]
  %v62 = vld [vmem:[%s1 + $0x100] sm:$0xff]
  %v63 = vld [vmem:[%s1 + $0x108] sm:$0xff]
  %v64 = vld [vmem:[%s1 + $0x110] sm:$0xff]
  %v65 = vld [vmem:[%s1 + $0x118] sm:$0xff]
  %v66 = vld [vmem:[%s1 + $0x120] sm:$0xff]
  %v67 = vld [vmem:[%s1 + $0x128] sm:$0xff]
  %v68 = vld [vmem:[%s1 + $0x130] sm:$0xff]
  %v69 = vld [vmem:[%s1 + $0x138] sm:$0xff]
  %v70 = vld [vmem:[%s1 + $0x140] sm:$0xff]
  %v71 = vld [vmem:[%s1 + $0x148] sm:$0xff]
  %v72 = vld [vmem:[%s1 + $0x150] sm:$0xff]
  %v73 = vld [vmem:[%s1 + $0x158] sm:$0xff]
  %v74 = vld [vmem:[%s1 + $0x160] sm:$0xff]
  %v75 = vld [vmem:[%s1 + $0x168] sm:$0xff]
  %v76 = vld [vmem:[%s1 + $0x170] sm:$0xff]
  %v77 = vld [vmem:[%s1 + $0x178] sm:$0xff]
  %v78 = vld [vmem:[%s1 + $0x180] sm:$0xff]
  %v79 = vld [vmem:[%s1 + $0x188] sm:$0xff]
  %v80 = vld [vmem:[%s1 + $0x190] sm:$0xff]
  %v81 = vld [vmem:[%s1 + $0x198] sm:$0xff]
  %v82 = vld [vmem:[%s1 + $0x1a0] sm:$0xff]
  %v83 = vld [vmem:[%s1 + $0x1a8] sm:$0xff]
  %v84 = vld [vmem:[%s1 + $0x1b0] sm:$0xff]
  %v85 = vld [vmem:[%s1 + $0x1b8] sm:$0xff]
  %v86 = vld [vmem:[%s1 + $0x1c0] sm:$0xff]
  %v87 = vld [vmem:[%s1 + $0x1c8] sm:$0xff]
  %v88 = vld [vmem:[%s1 + $0x1d0] sm:$0xff]
  %v89 = vld [vmem:[%s1 + $0x1d8] sm:$0xff]
  %v90 = vld [vmem:[%s1 + $0x1e0] sm:$0xff]
  %v91 = vld [vmem:[%s1 + $0x1e8] sm:$0xff]
  %v92 = vld [vmem:[%s1 + $0x1f0] sm:$0xff]
  %v93 = vld [vmem:[%s1 + $0x1f8] sm:$0xff]
  %v94 = vld [vmem:[%s1 + $0x200] sm:$0xff]
  %v95 = vld [vmem:[%s1 + $0x208] sm:$0xff]
  %v96 = vld [vmem:[%s1 + $0x210] sm:$0xff]
  %v97 = vld [vmem:[%s1 + $0x218] sm:$0xff]
  %v98 = vld [vmem:[%s1 + $0x220] sm:$0xff]
  %v99 = vld [vmem:[%s1 + $0x228] sm:$0xff]
  %v100 = vld [vmem:[%s1 + $0x230] sm:$0xff]
  %v101 = vld [vmem:[%s1 + $0x238] sm:$0xff]
  %v102 = vld [vmem:[%s1 + $0x240] sm:$0xff]
  %v103 = vld [vmem:[%s1 + $0x248] sm:$0xff]
  %v104 = vld [vmem:[%s1 + $0x250] sm:$0xff]
  %v105 = vld [vmem:[%s1 + $0x258] sm:$0xff]
  %v106 = vld [vmem:[%s1 + $0x260] sm:$0xff]
  %v107 = vld [vmem:[%s1 + $0x268] sm:$0xff]
  %v108 = vld [vmem:[%s1 + $0x270] sm:$0xff]
  %v109 = vld [vmem:[%s1 + $0x278] sm:$0xff]
  %v110 = vld [vmem:[%s1 + $0x280] sm:$0xff]
  %v111 = vld [vmem:[%s1 + $0x288] sm:$0xff]
  %v112 = vld [vmem:[%s1 + $0x290] sm:$0xff]
  %v113 = vld [vmem:[%s1 + $0x298] sm:$0xff]
  %v114 = vld [vmem:[%s1 + $0x2a0] sm:$0xff]
  %v115 = vld [vmem:[%s1 + $0x2a8] sm:$0xff]
  %v116 = vld [vmem:[%s1 + $0x2b0] sm:$0xff]
  %v117 = vld [vmem:[%s1 + $0x2b8] sm:$0xff]
  %v118 = vld [vmem:[%s1 + $0x2c0] sm:$0xff]
  %v119 = vld [vmem:[%s1 + $0x2c8] sm:$0xff]
  %v120 = vld [vmem:[%s1 + $0x2d0] sm:$0xff]
  %v121 = vld [vmem:[%s1 + $0x2d8] sm:$0xff]
  %v122 = vld [vmem:[%s1 + $0x2e0] sm:$0xff]
  %v123 = vld [vmem:[%s1 + $0x2e8] sm:$0xff]
  %v124 = vld [vmem:[%s1 + $0x2f0] sm:$0xff]
  %v125 = vld [vmem:[%s1 + $0x2f8] sm:$0xff]
  %v126 = vld [vmem:[%s1 + $0x300] sm:$0xff]
  %v127 = vld [vmem:[%s1 + $0x308] sm:$0xff]
  %v128 = vld [vmem:[%s1 + $0x310] sm:$0xff]
  %v129 = vld [vmem:[%s1 + $0x318] sm:$0xff]
  %v130 = vld [vmem:[%s1 + $0x320] sm:$0xff]
  %v131 = vld [vmem:[%s1 + $0x328] sm:$0xff]
  %v132 = vld [vmem:[%s1 + $0x330] sm:$0xff]
  %v133 = vld [vmem:[%s1 + $0x338] sm:$0xff]
  %v134 = vld [vmem:[%s1 + $0x340] sm:$0xff]
  %v135 = vld [vmem:[%s1 + $0x348] sm:$0xff]
  %v136 = vld [vmem:[%s1 + $0x350] sm:$0xff]
  %v137 = vld [vmem:[%s1 + $0x358] sm:$0xff]
  %v138 = vld [vmem:[%s1 + $0x360] sm:$0xff]
  %v139 = vld [vmem:[%s1 + $0x368] sm:$0xff]
  %v140 = vld [vmem:[%s1 + $0x370] sm:$0xff]
  %v141 = vld [vmem:[%s1 + $0x378] sm:$0xff]
  %v142 = vld [vmem:[%s1 + $0x380] sm:$0xff]
  %v143 = vld [vmem:[%s1 + $0x388] sm:$0xff]
  %v144 = vld [vmem:[%s1 + $0x390] sm:$0xff]
  %v145 = vld [vmem:[%s1 + $0x398] sm:$0xff]
  %v146 = vld [vmem:[%s1 + $0x3a0] sm:$0xff]
  %v147 = vld [vmem:[%s1 + $0x3a8] sm:$0xff]
  %v148 = vld [vmem:[%s1 + $0x3b0] sm:$0xff]
  %v149 = vld [vmem:[%s1 + $0x3b8] sm:$0xff]
  %v150 = vld [vmem:[%s1 + $0x3c0] sm:$0xff]
  %v151 = vld [vmem:[%s1 + $0x3c8] sm:$0xff]
  %v152 = vld [vmem:[%s1 + $0x3d0] sm:$0xff]
  %v153 = vld [vmem:[%s1 + $0x3d8] sm:$0xff]
  %v154 = vld [vmem:[%s1 + $0x3e0] sm:$0xff]
  %v155 = vld [vmem:[%s1 + $0x3e8] sm:$0xff]
  %v156 = vld [vmem:[%s1 + $0x3f0] sm:$0xff]
  %v157 = vld [vmem:[%s1 + $0x3f8] sm:$0xff]
  %v158 = vpack.c.bf16 %v32, %v30
  %v159 = vpack.c.bf16 %v33, %v31
  %v160 = vpack.c.bf16 %v36, %v34
  %v161 = vpack.c.bf16 %v37, %v35
  %v162 = vpack.c.bf16 %v40, %v38
  %v163 = vpack.c.bf16 %v41, %v39
  %v164 = vpack.c.bf16 %v44, %v42
  %v165 = vpack.c.bf16 %v45, %v43
  %v166 = vpack.c.bf16 %v48, %v46
  %v167 = vpack.c.bf16 %v49, %v47
  %v168 = vpack.c.bf16 %v52, %v50
  %v169 = vpack.c.bf16 %v53, %v51
  %v170 = vpack.c.bf16 %v56, %v54
  %v171 = vpack.c.bf16 %v57, %v55
  %v172 = vpack.c.bf16 %v60, %v58
  %v173 = vpack.c.bf16 %v61, %v59
  %v174 = vpack.c.bf16 %v64, %v62
  %v175 = vpack.c.bf16 %v65, %v63
  %v176 = vpack.c.bf16 %v68, %v66
  %v177 = vpack.c.bf16 %v69, %v67
  %v178 = vpack.c.bf16 %v72, %v70
  %v179 = vpack.c.bf16 %v73, %v71
  %v180 = vpack.c.bf16 %v76, %v74
  %v181 = vpack.c.bf16 %v77, %v75
  %v182 = vpack.c.bf16 %v80, %v78
  %v183 = vpack.c.bf16 %v81, %v79
  %v184 = vpack.c.bf16 %v84, %v82
  %v185 = vpack.c.bf16 %v85, %v83
  %v186 = vpack.c.bf16 %v88, %v86
  %v187 = vpack.c.bf16 %v89, %v87
  %v188 = vpack.c.bf16 %v92, %v90
  %v189 = vpack.c.bf16 %v93, %v91
  %v190 = vpack.c.bf16 %v96, %v94
  %v191 = vpack.c.bf16 %v97, %v95
  %v192 = vpack.c.bf16 %v100, %v98
  %v193 = vpack.c.bf16 %v101, %v99
  %v194 = vpack.c.bf16 %v104, %v102
  %v195 = vpack.c.bf16 %v105, %v103
  %v196 = vpack.c.bf16 %v108, %v106
  %v197 = vpack.c.bf16 %v109, %v107
  %v198 = vpack.c.bf16 %v112, %v110
  %v199 = vpack.c.bf16 %v113, %v111
  %v200 = vpack.c.bf16 %v116, %v114
  %v201 = vpack.c.bf16 %v117, %v115
  %v202 = vpack.c.bf16 %v120, %v118
  %v203 = vpack.c.bf16 %v121, %v119
  %v204 = vpack.c.bf16 %v124, %v122
  %v205 = vpack.c.bf16 %v125, %v123
  %v206 = vpack.c.bf16 %v128, %v126
  %v207 = vpack.c.bf16 %v129, %v127
  %v208 = vpack.c.bf16 %v132, %v130
  %v209 = vpack.c.bf16 %v133, %v131
  %v210 = vpack.c.bf16 %v136, %v134
  %v211 = vpack.c.bf16 %v137, %v135
  %v212 = vpack.c.bf16 %v140, %v138
  %v213 = vpack.c.bf16 %v141, %v139
  %v214 = vpack.c.bf16 %v144, %v142
  %v215 = vpack.c.bf16 %v145, %v143
  %v216 = vpack.c.bf16 %v148, %v146
  %v217 = vpack.c.bf16 %v149, %v147
  %v218 = vpack.c.bf16 %v152, %v150
  %v219 = vpack.c.bf16 %v153, %v151
  %v220 = vpack.c.bf16 %v156, %v154
  %v221 = vpack.c.bf16 %v157, %v155
  %v222 = vld [vmem:[%s2] sm:$0xff]
  %v223 = vld [vmem:[%s2 + $0x8] sm:$0xff]
  %v224 = vld [vmem:[%s2 + $0x10] sm:$0xff]
  %v225 = vld [vmem:[%s2 + $0x18] sm:$0xff]
  %v226 = vld [vmem:[%s2 + $0x20] sm:$0xff]
  %v227 = vld [vmem:[%s2 + $0x28] sm:$0xff]
  %v228 = vld [vmem:[%s2 + $0x30] sm:$0xff]
  %v229 = vld [vmem:[%s2 + $0x38] sm:$0xff]
  %231 = vset.pattern.permute.xlu0 0
  %232 = vperm.xlu0 %231, %v222
  %v233 = vpop.permute.xlu0 %232
  %236 = vset.pattern.permute.xlu0 0
  %237 = vperm.xlu0 %236, %v223
  %v238 = vpop.permute.xlu0 %237
  %241 = vset.pattern.permute.xlu0 0
  %242 = vperm.xlu0 %241, %v224
  %v243 = vpop.permute.xlu0 %242
  %246 = vset.pattern.permute.xlu0 0
  %247 = vperm.xlu0 %246, %v225
  %v248 = vpop.permute.xlu0 %247
  %251 = vset.pattern.permute.xlu0 0
  %252 = vperm.xlu0 %251, %v226
  %v253 = vpop.permute.xlu0 %252
  %256 = vset.pattern.permute.xlu0 0
  %257 = vperm.xlu0 %256, %v227
  %v258 = vpop.permute.xlu0 %257
  %261 = vset.pattern.permute.xlu0 0
  %262 = vperm.xlu0 %261, %v228
  %v263 = vpop.permute.xlu0 %262
  %266 = vset.pattern.permute.xlu0 0
  %267 = vperm.xlu0 %266, %v229
  %v268 = vpop.permute.xlu0 %267
  %v286 = vunpack.c.l.b16 %v14
  %v287 = vunpack.c.h.b16 %v14
  %v288 = vunpack.c.l.b16 %v15
  %v289 = vunpack.c.h.b16 %v15
  %v290 = vunpack.c.l.b16 %v16
  %v291 = vunpack.c.h.b16 %v16
  %v292 = vunpack.c.l.b16 %v17
  %v293 = vunpack.c.h.b16 %v17
  %v294 = vunpack.c.l.b16 %v18
  %v295 = vunpack.c.h.b16 %v18
  %v296 = vunpack.c.l.b16 %v19
  %v297 = vunpack.c.h.b16 %v19
  %v298 = vunpack.c.l.b16 %v20
  %v299 = vunpack.c.h.b16 %v20
  %v300 = vunpack.c.l.b16 %v21
  %v301 = vunpack.c.h.b16 %v21
  %v302 = vunpack.c.l.b16 %v22
  %v303 = vunpack.c.h.b16 %v22
  %v304 = vunpack.c.l.b16 %v23
  %v305 = vunpack.c.h.b16 %v23
  %v306 = vunpack.c.l.b16 %v24
  %v307 = vunpack.c.h.b16 %v24
  %v308 = vunpack.c.l.b16 %v25
  %v309 = vunpack.c.h.b16 %v25
  %v310 = vunpack.c.l.b16 %v26
  %v311 = vunpack.c.h.b16 %v26
  %v312 = vunpack.c.l.b16 %v27
  %v313 = vunpack.c.h.b16 %v27
  %v314 = vunpack.c.l.b16 %v28
  %v315 = vunpack.c.h.b16 %v28
  %v316 = vunpack.c.l.b16 %v29
  %v317 = vunpack.c.h.b16 %v29
  %v318 = vpack.c.b16 %v290, %v286
  %v319 = vpack.c.b16 %v291, %v287
  %v320 = vpack.c.b16 %v292, %v288
  %v321 = vpack.c.b16 %v293, %v289
  %v322 = vpack.c.b16 %v298, %v294
  %v323 = vpack.c.b16 %v299, %v295
  %v324 = vpack.c.b16 %v300, %v296
  %v325 = vpack.c.b16 %v301, %v297
  %v326 = vpack.c.b16 %v306, %v302
  %v327 = vpack.c.b16 %v307, %v303
  %v328 = vpack.c.b16 %v308, %v304
  %v329 = vpack.c.b16 %v309, %v305
  %v330 = vpack.c.b16 %v314, %v310
  %v331 = vpack.c.b16 %v315, %v311
  %v332 = vpack.c.b16 %v316, %v312
  %v333 = vpack.c.b16 %v317, %v313
  %350 = vmatprep.subr.bf16.mxu0 %v159
  %351 = vmatpush1.bf16.msra.mxu0 %v158
  %352 = vmatprep.subr.bf16.mxu0 %v161
  %353 = vmatpush1.bf16.msra.mxu0 %v160
  %354 = vmatprep.subr.bf16.mxu0 %v163
  %355 = vmatpush1.bf16.msra.mxu0 %v162
  %356 = vmatprep.subr.bf16.mxu0 %v165
  %357 = vmatpush1.bf16.msra.mxu0 %v164
  %358 = vmatprep.subr.bf16.mxu0 %v167
  %359 = vmatpush1.bf16.msra.mxu0 %v166
  %360 = vmatprep.subr.bf16.mxu0 %v169
  %361 = vmatpush1.bf16.msra.mxu0 %v168
  %362 = vmatprep.subr.bf16.mxu0 %v171
  %363 = vmatpush1.bf16.msra.mxu0 %v170
  %364 = vmatprep.subr.bf16.mxu0 %v173
  %365 = vmatpush1.bf16.msra.mxu0 %v172
  %366 = vmatprep.subr.bf16.mxu0 %v175
  %367 = vmatpush1.bf16.msra.mxu0 %v174
  %368 = vmatprep.subr.bf16.mxu0 %v177
  %369 = vmatpush1.bf16.msra.mxu0 %v176
  %370 = vmatprep.subr.bf16.mxu0 %v179
  %371 = vmatpush1.bf16.msra.mxu0 %v178
  %372 = vmatprep.subr.bf16.mxu0 %v181
  %373 = vmatpush1.bf16.msra.mxu0 %v180
  %374 = vmatprep.subr.bf16.mxu0 %v183
  %375 = vmatpush1.bf16.msra.mxu0 %v182
  %376 = vmatprep.subr.bf16.mxu0 %v185
  %377 = vmatpush1.bf16.msra.mxu0 %v184
  %378 = vmatprep.subr.bf16.mxu0 %v187
  %379 = vmatpush1.bf16.msra.mxu0 %v186
  %380 = vmatprep.subr.bf16.mxu0 %v189
  %381 = vmatpush1.bf16.msra.mxu0 %v188
  %382 = vmatprep.mubr.bf16.mxu0 %v319
  %383 = vmatmul.mubr.bf16.gmra.mrb[0].mxu0 %v318
  %v384 = vpop.f32.mrb[0].mxu0
  %v385 = vadd.f32 %v233, %v384
  %v386 = vpop.f32.mrb[0].mxu0
  %v387 = vadd.f32 %v233, %v386
  %v388 = vpop.f32.mrb[0].mxu0
  %v389 = vadd.f32 %v238, %v388
  %v390 = vpop.f32.mrb[0].mxu0
  %v391 = vadd.f32 %v238, %v390
  %392 = vmatprep.mubr.bf16.mxu0 %v323
  %393 = vmatmul.mubr.bf16.gmra.mrb[0].mxu0 %v322
  %v394 = vpop.f32.mrb[0].mxu0
  %v395 = vadd.f32 %v243, %v394
  %v396 = vpop.f32.mrb[0].mxu0
  %v397 = vadd.f32 %v243, %v396
  %v398 = vpop.f32.mrb[0].mxu0
  %v399 = vadd.f32 %v248, %v398
  %v400 = vpop.f32.mrb[0].mxu0
  %v401 = vadd.f32 %v248, %v400
  %402 = vmatprep.mubr.bf16.mxu0 %v327
  %403 = vmatmul.mubr.bf16.gmra.mrb[0].mxu0 %v326
  %v404 = vpop.f32.mrb[0].mxu0
  %v405 = vadd.f32 %v253, %v404
  %v406 = vpop.f32.mrb[0].mxu0
  %v407 = vadd.f32 %v253, %v406
  %v408 = vpop.f32.mrb[0].mxu0
  %v409 = vadd.f32 %v258, %v408
  %v410 = vpop.f32.mrb[0].mxu0
  %v411 = vadd.f32 %v258, %v410
  %412 = vmatprep.mubr.bf16.mxu0 %v331
  %413 = vmatmul.mubr.bf16.gmra.mrb[0].mxu0 %v330
  %v414 = vpop.f32.mrb[0].mxu0
  %v415 = vadd.f32 %v263, %v414
  %v416 = vpop.f32.mrb[0].mxu0
  %v417 = vadd.f32 %v263, %v416
  %v418 = vpop.f32.mrb[0].mxu0
  %v419 = vadd.f32 %v268, %v418
  %v420 = vpop.f32.mrb[0].mxu0
  %v421 = vadd.f32 %v268, %v420
  %422 = vdwg.mxu0
  %423 = vmatprep.subr.bf16.mxu0 %v191
  %424 = vmatpush1.bf16.msra.mxu0 %v190
  %425 = vmatprep.subr.bf16.mxu0 %v193
  %426 = vmatpush1.bf16.msra.mxu0 %v192
  %427 = vmatprep.subr.bf16.mxu0 %v195
  %428 = vmatpush1.bf16.msra.mxu0 %v194
  %429 = vmatprep.subr.bf16.mxu0 %v197
  %430 = vmatpush1.bf16.msra.mxu0 %v196
  %431 = vmatprep.subr.bf16.mxu0 %v199
  %432 = vmatpush1.bf16.msra.mxu0 %v198
  %433 = vmatprep.subr.bf16.mxu0 %v201
  %434 = vmatpush1.bf16.msra.mxu0 %v200
  %435 = vmatprep.subr.bf16.mxu0 %v203
  %436 = vmatpush1.bf16.msra.mxu0 %v202
  %437 = vmatprep.subr.bf16.mxu0 %v205
  %438 = vmatpush1.bf16.msra.mxu0 %v204
  %439 = vmatprep.subr.bf16.mxu0 %v207
  %440 = vmatpush1.bf16.msra.mxu0 %v206
  %441 = vmatprep.subr.bf16.mxu0 %v209
  %442 = vmatpush1.bf16.msra.mxu0 %v208
  %443 = vmatprep.subr.bf16.mxu0 %v211
  %444 = vmatpush1.bf16.msra.mxu0 %v210
  %445 = vmatprep.subr.bf16.mxu0 %v213
  %446 = vmatpush1.bf16.msra.mxu0 %v212
  %447 = vmatprep.subr.bf16.mxu0 %v215
  %448 = vmatpush1.bf16.msra.mxu0 %v214
  %449 = vmatprep.subr.bf16.mxu0 %v217
  %450 = vmatpush1.bf16.msra.mxu0 %v216
  %451 = vmatprep.subr.bf16.mxu0 %v219
  %452 = vmatpush1.bf16.msra.mxu0 %v218
  %453 = vmatprep.subr.bf16.mxu0 %v221
  %454 = vmatpush1.bf16.msra.mxu0 %v220
  %455 = vmatprep.mubr.bf16.mxu0 %v321
  %456 = vmatmul.mubr.bf16.gmra.mrb[0].mxu0 %v320
  %v457 = vpop.f32.mrb[0].mxu0
  %v458 = vadd.f32 %v385, %v457
  %v459 = vpop.f32.mrb[0].mxu0
  %v460 = vadd.f32 %v387, %v459
  %v461 = vpop.f32.mrb[0].mxu0
  %v462 = vadd.f32 %v389, %v461
  %v463 = vpop.f32.mrb[0].mxu0
  %v464 = vadd.f32 %v391, %v463
  %465 = vmatprep.mubr.bf16.mxu0 %v325
  %466 = vmatmul.mubr.bf16.gmra.mrb[0].mxu0 %v324
  %v467 = vpop.f32.mrb[0].mxu0
  %v468 = vadd.f32 %v395, %v467
  %v469 = vpop.f32.mrb[0].mxu0
  %v470 = vadd.f32 %v397, %v469
  %v471 = vpop.f32.mrb[0].mxu0
  %v472 = vadd.f32 %v399, %v471
  %v473 = vpop.f32.mrb[0].mxu0
  %v474 = vadd.f32 %v401, %v473
  %475 = vmatprep.mubr.bf16.mxu0 %v329
  %476 = vmatmul.mubr.bf16.gmra.mrb[0].mxu0 %v328
  %v477 = vpop.f32.mrb[0].mxu0
  %v478 = vadd.f32 %v405, %v477
  %v479 = vpop.f32.mrb[0].mxu0
  %v480 = vadd.f32 %v407, %v479
  %v481 = vpop.f32.mrb[0].mxu0
  %v482 = vadd.f32 %v409, %v481
  %v483 = vpop.f32.mrb[0].mxu0
  %v484 = vadd.f32 %v411, %v483
  %485 = vmatprep.mubr.bf16.mxu0 %v333
  %486 = vmatmul.mubr.bf16.gmra.mrb[0].mxu0 %v332
  %v487 = vpop.f32.mrb[0].mxu0
  %v488 = vadd.f32 %v415, %v487
  %v489 = vpop.f32.mrb[0].mxu0
  %v490 = vadd.f32 %v417, %v489
  %v491 = vpop.f32.mrb[0].mxu0
  %v492 = vadd.f32 %v419, %v491
  %v493 = vpop.f32.mrb[0].mxu0
  %v494 = vadd.f32 %v421, %v493
  %495 = vdwg.mxu0
  %v496 = vmax.f32 %v458, 0.0
  %v497 = vmax.f32 %v460, 0.0
  %v498 = vmax.f32 %v462, 0.0
  %v499 = vmax.f32 %v464, 0.0
  %v500 = vmax.f32 %v468, 0.0
  %v501 = vmax.f32 %v470, 0.0
  %v502 = vmax.f32 %v472, 0.0
  %v503 = vmax.f32 %v474, 0.0
  %v504 = vmax.f32 %v478, 0.0
  %v505 = vmax.f32 %v480, 0.0
  %v506 = vmax.f32 %v482, 0.0
  %v507 = vmax.f32 %v484, 0.0
  %v508 = vmax.f32 %v488, 0.0
  %v509 = vmax.f32 %v490, 0.0
  %v510 = vmax.f32 %v492, 0.0
  %v511 = vmax.f32 %v494, 0.0
  %512 = vst [vmem:[%s3] sm:$0xff] %v496
  %vm513 = vcmask 277504
  %514 = vst.msk [vmem:[%s3 + $0x8] sm:$0xff] %vm513, %v497
  %515 = vst [vmem:[%s3 + $0x10] sm:$0xff] %v498
  %516 = vst.msk [vmem:[%s3 + $0x18] sm:$0xff] %vm513, %v499
  %517 = vst [vmem:[%s3 + $0x20] sm:$0xff] %v500
  %518 = vst.msk [vmem:[%s3 + $0x28] sm:$0xff] %vm513, %v501
  %519 = vst [vmem:[%s3 + $0x30] sm:$0xff] %v502
  %520 = vst.msk [vmem:[%s3 + $0x38] sm:$0xff] %vm513, %v503
  %521 = vst [vmem:[%s3 + $0x40] sm:$0xff] %v504
  %522 = vst.msk [vmem:[%s3 + $0x48] sm:$0xff] %vm513, %v505
  %523 = vst [vmem:[%s3 + $0x50] sm:$0xff] %v506
  %524 = vst.msk [vmem:[%s3 + $0x58] sm:$0xff] %vm513, %v507
  %525 = vst [vmem:[%s3 + $0x60] sm:$0xff] %v508
  %526 = vst.msk [vmem:[%s3 + $0x68] sm:$0xff] %vm513, %v509
  %527 = vst [vmem:[%s3 + $0x70] sm:$0xff] %v510
  %528 = vst.msk [vmem:[%s3 + $0x78] sm:$0xff] %vm513, %v511
  // Predicated region
  $region14: #{qnetwork_forward.5} parent=0 // pred_check
    _
  $region15: #{qnetwork_forward.5} parent=0 // pred_check_branch
    %530 = sbr.rel (0) target = $region17
  $region16: #{qnetwork_forward.5} parent=0 // pred_region
    _
  $region17: #{qnetwork_forward.5} parent=0 // pred_fallthru
    _
  // Predicated region
  $region18: #{qnetwork_forward.5} parent=0 // pred_check
    _
  $region19: #{qnetwork_forward.5} parent=0 // pred_check_branch
    %532 = sbr.rel (0) target = $region21
  $region20: #{qnetwork_forward.5} parent=0 // pred_region
    _
  $region21: #{qnetwork_forward.5} parent=0 // pred_fallthru
    _

// kernel: qnetwork_forward.6
$region0: #{qnetwork_forward.6}
  #allocation0 [shape = 'u32[]', space=smem, size = 0x4, offset = 0x4, fixed_abs, tag = 'smem constant byte address 0x4 - core index']
  #allocation1 [shape = 'u32[144,128]{1,0:T(1,128)}', space=vmem, size = 0x12000, scoped, tag = 'internal scratch']
  %s0 = inlined_call_operand.vmem [shape: bf16[64,576], index: 0, kind: input, shape index: {}]
  %s1 = inlined_call_operand.vmem [shape: f32[576,98], index: 1, kind: input, shape index: {}]
  %s2 = inlined_call_operand.vmem [shape: f32[64,1], index: 2, kind: input, shape index: {}]
  %s3 = inlined_call_operand.vmem [shape: f32[64,98], index: 3, kind: output, shape index: {}]
  %s4 = sld [smem:[#allocation0]]
  $region22: #{qnetwork_forward.6} parent=0
    _
  %s6 = ssub.s32 1, %s4
  %s7 = scalar_select 0, %s6, %s4
  // Predicated region
  $region2: #{qnetwork_forward.6} parent=0 // pred_check
    _
  $region3: #{qnetwork_forward.6} parent=0 // pred_check_branch
    %9 = sbr.rel (0) target = $region5
  $region4: #{qnetwork_forward.6} parent=0 // pred_region
    _
  $region5: #{qnetwork_forward.6} parent=0 // pred_fallthru
    _
  // Predicated region
  $region6: #{qnetwork_forward.6} parent=0 // pred_check
    _
  $region7: #{qnetwork_forward.6} parent=0 // pred_check_branch
    %11 = sbr.rel (0) target = $region9
  $region8: #{qnetwork_forward.6} parent=0 // pred_region
    _
  $region9: #{qnetwork_forward.6} parent=0 // pred_fallthru
    _
  // Predicated region
  $region10: #{qnetwork_forward.6} parent=0 // pred_check
    _
  $region11: #{qnetwork_forward.6} parent=0 // pred_check_branch
    %13 = sbr.rel (0) target = $region13
  $region12: #{qnetwork_forward.6} parent=0 // pred_region
    _
  $region13: #{qnetwork_forward.6} parent=0 // pred_fallthru
    _
  %v15 = vld [vmem:[%s0] sm:$0xff]
  %v16 = vld [vmem:[%s0 + $0x8] sm:$0xff]
  %v17 = vld [vmem:[%s0 + $0x10] sm:$0xf]
  %v18 = vld [vmem:[%s0 + $0x14] sm:$0xff]
  %v19 = vld [vmem:[%s0 + $0x1c] sm:$0xff]
  %v20 = vld [vmem:[%s0 + $0x24] sm:$0xf]
  %v21 = vld [vmem:[%s0 + $0x28] sm:$0xff]
  %v22 = vld [vmem:[%s0 + $0x30] sm:$0xff]
  %v23 = vld [vmem:[%s0 + $0x38] sm:$0xf]
  %v24 = vld [vmem:[%s0 + $0x3c] sm:$0xff]
  %v25 = vld [vmem:[%s0 + $0x44] sm:$0xff]
  %v26 = vld [vmem:[%s0 + $0x4c] sm:$0xf]
  %v27 = vld [vmem:[%s0 + $0x50] sm:$0xff]
  %v28 = vld [vmem:[%s0 + $0x58] sm:$0xff]
  %v29 = vld [vmem:[%s0 + $0x60] sm:$0xf]
  %v30 = vld [vmem:[%s0 + $0x64] sm:$0xff]
  %v31 = vld [vmem:[%s0 + $0x6c] sm:$0xff]
  %v32 = vld [vmem:[%s0 + $0x74] sm:$0xf]
  %v33 = vld [vmem:[%s0 + $0x78] sm:$0xff]
  %v34 = vld [vmem:[%s0 + $0x80] sm:$0xff]
  %v35 = vld [vmem:[%s0 + $0x88] sm:$0xf]
  %v36 = vld [vmem:[%s0 + $0x8c] sm:$0xff]
  %v37 = vld [vmem:[%s0 + $0x94] sm:$0xff]
  %v38 = vld [vmem:[%s0 + $0x9c] sm:$0xf]
  %v39 = vld [vmem:[%s1] sm:$0xff]
  %v40 = vld [vmem:[%s1 + $0x8] sm:$0xff]
  %v41 = vld [vmem:[%s1 + $0x10] sm:$0xff]
  %v42 = vld [vmem:[%s1 + $0x18] sm:$0xff]
  %v43 = vld [vmem:[%s1 + $0x20] sm:$0xff]
  %v44 = vld [vmem:[%s1 + $0x28] sm:$0xff]
  %v45 = vld [vmem:[%s1 + $0x30] sm:$0xff]
  %v46 = vld [vmem:[%s1 + $0x38] sm:$0xff]
  %v47 = vld [vmem:[%s1 + $0x40] sm:$0xff]
  %v48 = vld [vmem:[%s1 + $0x48] sm:$0xff]
  %v49 = vld [vmem:[%s1 + $0x50] sm:$0xff]
  %v50 = vld [vmem:[%s1 + $0x58] sm:$0xff]
  %v51 = vld [vmem:[%s1 + $0x60] sm:$0xff]
  %v52 = vld [vmem:[%s1 + $0x68] sm:$0xff]
  %v53 = vld [vmem:[%s1 + $0x70] sm:$0xff]
  %v54 = vld [vmem:[%s1 + $0x78] sm:$0xff]
  %v55 = vld [vmem:[%s1 + $0x80] sm:$0xff]
  %v56 = vld [vmem:[%s1 + $0x88] sm:$0xff]
  %v57 = vld [vmem:[%s1 + $0x90] sm:$0xff]
  %v58 = vld [vmem:[%s1 + $0x98] sm:$0xff]
  %v59 = vld [vmem:[%s1 + $0xa0] sm:$0xff]
  %v60 = vld [vmem:[%s1 + $0xa8] sm:$0xff]
  %v61 = vld [vmem:[%s1 + $0xb0] sm:$0xff]
  %v62 = vld [vmem:[%s1 + $0xb8] sm:$0xff]
  %v63 = vld [vmem:[%s1 + $0xc0] sm:$0xff]
  %v64 = vld [vmem:[%s1 + $0xc8] sm:$0xff]
  %v65 = vld [vmem:[%s1 + $0xd0] sm:$0xff]
  %v66 = vld [vmem:[%s1 + $0xd8] sm:$0xff]
  %v67 = vld [vmem:[%s1 + $0xe0] sm:$0xff]
  %v68 = vld [vmem:[%s1 + $0xe8] sm:$0xff]
  %v69 = vld [vmem:[%s1 + $0xf0] sm:$0xff]
  %v70 = vld [vmem:[%s1 + $0xf8] sm:$0xff]
  %v71 = vld [vmem:[%s1 + $0x100] sm:$0xff]
  %v72 = vld [vmem:[%s1 + $0x108] sm:$0xff]
  %v73 = vld [vmem:[%s1 + $0x110] sm:$0xff]
  %v74 = vld [vmem:[%s1 + $0x118] sm:$0xff]
  %v75 = vld [vmem:[%s1 + $0x120] sm:$0xff]
  %v76 = vld [vmem:[%s1 + $0x128] sm:$0xff]
  %v77 = vld [vmem:[%s1 + $0x130] sm:$0xff]
  %v78 = vld [vmem:[%s1 + $0x138] sm:$0xff]
  %v79 = vld [vmem:[%s1 + $0x140] sm:$0xff]
  %v80 = vld [vmem:[%s1 + $0x148] sm:$0xff]
  %v81 = vld [vmem:[%s1 + $0x150] sm:$0xff]
  %v82 = vld [vmem:[%s1 + $0x158] sm:$0xff]
  %v83 = vld [vmem:[%s1 + $0x160] sm:$0xff]
  %v84 = vld [vmem:[%s1 + $0x168] sm:$0xff]
  %v85 = vld [vmem:[%s1 + $0x170] sm:$0xff]
  %v86 = vld [vmem:[%s1 + $0x178] sm:$0xff]
  %v87 = vld [vmem:[%s1 + $0x180] sm:$0xff]
  %v88 = vld [vmem:[%s1 + $0x188] sm:$0xff]
  %v89 = vld [vmem:[%s1 + $0x190] sm:$0xff]
  %v90 = vld [vmem:[%s1 + $0x198] sm:$0xff]
  %v91 = vld [vmem:[%s1 + $0x1a0] sm:$0xff]
  %v92 = vld [vmem:[%s1 + $0x1a8] sm:$0xff]
  %v93 = vld [vmem:[%s1 + $0x1b0] sm:$0xff]
  %v94 = vld [vmem:[%s1 + $0x1b8] sm:$0xff]
  %v95 = vld [vmem:[%s1 + $0x1c0] sm:$0xff]
  %v96 = vld [vmem:[%s1 + $0x1c8] sm:$0xff]
  %v97 = vld [vmem:[%s1 + $0x1d0] sm:$0xff]
  %v98 = vld [vmem:[%s1 + $0x1d8] sm:$0xff]
  %v99 = vld [vmem:[%s1 + $0x1e0] sm:$0xff]
  %v100 = vld [vmem:[%s1 + $0x1e8] sm:$0xff]
  %v101 = vld [vmem:[%s1 + $0x1f0] sm:$0xff]
  %v102 = vld [vmem:[%s1 + $0x1f8] sm:$0xff]
  %v103 = vld [vmem:[%s1 + $0x200] sm:$0xff]
  %v104 = vld [vmem:[%s1 + $0x208] sm:$0xff]
  %v105 = vld [vmem:[%s1 + $0x210] sm:$0xff]
  %v106 = vld [vmem:[%s1 + $0x218] sm:$0xff]
  %v107 = vld [vmem:[%s1 + $0x220] sm:$0xff]
  %v108 = vld [vmem:[%s1 + $0x228] sm:$0xff]
  %v109 = vld [vmem:[%s1 + $0x230] sm:$0xff]
  %v110 = vld [vmem:[%s1 + $0x238] sm:$0xff]
  %v111 = vpack.c.bf16 %v40, %v39
  %v112 = vpack.c.bf16 %v42, %v41
  %v113 = vpack.c.bf16 %v44, %v43
  %v114 = vpack.c.bf16 %v46, %v45
  %v115 = vpack.c.bf16 %v48, %v47
  %v116 = vpack.c.bf16 %v50, %v49
  %v117 = vpack.c.bf16 %v52, %v51
  %v118 = vpack.c.bf16 %v54, %v53
  %v119 = vpack.c.bf16 %v56, %v55
  %v120 = vpack.c.bf16 %v58, %v57
  %v121 = vpack.c.bf16 %v60, %v59
  %v122 = vpack.c.bf16 %v62, %v61
  %v123 = vpack.c.bf16 %v64, %v63
  %v124 = vpack.c.bf16 %v66, %v65
  %v125 = vpack.c.bf16 %v68, %v67
  %v126 = vpack.c.bf16 %v70, %v69
  %v127 = vpack.c.bf16 %v72, %v71
  %v128 = vpack.c.bf16 %v74, %v73
  %v129 = vpack.c.bf16 %v76, %v75
  %v130 = vpack.c.bf16 %v78, %v77
  %v131 = vpack.c.bf16 %v80, %v79
  %v132 = vpack.c.bf16 %v82, %v81
  %v133 = vpack.c.bf16 %v84, %v83
  %v134 = vpack.c.bf16 %v86, %v85
  %v135 = vpack.c.bf16 %v88, %v87
  %v136 = vpack.c.bf16 %v90, %v89
  %v137 = vpack.c.bf16 %v92, %v91
  %v138 = vpack.c.bf16 %v94, %v93
  %v139 = vpack.c.bf16 %v96, %v95
  %v140 = vpack.c.bf16 %v98, %v97
  %v141 = vpack.c.bf16 %v100, %v99
  %v142 = vpack.c.bf16 %v102, %v101
  %v143 = vpack.c.bf16 %v104, %v103
  %v144 = vpack.c.bf16 %v106, %v105
  %v145 = vpack.c.bf16 %v108, %v107
  %v146 = vpack.c.bf16 %v110, %v109
  %v147 = vld [vmem:[%s2] sm:$0xff]
  %v148 = vld [vmem:[%s2 + $0x8] sm:$0xff]
  %v149 = vld [vmem:[%s2 + $0x10] sm:$0xff]
  %v150 = vld [vmem:[%s2 + $0x18] sm:$0xff]
  %v151 = vld [vmem:[%s2 + $0x20] sm:$0xff]
  %v152 = vld [vmem:[%s2 + $0x28] sm:$0xff]
  %v153 = vld [vmem:[%s2 + $0x30] sm:$0xff]
  %v154 = vld [vmem:[%s2 + $0x38] sm:$0xff]
  %156 = vset.pattern.permute.xlu0 0
  %157 = vperm.xlu0 %156, %v147
  %v158 = vpop.permute.xlu0 %157
  %161 = vset.pattern.permute.xlu0 0
  %162 = vperm.xlu0 %161, %v148
  %v163 = vpop.permute.xlu0 %162
  %166 = vset.pattern.permute.xlu0 0
  %167 = vperm.xlu0 %166, %v149
  %v168 = vpop.permute.xlu0 %167
  %171 = vset.pattern.permute.xlu0 0
  %172 = vperm.xlu0 %171, %v150
  %v173 = vpop.permute.xlu0 %172
  %176 = vset.pattern.permute.xlu0 0
  %177 = vperm.xlu0 %176, %v151
  %v178 = vpop.permute.xlu0 %177
  %181 = vset.pattern.permute.xlu0 0
  %182 = vperm.xlu0 %181, %v152
  %v183 = vpop.permute.xlu0 %182
  %186 = vset.pattern.permute.xlu0 0
  %187 = vperm.xlu0 %186, %v153
  %v188 = vpop.permute.xlu0 %187
  %191 = vset.pattern.permute.xlu0 0
  %192 = vperm.xlu0 %191, %v154
  %v193 = vpop.permute.xlu0 %192
  %v219 = vunpack.c.l.b16 %v15
  %v220 = vunpack.c.h.b16 %v15
  %v221 = vunpack.c.l.b16 %v16
  %v222 = vunpack.c.h.b16 %v16
  %v223 = vunpack.c.l.b16 %v17
  %v224 = vunpack.c.l.b16 %v18
  %v225 = vunpack.c.h.b16 %v18
  %v226 = vunpack.c.l.b16 %v19
  %v227 = vunpack.c.h.b16 %v19
  %v228 = vunpack.c.l.b16 %v20
  %v229 = vunpack.c.l.b16 %v21
  %v230 = vunpack.c.h.b16 %v21
  %v231 = vunpack.c.l.b16 %v22
  %v232 = vunpack.c.h.b16 %v22
  %v233 = vunpack.c.l.b16 %v23
  %v234 = vunpack.c.l.b16 %v24
  %v235 = vunpack.c.h.b16 %v24
  %v236 = vunpack.c.l.b16 %v25
  %v237 = vunpack.c.h.b16 %v25
  %v238 = vunpack.c.l.b16 %v26
  %v239 = vunpack.c.l.b16 %v27
  %v240 = vunpack.c.h.b16 %v27
  %v241 = vunpack.c.l.b16 %v28
  %v242 = vunpack.c.h.b16 %v28
  %v243 = vunpack.c.l.b16 %v29
  %v244 = vunpack.c.l.b16 %v30
  %v245 = vunpack.c.h.b16 %v30
  %v246 = vunpack.c.l.b16 %v31
  %v247 = vunpack.c.h.b16 %v31
  %v248 = vunpack.c.l.b16 %v32
  %v249 = vunpack.c.l.b16 %v33
  %v250 = vunpack.c.h.b16 %v33
  %v251 = vunpack.c.l.b16 %v34
  %v252 = vunpack.c.h.b16 %v34
  %v253 = vunpack.c.l.b16 %v35
  %v254 = vunpack.c.l.b16 %v36
  %v255 = vunpack.c.h.b16 %v36
  %v256 = vunpack.c.l.b16 %v37
  %v257 = vunpack.c.h.b16 %v37
  %v258 = vunpack.c.l.b16 %v38
  %v259 = vpack.c.b16 %v224, %v219
  %v260 = vpack.c.b16 %v225, %v220
  %v261 = vpack.c.b16 %v226, %v221
  %v262 = vpack.c.b16 %v227, %v222
  %v263 = vpack.c.b16 %v228, %v223
  %v264 = vpack.c.b16 %v234, %v229
  %v265 = vpack.c.b16 %v235, %v230
  %v266 = vpack.c.b16 %v236, %v231
  %v267 = vpack.c.b16 %v237, %v232
  %v268 = vpack.c.b16 %v238, %v233
  %v269 = vpack.c.b16 %v244, %v239
  %v270 = vpack.c.b16 %v245, %v240
  %v271 = vpack.c.b16 %v246, %v241
  %v272 = vpack.c.b16 %v247, %v242
  %v273 = vpack.c.b16 %v248, %v243
  %v274 = vpack.c.b16 %v254, %v249
  %v275 = vpack.c.b16 %v255, %v250
  %v276 = vpack.c.b16 %v256, %v251
  %v277 = vpack.c.b16 %v257, %v252
  %v278 = vpack.c.b16 %v258, %v253
  %vm295 = vcmask 523264
  %v297 = vsel %vm295, %v263, 0
  %v300 = vsel %vm295, %v268, 0
  %v303 = vsel %vm295, %v273, 0
  %v306 = vsel %vm295, %v278, 0
  %308 = vmatprep.subr.bf16.mxu0 0
  %309 = vmatpush1.bf16.msra.mxu0 %v111
  %310 = vmatprep.subr.bf16.mxu0 0
  %311 = vmatpush1.bf16.msra.mxu0 %v112
  %312 = vmatprep.subr.bf16.mxu0 0
  %313 = vmatpush1.bf16.msra.mxu0 %v113
  %314 = vmatprep.subr.bf16.mxu0 0
  %315 = vmatpush1.bf16.msra.mxu0 %v114
  %316 = vmatprep.subr.bf16.mxu0 0
  %317 = vmatpush1.bf16.msra.mxu0 %v115
  %318 = vmatprep.subr.bf16.mxu0 0
  %319 = vmatpush1.bf16.msra.mxu0 %v116
  %320 = vmatprep.subr.bf16.mxu0 0
  %321 = vmatpush1.bf16.msra.mxu0 %v117
  %322 = vmatprep.subr.bf16.mxu0 0
  %323 = vmatpush1.bf16.msra.mxu0 %v118
  %324 = vmatprep.subr.bf16.mxu0 0
  %325 = vmatpush1.bf16.msra.mxu0 %v119
  %326 = vmatprep.subr.bf16.mxu0 0
  %327 = vmatpush1.bf16.msra.mxu0 %v120
  %328 = vmatprep.subr.bf16.mxu0 0
  %329 = vmatpush1.bf16.msra.mxu0 %v121
  %330 = vmatprep.subr.bf16.mxu0 0
  %331 = vmatpush1.bf16.msra.mxu0 %v122
  %332 = vmatprep.subr.bf16.mxu0 0
  %333 = vmatpush1.bf16.msra.mxu0 %v123
  %334 = vmatprep.subr.bf16.mxu0 0
  %335 = vmatpush1.bf16.msra.mxu0 %v124
  %336 = vmatprep.subr.bf16.mxu0 0
  %337 = vmatpush1.bf16.msra.mxu0 %v125
  %338 = vmatprep.subr.bf16.mxu0 0
  %339 = vmatpush1.bf16.msra.mxu0 %v126
  %340 = vmatprep.mubr.bf16.mxu0 %v260
  %341 = vmatmul.mubr.bf16.gmra.mrb[0].mxu0 %v259
  %v342 = vpop.f32.mrb[0].mxu0
  %v343 = vadd.f32 %v158, %v342
  %v344 = vpop.f32.mrb[0].mxu0
  %v345 = vpop.f32.mrb[0].mxu0
  %v346 = vadd.f32 %v163, %v345
  %v347 = vpop.f32.mrb[0].mxu0
  %348 = vmatprep.mubr.bf16.mxu0 %v265
  %349 = vmatmul.mubr.bf16.gmra.mrb[0].mxu0 %v264
  %v350 = vpop.f32.mrb[0].mxu0
  %v351 = vadd.f32 %v168, %v350
  %v352 = vpop.f32.mrb[0].mxu0
  %v353 = vpop.f32.mrb[0].mxu0
  %v354 = vadd.f32 %v173, %v353
  %v355 = vpop.f32.mrb[0].mxu0
  %356 = vmatprep.mubr.bf16.mxu0 %v270
  %357 = vmatmul.mubr.bf16.gmra.mrb[0].mxu0 %v269
  %v358 = vpop.f32.mrb[0].mxu0
  %v359 = vadd.f32 %v178, %v358
  %v360 = vpop.f32.mrb[0].mxu0
  %v361 = vpop.f32.mrb[0].mxu0
  %v362 = vadd.f32 %v183, %v361
  %v363 = vpop.f32.mrb[0].mxu0
  %364 = vmatprep.mubr.bf16.mxu0 %v275
  %365 = vmatmul.mubr.bf16.gmra.mrb[0].mxu0 %v274
  %v366 = vpop.f32.mrb[0].mxu0
  %v367 = vadd.f32 %v188, %v366
  %v368 = vpop.f32.mrb[0].mxu0
  %v369 = vpop.f32.mrb[0].mxu0
  %v370 = vadd.f32 %v193, %v369
  %v371 = vpop.f32.mrb[0].mxu0
  %372 = vdwg.mxu0
  %373 = vmatprep.subr.bf16.mxu0 0
  %374 = vmatpush1.bf16.msra.mxu0 %v127
  %375 = vmatprep.subr.bf16.mxu0 0
  %376 = vmatpush1.bf16.msra.mxu0 %v128
  %377 = vmatprep.subr.bf16.mxu0 0
  %378 = vmatpush1.bf16.msra.mxu0 %v129
  %379 = vmatprep.subr.bf16.mxu0 0
  %380 = vmatpush1.bf16.msra.mxu0 %v130
  %381 = vmatprep.subr.bf16.mxu0 0
  %382 = vmatpush1.bf16.msra.mxu0 %v131
  %383 = vmatprep.subr.bf16.mxu0 0
  %384 = vmatpush1.bf16.msra.mxu0 %v132
  %385 = vmatprep.subr.bf16.mxu0 0
  %386 = vmatpush1.bf16.msra.mxu0 %v133
  %387 = vmatprep.subr.bf16.mxu0 0
  %388 = vmatpush1.bf16.msra.mxu0 %v134
  %389 = vmatprep.subr.bf16.mxu0 0
  %390 = vmatpush1.bf16.msra.mxu0 %v135
  %391 = vmatprep.subr.bf16.mxu0 0
  %392 = vmatpush1.bf16.msra.mxu0 %v136
  %393 = vmatprep.subr.bf16.mxu0 0
  %394 = vmatpush1.bf16.msra.mxu0 %v137
  %395 = vmatprep.subr.bf16.mxu0 0
  %396 = vmatpush1.bf16.msra.mxu0 %v138
  %397 = vmatprep.subr.bf16.mxu0 0
  %398 = vmatpush1.bf16.msra.mxu0 %v139
  %399 = vmatprep.subr.bf16.mxu0 0
  %400 = vmatpush1.bf16.msra.mxu0 %v140
  %401 = vmatprep.subr.bf16.mxu0 0
  %402 = vmatpush1.bf16.msra.mxu0 %v141
  %403 = vmatprep.subr.bf16.mxu0 0
  %404 = vmatpush1.bf16.msra.mxu0 %v142
  %405 = vmatprep.mubr.bf16.mxu0 %v262
  %406 = vmatmul.mubr.bf16.gmra.mrb[0].mxu0 %v261
  %v407 = vpop.f32.mrb[0].mxu0
  %v408 = vadd.f32 %v343, %v407
  %v409 = vpop.f32.mrb[0].mxu0
  %v410 = vpop.f32.mrb[0].mxu0
  %v411 = vadd.f32 %v346, %v410
  %v412 = vpop.f32.mrb[0].mxu0
  %413 = vmatprep.mubr.bf16.mxu0 %v267
  %414 = vmatmul.mubr.bf16.gmra.mrb[0].mxu0 %v266
  %v415 = vpop.f32.mrb[0].mxu0
  %v416 = vadd.f32 %v351, %v415
  %v417 = vpop.f32.mrb[0].mxu0
  %v418 = vpop.f32.mrb[0].mxu0
  %v419 = vadd.f32 %v354, %v418
  %v420 = vpop.f32.mrb[0].mxu0
  %421 = vmatprep.mubr.bf16.mxu0 %v272
  %422 = vmatmul.mubr.bf16.gmra.mrb[0].mxu0 %v271
  %v423 = vpop.f32.mrb[0].mxu0
  %v424 = vadd.f32 %v359, %v423
  %v425 = vpop.f32.mrb[0].mxu0
  %v426 = vpop.f32.mrb[0].mxu0
  %v427 = vadd.f32 %v362, %v426
  %v428 = vpop.f32.mrb[0].mxu0
  %429 = vmatprep.mubr.bf16.mxu0 %v277
  %430 = vmatmul.mubr.bf16.gmra.mrb[0].mxu0 %v276
  %v431 = vpop.f32.mrb[0].mxu0
  %v432 = vadd.f32 %v367, %v431
  %v433 = vpop.f32.mrb[0].mxu0
  %v434 = vpop.f32.mrb[0].mxu0
  %v435 = vadd.f32 %v370, %v434
  %v436 = vpop.f32.mrb[0].mxu0
  %437 = vdwg.mxu0
  %438 = vmatprep.subr.bf16.mxu0 0
  %439 = vmatpush1.bf16.msra.mxu0 %v143
  %440 = vmatprep.subr.bf16.mxu0 0
  %441 = vmatpush1.bf16.msra.mxu0 %v144
  %442 = vmatprep.subr.bf16.mxu0 0
  %443 = vmatpush1.bf16.msra.mxu0 %v145
  %444 = vmatprep.subr.bf16.mxu0 0
  %445 = vmatpush1.bf16.msra.mxu0 %v146
  %446 = vmatprep.subr.bf16.mxu0 0
  %447 = vmatpush1.bf16.msra.mxu0 0
  %448 = vmatprep.subr.bf16.mxu0 0
  %449 = vmatpush1.bf16.msra.mxu0 0
  %450 = vmatprep.subr.bf16.mxu0 0
  %451 = vmatpush1.bf16.msra.mxu0 0
  %452 = vmatprep.subr.bf16.mxu0 0
  %453 = vmatpush1.bf16.msra.mxu0 0
  %454 = vmatprep.subr.bf16.mxu0 0
  %455 = vmatpush1.bf16.msra.mxu0 0
  %456 = vmatprep.subr.bf16.mxu0 0
  %457 = vmatpush1.bf16.msra.mxu0 0
  %458 = vmatprep.subr.bf16.mxu0 0
  %459 = vmatpush1.bf16.msra.mxu0 0
  %460 = vmatprep.subr.bf16.mxu0 0
  %461 = vmatpush1.bf16.msra.mxu0 0
  %462 = vmatprep.subr.bf16.mxu0 0
  %463 = vmatpush1.bf16.msra.mxu0 0
  %464 = vmatprep.subr.bf16.mxu0 0
  %465 = vmatpush1.bf16.msra.mxu0 0
  %466 = vmatprep.subr.bf16.mxu0 0
  %467 = vmatpush1.bf16.msra.mxu0 0
  %468 = vmatprep.subr.bf16.mxu0 0
  %469 = vmatpush1.bf16.msra.mxu0 0
  %470 = vmatprep.mubr.bf16.mxu0 0
  %471 = vmatmul.mubr.bf16.gmra.mrb[0].mxu0 %v297
  %v472 = vpop.f32.mrb[0].mxu0
  %v473 = vadd.f32 %v408, %v472
  %v474 = vpop.f32.mrb[0].mxu0
  %v475 = vpop.f32.mrb[0].mxu0
  %v476 = vadd.f32 %v411, %v475
  %v477 = vpop.f32.mrb[0].mxu0
  %478 = vmatprep.mubr.bf16.mxu0 0
  %479 = vmatmul.mubr.bf16.gmra.mrb[0].mxu0 %v300
  %v480 = vpop.f32.mrb[0].mxu0
  %v481 = vadd.f32 %v416, %v480
  %v482 = vpop.f32.mrb[0].mxu0
  %v483 = vpop.f32.mrb[0].mxu0
  %v484 = vadd.f32 %v419, %v483
  %v485 = vpop.f32.mrb[0].mxu0
  %486 = vmatprep.mubr.bf16.mxu0 0
  %487 = vmatmul.mubr.bf16.gmra.mrb[0].mxu0 %v303
  %v488 = vpop.f32.mrb[0].mxu0
  %v489 = vadd.f32 %v424, %v488
  %v490 = vpop.f32.mrb[0].mxu0
  %v491 = vpop.f32.mrb[0].mxu0
  %v492 = vadd.f32 %v427, %v491
  %v493 = vpop.f32.mrb[0].mxu0
  %494 = vmatprep.mubr.bf16.mxu0 0
  %495 = vmatmul.mubr.bf16.gmra.mrb[0].mxu0 %v306
  %v496 = vpop.f32.mrb[0].mxu0
  %v497 = vadd.f32 %v432, %v496
  %v498 = vpop.f32.mrb[0].mxu0
  %v499 = vpop.f32.mrb[0].mxu0
  %v500 = vadd.f32 %v435, %v499
  %v501 = vpop.f32.mrb[0].mxu0
  %502 = vdwg.mxu0
  %v503 = vmax.f32 %v473, 0.0
  %v504 = vmax.f32 %v476, 0.0
  %v505 = vmax.f32 %v481, 0.0
  %v506 = vmax.f32 %v484, 0.0
  %v507 = vmax.f32 %v489, 0.0
  %v508 = vmax.f32 %v492, 0.0
  %v509 = vmax.f32 %v497, 0.0
  %v510 = vmax.f32 %v500, 0.0
  %vm511 = vcmask 801792
  %512 = vst.msk [vmem:[%s3] sm:$0xff] %vm511, %v503
  %513 = vst.msk [vmem:[%s3 + $0x8] sm:$0xff] %vm511, %v504
  %514 = vst.msk [vmem:[%s3 + $0x10] sm:$0xff] %vm511, %v505
  %515 = vst.msk [vmem:[%s3 + $0x18] sm:$0xff] %vm511, %v506
  %516 = vst.msk [vmem:[%s3 + $0x20] sm:$0xff] %vm511, %v507
  %517 = vst.msk [vmem:[%s3 + $0x28] sm:$0xff] %vm511, %v508
  %518 = vst.msk [vmem:[%s3 + $0x30] sm:$0xff] %vm511, %v509
  %519 = vst.msk [vmem:[%s3 + $0x38] sm:$0xff] %vm511, %v510
  // Predicated region
  $region14: #{qnetwork_forward.6} parent=0 // pred_check
    _
  $region15: #{qnetwork_forward.6} parent=0 // pred_check_branch
    %521 = sbr.rel (0) target = $region17
  $region16: #{qnetwork_forward.6} parent=0 // pred_region
    _
  $region17: #{qnetwork_forward.6} parent=0 // pred_fallthru
    _
  // Predicated region
  $region18: #{qnetwork_forward.6} parent=0 // pred_check
    _
  $region19: #{qnetwork_forward.6} parent=0 // pred_check_branch
    %523 = sbr.rel (0) target = $region21
  $region20: #{qnetwork_forward.6} parent=0 // pred_region
    _
  $region21: #{qnetwork_forward.6} parent=0 // pred_fallthru
    _

// kernel: qnetwork_forward.7
$region0: #{qnetwork_forward.7}
  #allocation0 [shape = 'u32[]', space=smem, size = 0x4, offset = 0x4, fixed_abs, tag = 'smem constant byte address 0x4 - core index']
  #allocation1 [shape = 'u32[144,128]{1,0:T(1,128)}', space=vmem, size = 0x12000, scoped, tag = 'internal scratch']
  %s0 = inlined_call_operand.vmem [shape: f32[2,3200], index: 0, kind: input, shape index: {}]
  %s1 = inlined_call_operand.vmem [shape: bf16[3200,512], index: 1, kind: input, shape index: {}]
  %s2 = inlined_call_operand.vmem [shape: f32[1,512], index: 2, kind: input, shape index: {}]
  %s3 = inlined_call_operand.vmem [shape: bf16[512,128], index: 3, kind: input, shape index: {}]
  %s4 = inlined_call_operand.vmem [shape: f32[1,128], index: 4, kind: input, shape index: {}]
  %s5 = inlined_call_operand.hbm [shape: f32[2,128], index: 5, kind: output, shape index: {}]
  %s6 = sld [smem:[#allocation0]]
  $region30: #{qnetwork_forward.7} parent=0
    _
  %s8 = ssub.s32 1, %s6
  %s9 = scalar_select 0, %s8, %s6
  $region1: #{qnetwork_forward.7} parent=0
    #allocation2 [shape = 'u8[1024]{0}', space=vmem, size = 0x400, scoped, tag = 'output window, operand 0, single buffered']
    #allocation3 [shape = 's32[1]{0}', space=sflag, size = 0x4, scoped, tag = 'scoped memory for qnetwork_forward.7']
    %10 = vsyncpa [#allocation3], 0
    // Predicated region
    $region2: #{qnetwork_forward.7} parent=1 // pred_check
      _
    $region3: #{qnetwork_forward.7} parent=1 // pred_check_branch
      %12 = sbr.rel (0) target = $region5
    $region4: #{qnetwork_forward.7} parent=1 // pred_region
      _
    $region5: #{qnetwork_forward.7} parent=1 // pred_fallthru
      _
    // Predicated region
    $region6: #{qnetwork_forward.7} parent=1 // pred_check
      _
    $region7: #{qnetwork_forward.7} parent=1 // pred_check_branch
      %14 = sbr.rel (0) target = $region9
    $region8: #{qnetwork_forward.7} parent=1 // pred_region
      _
    $region9: #{qnetwork_forward.7} parent=1 // pred_fallthru
      _
    // Predicated region
    $region10: #{qnetwork_forward.7} parent=1 // pred_check
      _
    $region11: #{qnetwork_forward.7} parent=1 // pred_check_branch
      %16 = sbr.rel (0) target = $region13
    $region12: #{qnetwork_forward.7} parent=1 // pred_region
      _
    $region13: #{qnetwork_forward.7} parent=1 // pred_fallthru
      _
    // Predicated region
    $region14: #{qnetwork_forward.7} parent=1 // pred_check
      _
    $region15: #{qnetwork_forward.7} parent=1 // pred_check_branch
      %18 = sbr.rel (0) target = $region17
    $region16: #{qnetwork_forward.7} parent=1 // pred_region
      _
    $region17: #{qnetwork_forward.7} parent=1 // pred_fallthru
      _
    // Predicated region
    $region18: #{qnetwork_forward.7} parent=1 // pred_check
      _
    $region19: #{qnetwork_forward.7} parent=1 // pred_check_branch
      %20 = sbr.rel (0) target = $region21
    $region20: #{qnetwork_forward.7} parent=1 // pred_region
      _
    $region21: #{qnetwork_forward.7} parent=1 // pred_fallthru
      _
    %v22 = vld [vmem:[%s0] sm:$0xff]
    %v23 = vld [vmem:[%s0 + $0x8] sm:$0xff]
    %v24 = vld [vmem:[%s0 + $0x10] sm:$0xff]
    %v25 = vld [vmem:[%s0 + $0x18] sm:$0xff]
    %v26 = vld [vmem:[%s0 + $0x20] sm:$0xff]
    %v27 = vld [vmem:[%s0 + $0x28] sm:$0xff]
    %v28 = vld [vmem:[%s0 + $0x30] sm:$0x3]
    %v36 = vcombine.high %v22, %v22
    %v38 = vunpack.c.l.s4 1983009808
    %v39 = vunpack.c.0.s8 %v38
    %v40 = vlaneseq
    %v41 = vshrl.u32 %v40, 7
    %v42 = vsub.s32 %v39, %v41
    %v43 = vrot.slane %v22, %v42
    %v45 = vunpack.c.l.s4 1983009808
    %v46 = vunpack.c.0.s8 %v45
    %v47 = vlaneseq
    %v48 = vshrl.u32 %v47, 7
    %v49 = vsub.s32 %v46, %v48
    %v50 = vrot.slane %v36, %v49
    %v51 = vcombine.high %v43, %v43
    %v52 = vcombine.high %v50, %v50
    %v53 = vcombine.high %v23, %v23
    %v55 = vunpack.c.l.s4 1983009808
    %v56 = vunpack.c.0.s8 %v55
    %v57 = vlaneseq
    %v58 = vshrl.u32 %v57, 7
    %v59 = vsub.s32 %v56, %v58
    %v60 = vrot.slane %v23, %v59
    %v62 = vunpack.c.l.s4 1983009808
    %v63 = vunpack.c.0.s8 %v62
    %v64 = vlaneseq
    %v65 = vshrl.u32 %v64, 7
    %v66 = vsub.s32 %v63, %v65
    %v67 = vrot.slane %v53, %v66
    %v68 = vcombine.high %v60, %v60
    %v69 = vcombine.high %v67, %v67
    %v70 = vcombine.high %v24, %v24
    %v72 = vunpack.c.l.s4 1983009808
    %v73 = vunpack.c.0.s8 %v72
    %v74 = vlaneseq
    %v75 = vshrl.u32 %v74, 7
    %v76 = vsub.s32 %v73, %v75
    %v77 = vrot.slane %v24, %v76
    %v79 = vunpack.c.l.s4 1983009808
    %v80 = vunpack.c.0.s8 %v79
    %v81 = vlaneseq
    %v82 = vshrl.u32 %v81, 7
    %v83 = vsub.s32 %v80, %v82
    %v84 = vrot.slane %v70, %v83
    %v85 = vcombine.high %v77, %v77
    %v86 = vcombine.high %v84, %v84
    %v87 = vcombine.high %v25, %v25
    %v89 = vunpack.c.l.s4 1983009808
    %v90 = vunpack.c.0.s8 %v89
    %v91 = vlaneseq
    %v92 = vshrl.u32 %v91, 7
    %v93 = vsub.s32 %v90, %v92
    %v94 = vrot.slane %v25, %v93
    %v96 = vunpack.c.l.s4 1983009808
    %v97 = vunpack.c.0.s8 %v96
    %v98 = vlaneseq
    %v99 = vshrl.u32 %v98, 7
    %v100 = vsub.s32 %v97, %v99
    %v101 = vrot.slane %v87, %v100
    %v102 = vcombine.high %v94, %v94
    %v103 = vcombine.high %v101, %v101
    %v104 = vcombine.high %v26, %v26
    %v106 = vunpack.c.l.s4 1983009808
    %v107 = vunpack.c.0.s8 %v106
    %v108 = vlaneseq
    %v109 = vshrl.u32 %v108, 7
    %v110 = vsub.s32 %v107, %v109
    %v111 = vrot.slane %v26, %v110
    %v113 = vunpack.c.l.s4 1983009808
    %v114 = vunpack.c.0.s8 %v113
    %v115 = vlaneseq
    %v116 = vshrl.u32 %v115, 7
    %v117 = vsub.s32 %v114, %v116
    %v118 = vrot.slane %v104, %v117
    %v119 = vcombine.high %v111, %v111
    %v120 = vcombine.high %v118, %v118
    %v121 = vcombine.high %v27, %v27
    %v123 = vunpack.c.l.s4 1983009808
    %v124 = vunpack.c.0.s8 %v123
    %v125 = vlaneseq
    %v126 = vshrl.u32 %v125, 7
    %v127 = vsub.s32 %v124, %v126
    %v128 = vrot.slane %v27, %v127
    %v130 = vunpack.c.l.s4 1983009808
    %v131 = vunpack.c.0.s8 %v130
    %v132 = vlaneseq
    %v133 = vshrl.u32 %v132, 7
    %v134 = vsub.s32 %v131, %v133
    %v135 = vrot.slane %v121, %v134
    %v136 = vcombine.high %v128, %v128
    %v137 = vcombine.high %v135, %v135
    %v139 = vunpack.c.l.s4 1983009808
    %v140 = vunpack.c.0.s8 %v139
    %v141 = vlaneseq
    %v142 = vshrl.u32 %v141, 7
    %v143 = vsub.s32 %v140, %v142
    %v144 = vrot.slane %v28, %v143
    %v170 = vpack.c.bf16 %v43, %v43
    %v171 = vpack.c.bf16 %v51, %v51
    %v172 = vpack.c.bf16 %v50, %v50
    %v173 = vpack.c.bf16 %v52, %v52
    %v174 = vpack.c.bf16 %v60, %v60
    %v175 = vpack.c.bf16 %v68, %v68
    %v176 = vpack.c.bf16 %v67, %v67
    %v177 = vpack.c.bf16 %v69, %v69
    %v178 = vpack.c.bf16 %v77, %v77
    %v179 = vpack.c.bf16 %v85, %v85
    %v180 = vpack.c.bf16 %v84, %v84
    %v181 = vpack.c.bf16 %v86, %v86
    %v182 = vpack.c.bf16 %v94, %v94
    %v183 = vpack.c.bf16 %v102, %v102
    %v184 = vpack.c.bf16 %v101, %v101
    %v185 = vpack.c.bf16 %v103, %v103
    %v186 = vpack.c.bf16 %v111, %v111
    %v187 = vpack.c.bf16 %v119, %v119
    %v188 = vpack.c.bf16 %v118, %v118
    %v189 = vpack.c.bf16 %v120, %v120
    %v190 = vpack.c.bf16 %v128, %v128
    %v191 = vpack.c.bf16 %v136, %v136
    %v192 = vpack.c.bf16 %v135, %v135
    %v193 = vpack.c.bf16 %v137, %v137
    %v194 = vpack.c.bf16 %v144, %v144
    %v195 = vld [vmem:[%s1] sm:$0xff]
    %v196 = vld [vmem:[%s1 + $0x8] sm:$0xff]
    %v197 = vld [vmem:[%s1 + $0x10] sm:$0xff]
    %v198 = vld [vmem:[%s1 + $0x18] sm:$0xff]
    %v199 = vld [vmem:[%s1 + $0x20] sm:$0xff]
    %v200 = vld [vmem:[%s1 + $0x28] sm:$0xff]
    %v201 = vld [vmem:[%s1 + $0x30] sm:$0xff]
    %v202 = vld [vmem:[%s1 + $0x38] sm:$0xff]
    %v203 = vld [vmem:[%s1 + $0x40] sm:$0xff]
    %v204 = vld [vmem:[%s1 + $0x48] sm:$0xff]
    %v205 = vld [vmem:[%s1 + $0x50] sm:$0xff]
    %v206 = vld [vmem:[%s1 + $0x58] sm:$0xff]
    %v207 = vld [vmem:[%s1 + $0x60] sm:$0xff]
    %v208 = vld [vmem:[%s1 + $0x68] sm:$0xff]
    %v209 = vld [vmem:[%s1 + $0x70] sm:$0xff]
    %v210 = vld [vmem:[%s1 + $0x78] sm:$0xff]
    %v211 = vld [vmem:[%s1 + $0x80] sm:$0xff]
    %v212 = vld [vmem:[%s1 + $0x88] sm:$0xff]
    %v213 = vld [vmem:[%s1 + $0x90] sm:$0xff]
    %v214 = vld [vmem:[%s1 + $0x98] sm:$0xff]
    %v215 = vld [vmem:[%s1 + $0xa0] sm:$0xff]
    %v216 = vld [vmem:[%s1 + $0xa8] sm:$0xff]
    %v217 = vld [vmem:[%s1 + $0xb0] sm:$0xff]
    %v218 = vld [vmem:[%s1 + $0xb8] sm:$0xff]
    %v219 = vld [vmem:[%s1 + $0xc0] sm:$0xff]
    %v220 = vld [vmem:[%s1 + $0xc8] sm:$0xff]
    %v221 = vld [vmem:[%s1 + $0xd0] sm:$0xff]
    %v222 = vld [vmem:[%s1 + $0xd8] sm:$0xff]
    %v223 = vld [vmem:[%s1 + $0xe0] sm:$0xff]
    %v224 = vld [vmem:[%s1 + $0xe8] sm:$0xff]
    %v225 = vld [vmem:[%s1 + $0xf0] sm:$0xff]
    %v226 = vld [vmem:[%s1 + $0xf8] sm:$0xff]
    %v227 = vld [vmem:[%s1 + $0x100] sm:$0xff]
    %v228 = vld [vmem:[%s1 + $0x108] sm:$0xff]
    %v229 = vld [vmem:[%s1 + $0x110] sm:$0xff]
    %v230 = vld [vmem:[%s1 + $0x118] sm:$0xff]
    %v231 = vld [vmem:[%s1 + $0x120] sm:$0xff]
    %v232 = vld [vmem:[%s1 + $0x128] sm:$0xff]
    %v233 = vld [vmem:[%s1 + $0x130] sm:$0xff]
    %v234 = vld [vmem:[%s1 + $0x138] sm:$0xff]
    %v235 = vld [vmem:[%s1 + $0x140] sm:$0xff]
    %v236 = vld [vmem:[%s1 + $0x148] sm:$0xff]
    %v237 = vld [vmem:[%s1 + $0x150] sm:$0xff]
    %v238 = vld [vmem:[%s1 + $0x158] sm:$0xff]
    %v239 = vld [vmem:[%s1 + $0x160] sm:$0xff]
    %v240 = vld [vmem:[%s1 + $0x168] sm:$0xff]
    %v241 = vld [vmem:[%s1 + $0x170] sm:$0xff]
    %v242 = vld [vmem:[%s1 + $0x178] sm:$0xff]
    %v243 = vld [vmem:[%s1 + $0x180] sm:$0xff]
    %v244 = vld [vmem:[%s1 + $0x188] sm:$0xff]
    %v245 = vld [vmem:[%s1 + $0x190] sm:$0xff]
    %v246 = vld [vmem:[%s1 + $0x198] sm:$0xff]
    %v247 = vld [vmem:[%s1 + $0x1a0] sm:$0xff]
    %v248 = vld [vmem:[%s1 + $0x1a8] sm:$0xff]
    %v249 = vld [vmem:[%s1 + $0x1b0] sm:$0xff]
    %v250 = vld [vmem:[%s1 + $0x1b8] sm:$0xff]
    %v251 = vld [vmem:[%s1 + $0x1c0] sm:$0xff]
    %v252 = vld [vmem:[%s1 + $0x1c8] sm:$0xff]
    %v253 = vld [vmem:[%s1 + $0x1d0] sm:$0xff]
    %v254 = vld [vmem:[%s1 + $0x1d8] sm:$0xff]
    %v255 = vld [vmem:[%s1 + $0x1e0] sm:$0xff]
    %v256 = vld [vmem:[%s1 + $0x1e8] sm:$0xff]
    %v257 = vld [vmem:[%s1 + $0x1f0] sm:$0xff]
    %v258 = vld [vmem:[%s1 + $0x1f8] sm:$0xff]
    %v259 = vld [vmem:[%s1 + $0x200] sm:$0xff]
    %v260 = vld [vmem:[%s1 + $0x208] sm:$0xff]
    %v261 = vld [vmem:[%s1 + $0x210] sm:$0xff]
    %v262 = vld [vmem:[%s1 + $0x218] sm:$0xff]
    %v263 = vld [vmem:[%s1 + $0x220] sm:$0xff]
    %v264 = vld [vmem:[%s1 + $0x228] sm:$0xff]
    %v265 = vld [vmem:[%s1 + $0x230] sm:$0xff]
    %v266 = vld [vmem:[%s1 + $0x238] sm:$0xff]
    %v267 = vld [vmem:[%s1 + $0x240] sm:$0xff]
    %v268 = vld [vmem:[%s1 + $0x248] sm:$0xff]
    %v269 = vld [vmem:[%s1 + $0x250] sm:$0xff]
    %v270 = vld [vmem:[%s1 + $0x258] sm:$0xff]
    %v271 = vld [vmem:[%s1 + $0x260] sm:$0xff]
    %v272 = vld [vmem:[%s1 + $0x268] sm:$0xff]
    %v273 = vld [vmem:[%s1 + $0x270] sm:$0xff]
    %v274 = vld [vmem:[%s1 + $0x278] sm:$0xff]
    %v275 = vld [vmem:[%s1 + $0x280] sm:$0xff]
    %v276 = vld [vmem:[%s1 + $0x288] sm:$0xff]
    %v277 = vld [vmem:[%s1 + $0x290] sm:$0xff]
    %v278 = vld [vmem:[%s1 + $0x298] sm:$0xff]
    %v279 = vld [vmem:[%s1 + $0x2a0] sm:$0xff]
    %v280 = vld [vmem:[%s1 + $0x2a8] sm:$0xff]
    %v281 = vld [vmem:[%s1 + $0x2b0] sm:$0xff]
    %v282 = vld [vmem:[%s1 + $0x2b8] sm:$0xff]
    %v283 = vld [vmem:[%s1 + $0x2c0] sm:$0xff]
    %v284 = vld [vmem:[%s1 + $0x2c8] sm:$0xff]
    %v285 = vld [vmem:[%s1 + $0x2d0] sm:$0xff]
    %v286 = vld [vmem:[%s1 + $0x2d8] sm:$0xff]
    %v287 = vld [vmem:[%s1 + $0x2e0] sm:$0xff]
    %v288 = vld [vmem:[%s1 + $0x2e8] sm:$0xff]
    %v289 = vld [vmem:[%s1 + $0x2f0] sm:$0xff]
    %v290 = vld [vmem:[%s1 + $0x2f8] sm:$0xff]
    %v291 = vld [vmem:[%s1 + $0x300] sm:$0xff]
    %v292 = vld [vmem:[%s1 + $0x308] sm:$0xff]
    %v293 = vld [vmem:[%s1 + $0x310] sm:$0xff]
    %v294 = vld [vmem:[%s1 + $0x318] sm:$0xff]
    %v295 = vld [vmem:[%s1 + $0x320] sm:$0xff]
    %v296 = vld [vmem:[%s1 + $0x328] sm:$0xff]
    %v297 = vld [vmem:[%s1 + $0x330] sm:$0xff]
    %v298 = vld [vmem:[%s1 + $0x338] sm:$0xff]
    %v299 = vld [vmem:[%s1 + $0x340] sm:$0xff]
    %v300 = vld [vmem:[%s1 + $0x348] sm:$0xff]
    %v301 = vld [vmem:[%s1 + $0x350] sm:$0xff]
    %v302 = vld [vmem:[%s1 + $0x358] sm:$0xff]
    %v303 = vld [vmem:[%s1 + $0x360] sm:$0xff]
    %v304 = vld [vmem:[%s1 + $0x368] sm:$0xff]
    %v305 = vld [vmem:[%s1 + $0x370] sm:$0xff]
    %v306 = vld [vmem:[%s1 + $0x378] sm:$0xff]
    %v307 = vld [vmem:[%s1 + $0x380] sm:$0xff]
    %v308 = vld [vmem:[%s1 + $0x388] sm:$0xff]
    %v309 = vld [vmem:[%s1 + $0x390] sm:$0xff]
    %v310 = vld [vmem:[%s1 + $0x398] sm:$0xff]
    %v311 = vld [vmem:[%s1 + $0x3a0] sm:$0xff]
    %v312 = vld [vmem:[%s1 + $0x3a8] sm:$0xff]
    %v313 = vld [vmem:[%s1 + $0x3b0] sm:$0xff]
    %v314 = vld [vmem:[%s1 + $0x3b8] sm:$0xff]
    %v315 = vld [vmem:[%s1 + $0x3c0] sm:$0xff]
    %v316 = vld [vmem:[%s1 + $0x3c8] sm:$0xff]
    %v317 = vld [vmem:[%s1 + $0x3d0] sm:$0xff]
    %v318 = vld [vmem:[%s1 + $0x3d8] sm:$0xff]
    %v319 = vld [vmem:[%s1 + $0x3e0] sm:$0xff]
    %v320 = vld [vmem:[%s1 + $0x3e8] sm:$0xff]
    %v321 = vld [vmem:[%s1 + $0x3f0] sm:$0xff]
    %v322 = vld [vmem:[%s1 + $0x3f8] sm:$0xff]
    %v323 = vld [vmem:[%s1 + $0x400] sm:$0xff]
    %v324 = vld [vmem:[%s1 + $0x408] sm:$0xff]
    %v325 = vld [vmem:[%s1 + $0x410] sm:$0xff]
    %v326 = vld [vmem:[%s1 + $0x418] sm:$0xff]
    %v327 = vld [vmem:[%s1 + $0x420] sm:$0xff]
    %v328 = vld [vmem:[%s1 + $0x428] sm:$0xff]
    %v329 = vld [vmem:[%s1 + $0x430] sm:$0xff]
    %v330 = vld [vmem:[%s1 + $0x438] sm:$0xff]
    %v331 = vld [vmem:[%s1 + $0x440] sm:$0xff]
    %v332 = vld [vmem:[%s1 + $0x448] sm:$0xff]
    %v333 = vld [vmem:[%s1 + $0x450] sm:$0xff]
    %v334 = vld [vmem:[%s1 + $0x458] sm:$0xff]
    %v335 = vld [vmem:[%s1 + $0x460] sm:$0xff]
    %v336 = vld [vmem:[%s1 + $0x468] sm:$0xff]
    %v337 = vld [vmem:[%s1 + $0x470] sm:$0xff]
    %v338 = vld [vmem:[%s1 + $0x478] sm:$0xff]
    %v339 = vld [vmem:[%s1 + $0x480] sm:$0xff]
    %v340 = vld [vmem:[%s1 + $0x488] sm:$0xff]
    %v341 = vld [vmem:[%s1 + $0x490] sm:$0xff]
    %v342 = vld [vmem:[%s1 + $0x498] sm:$0xff]
    %v343 = vld [vmem:[%s1 + $0x4a0] sm:$0xff]
    %v344 = vld [vmem:[%s1 + $0x4a8] sm:$0xff]
    %v345 = vld [vmem:[%s1 + $0x4b0] sm:$0xff]
    %v346 = vld [vmem:[%s1 + $0x4b8] sm:$0xff]
    %v347 = vld [vmem:[%s1 + $0x4c0] sm:$0xff]
    %v348 = vld [vmem:[%s1 + $0x4c8] sm:$0xff]
    %v349 = vld [vmem:[%s1 + $0x4d0] sm:$0xff]
    %v350 = vld [vmem:[%s1 + $0x4d8] sm:$0xff]
    %v351 = vld [vmem:[%s1 + $0x4e0] sm:$0xff]
    %v352 = vld [vmem:[%s1 + $0x4e8] sm:$0xff]
    %v353 = vld [vmem:[%s1 + $0x4f0] sm:$0xff]
    %v354 = vld [vmem:[%s1 + $0x4f8] sm:$0xff]
    %v355 = vld [vmem:[%s1 + $0x500] sm:$0xff]
    %v356 = vld [vmem:[%s1 + $0x508] sm:$0xff]
    %v357 = vld [vmem:[%s1 + $0x510] sm:$0xff]
    %v358 = vld [vmem:[%s1 + $0x518] sm:$0xff]
    %v359 = vld [vmem:[%s1 + $0x520] sm:$0xff]
    %v360 = vld [vmem:[%s1 + $0x528] sm:$0xff]
    %v361 = vld [vmem:[%s1 + $0x530] sm:$0xff]
    %v362 = vld [vmem:[%s1 + $0x538] sm:$0xff]
    %v363 = vld [vmem:[%s1 + $0x540] sm:$0xff]
    %v364 = vld [vmem:[%s1 + $0x548] sm:$0xff]
    %v365 = vld [vmem:[%s1 + $0x550] sm:$0xff]
    %v366 = vld [vmem:[%s1 + $0x558] sm:$0xff]
    %v367 = vld [vmem:[%s1 + $0x560] sm:$0xff]
    %v368 = vld [vmem:[%s1 + $0x568] sm:$0xff]
    %v369 = vld [vmem:[%s1 + $0x570] sm:$0xff]
    %v370 = vld [vmem:[%s1 + $0x578] sm:$0xff]
    %v371 = vld [vmem:[%s1 + $0x580] sm:$0xff]
    %v372 = vld [vmem:[%s1 + $0x588] sm:$0xff]
    %v373 = vld [vmem:[%s1 + $0x590] sm:$0xff]
    %v374 = vld [vmem:[%s1 + $0x598] sm:$0xff]
    %v375 = vld [vmem:[%s1 + $0x5a0] sm:$0xff]
    %v376 = vld [vmem:[%s1 + $0x5a8] sm:$0xff]
    %v377 = vld [vmem:[%s1 + $0x5b0] sm:$0xff]
    %v378 = vld [vmem:[%s1 + $0x5b8] sm:$0xff]
    %v379 = vld [vmem:[%s1 + $0x5c0] sm:$0xff]
    %v380 = vld [vmem:[%s1 + $0x5c8] sm:$0xff]
    %v381 = vld [vmem:[%s1 + $0x5d0] sm:$0xff]
    %v382 = vld [vmem:[%s1 + $0x5d8] sm:$0xff]
    %v383 = vld [vmem:[%s1 + $0x5e0] sm:$0xff]
    %v384 = vld [vmem:[%s1 + $0x5e8] sm:$0xff]
    %v385 = vld [vmem:[%s1 + $0x5f0] sm:$0xff]
    %v386 = vld [vmem:[%s1 + $0x5f8] sm:$0xff]
    %v387 = vld [vmem:[%s1 + $0x600] sm:$0xff]
    %v388 = vld [vmem:[%s1 + $0x608] sm:$0xff]
    %v389 = vld [vmem:[%s1 + $0x610] sm:$0xff]
    %v390 = vld [vmem:[%s1 + $0x618] sm:$0xff]
    %v391 = vld [vmem:[%s1 + $0x620] sm:$0xff]
    %v392 = vld [vmem:[%s1 + $0x628] sm:$0xff]
    %v393 = vld [vmem:[%s1 + $0x630] sm:$0xff]
    %v394 = vld [vmem:[%s1 + $0x638] sm:$0xff]
    %v395 = vld [vmem:[%s1 + $0x640] sm:$0xff]
    %v396 = vld [vmem:[%s1 + $0x648] sm:$0xff]
    %v397 = vld [vmem:[%s1 + $0x650] sm:$0xff]
    %v398 = vld [vmem:[%s1 + $0x658] sm:$0xff]
    %v399 = vld [vmem:[%s1 + $0x660] sm:$0xff]
    %v400 = vld [vmem:[%s1 + $0x668] sm:$0xff]
    %v401 = vld [vmem:[%s1 + $0x670] sm:$0xff]
    %v402 = vld [vmem:[%s1 + $0x678] sm:$0xff]
    %v403 = vld [vmem:[%s1 + $0x680] sm:$0xff]
    %v404 = vld [vmem:[%s1 + $0x688] sm:$0xff]
    %v405 = vld [vmem:[%s1 + $0x690] sm:$0xff]
    %v406 = vld [vmem:[%s1 + $0x698] sm:$0xff]
    %v407 = vld [vmem:[%s1 + $0x6a0] sm:$0xff]
    %v408 = vld [vmem:[%s1 + $0x6a8] sm:$0xff]
    %v409 = vld [vmem:[%s1 + $0x6b0] sm:$0xff]
    %v410 = vld [vmem:[%s1 + $0x6b8] sm:$0xff]
    %v411 = vld [vmem:[%s1 + $0x6c0] sm:$0xff]
    %v412 = vld [vmem:[%s1 + $0x6c8] sm:$0xff]
    %v413 = vld [vmem:[%s1 + $0x6d0] sm:$0xff]
    %v414 = vld [vmem:[%s1 + $0x6d8] sm:$0xff]
    %v415 = vld [vmem:[%s1 + $0x6e0] sm:$0xff]
    %v416 = vld [vmem:[%s1 + $0x6e8] sm:$0xff]
    %v417 = vld [vmem:[%s1 + $0x6f0] sm:$0xff]
    %v418 = vld [vmem:[%s1 + $0x6f8] sm:$0xff]
    %v419 = vld [vmem:[%s1 + $0x700] sm:$0xff]
    %v420 = vld [vmem:[%s1 + $0x708] sm:$0xff]
    %v421 = vld [vmem:[%s1 + $0x710] sm:$0xff]
    %v422 = vld [vmem:[%s1 + $0x718] sm:$0xff]
    %v423 = vld [vmem:[%s1 + $0x720] sm:$0xff]
    %v424 = vld [vmem:[%s1 + $0x728] sm:$0xff]
    %v425 = vld [vmem:[%s1 + $0x730] sm:$0xff]
    %v426 = vld [vmem:[%s1 + $0x738] sm:$0xff]
    %v427 = vld [vmem:[%s1 + $0x740] sm:$0xff]
    %v428 = vld [vmem:[%s1 + $0x748] sm:$0xff]
    %v429 = vld [vmem:[%s1 + $0x750] sm:$0xff]
    %v430 = vld [vmem:[%s1 + $0x758] sm:$0xff]
    %v431 = vld [vmem:[%s1 + $0x760] sm:$0xff]
    %v432 = vld [vmem:[%s1 + $0x768] sm:$0xff]
    %v433 = vld [vmem:[%s1 + $0x770] sm:$0xff]
    %v434 = vld [vmem:[%s1 + $0x778] sm:$0xff]
    %v435 = vld [vmem:[%s1 + $0x780] sm:$0xff]
    %v436 = vld [vmem:[%s1 + $0x788] sm:$0xff]
    %v437 = vld [vmem:[%s1 + $0x790] sm:$0xff]
    %v438 = vld [vmem:[%s1 + $0x798] sm:$0xff]
    %v439 = vld [vmem:[%s1 + $0x7a0] sm:$0xff]
    %v440 = vld [vmem:[%s1 + $0x7a8] sm:$0xff]
    %v441 = vld [vmem:[%s1 + $0x7b0] sm:$0xff]
    %v442 = vld [vmem:[%s1 + $0x7b8] sm:$0xff]
    %v443 = vld [vmem:[%s1 + $0x7c0] sm:$0xff]
    %v444 = vld [vmem:[%s1 + $0x7c8] sm:$0xff]
    %v445 = vld [vmem:[%s1 + $0x7d0] sm:$0xff]
    %v446 = vld [vmem:[%s1 + $0x7d8] sm:$0xff]
    %v447 = vld [vmem:[%s1 + $0x7e0] sm:$0xff]
    %v448 = vld [vmem:[%s1 + $0x7e8] sm:$0xff]
    %v449 = vld [vmem:[%s1 + $0x7f0] sm:$0xff]
    %v450 = vld [vmem:[%s1 + $0x7f8] sm:$0xff]
    %v451 = vld [vmem:[%s1 + $0x800] sm:$0xff]
    %v452 = vld [vmem:[%s1 + $0x808] sm:$0xff]
    %v453 = vld [vmem:[%s1 + $0x810] sm:$0xff]
    %v454 = vld [vmem:[%s1 + $0x818] sm:$0xff]
    %v455 = vld [vmem:[%s1 + $0x820] sm:$0xff]
    %v456 = vld [vmem:[%s1 + $0x828] sm:$0xff]
    %v457 = vld [vmem:[%s1 + $0x830] sm:$0xff]
    %v458 = vld [vmem:[%s1 + $0x838] sm:$0xff]
    %v459 = vld [vmem:[%s1 + $0x840] sm:$0xff]
    %v460 = vld [vmem:[%s1 + $0x848] sm:$0xff]
    %v461 = vld [vmem:[%s1 + $0x850] sm:$0xff]
    %v462 = vld [vmem:[%s1 + $0x858] sm:$0xff]
    %v463 = vld [vmem:[%s1 + $0x860] sm:$0xff]
    %v464 = vld [vmem:[%s1 + $0x868] sm:$0xff]
    %v465 = vld [vmem:[%s1 + $0x870] sm:$0xff]
    %v466 = vld [vmem:[%s1 + $0x878] sm:$0xff]
    %v467 = vld [vmem:[%s1 + $0x880] sm:$0xff]
    %v468 = vld [vmem:[%s1 + $0x888] sm:$0xff]
    %v469 = vld [vmem:[%s1 + $0x890] sm:$0xff]
    %v470 = vld [vmem:[%s1 + $0x898] sm:$0xff]
    %v471 = vld [vmem:[%s1 + $0x8a0] sm:$0xff]
    %v472 = vld [vmem:[%s1 + $0x8a8] sm:$0xff]
    %v473 = vld [vmem:[%s1 + $0x8b0] sm:$0xff]
    %v474 = vld [vmem:[%s1 + $0x8b8] sm:$0xff]
    %v475 = vld [vmem:[%s1 + $0x8c0] sm:$0xff]
    %v476 = vld [vmem:[%s1 + $0x8c8] sm:$0xff]
    %v477 = vld [vmem:[%s1 + $0x8d0] sm:$0xff]
    %v478 = vld [vmem:[%s1 + $0x8d8] sm:$0xff]
    %v479 = vld [vmem:[%s1 + $0x8e0] sm:$0xff]
    %v480 = vld [vmem:[%s1 + $0x8e8] sm:$0xff]
    %v481 = vld [vmem:[%s1 + $0x8f0] sm:$0xff]
    %v482 = vld [vmem:[%s1 + $0x8f8] sm:$0xff]
    %v483 = vld [vmem:[%s1 + $0x900] sm:$0xff]
    %v484 = vld [vmem:[%s1 + $0x908] sm:$0xff]
    %v485 = vld [vmem:[%s1 + $0x910] sm:$0xff]
    %v486 = vld [vmem:[%s1 + $0x918] sm:$0xff]
    %v487 = vld [vmem:[%s1 + $0x920] sm:$0xff]
    %v488 = vld [vmem:[%s1 + $0x928] sm:$0xff]
    %v489 = vld [vmem:[%s1 + $0x930] sm:$0xff]
    %v490 = vld [vmem:[%s1 + $0x938] sm:$0xff]
    %v491 = vld [vmem:[%s1 + $0x940] sm:$0xff]
    %v492 = vld [vmem:[%s1 + $0x948] sm:$0xff]
    %v493 = vld [vmem:[%s1 + $0x950] sm:$0xff]
    %v494 = vld [vmem:[%s1 + $0x958] sm:$0xff]
    %v495 = vld [vmem:[%s1 + $0x960] sm:$0xff]
    %v496 = vld [vmem:[%s1 + $0x968] sm:$0xff]
    %v497 = vld [vmem:[%s1 + $0x970] sm:$0xff]
    %v498 = vld [vmem:[%s1 + $0x978] sm:$0xff]
    %v499 = vld [vmem:[%s1 + $0x980] sm:$0xff]
    %v500 = vld [vmem:[%s1 + $0x988] sm:$0xff]
    %v501 = vld [vmem:[%s1 + $0x990] sm:$0xff]
    %v502 = vld [vmem:[%s1 + $0x998] sm:$0xff]
    %v503 = vld [vmem:[%s1 + $0x9a0] sm:$0xff]
    %v504 = vld [vmem:[%s1 + $0x9a8] sm:$0xff]
    %v505 = vld [vmem:[%s1 + $0x9b0] sm:$0xff]
    %v506 = vld [vmem:[%s1 + $0x9b8] sm:$0xff]
    %v507 = vld [vmem:[%s1 + $0x9c0] sm:$0xff]
    %v508 = vld [vmem:[%s1 + $0x9c8] sm:$0xff]
    %v509 = vld [vmem:[%s1 + $0x9d0] sm:$0xff]
    %v510 = vld [vmem:[%s1 + $0x9d8] sm:$0xff]
    %v511 = vld [vmem:[%s1 + $0x9e0] sm:$0xff]
    %v512 = vld [vmem:[%s1 + $0x9e8] sm:$0xff]
    %v513 = vld [vmem:[%s1 + $0x9f0] sm:$0xff]
    %v514 = vld [vmem:[%s1 + $0x9f8] sm:$0xff]
    %v515 = vld [vmem:[%s1 + $0xa00] sm:$0xff]
    %v516 = vld [vmem:[%s1 + $0xa08] sm:$0xff]
    %v517 = vld [vmem:[%s1 + $0xa10] sm:$0xff]
    %v518 = vld [vmem:[%s1 + $0xa18] sm:$0xff]
    %v519 = vld [vmem:[%s1 + $0xa20] sm:$0xff]
    %v520 = vld [vmem:[%s1 + $0xa28] sm:$0xff]
    %v521 = vld [vmem:[%s1 + $0xa30] sm:$0xff]
    %v522 = vld [vmem:[%s1 + $0xa38] sm:$0xff]
    %v523 = vld [vmem:[%s1 + $0xa40] sm:$0xff]
    %v524 = vld [vmem:[%s1 + $0xa48] sm:$0xff]
    %v525 = vld [vmem:[%s1 + $0xa50] sm:$0xff]
    %v526 = vld [vmem:[%s1 + $0xa58] sm:$0xff]
    %v527 = vld [vmem:[%s1 + $0xa60] sm:$0xff]
    %v528 = vld [vmem:[%s1 + $0xa68] sm:$0xff]
    %v529 = vld [vmem:[%s1 + $0xa70] sm:$0xff]
    %v530 = vld [vmem:[%s1 + $0xa78] sm:$0xff]
    %v531 = vld [vmem:[%s1 + $0xa80] sm:$0xff]
    %v532 = vld [vmem:[%s1 + $0xa88] sm:$0xff]
    %v533 = vld [vmem:[%s1 + $0xa90] sm:$0xff]
    %v534 = vld [vmem:[%s1 + $0xa98] sm:$0xff]
    %v535 = vld [vmem:[%s1 + $0xaa0] sm:$0xff]
    %v536 = vld [vmem:[%s1 + $0xaa8] sm:$0xff]
    %v537 = vld [vmem:[%s1 + $0xab0] sm:$0xff]
    %v538 = vld [vmem:[%s1 + $0xab8] sm:$0xff]
    %v539 = vld [vmem:[%s1 + $0xac0] sm:$0xff]
    %v540 = vld [vmem:[%s1 + $0xac8] sm:$0xff]
    %v541 = vld [vmem:[%s1 + $0xad0] sm:$0xff]
    %v542 = vld [vmem:[%s1 + $0xad8] sm:$0xff]
    %v543 = vld [vmem:[%s1 + $0xae0] sm:$0xff]
    %v544 = vld [vmem:[%s1 + $0xae8] sm:$0xff]
    %v545 = vld [vmem:[%s1 + $0xaf0] sm:$0xff]
    %v546 = vld [vmem:[%s1 + $0xaf8] sm:$0xff]
    %v547 = vld [vmem:[%s1 + $0xb00] sm:$0xff]
    %v548 = vld [vmem:[%s1 + $0xb08] sm:$0xff]
    %v549 = vld [vmem:[%s1 + $0xb10] sm:$0xff]
    %v550 = vld [vmem:[%s1 + $0xb18] sm:$0xff]
    %v551 = vld [vmem:[%s1 + $0xb20] sm:$0xff]
    %v552 = vld [vmem:[%s1 + $0xb28] sm:$0xff]
    %v553 = vld [vmem:[%s1 + $0xb30] sm:$0xff]
    %v554 = vld [vmem:[%s1 + $0xb38] sm:$0xff]
    %v555 = vld [vmem:[%s1 + $0xb40] sm:$0xff]
    %v556 = vld [vmem:[%s1 + $0xb48] sm:$0xff]
    %v557 = vld [vmem:[%s1 + $0xb50] sm:$0xff]
    %v558 = vld [vmem:[%s1 + $0xb58] sm:$0xff]
    %v559 = vld [vmem:[%s1 + $0xb60] sm:$0xff]
    %v560 = vld [vmem:[%s1 + $0xb68] sm:$0xff]
    %v561 = vld [vmem:[%s1 + $0xb70] sm:$0xff]
    %v562 = vld [vmem:[%s1 + $0xb78] sm:$0xff]
    %v563 = vld [vmem:[%s1 + $0xb80] sm:$0xff]
    %v564 = vld [vmem:[%s1 + $0xb88] sm:$0xff]
    %v565 = vld [vmem:[%s1 + $0xb90] sm:$0xff]
    %v566 = vld [vmem:[%s1 + $0xb98] sm:$0xff]
    %v567 = vld [vmem:[%s1 + $0xba0] sm:$0xff]
    %v568 = vld [vmem:[%s1 + $0xba8] sm:$0xff]
    %v569 = vld [vmem:[%s1 + $0xbb0] sm:$0xff]
    %v570 = vld [vmem:[%s1 + $0xbb8] sm:$0xff]
    %v571 = vld [vmem:[%s1 + $0xbc0] sm:$0xff]
    %v572 = vld [vmem:[%s1 + $0xbc8] sm:$0xff]
    %v573 = vld [vmem:[%s1 + $0xbd0] sm:$0xff]
    %v574 = vld [vmem:[%s1 + $0xbd8] sm:$0xff]
    %v575 = vld [vmem:[%s1 + $0xbe0] sm:$0xff]
    %v576 = vld [vmem:[%s1 + $0xbe8] sm:$0xff]
    %v577 = vld [vmem:[%s1 + $0xbf0] sm:$0xff]
    %v578 = vld [vmem:[%s1 + $0xbf8] sm:$0xff]
    %v579 = vld [vmem:[%s1 + $0xc00] sm:$0xff]
    %v580 = vld [vmem:[%s1 + $0xc08] sm:$0xff]
    %v581 = vld [vmem:[%s1 + $0xc10] sm:$0xff]
    %v582 = vld [vmem:[%s1 + $0xc18] sm:$0xff]
    %v583 = vld [vmem:[%s1 + $0xc20] sm:$0xff]
    %v584 = vld [vmem:[%s1 + $0xc28] sm:$0xff]
    %v585 = vld [vmem:[%s1 + $0xc30] sm:$0xff]
    %v586 = vld [vmem:[%s1 + $0xc38] sm:$0xff]
    %v587 = vld [vmem:[%s1 + $0xc40] sm:$0xff]
    %v588 = vld [vmem:[%s1 + $0xc48] sm:$0xff]
    %v589 = vld [vmem:[%s1 + $0xc50] sm:$0xff]
    %v590 = vld [vmem:[%s1 + $0xc58] sm:$0xff]
    %v591 = vld [vmem:[%s1 + $0xc60] sm:$0xff]
    %v592 = vld [vmem:[%s1 + $0xc68] sm:$0xff]
    %v593 = vld [vmem:[%s1 + $0xc70] sm:$0xff]
    %v594 = vld [vmem:[%s1 + $0xc78] sm:$0xff]
    %v595 = vld [vmem:[%s1 + $0xc80] sm:$0xff]
    %v596 = vld [vmem:[%s1 + $0xc88] sm:$0xff]
    %v597 = vld [vmem:[%s1 + $0xc90] sm:$0xff]
    %v598 = vld [vmem:[%s1 + $0xc98] sm:$0xff]
    %v599 = vld [vmem:[%s1 + $0xca0] sm:$0xff]
    %v600 = vld [vmem:[%s1 + $0xca8] sm:$0xff]
    %v601 = vld [vmem:[%s1 + $0xcb0] sm:$0xff]
    %v602 = vld [vmem:[%s1 + $0xcb8] sm:$0xff]
    %v603 = vld [vmem:[%s1 + $0xcc0] sm:$0xff]
    %v604 = vld [vmem:[%s1 + $0xcc8] sm:$0xff]
    %v605 = vld [vmem:[%s1 + $0xcd0] sm:$0xff]
    %v606 = vld [vmem:[%s1 + $0xcd8] sm:$0xff]
    %v607 = vld [vmem:[%s1 + $0xce0] sm:$0xff]
    %v608 = vld [vmem:[%s1 + $0xce8] sm:$0xff]
    %v609 = vld [vmem:[%s1 + $0xcf0] sm:$0xff]
    %v610 = vld [vmem:[%s1 + $0xcf8] sm:$0xff]
    %v611 = vld [vmem:[%s1 + $0xd00] sm:$0xff]
    %v612 = vld [vmem:[%s1 + $0xd08] sm:$0xff]
    %v613 = vld [vmem:[%s1 + $0xd10] sm:$0xff]
    %v614 = vld [vmem:[%s1 + $0xd18] sm:$0xff]
    %v615 = vld [vmem:[%s1 + $0xd20] sm:$0xff]
    %v616 = vld [vmem:[%s1 + $0xd28] sm:$0xff]
    %v617 = vld [vmem:[%s1 + $0xd30] sm:$0xff]
    %v618 = vld [vmem:[%s1 + $0xd38] sm:$0xff]
    %v619 = vld [vmem:[%s1 + $0xd40] sm:$0xff]
    %v620 = vld [vmem:[%s1 + $0xd48] sm:$0xff]
    %v621 = vld [vmem:[%s1 + $0xd50] sm:$0xff]
    %v622 = vld [vmem:[%s1 + $0xd58] sm:$0xff]
    %v623 = vld [vmem:[%s1 + $0xd60] sm:$0xff]
    %v624 = vld [vmem:[%s1 + $0xd68] sm:$0xff]
    %v625 = vld [vmem:[%s1 + $0xd70] sm:$0xff]
    %v626 = vld [vmem:[%s1 + $0xd78] sm:$0xff]
    %v627 = vld [vmem:[%s1 + $0xd80] sm:$0xff]
    %v628 = vld [vmem:[%s1 + $0xd88] sm:$0xff]
    %v629 = vld [vmem:[%s1 + $0xd90] sm:$0xff]
    %v630 = vld [vmem:[%s1 + $0xd98] sm:$0xff]
    %v631 = vld [vmem:[%s1 + $0xda0] sm:$0xff]
    %v632 = vld [vmem:[%s1 + $0xda8] sm:$0xff]
    %v633 = vld [vmem:[%s1 + $0xdb0] sm:$0xff]
    %v634 = vld [vmem:[%s1 + $0xdb8] sm:$0xff]
    %v635 = vld [vmem:[%s1 + $0xdc0] sm:$0xff]
    %v636 = vld [vmem:[%s1 + $0xdc8] sm:$0xff]
    %v637 = vld [vmem:[%s1 + $0xdd0] sm:$0xff]
    %v638 = vld [vmem:[%s1 + $0xdd8] sm:$0xff]
    %v639 = vld [vmem:[%s1 + $0xde0] sm:$0xff]
    %v640 = vld [vmem:[%s1 + $0xde8] sm:$0xff]
    %v641 = vld [vmem:[%s1 + $0xdf0] sm:$0xff]
    %v642 = vld [vmem:[%s1 + $0xdf8] sm:$0xff]
    %v643 = vld [vmem:[%s1 + $0xe00] sm:$0xff]
    %v644 = vld [vmem:[%s1 + $0xe08] sm:$0xff]
    %v645 = vld [vmem:[%s1 + $0xe10] sm:$0xff]
    %v646 = vld [vmem:[%s1 + $0xe18] sm:$0xff]
    %v647 = vld [vmem:[%s1 + $0xe20] sm:$0xff]
    %v648 = vld [vmem:[%s1 + $0xe28] sm:$0xff]
    %v649 = vld [vmem:[%s1 + $0xe30] sm:$0xff]
    %v650 = vld [vmem:[%s1 + $0xe38] sm:$0xff]
    %v651 = vld [vmem:[%s1 + $0xe40] sm:$0xff]
    %v652 = vld [vmem:[%s1 + $0xe48] sm:$0xff]
    %v653 = vld [vmem:[%s1 + $0xe50] sm:$0xff]
    %v654 = vld [vmem:[%s1 + $0xe58] sm:$0xff]
    %v655 = vld [vmem:[%s1 + $0xe60] sm:$0xff]
    %v656 = vld [vmem:[%s1 + $0xe68] sm:$0xff]
    %v657 = vld [vmem:[%s1 + $0xe70] sm:$0xff]
    %v658 = vld [vmem:[%s1 + $0xe78] sm:$0xff]
    %v659 = vld [vmem:[%s1 + $0xe80] sm:$0xff]
    %v660 = vld [vmem:[%s1 + $0xe88] sm:$0xff]
    %v661 = vld [vmem:[%s1 + $0xe90] sm:$0xff]
    %v662 = vld [vmem:[%s1 + $0xe98] sm:$0xff]
    %v663 = vld [vmem:[%s1 + $0xea0] sm:$0xff]
    %v664 = vld [vmem:[%s1 + $0xea8] sm:$0xff]
    %v665 = vld [vmem:[%s1 + $0xeb0] sm:$0xff]
    %v666 = vld [vmem:[%s1 + $0xeb8] sm:$0xff]
    %v667 = vld [vmem:[%s1 + $0xec0] sm:$0xff]
    %v668 = vld [vmem:[%s1 + $0xec8] sm:$0xff]
    %v669 = vld [vmem:[%s1 + $0xed0] sm:$0xff]
    %v670 = vld [vmem:[%s1 + $0xed8] sm:$0xff]
    %v671 = vld [vmem:[%s1 + $0xee0] sm:$0xff]
    %v672 = vld [vmem:[%s1 + $0xee8] sm:$0xff]
    %v673 = vld [vmem:[%s1 + $0xef0] sm:$0xff]
    %v674 = vld [vmem:[%s1 + $0xef8] sm:$0xff]
    %v675 = vld [vmem:[%s1 + $0xf00] sm:$0xff]
    %v676 = vld [vmem:[%s1 + $0xf08] sm:$0xff]
    %v677 = vld [vmem:[%s1 + $0xf10] sm:$0xff]
    %v678 = vld [vmem:[%s1 + $0xf18] sm:$0xff]
    %v679 = vld [vmem:[%s1 + $0xf20] sm:$0xff]
    %v680 = vld [vmem:[%s1 + $0xf28] sm:$0xff]
    %v681 = vld [vmem:[%s1 + $0xf30] sm:$0xff]
    %v682 = vld [vmem:[%s1 + $0xf38] sm:$0xff]
    %v683 = vld [vmem:[%s1 + $0xf40] sm:$0xff]
    %v684 = vld [vmem:[%s1 + $0xf48] sm:$0xff]
    %v685 = vld [vmem:[%s1 + $0xf50] sm:$0xff]
    %v686 = vld [vmem:[%s1 + $0xf58] sm:$0xff]
    %v687 = vld [vmem:[%s1 + $0xf60] sm:$0xff]
    %v688 = vld [vmem:[%s1 + $0xf68] sm:$0xff]
    %v689 = vld [vmem:[%s1 + $0xf70] sm:$0xff]
    %v690 = vld [vmem:[%s1 + $0xf78] sm:$0xff]
    %v691 = vld [vmem:[%s1 + $0xf80] sm:$0xff]
    %v692 = vld [vmem:[%s1 + $0xf88] sm:$0xff]
    %v693 = vld [vmem:[%s1 + $0xf90] sm:$0xff]
    %v694 = vld [vmem:[%s1 + $0xf98] sm:$0xff]
    %v695 = vld [vmem:[%s1 + $0xfa0] sm:$0xff]
    %v696 = vld [vmem:[%s1 + $0xfa8] sm:$0xff]
    %v697 = vld [vmem:[%s1 + $0xfb0] sm:$0xff]
    %v698 = vld [vmem:[%s1 + $0xfb8] sm:$0xff]
    %v699 = vld [vmem:[%s1 + $0xfc0] sm:$0xff]
    %v700 = vld [vmem:[%s1 + $0xfc8] sm:$0xff]
    %v701 = vld [vmem:[%s1 + $0xfd0] sm:$0xff]
    %v702 = vld [vmem:[%s1 + $0xfd8] sm:$0xff]
    %v703 = vld [vmem:[%s1 + $0xfe0] sm:$0xff]
    %v704 = vld [vmem:[%s1 + $0xfe8] sm:$0xff]
    %v705 = vld [vmem:[%s1 + $0xff0] sm:$0xff]
    %v706 = vld [vmem:[%s1 + $0xff8] sm:$0xff]
    %v707 = vld [vmem:[%s1 + $0x1000] sm:$0xff]
    %v708 = vld [vmem:[%s1 + $0x1008] sm:$0xff]
    %v709 = vld [vmem:[%s1 + $0x1010] sm:$0xff]
    %v710 = vld [vmem:[%s1 + $0x1018] sm:$0xff]
    %v711 = vld [vmem:[%s1 + $0x1020] sm:$0xff]
    %v712 = vld [vmem:[%s1 + $0x1028] sm:$0xff]
    %v713 = vld [vmem:[%s1 + $0x1030] sm:$0xff]
    %v714 = vld [vmem:[%s1 + $0x1038] sm:$0xff]
    %v715 = vld [vmem:[%s1 + $0x1040] sm:$0xff]
    %v716 = vld [vmem:[%s1 + $0x1048] sm:$0xff]
    %v717 = vld [vmem:[%s1 + $0x1050] sm:$0xff]
    %v718 = vld [vmem:[%s1 + $0x1058] sm:$0xff]
    %v719 = vld [vmem:[%s1 + $0x1060] sm:$0xff]
    %v720 = vld [vmem:[%s1 + $0x1068] sm:$0xff]
    %v721 = vld [vmem:[%s1 + $0x1070] sm:$0xff]
    %v722 = vld [vmem:[%s1 + $0x1078] sm:$0xff]
    %v723 = vld [vmem:[%s1 + $0x1080] sm:$0xff]
    %v724 = vld [vmem:[%s1 + $0x1088] sm:$0xff]
    %v725 = vld [vmem:[%s1 + $0x1090] sm:$0xff]
    %v726 = vld [vmem:[%s1 + $0x1098] sm:$0xff]
    %v727 = vld [vmem:[%s1 + $0x10a0] sm:$0xff]
    %v728 = vld [vmem:[%s1 + $0x10a8] sm:$0xff]
    %v729 = vld [vmem:[%s1 + $0x10b0] sm:$0xff]
    %v730 = vld [vmem:[%s1 + $0x10b8] sm:$0xff]
    %v731 = vld [vmem:[%s1 + $0x10c0] sm:$0xff]
    %v732 = vld [vmem:[%s1 + $0x10c8] sm:$0xff]
    %v733 = vld [vmem:[%s1 + $0x10d0] sm:$0xff]
    %v734 = vld [vmem:[%s1 + $0x10d8] sm:$0xff]
    %v735 = vld [vmem:[%s1 + $0x10e0] sm:$0xff]
    %v736 = vld [vmem:[%s1 + $0x10e8] sm:$0xff]
    %v737 = vld [vmem:[%s1 + $0x10f0] sm:$0xff]
    %v738 = vld [vmem:[%s1 + $0x10f8] sm:$0xff]
    %v739 = vld [vmem:[%s1 + $0x1100] sm:$0xff]
    %v740 = vld [vmem:[%s1 + $0x1108] sm:$0xff]
    %v741 = vld [vmem:[%s1 + $0x1110] sm:$0xff]
    %v742 = vld [vmem:[%s1 + $0x1118] sm:$0xff]
    %v743 = vld [vmem:[%s1 + $0x1120] sm:$0xff]
    %v744 = vld [vmem:[%s1 + $0x1128] sm:$0xff]
    %v745 = vld [vmem:[%s1 + $0x1130] sm:$0xff]
    %v746 = vld [vmem:[%s1 + $0x1138] sm:$0xff]
    %v747 = vld [vmem:[%s1 + $0x1140] sm:$0xff]
    %v748 = vld [vmem:[%s1 + $0x1148] sm:$0xff]
    %v749 = vld [vmem:[%s1 + $0x1150] sm:$0xff]
    %v750 = vld [vmem:[%s1 + $0x1158] sm:$0xff]
    %v751 = vld [vmem:[%s1 + $0x1160] sm:$0xff]
    %v752 = vld [vmem:[%s1 + $0x1168] sm:$0xff]
    %v753 = vld [vmem:[%s1 + $0x1170] sm:$0xff]
    %v754 = vld [vmem:[%s1 + $0x1178] sm:$0xff]
    %v755 = vld [vmem:[%s1 + $0x1180] sm:$0xff]
    %v756 = vld [vmem:[%s1 + $0x1188] sm:$0xff]
    %v757 = vld [vmem:[%s1 + $0x1190] sm:$0xff]
    %v758 = vld [vmem:[%s1 + $0x1198] sm:$0xff]
    %v759 = vld [vmem:[%s1 + $0x11a0] sm:$0xff]
    %v760 = vld [vmem:[%s1 + $0x11a8] sm:$0xff]
    %v761 = vld [vmem:[%s1 + $0x11b0] sm:$0xff]
    %v762 = vld [vmem:[%s1 + $0x11b8] sm:$0xff]
    %v763 = vld [vmem:[%s1 + $0x11c0] sm:$0xff]
    %v764 = vld [vmem:[%s1 + $0x11c8] sm:$0xff]
    %v765 = vld [vmem:[%s1 + $0x11d0] sm:$0xff]
    %v766 = vld [vmem:[%s1 + $0x11d8] sm:$0xff]
    %v767 = vld [vmem:[%s1 + $0x11e0] sm:$0xff]
    %v768 = vld [vmem:[%s1 + $0x11e8] sm:$0xff]
    %v769 = vld [vmem:[%s1 + $0x11f0] sm:$0xff]
    %v770 = vld [vmem:[%s1 + $0x11f8] sm:$0xff]
    %v771 = vld [vmem:[%s1 + $0x1200] sm:$0xff]
    %v772 = vld [vmem:[%s1 + $0x1208] sm:$0xff]
    %v773 = vld [vmem:[%s1 + $0x1210] sm:$0xff]
    %v774 = vld [vmem:[%s1 + $0x1218] sm:$0xff]
    %v775 = vld [vmem:[%s1 + $0x1220] sm:$0xff]
    %v776 = vld [vmem:[%s1 + $0x1228] sm:$0xff]
    %v777 = vld [vmem:[%s1 + $0x1230] sm:$0xff]
    %v778 = vld [vmem:[%s1 + $0x1238] sm:$0xff]
    %v779 = vld [vmem:[%s1 + $0x1240] sm:$0xff]
    %v780 = vld [vmem:[%s1 + $0x1248] sm:$0xff]
    %v781 = vld [vmem:[%s1 + $0x1250] sm:$0xff]
    %v782 = vld [vmem:[%s1 + $0x1258] sm:$0xff]
    %v783 = vld [vmem:[%s1 + $0x1260] sm:$0xff]
    %v784 = vld [vmem:[%s1 + $0x1268] sm:$0xff]
    %v785 = vld [vmem:[%s1 + $0x1270] sm:$0xff]
    %v786 = vld [vmem:[%s1 + $0x1278] sm:$0xff]
    %v787 = vld [vmem:[%s1 + $0x1280] sm:$0xff]
    %v788 = vld [vmem:[%s1 + $0x1288] sm:$0xff]
    %v789 = vld [vmem:[%s1 + $0x1290] sm:$0xff]
    %v790 = vld [vmem:[%s1 + $0x1298] sm:$0xff]
    %v791 = vld [vmem:[%s1 + $0x12a0] sm:$0xff]
    %v792 = vld [vmem:[%s1 + $0x12a8] sm:$0xff]
    %v793 = vld [vmem:[%s1 + $0x12b0] sm:$0xff]
    %v794 = vld [vmem:[%s1 + $0x12b8] sm:$0xff]
    %v795 = vld [vmem:[%s1 + $0x12c0] sm:$0xff]
    %v796 = vld [vmem:[%s1 + $0x12c8] sm:$0xff]
    %v797 = vld [vmem:[%s1 + $0x12d0] sm:$0xff]
    %v798 = vld [vmem:[%s1 + $0x12d8] sm:$0xff]
    %v799 = vld [vmem:[%s1 + $0x12e0] sm:$0xff]
    %v800 = vld [vmem:[%s1 + $0x12e8] sm:$0xff]
    %v801 = vld [vmem:[%s1 + $0x12f0] sm:$0xff]
    %v802 = vld [vmem:[%s1 + $0x12f8] sm:$0xff]
    %v803 = vld [vmem:[%s1 + $0x1300] sm:$0xff]
    %v804 = vld [vmem:[%s1 + $0x1308] sm:$0xff]
    %v805 = vld [vmem:[%s1 + $0x1310] sm:$0xff]
    %v806 = vld [vmem:[%s1 + $0x1318] sm:$0xff]
    %v807 = vld [vmem:[%s1 + $0x1320] sm:$0xff]
    %v808 = vld [vmem:[%s1 + $0x1328] sm:$0xff]
    %v809 = vld [vmem:[%s1 + $0x1330] sm:$0xff]
    %v810 = vld [vmem:[%s1 + $0x1338] sm:$0xff]
    %v811 = vld [vmem:[%s1 + $0x1340] sm:$0xff]
    %v812 = vld [vmem:[%s1 + $0x1348] sm:$0xff]
    %v813 = vld [vmem:[%s1 + $0x1350] sm:$0xff]
    %v814 = vld [vmem:[%s1 + $0x1358] sm:$0xff]
    %v815 = vld [vmem:[%s1 + $0x1360] sm:$0xff]
    %v816 = vld [vmem:[%s1 + $0x1368] sm:$0xff]
    %v817 = vld [vmem:[%s1 + $0x1370] sm:$0xff]
    %v818 = vld [vmem:[%s1 + $0x1378] sm:$0xff]
    %v819 = vld [vmem:[%s1 + $0x1380] sm:$0xff]
    %v820 = vld [vmem:[%s1 + $0x1388] sm:$0xff]
    %v821 = vld [vmem:[%s1 + $0x1390] sm:$0xff]
    %v822 = vld [vmem:[%s1 + $0x1398] sm:$0xff]
    %v823 = vld [vmem:[%s1 + $0x13a0] sm:$0xff]
    %v824 = vld [vmem:[%s1 + $0x13a8] sm:$0xff]
    %v825 = vld [vmem:[%s1 + $0x13b0] sm:$0xff]
    %v826 = vld [vmem:[%s1 + $0x13b8] sm:$0xff]
    %v827 = vld [vmem:[%s1 + $0x13c0] sm:$0xff]
    %v828 = vld [vmem:[%s1 + $0x13c8] sm:$0xff]
    %v829 = vld [vmem:[%s1 + $0x13d0] sm:$0xff]
    %v830 = vld [vmem:[%s1 + $0x13d8] sm:$0xff]
    %v831 = vld [vmem:[%s1 + $0x13e0] sm:$0xff]
    %v832 = vld [vmem:[%s1 + $0x13e8] sm:$0xff]
    %v833 = vld [vmem:[%s1 + $0x13f0] sm:$0xff]
    %v834 = vld [vmem:[%s1 + $0x13f8] sm:$0xff]
    %v835 = vld [vmem:[%s1 + $0x1400] sm:$0xff]
    %v836 = vld [vmem:[%s1 + $0x1408] sm:$0xff]
    %v837 = vld [vmem:[%s1 + $0x1410] sm:$0xff]
    %v838 = vld [vmem:[%s1 + $0x1418] sm:$0xff]
    %v839 = vld [vmem:[%s1 + $0x1420] sm:$0xff]
    %v840 = vld [vmem:[%s1 + $0x1428] sm:$0xff]
    %v841 = vld [vmem:[%s1 + $0x1430] sm:$0xff]
    %v842 = vld [vmem:[%s1 + $0x1438] sm:$0xff]
    %v843 = vld [vmem:[%s1 + $0x1440] sm:$0xff]
    %v844 = vld [vmem:[%s1 + $0x1448] sm:$0xff]
    %v845 = vld [vmem:[%s1 + $0x1450] sm:$0xff]
    %v846 = vld [vmem:[%s1 + $0x1458] sm:$0xff]
    %v847 = vld [vmem:[%s1 + $0x1460] sm:$0xff]
    %v848 = vld [vmem:[%s1 + $0x1468] sm:$0xff]
    %v849 = vld [vmem:[%s1 + $0x1470] sm:$0xff]
    %v850 = vld [vmem:[%s1 + $0x1478] sm:$0xff]
    %v851 = vld [vmem:[%s1 + $0x1480] sm:$0xff]
    %v852 = vld [vmem:[%s1 + $0x1488] sm:$0xff]
    %v853 = vld [vmem:[%s1 + $0x1490] sm:$0xff]
    %v854 = vld [vmem:[%s1 + $0x1498] sm:$0xff]
    %v855 = vld [vmem:[%s1 + $0x14a0] sm:$0xff]
    %v856 = vld [vmem:[%s1 + $0x14a8] sm:$0xff]
    %v857 = vld [vmem:[%s1 + $0x14b0] sm:$0xff]
    %v858 = vld [vmem:[%s1 + $0x14b8] sm:$0xff]
    %v859 = vld [vmem:[%s1 + $0x14c0] sm:$0xff]
    %v860 = vld [vmem:[%s1 + $0x14c8] sm:$0xff]
    %v861 = vld [vmem:[%s1 + $0x14d0] sm:$0xff]
    %v862 = vld [vmem:[%s1 + $0x14d8] sm:$0xff]
    %v863 = vld [vmem:[%s1 + $0x14e0] sm:$0xff]
    %v864 = vld [vmem:[%s1 + $0x14e8] sm:$0xff]
    %v865 = vld [vmem:[%s1 + $0x14f0] sm:$0xff]
    %v866 = vld [vmem:[%s1 + $0x14f8] sm:$0xff]
    %v867 = vld [vmem:[%s1 + $0x1500] sm:$0xff]
    %v868 = vld [vmem:[%s1 + $0x1508] sm:$0xff]
    %v869 = vld [vmem:[%s1 + $0x1510] sm:$0xff]
    %v870 = vld [vmem:[%s1 + $0x1518] sm:$0xff]
    %v871 = vld [vmem:[%s1 + $0x1520] sm:$0xff]
    %v872 = vld [vmem:[%s1 + $0x1528] sm:$0xff]
    %v873 = vld [vmem:[%s1 + $0x1530] sm:$0xff]
    %v874 = vld [vmem:[%s1 + $0x1538] sm:$0xff]
    %v875 = vld [vmem:[%s1 + $0x1540] sm:$0xff]
    %v876 = vld [vmem:[%s1 + $0x1548] sm:$0xff]
    %v877 = vld [vmem:[%s1 + $0x1550] sm:$0xff]
    %v878 = vld [vmem:[%s1 + $0x1558] sm:$0xff]
    %v879 = vld [vmem:[%s1 + $0x1560] sm:$0xff]
    %v880 = vld [vmem:[%s1 + $0x1568] sm:$0xff]
    %v881 = vld [vmem:[%s1 + $0x1570] sm:$0xff]
    %v882 = vld [vmem:[%s1 + $0x1578] sm:$0xff]
    %v883 = vld [vmem:[%s1 + $0x1580] sm:$0xff]
    %v884 = vld [vmem:[%s1 + $0x1588] sm:$0xff]
    %v885 = vld [vmem:[%s1 + $0x1590] sm:$0xff]
    %v886 = vld [vmem:[%s1 + $0x1598] sm:$0xff]
    %v887 = vld [vmem:[%s1 + $0x15a0] sm:$0xff]
    %v888 = vld [vmem:[%s1 + $0x15a8] sm:$0xff]
    %v889 = vld [vmem:[%s1 + $0x15b0] sm:$0xff]
    %v890 = vld [vmem:[%s1 + $0x15b8] sm:$0xff]
    %v891 = vld [vmem:[%s1 + $0x15c0] sm:$0xff]
    %v892 = vld [vmem:[%s1 + $0x15c8] sm:$0xff]
    %v893 = vld [vmem:[%s1 + $0x15d0] sm:$0xff]
    %v894 = vld [vmem:[%s1 + $0x15d8] sm:$0xff]
    %v895 = vld [vmem:[%s1 + $0x15e0] sm:$0xff]
    %v896 = vld [vmem:[%s1 + $0x15e8] sm:$0xff]
    %v897 = vld [vmem:[%s1 + $0x15f0] sm:$0xff]
    %v898 = vld [vmem:[%s1 + $0x15f8] sm:$0xff]
    %v899 = vld [vmem:[%s1 + $0x1600] sm:$0xff]
    %v900 = vld [vmem:[%s1 + $0x1608] sm:$0xff]
    %v901 = vld [vmem:[%s1 + $0x1610] sm:$0xff]
    %v902 = vld [vmem:[%s1 + $0x1618] sm:$0xff]
    %v903 = vld [vmem:[%s1 + $0x1620] sm:$0xff]
    %v904 = vld [vmem:[%s1 + $0x1628] sm:$0xff]
    %v905 = vld [vmem:[%s1 + $0x1630] sm:$0xff]
    %v906 = vld [vmem:[%s1 + $0x1638] sm:$0xff]
    %v907 = vld [vmem:[%s1 + $0x1640] sm:$0xff]
    %v908 = vld [vmem:[%s1 + $0x1648] sm:$0xff]
    %v909 = vld [vmem:[%s1 + $0x1650] sm:$0xff]
    %v910 = vld [vmem:[%s1 + $0x1658] sm:$0xff]
    %v911 = vld [vmem:[%s1 + $0x1660] sm:$0xff]
    %v912 = vld [vmem:[%s1 + $0x1668] sm:$0xff]
    %v913 = vld [vmem:[%s1 + $0x1670] sm:$0xff]
    %v914 = vld [vmem:[%s1 + $0x1678] sm:$0xff]
    %v915 = vld [vmem:[%s1 + $0x1680] sm:$0xff]
    %v916 = vld [vmem:[%s1 + $0x1688] sm:$0xff]
    %v917 = vld [vmem:[%s1 + $0x1690] sm:$0xff]
    %v918 = vld [vmem:[%s1 + $0x1698] sm:$0xff]
    %v919 = vld [vmem:[%s1 + $0x16a0] sm:$0xff]
    %v920 = vld [vmem:[%s1 + $0x16a8] sm:$0xff]
    %v921 = vld [vmem:[%s1 + $0x16b0] sm:$0xff]
    %v922 = vld [vmem:[%s1 + $0x16b8] sm:$0xff]
    %v923 = vld [vmem:[%s1 + $0x16c0] sm:$0xff]
    %v924 = vld [vmem:[%s1 + $0x16c8] sm:$0xff]
    %v925 = vld [vmem:[%s1 + $0x16d0] sm:$0xff]
    %v926 = vld [vmem:[%s1 + $0x16d8] sm:$0xff]
    %v927 = vld [vmem:[%s1 + $0x16e0] sm:$0xff]
    %v928 = vld [vmem:[%s1 + $0x16e8] sm:$0xff]
    %v929 = vld [vmem:[%s1 + $0x16f0] sm:$0xff]
    %v930 = vld [vmem:[%s1 + $0x16f8] sm:$0xff]
    %v931 = vld [vmem:[%s1 + $0x1700] sm:$0xff]
    %v932 = vld [vmem:[%s1 + $0x1708] sm:$0xff]
    %v933 = vld [vmem:[%s1 + $0x1710] sm:$0xff]
    %v934 = vld [vmem:[%s1 + $0x1718] sm:$0xff]
    %v935 = vld [vmem:[%s1 + $0x1720] sm:$0xff]
    %v936 = vld [vmem:[%s1 + $0x1728] sm:$0xff]
    %v937 = vld [vmem:[%s1 + $0x1730] sm:$0xff]
    %v938 = vld [vmem:[%s1 + $0x1738] sm:$0xff]
    %v939 = vld [vmem:[%s1 + $0x1740] sm:$0xff]
    %v940 = vld [vmem:[%s1 + $0x1748] sm:$0xff]
    %v941 = vld [vmem:[%s1 + $0x1750] sm:$0xff]
    %v942 = vld [vmem:[%s1 + $0x1758] sm:$0xff]
    %v943 = vld [vmem:[%s1 + $0x1760] sm:$0xff]
    %v944 = vld [vmem:[%s1 + $0x1768] sm:$0xff]
    %v945 = vld [vmem:[%s1 + $0x1770] sm:$0xff]
    %v946 = vld [vmem:[%s1 + $0x1778] sm:$0xff]
    %v947 = vld [vmem:[%s1 + $0x1780] sm:$0xff]
    %v948 = vld [vmem:[%s1 + $0x1788] sm:$0xff]
    %v949 = vld [vmem:[%s1 + $0x1790] sm:$0xff]
    %v950 = vld [vmem:[%s1 + $0x1798] sm:$0xff]
    %v951 = vld [vmem:[%s1 + $0x17a0] sm:$0xff]
    %v952 = vld [vmem:[%s1 + $0x17a8] sm:$0xff]
    %v953 = vld [vmem:[%s1 + $0x17b0] sm:$0xff]
    %v954 = vld [vmem:[%s1 + $0x17b8] sm:$0xff]
    %v955 = vld [vmem:[%s1 + $0x17c0] sm:$0xff]
    %v956 = vld [vmem:[%s1 + $0x17c8] sm:$0xff]
    %v957 = vld [vmem:[%s1 + $0x17d0] sm:$0xff]
    %v958 = vld [vmem:[%s1 + $0x17d8] sm:$0xff]
    %v959 = vld [vmem:[%s1 + $0x17e0] sm:$0xff]
    %v960 = vld [vmem:[%s1 + $0x17e8] sm:$0xff]
    %v961 = vld [vmem:[%s1 + $0x17f0] sm:$0xff]
    %v962 = vld [vmem:[%s1 + $0x17f8] sm:$0xff]
    %v963 = vld [vmem:[%s1 + $0x1800] sm:$0xff]
    %v964 = vld [vmem:[%s1 + $0x1808] sm:$0xff]
    %v965 = vld [vmem:[%s1 + $0x1810] sm:$0xff]
    %v966 = vld [vmem:[%s1 + $0x1818] sm:$0xff]
    %v967 = vld [vmem:[%s1 + $0x1820] sm:$0xff]
    %v968 = vld [vmem:[%s1 + $0x1828] sm:$0xff]
    %v969 = vld [vmem:[%s1 + $0x1830] sm:$0xff]
    %v970 = vld [vmem:[%s1 + $0x1838] sm:$0xff]
    %v971 = vld [vmem:[%s1 + $0x1840] sm:$0xff]
    %v972 = vld [vmem:[%s1 + $0x1848] sm:$0xff]
    %v973 = vld [vmem:[%s1 + $0x1850] sm:$0xff]
    %v974 = vld [vmem:[%s1 + $0x1858] sm:$0xff]
    %v975 = vld [vmem:[%s1 + $0x1860] sm:$0xff]
    %v976 = vld [vmem:[%s1 + $0x1868] sm:$0xff]
    %v977 = vld [vmem:[%s1 + $0x1870] sm:$0xff]
    %v978 = vld [vmem:[%s1 + $0x1878] sm:$0xff]
    %v979 = vld [vmem:[%s1 + $0x1880] sm:$0xff]
    %v980 = vld [vmem:[%s1 + $0x1888] sm:$0xff]
    %v981 = vld [vmem:[%s1 + $0x1890] sm:$0xff]
    %v982 = vld [vmem:[%s1 + $0x1898] sm:$0xff]
    %v983 = vld [vmem:[%s1 + $0x18a0] sm:$0xff]
    %v984 = vld [vmem:[%s1 + $0x18a8] sm:$0xff]
    %v985 = vld [vmem:[%s1 + $0x18b0] sm:$0xff]
    %v986 = vld [vmem:[%s1 + $0x18b8] sm:$0xff]
    %v987 = vld [vmem:[%s1 + $0x18c0] sm:$0xff]
    %v988 = vld [vmem:[%s1 + $0x18c8] sm:$0xff]
    %v989 = vld [vmem:[%s1 + $0x18d0] sm:$0xff]
    %v990 = vld [vmem:[%s1 + $0x18d8] sm:$0xff]
    %v991 = vld [vmem:[%s1 + $0x18e0] sm:$0xff]
    %v992 = vld [vmem:[%s1 + $0x18e8] sm:$0xff]
    %v993 = vld [vmem:[%s1 + $0x18f0] sm:$0xff]
    %v994 = vld [vmem:[%s1 + $0x18f8] sm:$0xff]
    %v995 = vld [vmem:[%s2] sm:$0xf]
    %v997 = vlaneseq
    %v998 = vshrl.u32 %v997, 7
    %v999 = vsub.s32 0, %v998
    %v1000 = vrot.slane %v995, %v999
    %v1001 = vlaneseq
    %v1002 = vshrl.u32 %v1001, 7
    %v1003 = vsub.s32 1, %v1002
    %v1004 = vrot.slane %v995, %v1003
    %v1005 = vlaneseq
    %v1006 = vshrl.u32 %v1005, 7
    %v1007 = vsub.s32 2, %v1006
    %v1008 = vrot.slane %v995, %v1007
    %v1009 = vlaneseq
    %v1010 = vshrl.u32 %v1009, 7
    %v1011 = vsub.s32 3, %v1010
    %v1012 = vrot.slane %v995, %v1011
    %v1817 = vunpack.c.l.b16 %v195
    %v1818 = vunpack.c.h.b16 %v195
    %v1819 = vunpack.c.l.b16 %v196
    %v1820 = vunpack.c.h.b16 %v196
    %v1821 = vunpack.c.l.b16 %v197
    %v1822 = vunpack.c.h.b16 %v197
    %v1823 = vunpack.c.l.b16 %v198
    %v1824 = vunpack.c.h.b16 %v198
    %v1825 = vunpack.c.l.b16 %v199
    %v1826 = vunpack.c.h.b16 %v199
    %v1827 = vunpack.c.l.b16 %v200
    %v1828 = vunpack.c.h.b16 %v200
    %v1829 = vunpack.c.l.b16 %v201
    %v1830 = vunpack.c.h.b16 %v201
    %v1831 = vunpack.c.l.b16 %v202
    %v1832 = vunpack.c.h.b16 %v202
    %v1833 = vunpack.c.l.b16 %v203
    %v1834 = vunpack.c.h.b16 %v203
    %v1835 = vunpack.c.l.b16 %v204
    %v1836 = vunpack.c.h.b16 %v204
    %v1837 = vunpack.c.l.b16 %v205
    %v1838 = vunpack.c.h.b16 %v205
    %v1839 = vunpack.c.l.b16 %v206
    %v1840 = vunpack.c.h.b16 %v206
    %v1841 = vunpack.c.l.b16 %v207
    %v1842 = vunpack.c.h.b16 %v207
    %v1843 = vunpack.c.l.b16 %v208
    %v1844 = vunpack.c.h.b16 %v208
    %v1845 = vunpack.c.l.b16 %v209
    %v1846 = vunpack.c.h.b16 %v209
    %v1847 = vunpack.c.l.b16 %v210
    %v1848 = vunpack.c.h.b16 %v210
    %v1849 = vunpack.c.l.b16 %v211
    %v1850 = vunpack.c.h.b16 %v211
    %v1851 = vunpack.c.l.b16 %v212
    %v1852 = vunpack.c.h.b16 %v212
    %v1853 = vunpack.c.l.b16 %v213
    %v1854 = vunpack.c.h.b16 %v213
    %v1855 = vunpack.c.l.b16 %v214
    %v1856 = vunpack.c.h.b16 %v214
    %v1857 = vunpack.c.l.b16 %v215
    %v1858 = vunpack.c.h.b16 %v215
    %v1859 = vunpack.c.l.b16 %v216
    %v1860 = vunpack.c.h.b16 %v216
    %v1861 = vunpack.c.l.b16 %v217
    %v1862 = vunpack.c.h.b16 %v217
    %v1863 = vunpack.c.l.b16 %v218
    %v1864 = vunpack.c.h.b16 %v218
    %v1865 = vunpack.c.l.b16 %v219
    %v1866 = vunpack.c.h.b16 %v219
    %v1867 = vunpack.c.l.b16 %v220
    %v1868 = vunpack.c.h.b16 %v220
    %v1869 = vunpack.c.l.b16 %v221
    %v1870 = vunpack.c.h.b16 %v221
    %v1871 = vunpack.c.l.b16 %v222
    %v1872 = vunpack.c.h.b16 %v222
    %v1873 = vunpack.c.l.b16 %v223
    %v1874 = vunpack.c.h.b16 %v223
    %v1875 = vunpack.c.l.b16 %v224
    %v1876 = vunpack.c.h.b16 %v224
    %v1877 = vunpack.c.l.b16 %v225
    %v1878 = vunpack.c.h.b16 %v225
    %v1879 = vunpack.c.l.b16 %v226
    %v1880 = vunpack.c.h.b16 %v226
    %v1881 = vunpack.c.l.b16 %v227
    %v1882 = vunpack.c.h.b16 %v227
    %v1883 = vunpack.c.l.b16 %v228
    %v1884 = vunpack.c.h.b16 %v228
    %v1885 = vunpack.c.l.b16 %v229
    %v1886 = vunpack.c.h.b16 %v229
    %v1887 = vunpack.c.l.b16 %v230
    %v1888 = vunpack.c.h.b16 %v230
    %v1889 = vunpack.c.l.b16 %v231
    %v1890 = vunpack.c.h.b16 %v231
    %v1891 = vunpack.c.l.b16 %v232
    %v1892 = vunpack.c.h.b16 %v232
    %v1893 = vunpack.c.l.b16 %v233
    %v1894 = vunpack.c.h.b16 %v233
    %v1895 = vunpack.c.l.b16 %v234
    %v1896 = vunpack.c.h.b16 %v234
    %v1897 = vunpack.c.l.b16 %v235
    %v1898 = vunpack.c.h.b16 %v235
    %v1899 = vunpack.c.l.b16 %v236
    %v1900 = vunpack.c.h.b16 %v236
    %v1901 = vunpack.c.l.b16 %v237
    %v1902 = vunpack.c.h.b16 %v237
    %v1903 = vunpack.c.l.b16 %v238
    %v1904 = vunpack.c.h.b16 %v238
    %v1905 = vunpack.c.l.b16 %v239
    %v1906 = vunpack.c.h.b16 %v239
    %v1907 = vunpack.c.l.b16 %v240
    %v1908 = vunpack.c.h.b16 %v240
    %v1909 = vunpack.c.l.b16 %v241
    %v1910 = vunpack.c.h.b16 %v241
    %v1911 = vunpack.c.l.b16 %v242
    %v1912 = vunpack.c.h.b16 %v242
    %v1913 = vunpack.c.l.b16 %v243
    %v1914 = vunpack.c.h.b16 %v243
    %v1915 = vunpack.c.l.b16 %v244
    %v1916 = vunpack.c.h.b16 %v244
    %v1917 = vunpack.c.l.b16 %v245
    %v1918 = vunpack.c.h.b16 %v245
    %v1919 = vunpack.c.l.b16 %v246
    %v1920 = vunpack.c.h.b16 %v246
    %v1921 = vunpack.c.l.b16 %v247
    %v1922 = vunpack.c.h.b16 %v247
    %v1923 = vunpack.c.l.b16 %v248
    %v1924 = vunpack.c.h.b16 %v248
    %v1925 = vunpack.c.l.b16 %v249
    %v1926 = vunpack.c.h.b16 %v249
    %v1927 = vunpack.c.l.b16 %v250
    %v1928 = vunpack.c.h.b16 %v250
    %v1929 = vunpack.c.l.b16 %v251
    %v1930 = vunpack.c.h.b16 %v251
    %v1931 = vunpack.c.l.b16 %v252
    %v1932 = vunpack.c.h.b16 %v252
    %v1933 = vunpack.c.l.b16 %v253
    %v1934 = vunpack.c.h.b16 %v253
    %v1935 = vunpack.c.l.b16 %v254
    %v1936 = vunpack.c.h.b16 %v254
    %v1937 = vunpack.c.l.b16 %v255
    %v1938 = vunpack.c.h.b16 %v255
    %v1939 = vunpack.c.l.b16 %v256
    %v1940 = vunpack.c.h.b16 %v256
    %v1941 = vunpack.c.l.b16 %v257
    %v1942 = vunpack.c.h.b16 %v257
    %v1943 = vunpack.c.l.b16 %v258
    %v1944 = vunpack.c.h.b16 %v258
    %v1945 = vunpack.c.l.b16 %v259
    %v1946 = vunpack.c.h.b16 %v259
    %v1947 = vunpack.c.l.b16 %v260
    %v1948 = vunpack.c.h.b16 %v260
    %v1949 = vunpack.c.l.b16 %v261
    %v1950 = vunpack.c.h.b16 %v261
    %v1951 = vunpack.c.l.b16 %v262
    %v1952 = vunpack.c.h.b16 %v262
    %v1953 = vunpack.c.l.b16 %v263
    %v1954 = vunpack.c.h.b16 %v263
    %v1955 = vunpack.c.l.b16 %v264
    %v1956 = vunpack.c.h.b16 %v264
    %v1957 = vunpack.c.l.b16 %v265
    %v1958 = vunpack.c.h.b16 %v265
    %v1959 = vunpack.c.l.b16 %v266
    %v1960 = vunpack.c.h.b16 %v266
    %v1961 = vunpack.c.l.b16 %v267
    %v1962 = vunpack.c.h.b16 %v267
    %v1963 = vunpack.c.l.b16 %v268
    %v1964 = vunpack.c.h.b16 %v268
    %v1965 = vunpack.c.l.b16 %v269
    %v1966 = vunpack.c.h.b16 %v269
    %v1967 = vunpack.c.l.b16 %v270
    %v1968 = vunpack.c.h.b16 %v270
    %v1969 = vunpack.c.l.b16 %v271
    %v1970 = vunpack.c.h.b16 %v271
    %v1971 = vunpack.c.l.b16 %v272
    %v1972 = vunpack.c.h.b16 %v272
    %v1973 = vunpack.c.l.b16 %v273
    %v1974 = vunpack.c.h.b16 %v273
    %v1975 = vunpack.c.l.b16 %v274
    %v1976 = vunpack.c.h.b16 %v274
    %v1977 = vunpack.c.l.b16 %v275
    %v1978 = vunpack.c.h.b16 %v275
    %v1979 = vunpack.c.l.b16 %v276
    %v1980 = vunpack.c.h.b16 %v276
    %v1981 = vunpack.c.l.b16 %v277
    %v1982 = vunpack.c.h.b16 %v277
    %v1983 = vunpack.c.l.b16 %v278
    %v1984 = vunpack.c.h.b16 %v278
    %v1985 = vunpack.c.l.b16 %v279
    %v1986 = vunpack.c.h.b16 %v279
    %v1987 = vunpack.c.l.b16 %v280
    %v1988 = vunpack.c.h.b16 %v280
    %v1989 = vunpack.c.l.b16 %v281
    %v1990 = vunpack.c.h.b16 %v281
    %v1991 = vunpack.c.l.b16 %v282
    %v1992 = vunpack.c.h.b16 %v282
    %v1993 = vunpack.c.l.b16 %v283
    %v1994 = vunpack.c.h.b16 %v283
    %v1995 = vunpack.c.l.b16 %v284
    %v1996 = vunpack.c.h.b16 %v284
    %v1997 = vunpack.c.l.b16 %v285
    %v1998 = vunpack.c.h.b16 %v285
    %v1999 = vunpack.c.l.b16 %v286
    %v2000 = vunpack.c.h.b16 %v286
    %v2001 = vunpack.c.l.b16 %v287
    %v2002 = vunpack.c.h.b16 %v287
    %v2003 = vunpack.c.l.b16 %v288
    %v2004 = vunpack.c.h.b16 %v288
    %v2005 = vunpack.c.l.b16 %v289
    %v2006 = vunpack.c.h.b16 %v289
    %v2007 = vunpack.c.l.b16 %v290
    %v2008 = vunpack.c.h.b16 %v290
    %v2009 = vunpack.c.l.b16 %v291
    %v2010 = vunpack.c.h.b16 %v291
    %v2011 = vunpack.c.l.b16 %v292
    %v2012 = vunpack.c.h.b16 %v292
    %v2013 = vunpack.c.l.b16 %v293
    %v2014 = vunpack.c.h.b16 %v293
    %v2015 = vunpack.c.l.b16 %v294
    %v2016 = vunpack.c.h.b16 %v294
    %v2017 = vunpack.c.l.b16 %v295
    %v2018 = vunpack.c.h.b16 %v295
    %v2019 = vunpack.c.l.b16 %v296
    %v2020 = vunpack.c.h.b16 %v296
    %v2021 = vunpack.c.l.b16 %v297
    %v2022 = vunpack.c.h.b16 %v297
    %v2023 = vunpack.c.l.b16 %v298
    %v2024 = vunpack.c.h.b16 %v298
    %v2025 = vunpack.c.l.b16 %v299
    %v2026 = vunpack.c.h.b16 %v299
    %v2027 = vunpack.c.l.b16 %v300
    %v2028 = vunpack.c.h.b16 %v300
    %v2029 = vunpack.c.l.b16 %v301
    %v2030 = vunpack.c.h.b16 %v301
    %v2031 = vunpack.c.l.b16 %v302
    %v2032 = vunpack.c.h.b16 %v302
    %v2033 = vunpack.c.l.b16 %v303
    %v2034 = vunpack.c.h.b16 %v303
    %v2035 = vunpack.c.l.b16 %v304
    %v2036 = vunpack.c.h.b16 %v304
    %v2037 = vunpack.c.l.b16 %v305
    %v2038 = vunpack.c.h.b16 %v305
    %v2039 = vunpack.c.l.b16 %v306
    %v2040 = vunpack.c.h.b16 %v306
    %v2041 = vunpack.c.l.b16 %v307
    %v2042 = vunpack.c.h.b16 %v307
    %v2043 = vunpack.c.l.b16 %v308
    %v2044 = vunpack.c.h.b16 %v308
    %v2045 = vunpack.c.l.b16 %v309
    %v2046 = vunpack.c.h.b16 %v309
    %v2047 = vunpack.c.l.b16 %v310
    %v2048 = vunpack.c.h.b16 %v310
    %v2049 = vunpack.c.l.b16 %v311
    %v2050 = vunpack.c.h.b16 %v311
    %v2051 = vunpack.c.l.b16 %v312
    %v2052 = vunpack.c.h.b16 %v312
    %v2053 = vunpack.c.l.b16 %v313
    %v2054 = vunpack.c.h.b16 %v313
    %v2055 = vunpack.c.l.b16 %v314
    %v2056 = vunpack.c.h.b16 %v314
    %v2057 = vunpack.c.l.b16 %v315
    %v2058 = vunpack.c.h.b16 %v315
    %v2059 = vunpack.c.l.b16 %v316
    %v2060 = vunpack.c.h.b16 %v316
    %v2061 = vunpack.c.l.b16 %v317
    %v2062 = vunpack.c.h.b16 %v317
    %v2063 = vunpack.c.l.b16 %v318
    %v2064 = vunpack.c.h.b16 %v318
    %v2065 = vunpack.c.l.b16 %v319
    %v2066 = vunpack.c.h.b16 %v319
    %v2067 = vunpack.c.l.b16 %v320
    %v2068 = vunpack.c.h.b16 %v320
    %v2069 = vunpack.c.l.b16 %v321
    %v2070 = vunpack.c.h.b16 %v321
    %v2071 = vunpack.c.l.b16 %v322
    %v2072 = vunpack.c.h.b16 %v322
    %v2073 = vunpack.c.l.b16 %v323
    %v2074 = vunpack.c.h.b16 %v323
    %v2075 = vunpack.c.l.b16 %v324
    %v2076 = vunpack.c.h.b16 %v324
    %v2077 = vunpack.c.l.b16 %v325
    %v2078 = vunpack.c.h.b16 %v325
    %v2079 = vunpack.c.l.b16 %v326
    %v2080 = vunpack.c.h.b16 %v326
    %v2081 = vunpack.c.l.b16 %v327
    %v2082 = vunpack.c.h.b16 %v327
    %v2083 = vunpack.c.l.b16 %v328
    %v2084 = vunpack.c.h.b16 %v328
    %v2085 = vunpack.c.l.b16 %v329
    %v2086 = vunpack.c.h.b16 %v329
    %v2087 = vunpack.c.l.b16 %v330
    %v2088 = vunpack.c.h.b16 %v330
    %v2089 = vunpack.c.l.b16 %v331
    %v2090 = vunpack.c.h.b16 %v331
    %v2091 = vunpack.c.l.b16 %v332
    %v2092 = vunpack.c.h.b16 %v332
    %v2093 = vunpack.c.l.b16 %v333
    %v2094 = vunpack.c.h.b16 %v333
    %v2095 = vunpack.c.l.b16 %v334
    %v2096 = vunpack.c.h.b16 %v334
    %v2097 = vunpack.c.l.b16 %v335
    %v2098 = vunpack.c.h.b16 %v335
    %v2099 = vunpack.c.l.b16 %v336
    %v2100 = vunpack.c.h.b16 %v336
    %v2101 = vunpack.c.l.b16 %v337
    %v2102 = vunpack.c.h.b16 %v337
    %v2103 = vunpack.c.l.b16 %v338
    %v2104 = vunpack.c.h.b16 %v338
    %v2105 = vunpack.c.l.b16 %v339
    %v2106 = vunpack.c.h.b16 %v339
    %v2107 = vunpack.c.l.b16 %v340
    %v2108 = vunpack.c.h.b16 %v340
    %v2109 = vunpack.c.l.b16 %v341
    %v2110 = vunpack.c.h.b16 %v341
    %v2111 = vunpack.c.l.b16 %v342
    %v2112 = vunpack.c.h.b16 %v342
    %v2113 = vunpack.c.l.b16 %v343
    %v2114 = vunpack.c.h.b16 %v343
    %v2115 = vunpack.c.l.b16 %v344
    %v2116 = vunpack.c.h.b16 %v344
    %v2117 = vunpack.c.l.b16 %v345
    %v2118 = vunpack.c.h.b16 %v345
    %v2119 = vunpack.c.l.b16 %v346
    %v2120 = vunpack.c.h.b16 %v346
    %v2121 = vunpack.c.l.b16 %v347
    %v2122 = vunpack.c.h.b16 %v347
    %v2123 = vunpack.c.l.b16 %v348
    %v2124 = vunpack.c.h.b16 %v348
    %v2125 = vunpack.c.l.b16 %v349
    %v2126 = vunpack.c.h.b16 %v349
    %v2127 = vunpack.c.l.b16 %v350
    %v2128 = vunpack.c.h.b16 %v350
    %v2129 = vunpack.c.l.b16 %v351
    %v2130 = vunpack.c.h.b16 %v351
    %v2131 = vunpack.c.l.b16 %v352
    %v2132 = vunpack.c.h.b16 %v352
    %v2133 = vunpack.c.l.b16 %v353
    %v2134 = vunpack.c.h.b16 %v353
    %v2135 = vunpack.c.l.b16 %v354
    %v2136 = vunpack.c.h.b16 %v354
    %v2137 = vunpack.c.l.b16 %v355
    %v2138 = vunpack.c.h.b16 %v355
    %v2139 = vunpack.c.l.b16 %v356
    %v2140 = vunpack.c.h.b16 %v356
    %v2141 = vunpack.c.l.b16 %v357
    %v2142 = vunpack.c.h.b16 %v357
    %v2143 = vunpack.c.l.b16 %v358
    %v2144 = vunpack.c.h.b16 %v358
    %v2145 = vunpack.c.l.b16 %v359
    %v2146 = vunpack.c.h.b16 %v359
    %v2147 = vunpack.c.l.b16 %v360
    %v2148 = vunpack.c.h.b16 %v360
    %v2149 = vunpack.c.l.b16 %v361
    %v2150 = vunpack.c.h.b16 %v361
    %v2151 = vunpack.c.l.b16 %v362
    %v2152 = vunpack.c.h.b16 %v362
    %v2153 = vunpack.c.l.b16 %v363
    %v2154 = vunpack.c.h.b16 %v363
    %v2155 = vunpack.c.l.b16 %v364
    %v2156 = vunpack.c.h.b16 %v364
    %v2157 = vunpack.c.l.b16 %v365
    %v2158 = vunpack.c.h.b16 %v365
    %v2159 = vunpack.c.l.b16 %v366
    %v2160 = vunpack.c.h.b16 %v366
    %v2161 = vunpack.c.l.b16 %v367
    %v2162 = vunpack.c.h.b16 %v367
    %v2163 = vunpack.c.l.b16 %v368
    %v2164 = vunpack.c.h.b16 %v368
    %v2165 = vunpack.c.l.b16 %v369
    %v2166 = vunpack.c.h.b16 %v369
    %v2167 = vunpack.c.l.b16 %v370
    %v2168 = vunpack.c.h.b16 %v370
    %v2169 = vunpack.c.l.b16 %v371
    %v2170 = vunpack.c.h.b16 %v371
    %v2171 = vunpack.c.l.b16 %v372
    %v2172 = vunpack.c.h.b16 %v372
    %v2173 = vunpack.c.l.b16 %v373
    %v2174 = vunpack.c.h.b16 %v373
    %v2175 = vunpack.c.l.b16 %v374
    %v2176 = vunpack.c.h.b16 %v374
    %v2177 = vunpack.c.l.b16 %v375
    %v2178 = vunpack.c.h.b16 %v375
    %v2179 = vunpack.c.l.b16 %v376
    %v2180 = vunpack.c.h.b16 %v376
    %v2181 = vunpack.c.l.b16 %v377
    %v2182 = vunpack.c.h.b16 %v377
    %v2183 = vunpack.c.l.b16 %v378
    %v2184 = vunpack.c.h.b16 %v378
    %v2185 = vunpack.c.l.b16 %v379
    %v2186 = vunpack.c.h.b16 %v379
    %v2187 = vunpack.c.l.b16 %v380
    %v2188 = vunpack.c.h.b16 %v380
    %v2189 = vunpack.c.l.b16 %v381
    %v2190 = vunpack.c.h.b16 %v381
    %v2191 = vunpack.c.l.b16 %v382
    %v2192 = vunpack.c.h.b16 %v382
    %v2193 = vunpack.c.l.b16 %v383
    %v2194 = vunpack.c.h.b16 %v383
    %v2195 = vunpack.c.l.b16 %v384
    %v2196 = vunpack.c.h.b16 %v384
    %v2197 = vunpack.c.l.b16 %v385
    %v2198 = vunpack.c.h.b16 %v385
    %v2199 = vunpack.c.l.b16 %v386
    %v2200 = vunpack.c.h.b16 %v386
    %v2201 = vunpack.c.l.b16 %v387
    %v2202 = vunpack.c.h.b16 %v387
    %v2203 = vunpack.c.l.b16 %v388
    %v2204 = vunpack.c.h.b16 %v388
    %v2205 = vunpack.c.l.b16 %v389
    %v2206 = vunpack.c.h.b16 %v389
    %v2207 = vunpack.c.l.b16 %v390
    %v2208 = vunpack.c.h.b16 %v390
    %v2209 = vunpack.c.l.b16 %v391
    %v2210 = vunpack.c.h.b16 %v391
    %v2211 = vunpack.c.l.b16 %v392
    %v2212 = vunpack.c.h.b16 %v392
    %v2213 = vunpack.c.l.b16 %v393
    %v2214 = vunpack.c.h.b16 %v393
    %v2215 = vunpack.c.l.b16 %v394
    %v2216 = vunpack.c.h.b16 %v394
    %v2217 = vunpack.c.l.b16 %v395
    %v2218 = vunpack.c.h.b16 %v395
    %v2219 = vunpack.c.l.b16 %v396
    %v2220 = vunpack.c.h.b16 %v396
    %v2221 = vunpack.c.l.b16 %v397
    %v2222 = vunpack.c.h.b16 %v397
    %v2223 = vunpack.c.l.b16 %v398
    %v2224 = vunpack.c.h.b16 %v398
    %v2225 = vunpack.c.l.b16 %v399
    %v2226 = vunpack.c.h.b16 %v399
    %v2227 = vunpack.c.l.b16 %v400
    %v2228 = vunpack.c.h.b16 %v400
    %v2229 = vunpack.c.l.b16 %v401
    %v2230 = vunpack.c.h.b16 %v401
    %v2231 = vunpack.c.l.b16 %v402
    %v2232 = vunpack.c.h.b16 %v402
    %v2233 = vunpack.c.l.b16 %v403
    %v2234 = vunpack.c.h.b16 %v403
    %v2235 = vunpack.c.l.b16 %v404
    %v2236 = vunpack.c.h.b16 %v404
    %v2237 = vunpack.c.l.b16 %v405
    %v2238 = vunpack.c.h.b16 %v405
    %v2239 = vunpack.c.l.b16 %v406
    %v2240 = vunpack.c.h.b16 %v406
    %v2241 = vunpack.c.l.b16 %v407
    %v2242 = vunpack.c.h.b16 %v407
    %v2243 = vunpack.c.l.b16 %v408
    %v2244 = vunpack.c.h.b16 %v408
    %v2245 = vunpack.c.l.b16 %v409
    %v2246 = vunpack.c.h.b16 %v409
    %v2247 = vunpack.c.l.b16 %v410
    %v2248 = vunpack.c.h.b16 %v410
    %v2249 = vunpack.c.l.b16 %v411
    %v2250 = vunpack.c.h.b16 %v411
    %v2251 = vunpack.c.l.b16 %v412
    %v2252 = vunpack.c.h.b16 %v412
    %v2253 = vunpack.c.l.b16 %v413
    %v2254 = vunpack.c.h.b16 %v413
    %v2255 = vunpack.c.l.b16 %v414
    %v2256 = vunpack.c.h.b16 %v414
    %v2257 = vunpack.c.l.b16 %v415
    %v2258 = vunpack.c.h.b16 %v415
    %v2259 = vunpack.c.l.b16 %v416
    %v2260 = vunpack.c.h.b16 %v416
    %v2261 = vunpack.c.l.b16 %v417
    %v2262 = vunpack.c.h.b16 %v417
    %v2263 = vunpack.c.l.b16 %v418
    %v2264 = vunpack.c.h.b16 %v418
    %v2265 = vunpack.c.l.b16 %v419
    %v2266 = vunpack.c.h.b16 %v419
    %v2267 = vunpack.c.l.b16 %v420
    %v2268 = vunpack.c.h.b16 %v420
    %v2269 = vunpack.c.l.b16 %v421
    %v2270 = vunpack.c.h.b16 %v421
    %v2271 = vunpack.c.l.b16 %v422
    %v2272 = vunpack.c.h.b16 %v422
    %v2273 = vunpack.c.l.b16 %v423
    %v2274 = vunpack.c.h.b16 %v423
    %v2275 = vunpack.c.l.b16 %v424
    %v2276 = vunpack.c.h.b16 %v424
    %v2277 = vunpack.c.l.b16 %v425
    %v2278 = vunpack.c.h.b16 %v425
    %v2279 = vunpack.c.l.b16 %v426
    %v2280 = vunpack.c.h.b16 %v426
    %v2281 = vunpack.c.l.b16 %v427
    %v2282 = vunpack.c.h.b16 %v427
    %v2283 = vunpack.c.l.b16 %v428
    %v2284 = vunpack.c.h.b16 %v428
    %v2285 = vunpack.c.l.b16 %v429
    %v2286 = vunpack.c.h.b16 %v429
    %v2287 = vunpack.c.l.b16 %v430
    %v2288 = vunpack.c.h.b16 %v430
    %v2289 = vunpack.c.l.b16 %v431
    %v2290 = vunpack.c.h.b16 %v431
    %v2291 = vunpack.c.l.b16 %v432
    %v2292 = vunpack.c.h.b16 %v432
    %v2293 = vunpack.c.l.b16 %v433
    %v2294 = vunpack.c.h.b16 %v433
    %v2295 = vunpack.c.l.b16 %v434
    %v2296 = vunpack.c.h.b16 %v434
    %v2297 = vunpack.c.l.b16 %v435
    %v2298 = vunpack.c.h.b16 %v435
    %v2299 = vunpack.c.l.b16 %v436
    %v2300 = vunpack.c.h.b16 %v436
    %v2301 = vunpack.c.l.b16 %v437
    %v2302 = vunpack.c.h.b16 %v437
    %v2303 = vunpack.c.l.b16 %v438
    %v2304 = vunpack.c.h.b16 %v438
    %v2305 = vunpack.c.l.b16 %v439
    %v2306 = vunpack.c.h.b16 %v439
    %v2307 = vunpack.c.l.b16 %v440
    %v2308 = vunpack.c.h.b16 %v440
    %v2309 = vunpack.c.l.b16 %v441
    %v2310 = vunpack.c.h.b16 %v441
    %v2311 = vunpack.c.l.b16 %v442
    %v2312 = vunpack.c.h.b16 %v442
    %v2313 = vunpack.c.l.b16 %v443
    %v2314 = vunpack.c.h.b16 %v443
    %v2315 = vunpack.c.l.b16 %v444
    %v2316 = vunpack.c.h.b16 %v444
    %v2317 = vunpack.c.l.b16 %v445
    %v2318 = vunpack.c.h.b16 %v445
    %v2319 = vunpack.c.l.b16 %v446
    %v2320 = vunpack.c.h.b16 %v446
    %v2321 = vunpack.c.l.b16 %v447
    %v2322 = vunpack.c.h.b16 %v447
    %v2323 = vunpack.c.l.b16 %v448
    %v2324 = vunpack.c.h.b16 %v448
    %v2325 = vunpack.c.l.b16 %v449
    %v2326 = vunpack.c.h.b16 %v449
    %v2327 = vunpack.c.l.b16 %v450
    %v2328 = vunpack.c.h.b16 %v450
    %v2329 = vunpack.c.l.b16 %v451
    %v2330 = vunpack.c.h.b16 %v451
    %v2331 = vunpack.c.l.b16 %v452
    %v2332 = vunpack.c.h.b16 %v452
    %v2333 = vunpack.c.l.b16 %v453
    %v2334 = vunpack.c.h.b16 %v453
    %v2335 = vunpack.c.l.b16 %v454
    %v2336 = vunpack.c.h.b16 %v454
    %v2337 = vunpack.c.l.b16 %v455
    %v2338 = vunpack.c.h.b16 %v455
    %v2339 = vunpack.c.l.b16 %v456
    %v2340 = vunpack.c.h.b16 %v456
    %v2341 = vunpack.c.l.b16 %v457
    %v2342 = vunpack.c.h.b16 %v457
    %v2343 = vunpack.c.l.b16 %v458
    %v2344 = vunpack.c.h.b16 %v458
    %v2345 = vunpack.c.l.b16 %v459
    %v2346 = vunpack.c.h.b16 %v459
    %v2347 = vunpack.c.l.b16 %v460
    %v2348 = vunpack.c.h.b16 %v460
    %v2349 = vunpack.c.l.b16 %v461
    %v2350 = vunpack.c.h.b16 %v461
    %v2351 = vunpack.c.l.b16 %v462
    %v2352 = vunpack.c.h.b16 %v462
    %v2353 = vunpack.c.l.b16 %v463
    %v2354 = vunpack.c.h.b16 %v463
    %v2355 = vunpack.c.l.b16 %v464
    %v2356 = vunpack.c.h.b16 %v464
    %v2357 = vunpack.c.l.b16 %v465
    %v2358 = vunpack.c.h.b16 %v465
    %v2359 = vunpack.c.l.b16 %v466
    %v2360 = vunpack.c.h.b16 %v466
    %v2361 = vunpack.c.l.b16 %v467
    %v2362 = vunpack.c.h.b16 %v467
    %v2363 = vunpack.c.l.b16 %v468
    %v2364 = vunpack.c.h.b16 %v468
    %v2365 = vunpack.c.l.b16 %v469
    %v2366 = vunpack.c.h.b16 %v469
    %v2367 = vunpack.c.l.b16 %v470
    %v2368 = vunpack.c.h.b16 %v470
    %v2369 = vunpack.c.l.b16 %v471
    %v2370 = vunpack.c.h.b16 %v471
    %v2371 = vunpack.c.l.b16 %v472
    %v2372 = vunpack.c.h.b16 %v472
    %v2373 = vunpack.c.l.b16 %v473
    %v2374 = vunpack.c.h.b16 %v473
    %v2375 = vunpack.c.l.b16 %v474
    %v2376 = vunpack.c.h.b16 %v474
    %v2377 = vunpack.c.l.b16 %v475
    %v2378 = vunpack.c.h.b16 %v475
    %v2379 = vunpack.c.l.b16 %v476
    %v2380 = vunpack.c.h.b16 %v476
    %v2381 = vunpack.c.l.b16 %v477
    %v2382 = vunpack.c.h.b16 %v477
    %v2383 = vunpack.c.l.b16 %v478
    %v2384 = vunpack.c.h.b16 %v478
    %v2385 = vunpack.c.l.b16 %v479
    %v2386 = vunpack.c.h.b16 %v479
    %v2387 = vunpack.c.l.b16 %v480
    %v2388 = vunpack.c.h.b16 %v480
    %v2389 = vunpack.c.l.b16 %v481
    %v2390 = vunpack.c.h.b16 %v481
    %v2391 = vunpack.c.l.b16 %v482
    %v2392 = vunpack.c.h.b16 %v482
    %v2393 = vunpack.c.l.b16 %v483
    %v2394 = vunpack.c.h.b16 %v483
    %v2395 = vunpack.c.l.b16 %v484
    %v2396 = vunpack.c.h.b16 %v484
    %v2397 = vunpack.c.l.b16 %v485
    %v2398 = vunpack.c.h.b16 %v485
    %v2399 = vunpack.c.l.b16 %v486
    %v2400 = vunpack.c.h.b16 %v486
    %v2401 = vunpack.c.l.b16 %v487
    %v2402 = vunpack.c.h.b16 %v487
    %v2403 = vunpack.c.l.b16 %v488
    %v2404 = vunpack.c.h.b16 %v488
    %v2405 = vunpack.c.l.b16 %v489
    %v2406 = vunpack.c.h.b16 %v489
    %v2407 = vunpack.c.l.b16 %v490
    %v2408 = vunpack.c.h.b16 %v490
    %v2409 = vunpack.c.l.b16 %v491
    %v2410 = vunpack.c.h.b16 %v491
    %v2411 = vunpack.c.l.b16 %v492
    %v2412 = vunpack.c.h.b16 %v492
    %v2413 = vunpack.c.l.b16 %v493
    %v2414 = vunpack.c.h.b16 %v493
    %v2415 = vunpack.c.l.b16 %v494
    %v2416 = vunpack.c.h.b16 %v494
    %v2417 = vunpack.c.l.b16 %v495
    %v2418 = vunpack.c.h.b16 %v495
    %v2419 = vunpack.c.l.b16 %v496
    %v2420 = vunpack.c.h.b16 %v496
    %v2421 = vunpack.c.l.b16 %v497
    %v2422 = vunpack.c.h.b16 %v497
    %v2423 = vunpack.c.l.b16 %v498
    %v2424 = vunpack.c.h.b16 %v498
    %v2425 = vunpack.c.l.b16 %v499
    %v2426 = vunpack.c.h.b16 %v499
    %v2427 = vunpack.c.l.b16 %v500
    %v2428 = vunpack.c.h.b16 %v500
    %v2429 = vunpack.c.l.b16 %v501
    %v2430 = vunpack.c.h.b16 %v501
    %v2431 = vunpack.c.l.b16 %v502
    %v2432 = vunpack.c.h.b16 %v502
    %v2433 = vunpack.c.l.b16 %v503
    %v2434 = vunpack.c.h.b16 %v503
    %v2435 = vunpack.c.l.b16 %v504
    %v2436 = vunpack.c.h.b16 %v504
    %v2437 = vunpack.c.l.b16 %v505
    %v2438 = vunpack.c.h.b16 %v505
    %v2439 = vunpack.c.l.b16 %v506
    %v2440 = vunpack.c.h.b16 %v506
    %v2441 = vunpack.c.l.b16 %v507
    %v2442 = vunpack.c.h.b16 %v507
    %v2443 = vunpack.c.l.b16 %v508
    %v2444 = vunpack.c.h.b16 %v508
    %v2445 = vunpack.c.l.b16 %v509
    %v2446 = vunpack.c.h.b16 %v509
    %v2447 = vunpack.c.l.b16 %v510
    %v2448 = vunpack.c.h.b16 %v510
    %v2449 = vunpack.c.l.b16 %v511
    %v2450 = vunpack.c.h.b16 %v511
    %v2451 = vunpack.c.l.b16 %v512
    %v2452 = vunpack.c.h.b16 %v512
    %v2453 = vunpack.c.l.b16 %v513
    %v2454 = vunpack.c.h.b16 %v513
    %v2455 = vunpack.c.l.b16 %v514
    %v2456 = vunpack.c.h.b16 %v514
    %v2457 = vunpack.c.l.b16 %v515
    %v2458 = vunpack.c.h.b16 %v515
    %v2459 = vunpack.c.l.b16 %v516
    %v2460 = vunpack.c.h.b16 %v516
    %v2461 = vunpack.c.l.b16 %v517
    %v2462 = vunpack.c.h.b16 %v517
    %v2463 = vunpack.c.l.b16 %v518
    %v2464 = vunpack.c.h.b16 %v518
    %v2465 = vunpack.c.l.b16 %v519
    %v2466 = vunpack.c.h.b16 %v519
    %v2467 = vunpack.c.l.b16 %v520
    %v2468 = vunpack.c.h.b16 %v520
    %v2469 = vunpack.c.l.b16 %v521
    %v2470 = vunpack.c.h.b16 %v521
    %v2471 = vunpack.c.l.b16 %v522
    %v2472 = vunpack.c.h.b16 %v522
    %v2473 = vunpack.c.l.b16 %v523
    %v2474 = vunpack.c.h.b16 %v523
    %v2475 = vunpack.c.l.b16 %v524
    %v2476 = vunpack.c.h.b16 %v524
    %v2477 = vunpack.c.l.b16 %v525
    %v2478 = vunpack.c.h.b16 %v525
    %v2479 = vunpack.c.l.b16 %v526
    %v2480 = vunpack.c.h.b16 %v526
    %v2481 = vunpack.c.l.b16 %v527
    %v2482 = vunpack.c.h.b16 %v527
    %v2483 = vunpack.c.l.b16 %v528
    %v2484 = vunpack.c.h.b16 %v528
    %v2485 = vunpack.c.l.b16 %v529
    %v2486 = vunpack.c.h.b16 %v529
    %v2487 = vunpack.c.l.b16 %v530
    %v2488 = vunpack.c.h.b16 %v530
    %v2489 = vunpack.c.l.b16 %v531
    %v2490 = vunpack.c.h.b16 %v531
    %v2491 = vunpack.c.l.b16 %v532
    %v2492 = vunpack.c.h.b16 %v532
    %v2493 = vunpack.c.l.b16 %v533
    %v2494 = vunpack.c.h.b16 %v533
    %v2495 = vunpack.c.l.b16 %v534
    %v2496 = vunpack.c.h.b16 %v534
    %v2497 = vunpack.c.l.b16 %v535
    %v2498 = vunpack.c.h.b16 %v535
    %v2499 = vunpack.c.l.b16 %v536
    %v2500 = vunpack.c.h.b16 %v536
    %v2501 = vunpack.c.l.b16 %v537
    %v2502 = vunpack.c.h.b16 %v537
    %v2503 = vunpack.c.l.b16 %v538
    %v2504 = vunpack.c.h.b16 %v538
    %v2505 = vunpack.c.l.b16 %v539
    %v2506 = vunpack.c.h.b16 %v539
    %v2507 = vunpack.c.l.b16 %v540
    %v2508 = vunpack.c.h.b16 %v540
    %v2509 = vunpack.c.l.b16 %v541
    %v2510 = vunpack.c.h.b16 %v541
    %v2511 = vunpack.c.l.b16 %v542
    %v2512 = vunpack.c.h.b16 %v542
    %v2513 = vunpack.c.l.b16 %v543
    %v2514 = vunpack.c.h.b16 %v543
    %v2515 = vunpack.c.l.b16 %v544
    %v2516 = vunpack.c.h.b16 %v544
    %v2517 = vunpack.c.l.b16 %v545
    %v2518 = vunpack.c.h.b16 %v545
    %v2519 = vunpack.c.l.b16 %v546
    %v2520 = vunpack.c.h.b16 %v546
    %v2521 = vunpack.c.l.b16 %v547
    %v2522 = vunpack.c.h.b16 %v547
    %v2523 = vunpack.c.l.b16 %v548
    %v2524 = vunpack.c.h.b16 %v548
    %v2525 = vunpack.c.l.b16 %v549
    %v2526 = vunpack.c.h.b16 %v549
    %v2527 = vunpack.c.l.b16 %v550
    %v2528 = vunpack.c.h.b16 %v550
    %v2529 = vunpack.c.l.b16 %v551
    %v2530 = vunpack.c.h.b16 %v551
    %v2531 = vunpack.c.l.b16 %v552
    %v2532 = vunpack.c.h.b16 %v552
    %v2533 = vunpack.c.l.b16 %v553
    %v2534 = vunpack.c.h.b16 %v553
    %v2535 = vunpack.c.l.b16 %v554
    %v2536 = vunpack.c.h.b16 %v554
    %v2537 = vunpack.c.l.b16 %v555
    %v2538 = vunpack.c.h.b16 %v555
    %v2539 = vunpack.c.l.b16 %v556
    %v2540 = vunpack.c.h.b16 %v556
    %v2541 = vunpack.c.l.b16 %v557
    %v2542 = vunpack.c.h.b16 %v557
    %v2543 = vunpack.c.l.b16 %v558
    %v2544 = vunpack.c.h.b16 %v558
    %v2545 = vunpack.c.l.b16 %v559
    %v2546 = vunpack.c.h.b16 %v559
    %v2547 = vunpack.c.l.b16 %v560
    %v2548 = vunpack.c.h.b16 %v560
    %v2549 = vunpack.c.l.b16 %v561
    %v2550 = vunpack.c.h.b16 %v561
    %v2551 = vunpack.c.l.b16 %v562
    %v2552 = vunpack.c.h.b16 %v562
    %v2553 = vunpack.c.l.b16 %v563
    %v2554 = vunpack.c.h.b16 %v563
    %v2555 = vunpack.c.l.b16 %v564
    %v2556 = vunpack.c.h.b16 %v564
    %v2557 = vunpack.c.l.b16 %v565
    %v2558 = vunpack.c.h.b16 %v565
    %v2559 = vunpack.c.l.b16 %v566
    %v2560 = vunpack.c.h.b16 %v566
    %v2561 = vunpack.c.l.b16 %v567
    %v2562 = vunpack.c.h.b16 %v567
    %v2563 = vunpack.c.l.b16 %v568
    %v2564 = vunpack.c.h.b16 %v568
    %v2565 = vunpack.c.l.b16 %v569
    %v2566 = vunpack.c.h.b16 %v569
    %v2567 = vunpack.c.l.b16 %v570
    %v2568 = vunpack.c.h.b16 %v570
    %v2569 = vunpack.c.l.b16 %v571
    %v2570 = vunpack.c.h.b16 %v571
    %v2571 = vunpack.c.l.b16 %v572
    %v2572 = vunpack.c.h.b16 %v572
    %v2573 = vunpack.c.l.b16 %v573
    %v2574 = vunpack.c.h.b16 %v573
    %v2575 = vunpack.c.l.b16 %v574
    %v2576 = vunpack.c.h.b16 %v574
    %v2577 = vunpack.c.l.b16 %v575
    %v2578 = vunpack.c.h.b16 %v575
    %v2579 = vunpack.c.l.b16 %v576
    %v2580 = vunpack.c.h.b16 %v576
    %v2581 = vunpack.c.l.b16 %v577
    %v2582 = vunpack.c.h.b16 %v577
    %v2583 = vunpack.c.l.b16 %v578
    %v2584 = vunpack.c.h.b16 %v578
    %v2585 = vunpack.c.l.b16 %v579
    %v2586 = vunpack.c.h.b16 %v579
    %v2587 = vunpack.c.l.b16 %v580
    %v2588 = vunpack.c.h.b16 %v580
    %v2589 = vunpack.c.l.b16 %v581
    %v2590 = vunpack.c.h.b16 %v581
    %v2591 = vunpack.c.l.b16 %v582
    %v2592 = vunpack.c.h.b16 %v582
    %v2593 = vunpack.c.l.b16 %v583
    %v2594 = vunpack.c.h.b16 %v583
    %v2595 = vunpack.c.l.b16 %v584
    %v2596 = vunpack.c.h.b16 %v584
    %v2597 = vunpack.c.l.b16 %v585
    %v2598 = vunpack.c.h.b16 %v585
    %v2599 = vunpack.c.l.b16 %v586
    %v2600 = vunpack.c.h.b16 %v586
    %v2601 = vunpack.c.l.b16 %v587
    %v2602 = vunpack.c.h.b16 %v587
    %v2603 = vunpack.c.l.b16 %v588
    %v2604 = vunpack.c.h.b16 %v588
    %v2605 = vunpack.c.l.b16 %v589
    %v2606 = vunpack.c.h.b16 %v589
    %v2607 = vunpack.c.l.b16 %v590
    %v2608 = vunpack.c.h.b16 %v590
    %v2609 = vunpack.c.l.b16 %v591
    %v2610 = vunpack.c.h.b16 %v591
    %v2611 = vunpack.c.l.b16 %v592
    %v2612 = vunpack.c.h.b16 %v592
    %v2613 = vunpack.c.l.b16 %v593
    %v2614 = vunpack.c.h.b16 %v593
    %v2615 = vunpack.c.l.b16 %v594
    %v2616 = vunpack.c.h.b16 %v594
    %v2617 = vunpack.c.l.b16 %v595
    %v2618 = vunpack.c.h.b16 %v595
    %v2619 = vunpack.c.l.b16 %v596
    %v2620 = vunpack.c.h.b16 %v596
    %v2621 = vunpack.c.l.b16 %v597
    %v2622 = vunpack.c.h.b16 %v597
    %v2623 = vunpack.c.l.b16 %v598
    %v2624 = vunpack.c.h.b16 %v598
    %v2625 = vunpack.c.l.b16 %v599
    %v2626 = vunpack.c.h.b16 %v599
    %v2627 = vunpack.c.l.b16 %v600
    %v2628 = vunpack.c.h.b16 %v600
    %v2629 = vunpack.c.l.b16 %v601
    %v2630 = vunpack.c.h.b16 %v601
    %v2631 = vunpack.c.l.b16 %v602
    %v2632 = vunpack.c.h.b16 %v602
    %v2633 = vunpack.c.l.b16 %v603
    %v2634 = vunpack.c.h.b16 %v603
    %v2635 = vunpack.c.l.b16 %v604
    %v2636 = vunpack.c.h.b16 %v604
    %v2637 = vunpack.c.l.b16 %v605
    %v2638 = vunpack.c.h.b16 %v605
    %v2639 = vunpack.c.l.b16 %v606
    %v2640 = vunpack.c.h.b16 %v606
    %v2641 = vunpack.c.l.b16 %v607
    %v2642 = vunpack.c.h.b16 %v607
    %v2643 = vunpack.c.l.b16 %v608
    %v2644 = vunpack.c.h.b16 %v608
    %v2645 = vunpack.c.l.b16 %v609
    %v2646 = vunpack.c.h.b16 %v609
    %v2647 = vunpack.c.l.b16 %v610
    %v2648 = vunpack.c.h.b16 %v610
    %v2649 = vunpack.c.l.b16 %v611
    %v2650 = vunpack.c.h.b16 %v611
    %v2651 = vunpack.c.l.b16 %v612
    %v2652 = vunpack.c.h.b16 %v612
    %v2653 = vunpack.c.l.b16 %v613
    %v2654 = vunpack.c.h.b16 %v613
    %v2655 = vunpack.c.l.b16 %v614
    %v2656 = vunpack.c.h.b16 %v614
    %v2657 = vunpack.c.l.b16 %v615
    %v2658 = vunpack.c.h.b16 %v615
    %v2659 = vunpack.c.l.b16 %v616
    %v2660 = vunpack.c.h.b16 %v616
    %v2661 = vunpack.c.l.b16 %v617
    %v2662 = vunpack.c.h.b16 %v617
    %v2663 = vunpack.c.l.b16 %v618
    %v2664 = vunpack.c.h.b16 %v618
    %v2665 = vunpack.c.l.b16 %v619
    %v2666 = vunpack.c.h.b16 %v619
    %v2667 = vunpack.c.l.b16 %v620
    %v2668 = vunpack.c.h.b16 %v620
    %v2669 = vunpack.c.l.b16 %v621
    %v2670 = vunpack.c.h.b16 %v621
    %v2671 = vunpack.c.l.b16 %v622
    %v2672 = vunpack.c.h.b16 %v622
    %v2673 = vunpack.c.l.b16 %v623
    %v2674 = vunpack.c.h.b16 %v623
    %v2675 = vunpack.c.l.b16 %v624
    %v2676 = vunpack.c.h.b16 %v624
    %v2677 = vunpack.c.l.b16 %v625
    %v2678 = vunpack.c.h.b16 %v625
    %v2679 = vunpack.c.l.b16 %v626
    %v2680 = vunpack.c.h.b16 %v626
    %v2681 = vunpack.c.l.b16 %v627
    %v2682 = vunpack.c.h.b16 %v627
    %v2683 = vunpack.c.l.b16 %v628
    %v2684 = vunpack.c.h.b16 %v628
    %v2685 = vunpack.c.l.b16 %v629
    %v2686 = vunpack.c.h.b16 %v629
    %v2687 = vunpack.c.l.b16 %v630
    %v2688 = vunpack.c.h.b16 %v630
    %v2689 = vunpack.c.l.b16 %v631
    %v2690 = vunpack.c.h.b16 %v631
    %v2691 = vunpack.c.l.b16 %v632
    %v2692 = vunpack.c.h.b16 %v632
    %v2693 = vunpack.c.l.b16 %v633
    %v2694 = vunpack.c.h.b16 %v633
    %v2695 = vunpack.c.l.b16 %v634
    %v2696 = vunpack.c.h.b16 %v634
    %v2697 = vunpack.c.l.b16 %v635
    %v2698 = vunpack.c.h.b16 %v635
    %v2699 = vunpack.c.l.b16 %v636
    %v2700 = vunpack.c.h.b16 %v636
    %v2701 = vunpack.c.l.b16 %v637
    %v2702 = vunpack.c.h.b16 %v637
    %v2703 = vunpack.c.l.b16 %v638
    %v2704 = vunpack.c.h.b16 %v638
    %v2705 = vunpack.c.l.b16 %v639
    %v2706 = vunpack.c.h.b16 %v639
    %v2707 = vunpack.c.l.b16 %v640
    %v2708 = vunpack.c.h.b16 %v640
    %v2709 = vunpack.c.l.b16 %v641
    %v2710 = vunpack.c.h.b16 %v641
    %v2711 = vunpack.c.l.b16 %v642
    %v2712 = vunpack.c.h.b16 %v642
    %v2713 = vunpack.c.l.b16 %v643
    %v2714 = vunpack.c.h.b16 %v643
    %v2715 = vunpack.c.l.b16 %v644
    %v2716 = vunpack.c.h.b16 %v644
    %v2717 = vunpack.c.l.b16 %v645
    %v2718 = vunpack.c.h.b16 %v645
    %v2719 = vunpack.c.l.b16 %v646
    %v2720 = vunpack.c.h.b16 %v646
    %v2721 = vunpack.c.l.b16 %v647
    %v2722 = vunpack.c.h.b16 %v647
    %v2723 = vunpack.c.l.b16 %v648
    %v2724 = vunpack.c.h.b16 %v648
    %v2725 = vunpack.c.l.b16 %v649
    %v2726 = vunpack.c.h.b16 %v649
    %v2727 = vunpack.c.l.b16 %v650
    %v2728 = vunpack.c.h.b16 %v650
    %v2729 = vunpack.c.l.b16 %v651
    %v2730 = vunpack.c.h.b16 %v651
    %v2731 = vunpack.c.l.b16 %v652
    %v2732 = vunpack.c.h.b16 %v652
    %v2733 = vunpack.c.l.b16 %v653
    %v2734 = vunpack.c.h.b16 %v653
    %v2735 = vunpack.c.l.b16 %v654
    %v2736 = vunpack.c.h.b16 %v654
    %v2737 = vunpack.c.l.b16 %v655
    %v2738 = vunpack.c.h.b16 %v655
    %v2739 = vunpack.c.l.b16 %v656
    %v2740 = vunpack.c.h.b16 %v656
    %v2741 = vunpack.c.l.b16 %v657
    %v2742 = vunpack.c.h.b16 %v657
    %v2743 = vunpack.c.l.b16 %v658
    %v2744 = vunpack.c.h.b16 %v658
    %v2745 = vunpack.c.l.b16 %v659
    %v2746 = vunpack.c.h.b16 %v659
    %v2747 = vunpack.c.l.b16 %v660
    %v2748 = vunpack.c.h.b16 %v660
    %v2749 = vunpack.c.l.b16 %v661
    %v2750 = vunpack.c.h.b16 %v661
    %v2751 = vunpack.c.l.b16 %v662
    %v2752 = vunpack.c.h.b16 %v662
    %v2753 = vunpack.c.l.b16 %v663
    %v2754 = vunpack.c.h.b16 %v663
    %v2755 = vunpack.c.l.b16 %v664
    %v2756 = vunpack.c.h.b16 %v664
    %v2757 = vunpack.c.l.b16 %v665
    %v2758 = vunpack.c.h.b16 %v665
    %v2759 = vunpack.c.l.b16 %v666
    %v2760 = vunpack.c.h.b16 %v666
    %v2761 = vunpack.c.l.b16 %v667
    %v2762 = vunpack.c.h.b16 %v667
    %v2763 = vunpack.c.l.b16 %v668
    %v2764 = vunpack.c.h.b16 %v668
    %v2765 = vunpack.c.l.b16 %v669
    %v2766 = vunpack.c.h.b16 %v669
    %v2767 = vunpack.c.l.b16 %v670
    %v2768 = vunpack.c.h.b16 %v670
    %v2769 = vunpack.c.l.b16 %v671
    %v2770 = vunpack.c.h.b16 %v671
    %v2771 = vunpack.c.l.b16 %v672
    %v2772 = vunpack.c.h.b16 %v672
    %v2773 = vunpack.c.l.b16 %v673
    %v2774 = vunpack.c.h.b16 %v673
    %v2775 = vunpack.c.l.b16 %v674
    %v2776 = vunpack.c.h.b16 %v674
    %v2777 = vunpack.c.l.b16 %v675
    %v2778 = vunpack.c.h.b16 %v675
    %v2779 = vunpack.c.l.b16 %v676
    %v2780 = vunpack.c.h.b16 %v676
    %v2781 = vunpack.c.l.b16 %v677
    %v2782 = vunpack.c.h.b16 %v677
    %v2783 = vunpack.c.l.b16 %v678
    %v2784 = vunpack.c.h.b16 %v678
    %v2785 = vunpack.c.l.b16 %v679
    %v2786 = vunpack.c.h.b16 %v679
    %v2787 = vunpack.c.l.b16 %v680
    %v2788 = vunpack.c.h.b16 %v680
    %v2789 = vunpack.c.l.b16 %v681
    %v2790 = vunpack.c.h.b16 %v681
    %v2791 = vunpack.c.l.b16 %v682
    %v2792 = vunpack.c.h.b16 %v682
    %v2793 = vunpack.c.l.b16 %v683
    %v2794 = vunpack.c.h.b16 %v683
    %v2795 = vunpack.c.l.b16 %v684
    %v2796 = vunpack.c.h.b16 %v684
    %v2797 = vunpack.c.l.b16 %v685
    %v2798 = vunpack.c.h.b16 %v685
    %v2799 = vunpack.c.l.b16 %v686
    %v2800 = vunpack.c.h.b16 %v686
    %v2801 = vunpack.c.l.b16 %v687
    %v2802 = vunpack.c.h.b16 %v687
    %v2803 = vunpack.c.l.b16 %v688
    %v2804 = vunpack.c.h.b16 %v688
    %v2805 = vunpack.c.l.b16 %v689
    %v2806 = vunpack.c.h.b16 %v689
    %v2807 = vunpack.c.l.b16 %v690
    %v2808 = vunpack.c.h.b16 %v690
    %v2809 = vunpack.c.l.b16 %v691
    %v2810 = vunpack.c.h.b16 %v691
    %v2811 = vunpack.c.l.b16 %v692
    %v2812 = vunpack.c.h.b16 %v692
    %v2813 = vunpack.c.l.b16 %v693
    %v2814 = vunpack.c.h.b16 %v693
    %v2815 = vunpack.c.l.b16 %v694
    %v2816 = vunpack.c.h.b16 %v694
    %v2817 = vunpack.c.l.b16 %v695
    %v2818 = vunpack.c.h.b16 %v695
    %v2819 = vunpack.c.l.b16 %v696
    %v2820 = vunpack.c.h.b16 %v696
    %v2821 = vunpack.c.l.b16 %v697
    %v2822 = vunpack.c.h.b16 %v697
    %v2823 = vunpack.c.l.b16 %v698
    %v2824 = vunpack.c.h.b16 %v698
    %v2825 = vunpack.c.l.b16 %v699
    %v2826 = vunpack.c.h.b16 %v699
    %v2827 = vunpack.c.l.b16 %v700
    %v2828 = vunpack.c.h.b16 %v700
    %v2829 = vunpack.c.l.b16 %v701
    %v2830 = vunpack.c.h.b16 %v701
    %v2831 = vunpack.c.l.b16 %v702
    %v2832 = vunpack.c.h.b16 %v702
    %v2833 = vunpack.c.l.b16 %v703
    %v2834 = vunpack.c.h.b16 %v703
    %v2835 = vunpack.c.l.b16 %v704
    %v2836 = vunpack.c.h.b16 %v704
    %v2837 = vunpack.c.l.b16 %v705
    %v2838 = vunpack.c.h.b16 %v705
    %v2839 = vunpack.c.l.b16 %v706
    %v2840 = vunpack.c.h.b16 %v706
    %v2841 = vunpack.c.l.b16 %v707
    %v2842 = vunpack.c.h.b16 %v707
    %v2843 = vunpack.c.l.b16 %v708
    %v2844 = vunpack.c.h.b16 %v708
    %v2845 = vunpack.c.l.b16 %v709
    %v2846 = vunpack.c.h.b16 %v709
    %v2847 = vunpack.c.l.b16 %v710
    %v2848 = vunpack.c.h.b16 %v710
    %v2849 = vunpack.c.l.b16 %v711
    %v2850 = vunpack.c.h.b16 %v711
    %v2851 = vunpack.c.l.b16 %v712
    %v2852 = vunpack.c.h.b16 %v712
    %v2853 = vunpack.c.l.b16 %v713
    %v2854 = vunpack.c.h.b16 %v713
    %v2855 = vunpack.c.l.b16 %v714
    %v2856 = vunpack.c.h.b16 %v714
    %v2857 = vunpack.c.l.b16 %v715
    %v2858 = vunpack.c.h.b16 %v715
    %v2859 = vunpack.c.l.b16 %v716
    %v2860 = vunpack.c.h.b16 %v716
    %v2861 = vunpack.c.l.b16 %v717
    %v2862 = vunpack.c.h.b16 %v717
    %v2863 = vunpack.c.l.b16 %v718
    %v2864 = vunpack.c.h.b16 %v718
    %v2865 = vunpack.c.l.b16 %v719
    %v2866 = vunpack.c.h.b16 %v719
    %v2867 = vunpack.c.l.b16 %v720
    %v2868 = vunpack.c.h.b16 %v720
    %v2869 = vunpack.c.l.b16 %v721
    %v2870 = vunpack.c.h.b16 %v721
    %v2871 = vunpack.c.l.b16 %v722
    %v2872 = vunpack.c.h.b16 %v722
    %v2873 = vunpack.c.l.b16 %v723
    %v2874 = vunpack.c.h.b16 %v723
    %v2875 = vunpack.c.l.b16 %v724
    %v2876 = vunpack.c.h.b16 %v724
    %v2877 = vunpack.c.l.b16 %v725
    %v2878 = vunpack.c.h.b16 %v725
    %v2879 = vunpack.c.l.b16 %v726
    %v2880 = vunpack.c.h.b16 %v726
    %v2881 = vunpack.c.l.b16 %v727
    %v2882 = vunpack.c.h.b16 %v727
    %v2883 = vunpack.c.l.b16 %v728
    %v2884 = vunpack.c.h.b16 %v728
    %v2885 = vunpack.c.l.b16 %v729
    %v2886 = vunpack.c.h.b16 %v729
    %v2887 = vunpack.c.l.b16 %v730
    %v2888 = vunpack.c.h.b16 %v730
    %v2889 = vunpack.c.l.b16 %v731
    %v2890 = vunpack.c.h.b16 %v731
    %v2891 = vunpack.c.l.b16 %v732
    %v2892 = vunpack.c.h.b16 %v732
    %v2893 = vunpack.c.l.b16 %v733
    %v2894 = vunpack.c.h.b16 %v733
    %v2895 = vunpack.c.l.b16 %v734
    %v2896 = vunpack.c.h.b16 %v734
    %v2897 = vunpack.c.l.b16 %v735
    %v2898 = vunpack.c.h.b16 %v735
    %v2899 = vunpack.c.l.b16 %v736
    %v2900 = vunpack.c.h.b16 %v736
    %v2901 = vunpack.c.l.b16 %v737
    %v2902 = vunpack.c.h.b16 %v737
    %v2903 = vunpack.c.l.b16 %v738
    %v2904 = vunpack.c.h.b16 %v738
    %v2905 = vunpack.c.l.b16 %v739
    %v2906 = vunpack.c.h.b16 %v739
    %v2907 = vunpack.c.l.b16 %v740
    %v2908 = vunpack.c.h.b16 %v740
    %v2909 = vunpack.c.l.b16 %v741
    %v2910 = vunpack.c.h.b16 %v741
    %v2911 = vunpack.c.l.b16 %v742
    %v2912 = vunpack.c.h.b16 %v742
    %v2913 = vunpack.c.l.b16 %v743
    %v2914 = vunpack.c.h.b16 %v743
    %v2915 = vunpack.c.l.b16 %v744
    %v2916 = vunpack.c.h.b16 %v744
    %v2917 = vunpack.c.l.b16 %v745
    %v2918 = vunpack.c.h.b16 %v745
    %v2919 = vunpack.c.l.b16 %v746
    %v2920 = vunpack.c.h.b16 %v746
    %v2921 = vunpack.c.l.b16 %v747
    %v2922 = vunpack.c.h.b16 %v747
    %v2923 = vunpack.c.l.b16 %v748
    %v2924 = vunpack.c.h.b16 %v748
    %v2925 = vunpack.c.l.b16 %v749
    %v2926 = vunpack.c.h.b16 %v749
    %v2927 = vunpack.c.l.b16 %v750
    %v2928 = vunpack.c.h.b16 %v750
    %v2929 = vunpack.c.l.b16 %v751
    %v2930 = vunpack.c.h.b16 %v751
    %v2931 = vunpack.c.l.b16 %v752
    %v2932 = vunpack.c.h.b16 %v752
    %v2933 = vunpack.c.l.b16 %v753
    %v2934 = vunpack.c.h.b16 %v753
    %v2935 = vunpack.c.l.b16 %v754
    %v2936 = vunpack.c.h.b16 %v754
    %v2937 = vunpack.c.l.b16 %v755
    %v2938 = vunpack.c.h.b16 %v755
    %v2939 = vunpack.c.l.b16 %v756
    %v2940 = vunpack.c.h.b16 %v756
    %v2941 = vunpack.c.l.b16 %v757
    %v2942 = vunpack.c.h.b16 %v757
    %v2943 = vunpack.c.l.b16 %v758
    %v2944 = vunpack.c.h.b16 %v758
    %v2945 = vunpack.c.l.b16 %v759
    %v2946 = vunpack.c.h.b16 %v759
    %v2947 = vunpack.c.l.b16 %v760
    %v2948 = vunpack.c.h.b16 %v760
    %v2949 = vunpack.c.l.b16 %v761
    %v2950 = vunpack.c.h.b16 %v761
    %v2951 = vunpack.c.l.b16 %v762
    %v2952 = vunpack.c.h.b16 %v762
    %v2953 = vunpack.c.l.b16 %v763
    %v2954 = vunpack.c.h.b16 %v763
    %v2955 = vunpack.c.l.b16 %v764
    %v2956 = vunpack.c.h.b16 %v764
    %v2957 = vunpack.c.l.b16 %v765
    %v2958 = vunpack.c.h.b16 %v765
    %v2959 = vunpack.c.l.b16 %v766
    %v2960 = vunpack.c.h.b16 %v766
    %v2961 = vunpack.c.l.b16 %v767
    %v2962 = vunpack.c.h.b16 %v767
    %v2963 = vunpack.c.l.b16 %v768
    %v2964 = vunpack.c.h.b16 %v768
    %v2965 = vunpack.c.l.b16 %v769
    %v2966 = vunpack.c.h.b16 %v769
    %v2967 = vunpack.c.l.b16 %v770
    %v2968 = vunpack.c.h.b16 %v770
    %v2969 = vunpack.c.l.b16 %v771
    %v2970 = vunpack.c.h.b16 %v771
    %v2971 = vunpack.c.l.b16 %v772
    %v2972 = vunpack.c.h.b16 %v772
    %v2973 = vunpack.c.l.b16 %v773
    %v2974 = vunpack.c.h.b16 %v773
    %v2975 = vunpack.c.l.b16 %v774
    %v2976 = vunpack.c.h.b16 %v774
    %v2977 = vunpack.c.l.b16 %v775
    %v2978 = vunpack.c.h.b16 %v775
    %v2979 = vunpack.c.l.b16 %v776
    %v2980 = vunpack.c.h.b16 %v776
    %v2981 = vunpack.c.l.b16 %v777
    %v2982 = vunpack.c.h.b16 %v777
    %v2983 = vunpack.c.l.b16 %v778
    %v2984 = vunpack.c.h.b16 %v778
    %v2985 = vunpack.c.l.b16 %v779
    %v2986 = vunpack.c.h.b16 %v779
    %v2987 = vunpack.c.l.b16 %v780
    %v2988 = vunpack.c.h.b16 %v780
    %v2989 = vunpack.c.l.b16 %v781
    %v2990 = vunpack.c.h.b16 %v781
    %v2991 = vunpack.c.l.b16 %v782
    %v2992 = vunpack.c.h.b16 %v782
    %v2993 = vunpack.c.l.b16 %v783
    %v2994 = vunpack.c.h.b16 %v783
    %v2995 = vunpack.c.l.b16 %v784
    %v2996 = vunpack.c.h.b16 %v784
    %v2997 = vunpack.c.l.b16 %v785
    %v2998 = vunpack.c.h.b16 %v785
    %v2999 = vunpack.c.l.b16 %v786
    %v3000 = vunpack.c.h.b16 %v786
    %v3001 = vunpack.c.l.b16 %v787
    %v3002 = vunpack.c.h.b16 %v787
    %v3003 = vunpack.c.l.b16 %v788
    %v3004 = vunpack.c.h.b16 %v788
    %v3005 = vunpack.c.l.b16 %v789
    %v3006 = vunpack.c.h.b16 %v789
    %v3007 = vunpack.c.l.b16 %v790
    %v3008 = vunpack.c.h.b16 %v790
    %v3009 = vunpack.c.l.b16 %v791
    %v3010 = vunpack.c.h.b16 %v791
    %v3011 = vunpack.c.l.b16 %v792
    %v3012 = vunpack.c.h.b16 %v792
    %v3013 = vunpack.c.l.b16 %v793
    %v3014 = vunpack.c.h.b16 %v793
    %v3015 = vunpack.c.l.b16 %v794
    %v3016 = vunpack.c.h.b16 %v794
    %v3017 = vunpack.c.l.b16 %v795
    %v3018 = vunpack.c.h.b16 %v795
    %v3019 = vunpack.c.l.b16 %v796
    %v3020 = vunpack.c.h.b16 %v796
    %v3021 = vunpack.c.l.b16 %v797
    %v3022 = vunpack.c.h.b16 %v797
    %v3023 = vunpack.c.l.b16 %v798
    %v3024 = vunpack.c.h.b16 %v798
    %v3025 = vunpack.c.l.b16 %v799
    %v3026 = vunpack.c.h.b16 %v799
    %v3027 = vunpack.c.l.b16 %v800
    %v3028 = vunpack.c.h.b16 %v800
    %v3029 = vunpack.c.l.b16 %v801
    %v3030 = vunpack.c.h.b16 %v801
    %v3031 = vunpack.c.l.b16 %v802
    %v3032 = vunpack.c.h.b16 %v802
    %v3033 = vunpack.c.l.b16 %v803
    %v3034 = vunpack.c.h.b16 %v803
    %v3035 = vunpack.c.l.b16 %v804
    %v3036 = vunpack.c.h.b16 %v804
    %v3037 = vunpack.c.l.b16 %v805
    %v3038 = vunpack.c.h.b16 %v805
    %v3039 = vunpack.c.l.b16 %v806
    %v3040 = vunpack.c.h.b16 %v806
    %v3041 = vunpack.c.l.b16 %v807
    %v3042 = vunpack.c.h.b16 %v807
    %v3043 = vunpack.c.l.b16 %v808
    %v3044 = vunpack.c.h.b16 %v808
    %v3045 = vunpack.c.l.b16 %v809
    %v3046 = vunpack.c.h.b16 %v809
    %v3047 = vunpack.c.l.b16 %v810
    %v3048 = vunpack.c.h.b16 %v810
    %v3049 = vunpack.c.l.b16 %v811
    %v3050 = vunpack.c.h.b16 %v811
    %v3051 = vunpack.c.l.b16 %v812
    %v3052 = vunpack.c.h.b16 %v812
    %v3053 = vunpack.c.l.b16 %v813
    %v3054 = vunpack.c.h.b16 %v813
    %v3055 = vunpack.c.l.b16 %v814
    %v3056 = vunpack.c.h.b16 %v814
    %v3057 = vunpack.c.l.b16 %v815
    %v3058 = vunpack.c.h.b16 %v815
    %v3059 = vunpack.c.l.b16 %v816
    %v3060 = vunpack.c.h.b16 %v816
    %v3061 = vunpack.c.l.b16 %v817
    %v3062 = vunpack.c.h.b16 %v817
    %v3063 = vunpack.c.l.b16 %v818
    %v3064 = vunpack.c.h.b16 %v818
    %v3065 = vunpack.c.l.b16 %v819
    %v3066 = vunpack.c.h.b16 %v819
    %v3067 = vunpack.c.l.b16 %v820
    %v3068 = vunpack.c.h.b16 %v820
    %v3069 = vunpack.c.l.b16 %v821
    %v3070 = vunpack.c.h.b16 %v821
    %v3071 = vunpack.c.l.b16 %v822
    %v3072 = vunpack.c.h.b16 %v822
    %v3073 = vunpack.c.l.b16 %v823
    %v3074 = vunpack.c.h.b16 %v823
    %v3075 = vunpack.c.l.b16 %v824
    %v3076 = vunpack.c.h.b16 %v824
    %v3077 = vunpack.c.l.b16 %v825
    %v3078 = vunpack.c.h.b16 %v825
    %v3079 = vunpack.c.l.b16 %v826
    %v3080 = vunpack.c.h.b16 %v826
    %v3081 = vunpack.c.l.b16 %v827
    %v3082 = vunpack.c.h.b16 %v827
    %v3083 = vunpack.c.l.b16 %v828
    %v3084 = vunpack.c.h.b16 %v828
    %v3085 = vunpack.c.l.b16 %v829
    %v3086 = vunpack.c.h.b16 %v829
    %v3087 = vunpack.c.l.b16 %v830
    %v3088 = vunpack.c.h.b16 %v830
    %v3089 = vunpack.c.l.b16 %v831
    %v3090 = vunpack.c.h.b16 %v831
    %v3091 = vunpack.c.l.b16 %v832
    %v3092 = vunpack.c.h.b16 %v832
    %v3093 = vunpack.c.l.b16 %v833
    %v3094 = vunpack.c.h.b16 %v833
    %v3095 = vunpack.c.l.b16 %v834
    %v3096 = vunpack.c.h.b16 %v834
    %v3097 = vunpack.c.l.b16 %v835
    %v3098 = vunpack.c.h.b16 %v835
    %v3099 = vunpack.c.l.b16 %v836
    %v3100 = vunpack.c.h.b16 %v836
    %v3101 = vunpack.c.l.b16 %v837
    %v3102 = vunpack.c.h.b16 %v837
    %v3103 = vunpack.c.l.b16 %v838
    %v3104 = vunpack.c.h.b16 %v838
    %v3105 = vunpack.c.l.b16 %v839
    %v3106 = vunpack.c.h.b16 %v839
    %v3107 = vunpack.c.l.b16 %v840
    %v3108 = vunpack.c.h.b16 %v840
    %v3109 = vunpack.c.l.b16 %v841
    %v3110 = vunpack.c.h.b16 %v841
    %v3111 = vunpack.c.l.b16 %v842
    %v3112 = vunpack.c.h.b16 %v842
    %v3113 = vunpack.c.l.b16 %v843
    %v3114 = vunpack.c.h.b16 %v843
    %v3115 = vunpack.c.l.b16 %v844
    %v3116 = vunpack.c.h.b16 %v844
    %v3117 = vunpack.c.l.b16 %v845
    %v3118 = vunpack.c.h.b16 %v845
    %v3119 = vunpack.c.l.b16 %v846
    %v3120 = vunpack.c.h.b16 %v846
    %v3121 = vunpack.c.l.b16 %v847
    %v3122 = vunpack.c.h.b16 %v847
    %v3123 = vunpack.c.l.b16 %v848
    %v3124 = vunpack.c.h.b16 %v848
    %v3125 = vunpack.c.l.b16 %v849
    %v3126 = vunpack.c.h.b16 %v849
    %v3127 = vunpack.c.l.b16 %v850
    %v3128 = vunpack.c.h.b16 %v850
    %v3129 = vunpack.c.l.b16 %v851
    %v3130 = vunpack.c.h.b16 %v851
    %v3131 = vunpack.c.l.b16 %v852
    %v3132 = vunpack.c.h.b16 %v852
    %v3133 = vunpack.c.l.b16 %v853
    %v3134 = vunpack.c.h.b16 %v853
    %v3135 = vunpack.c.l.b16 %v854
    %v3136 = vunpack.c.h.b16 %v854
    %v3137 = vunpack.c.l.b16 %v855
    %v3138 = vunpack.c.h.b16 %v855
    %v3139 = vunpack.c.l.b16 %v856
    %v3140 = vunpack.c.h.b16 %v856
    %v3141 = vunpack.c.l.b16 %v857
    %v3142 = vunpack.c.h.b16 %v857
    %v3143 = vunpack.c.l.b16 %v858
    %v3144 = vunpack.c.h.b16 %v858
    %v3145 = vunpack.c.l.b16 %v859
    %v3146 = vunpack.c.h.b16 %v859
    %v3147 = vunpack.c.l.b16 %v860
    %v3148 = vunpack.c.h.b16 %v860
    %v3149 = vunpack.c.l.b16 %v861
    %v3150 = vunpack.c.h.b16 %v861
    %v3151 = vunpack.c.l.b16 %v862
    %v3152 = vunpack.c.h.b16 %v862
    %v3153 = vunpack.c.l.b16 %v863
    %v3154 = vunpack.c.h.b16 %v863
    %v3155 = vunpack.c.l.b16 %v864
    %v3156 = vunpack.c.h.b16 %v864
    %v3157 = vunpack.c.l.b16 %v865
    %v3158 = vunpack.c.h.b16 %v865
    %v3159 = vunpack.c.l.b16 %v866
    %v3160 = vunpack.c.h.b16 %v866
    %v3161 = vunpack.c.l.b16 %v867
    %v3162 = vunpack.c.h.b16 %v867
    %v3163 = vunpack.c.l.b16 %v868
    %v3164 = vunpack.c.h.b16 %v868
    %v3165 = vunpack.c.l.b16 %v869
    %v3166 = vunpack.c.h.b16 %v869
    %v3167 = vunpack.c.l.b16 %v870
    %v3168 = vunpack.c.h.b16 %v870
    %v3169 = vunpack.c.l.b16 %v871
    %v3170 = vunpack.c.h.b16 %v871
    %v3171 = vunpack.c.l.b16 %v872
    %v3172 = vunpack.c.h.b16 %v872
    %v3173 = vunpack.c.l.b16 %v873
    %v3174 = vunpack.c.h.b16 %v873
    %v3175 = vunpack.c.l.b16 %v874
    %v3176 = vunpack.c.h.b16 %v874
    %v3177 = vunpack.c.l.b16 %v875
    %v3178 = vunpack.c.h.b16 %v875
    %v3179 = vunpack.c.l.b16 %v876
    %v3180 = vunpack.c.h.b16 %v876
    %v3181 = vunpack.c.l.b16 %v877
    %v3182 = vunpack.c.h.b16 %v877
    %v3183 = vunpack.c.l.b16 %v878
    %v3184 = vunpack.c.h.b16 %v878
    %v3185 = vunpack.c.l.b16 %v879
    %v3186 = vunpack.c.h.b16 %v879
    %v3187 = vunpack.c.l.b16 %v880
    %v3188 = vunpack.c.h.b16 %v880
    %v3189 = vunpack.c.l.b16 %v881
    %v3190 = vunpack.c.h.b16 %v881
    %v3191 = vunpack.c.l.b16 %v882
    %v3192 = vunpack.c.h.b16 %v882
    %v3193 = vunpack.c.l.b16 %v883
    %v3194 = vunpack.c.h.b16 %v883
    %v3195 = vunpack.c.l.b16 %v884
    %v3196 = vunpack.c.h.b16 %v884
    %v3197 = vunpack.c.l.b16 %v885
    %v3198 = vunpack.c.h.b16 %v885
    %v3199 = vunpack.c.l.b16 %v886
    %v3200 = vunpack.c.h.b16 %v886
    %v3201 = vunpack.c.l.b16 %v887
    %v3202 = vunpack.c.h.b16 %v887
    %v3203 = vunpack.c.l.b16 %v888
    %v3204 = vunpack.c.h.b16 %v888
    %v3205 = vunpack.c.l.b16 %v889
    %v3206 = vunpack.c.h.b16 %v889
    %v3207 = vunpack.c.l.b16 %v890
    %v3208 = vunpack.c.h.b16 %v890
    %v3209 = vunpack.c.l.b16 %v891
    %v3210 = vunpack.c.h.b16 %v891
    %v3211 = vunpack.c.l.b16 %v892
    %v3212 = vunpack.c.h.b16 %v892
    %v3213 = vunpack.c.l.b16 %v893
    %v3214 = vunpack.c.h.b16 %v893
    %v3215 = vunpack.c.l.b16 %v894
    %v3216 = vunpack.c.h.b16 %v894
    %v3217 = vunpack.c.l.b16 %v895
    %v3218 = vunpack.c.h.b16 %v895
    %v3219 = vunpack.c.l.b16 %v896
    %v3220 = vunpack.c.h.b16 %v896
    %v3221 = vunpack.c.l.b16 %v897
    %v3222 = vunpack.c.h.b16 %v897
    %v3223 = vunpack.c.l.b16 %v898
    %v3224 = vunpack.c.h.b16 %v898
    %v3225 = vunpack.c.l.b16 %v899
    %v3226 = vunpack.c.h.b16 %v899
    %v3227 = vunpack.c.l.b16 %v900
    %v3228 = vunpack.c.h.b16 %v900
    %v3229 = vunpack.c.l.b16 %v901
    %v3230 = vunpack.c.h.b16 %v901
    %v3231 = vunpack.c.l.b16 %v902
    %v3232 = vunpack.c.h.b16 %v902
    %v3233 = vunpack.c.l.b16 %v903
    %v3234 = vunpack.c.h.b16 %v903
    %v3235 = vunpack.c.l.b16 %v904
    %v3236 = vunpack.c.h.b16 %v904
    %v3237 = vunpack.c.l.b16 %v905
    %v3238 = vunpack.c.h.b16 %v905
    %v3239 = vunpack.c.l.b16 %v906
    %v3240 = vunpack.c.h.b16 %v906
    %v3241 = vunpack.c.l.b16 %v907
    %v3242 = vunpack.c.h.b16 %v907
    %v3243 = vunpack.c.l.b16 %v908
    %v3244 = vunpack.c.h.b16 %v908
    %v3245 = vunpack.c.l.b16 %v909
    %v3246 = vunpack.c.h.b16 %v909
    %v3247 = vunpack.c.l.b16 %v910
    %v3248 = vunpack.c.h.b16 %v910
    %v3249 = vunpack.c.l.b16 %v911
    %v3250 = vunpack.c.h.b16 %v911
    %v3251 = vunpack.c.l.b16 %v912
    %v3252 = vunpack.c.h.b16 %v912
    %v3253 = vunpack.c.l.b16 %v913
    %v3254 = vunpack.c.h.b16 %v913
    %v3255 = vunpack.c.l.b16 %v914
    %v3256 = vunpack.c.h.b16 %v914
    %v3257 = vunpack.c.l.b16 %v915
    %v3258 = vunpack.c.h.b16 %v915
    %v3259 = vunpack.c.l.b16 %v916
    %v3260 = vunpack.c.h.b16 %v916
    %v3261 = vunpack.c.l.b16 %v917
    %v3262 = vunpack.c.h.b16 %v917
    %v3263 = vunpack.c.l.b16 %v918
    %v3264 = vunpack.c.h.b16 %v918
    %v3265 = vunpack.c.l.b16 %v919
    %v3266 = vunpack.c.h.b16 %v919
    %v3267 = vunpack.c.l.b16 %v920
    %v3268 = vunpack.c.h.b16 %v920
    %v3269 = vunpack.c.l.b16 %v921
    %v3270 = vunpack.c.h.b16 %v921
    %v3271 = vunpack.c.l.b16 %v922
    %v3272 = vunpack.c.h.b16 %v922
    %v3273 = vunpack.c.l.b16 %v923
    %v3274 = vunpack.c.h.b16 %v923
    %v3275 = vunpack.c.l.b16 %v924
    %v3276 = vunpack.c.h.b16 %v924
    %v3277 = vunpack.c.l.b16 %v925
    %v3278 = vunpack.c.h.b16 %v925
    %v3279 = vunpack.c.l.b16 %v926
    %v3280 = vunpack.c.h.b16 %v926
    %v3281 = vunpack.c.l.b16 %v927
    %v3282 = vunpack.c.h.b16 %v927
    %v3283 = vunpack.c.l.b16 %v928
    %v3284 = vunpack.c.h.b16 %v928
    %v3285 = vunpack.c.l.b16 %v929
    %v3286 = vunpack.c.h.b16 %v929
    %v3287 = vunpack.c.l.b16 %v930
    %v3288 = vunpack.c.h.b16 %v930
    %v3289 = vunpack.c.l.b16 %v931
    %v3290 = vunpack.c.h.b16 %v931
    %v3291 = vunpack.c.l.b16 %v932
    %v3292 = vunpack.c.h.b16 %v932
    %v3293 = vunpack.c.l.b16 %v933
    %v3294 = vunpack.c.h.b16 %v933
    %v3295 = vunpack.c.l.b16 %v934
    %v3296 = vunpack.c.h.b16 %v934
    %v3297 = vunpack.c.l.b16 %v935
    %v3298 = vunpack.c.h.b16 %v935
    %v3299 = vunpack.c.l.b16 %v936
    %v3300 = vunpack.c.h.b16 %v936
    %v3301 = vunpack.c.l.b16 %v937
    %v3302 = vunpack.c.h.b16 %v937
    %v3303 = vunpack.c.l.b16 %v938
    %v3304 = vunpack.c.h.b16 %v938
    %v3305 = vunpack.c.l.b16 %v939
    %v3306 = vunpack.c.h.b16 %v939
    %v3307 = vunpack.c.l.b16 %v940
    %v3308 = vunpack.c.h.b16 %v940
    %v3309 = vunpack.c.l.b16 %v941
    %v3310 = vunpack.c.h.b16 %v941
    %v3311 = vunpack.c.l.b16 %v942
    %v3312 = vunpack.c.h.b16 %v942
    %v3313 = vunpack.c.l.b16 %v943
    %v3314 = vunpack.c.h.b16 %v943
    %v3315 = vunpack.c.l.b16 %v944
    %v3316 = vunpack.c.h.b16 %v944
    %v3317 = vunpack.c.l.b16 %v945
    %v3318 = vunpack.c.h.b16 %v945
    %v3319 = vunpack.c.l.b16 %v946
    %v3320 = vunpack.c.h.b16 %v946
    %v3321 = vunpack.c.l.b16 %v947
    %v3322 = vunpack.c.h.b16 %v947
    %v3323 = vunpack.c.l.b16 %v948
    %v3324 = vunpack.c.h.b16 %v948
    %v3325 = vunpack.c.l.b16 %v949
    %v3326 = vunpack.c.h.b16 %v949
    %v3327 = vunpack.c.l.b16 %v950
    %v3328 = vunpack.c.h.b16 %v950
    %v3329 = vunpack.c.l.b16 %v951
    %v3330 = vunpack.c.h.b16 %v951
    %v3331 = vunpack.c.l.b16 %v952
    %v3332 = vunpack.c.h.b16 %v952
    %v3333 = vunpack.c.l.b16 %v953
    %v3334 = vunpack.c.h.b16 %v953
    %v3335 = vunpack.c.l.b16 %v954
    %v3336 = vunpack.c.h.b16 %v954
    %v3337 = vunpack.c.l.b16 %v955
    %v3338 = vunpack.c.h.b16 %v955
    %v3339 = vunpack.c.l.b16 %v956
    %v3340 = vunpack.c.h.b16 %v956
    %v3341 = vunpack.c.l.b16 %v957
    %v3342 = vunpack.c.h.b16 %v957
    %v3343 = vunpack.c.l.b16 %v958
    %v3344 = vunpack.c.h.b16 %v958
    %v3345 = vunpack.c.l.b16 %v959
    %v3346 = vunpack.c.h.b16 %v959
    %v3347 = vunpack.c.l.b16 %v960
    %v3348 = vunpack.c.h.b16 %v960
    %v3349 = vunpack.c.l.b16 %v961
    %v3350 = vunpack.c.h.b16 %v961
    %v3351 = vunpack.c.l.b16 %v962
    %v3352 = vunpack.c.h.b16 %v962
    %v3353 = vunpack.c.l.b16 %v963
    %v3354 = vunpack.c.h.b16 %v963
    %v3355 = vunpack.c.l.b16 %v964
    %v3356 = vunpack.c.h.b16 %v964
    %v3357 = vunpack.c.l.b16 %v965
    %v3358 = vunpack.c.h.b16 %v965
    %v3359 = vunpack.c.l.b16 %v966
    %v3360 = vunpack.c.h.b16 %v966
    %v3361 = vunpack.c.l.b16 %v967
    %v3362 = vunpack.c.h.b16 %v967
    %v3363 = vunpack.c.l.b16 %v968
    %v3364 = vunpack.c.h.b16 %v968
    %v3365 = vunpack.c.l.b16 %v969
    %v3366 = vunpack.c.h.b16 %v969
    %v3367 = vunpack.c.l.b16 %v970
    %v3368 = vunpack.c.h.b16 %v970
    %v3369 = vunpack.c.l.b16 %v971
    %v3370 = vunpack.c.h.b16 %v971
    %v3371 = vunpack.c.l.b16 %v972
    %v3372 = vunpack.c.h.b16 %v972
    %v3373 = vunpack.c.l.b16 %v973
    %v3374 = vunpack.c.h.b16 %v973
    %v3375 = vunpack.c.l.b16 %v974
    %v3376 = vunpack.c.h.b16 %v974
    %v3377 = vunpack.c.l.b16 %v975
    %v3378 = vunpack.c.h.b16 %v975
    %v3379 = vunpack.c.l.b16 %v976
    %v3380 = vunpack.c.h.b16 %v976
    %v3381 = vunpack.c.l.b16 %v977
    %v3382 = vunpack.c.h.b16 %v977
    %v3383 = vunpack.c.l.b16 %v978
    %v3384 = vunpack.c.h.b16 %v978
    %v3385 = vunpack.c.l.b16 %v979
    %v3386 = vunpack.c.h.b16 %v979
    %v3387 = vunpack.c.l.b16 %v980
    %v3388 = vunpack.c.h.b16 %v980
    %v3389 = vunpack.c.l.b16 %v981
    %v3390 = vunpack.c.h.b16 %v981
    %v3391 = vunpack.c.l.b16 %v982
    %v3392 = vunpack.c.h.b16 %v982
    %v3393 = vunpack.c.l.b16 %v983
    %v3394 = vunpack.c.h.b16 %v983
    %v3395 = vunpack.c.l.b16 %v984
    %v3396 = vunpack.c.h.b16 %v984
    %v3397 = vunpack.c.l.b16 %v985
    %v3398 = vunpack.c.h.b16 %v985
    %v3399 = vunpack.c.l.b16 %v986
    %v3400 = vunpack.c.h.b16 %v986
    %v3401 = vunpack.c.l.b16 %v987
    %v3402 = vunpack.c.h.b16 %v987
    %v3403 = vunpack.c.l.b16 %v988
    %v3404 = vunpack.c.h.b16 %v988
    %v3405 = vunpack.c.l.b16 %v989
    %v3406 = vunpack.c.h.b16 %v989
    %v3407 = vunpack.c.l.b16 %v990
    %v3408 = vunpack.c.h.b16 %v990
    %v3409 = vunpack.c.l.b16 %v991
    %v3410 = vunpack.c.h.b16 %v991
    %v3411 = vunpack.c.l.b16 %v992
    %v3412 = vunpack.c.h.b16 %v992
    %v3413 = vunpack.c.l.b16 %v993
    %v3414 = vunpack.c.h.b16 %v993
    %v3415 = vunpack.c.l.b16 %v994
    %v3416 = vunpack.c.h.b16 %v994
    %v3417 = vpack.c.b16 %v1821, %v1817
    %v3418 = vpack.c.b16 %v1822, %v1818
    %v3419 = vpack.c.b16 %v1823, %v1819
    %v3420 = vpack.c.b16 %v1824, %v1820
    %v3421 = vpack.c.b16 %v1829, %v1825
    %v3422 = vpack.c.b16 %v1830, %v1826
    %v3423 = vpack.c.b16 %v1831, %v1827
    %v3424 = vpack.c.b16 %v1832, %v1828
    %v3425 = vpack.c.b16 %v1837, %v1833
    %v3426 = vpack.c.b16 %v1838, %v1834
    %v3427 = vpack.c.b16 %v1839, %v1835
    %v3428 = vpack.c.b16 %v1840, %v1836
    %v3429 = vpack.c.b16 %v1845, %v1841
    %v3430 = vpack.c.b16 %v1846, %v1842
    %v3431 = vpack.c.b16 %v1847, %v1843
    %v3432 = vpack.c.b16 %v1848, %v1844
    %v3433 = vpack.c.b16 %v1853, %v1849
    %v3434 = vpack.c.b16 %v1854, %v1850
    %v3435 = vpack.c.b16 %v1855, %v1851
    %v3436 = vpack.c.b16 %v1856, %v1852
    %v3437 = vpack.c.b16 %v1861, %v1857
    %v3438 = vpack.c.b16 %v1862, %v1858
    %v3439 = vpack.c.b16 %v1863, %v1859
    %v3440 = vpack.c.b16 %v1864, %v1860
    %v3441 = vpack.c.b16 %v1869, %v1865
    %v3442 = vpack.c.b16 %v1870, %v1866
    %v3443 = vpack.c.b16 %v1871, %v1867
    %v3444 = vpack.c.b16 %v1872, %v1868
    %v3445 = vpack.c.b16 %v1877, %v1873
    %v3446 = vpack.c.b16 %v1878, %v1874
    %v3447 = vpack.c.b16 %v1879, %v1875
    %v3448 = vpack.c.b16 %v1880, %v1876
    %v3449 = vpack.c.b16 %v1885, %v1881
    %v3450 = vpack.c.b16 %v1886, %v1882
    %v3451 = vpack.c.b16 %v1887, %v1883
    %v3452 = vpack.c.b16 %v1888, %v1884
    %v3453 = vpack.c.b16 %v1893, %v1889
    %v3454 = vpack.c.b16 %v1894, %v1890
    %v3455 = vpack.c.b16 %v1895, %v1891
    %v3456 = vpack.c.b16 %v1896, %v1892
    %v3457 = vpack.c.b16 %v1901, %v1897
    %v3458 = vpack.c.b16 %v1902, %v1898
    %v3459 = vpack.c.b16 %v1903, %v1899
    %v3460 = vpack.c.b16 %v1904, %v1900
    %v3461 = vpack.c.b16 %v1909, %v1905
    %v3462 = vpack.c.b16 %v1910, %v1906
    %v3463 = vpack.c.b16 %v1911, %v1907
    %v3464 = vpack.c.b16 %v1912, %v1908
    %v3465 = vpack.c.b16 %v1917, %v1913
    %v3466 = vpack.c.b16 %v1918, %v1914
    %v3467 = vpack.c.b16 %v1919, %v1915
    %v3468 = vpack.c.b16 %v1920, %v1916
    %v3469 = vpack.c.b16 %v1925, %v1921
    %v3470 = vpack.c.b16 %v1926, %v1922
    %v3471 = vpack.c.b16 %v1927, %v1923
    %v3472 = vpack.c.b16 %v1928, %v1924
    %v3473 = vpack.c.b16 %v1933, %v1929
    %v3474 = vpack.c.b16 %v1934, %v1930
    %v3475 = vpack.c.b16 %v1935, %v1931
    %v3476 = vpack.c.b16 %v1936, %v1932
    %v3477 = vpack.c.b16 %v1941, %v1937
    %v3478 = vpack.c.b16 %v1942, %v1938
    %v3479 = vpack.c.b16 %v1943, %v1939
    %v3480 = vpack.c.b16 %v1944, %v1940
    %v3481 = vpack.c.b16 %v1949, %v1945
    %v3482 = vpack.c.b16 %v1950, %v1946
    %v3483 = vpack.c.b16 %v1951, %v1947
    %v3484 = vpack.c.b16 %v1952, %v1948
    %v3485 = vpack.c.b16 %v1957, %v1953
    %v3486 = vpack.c.b16 %v1958, %v1954
    %v3487 = vpack.c.b16 %v1959, %v1955
    %v3488 = vpack.c.b16 %v1960, %v1956
    %v3489 = vpack.c.b16 %v1965, %v1961
    %v3490 = vpack.c.b16 %v1966, %v1962
    %v3491 = vpack.c.b16 %v1967, %v1963
    %v3492 = vpack.c.b16 %v1968, %v1964
    %v3493 = vpack.c.b16 %v1973, %v1969
    %v3494 = vpack.c.b16 %v1974, %v1970
    %v3495 = vpack.c.b16 %v1975, %v1971
    %v3496 = vpack.c.b16 %v1976, %v1972
    %v3497 = vpack.c.b16 %v1981, %v1977
    %v3498 = vpack.c.b16 %v1982, %v1978
    %v3499 = vpack.c.b16 %v1983, %v1979
    %v3500 = vpack.c.b16 %v1984, %v1980
    %v3501 = vpack.c.b16 %v1989, %v1985
    %v3502 = vpack.c.b16 %v1990, %v1986
    %v3503 = vpack.c.b16 %v1991, %v1987
    %v3504 = vpack.c.b16 %v1992, %v1988
    %v3505 = vpack.c.b16 %v1997, %v1993
    %v3506 = vpack.c.b16 %v1998, %v1994
    %v3507 = vpack.c.b16 %v1999, %v1995
    %v3508 = vpack.c.b16 %v2000, %v1996
    %v3509 = vpack.c.b16 %v2005, %v2001
    %v3510 = vpack.c.b16 %v2006, %v2002
    %v3511 = vpack.c.b16 %v2007, %v2003
    %v3512 = vpack.c.b16 %v2008, %v2004
    %v3513 = vpack.c.b16 %v2013, %v2009
    %v3514 = vpack.c.b16 %v2014, %v2010
    %v3515 = vpack.c.b16 %v2015, %v2011
    %v3516 = vpack.c.b16 %v2016, %v2012
    %v3517 = vpack.c.b16 %v2021, %v2017
    %v3518 = vpack.c.b16 %v2022, %v2018
    %v3519 = vpack.c.b16 %v2023, %v2019
    %v3520 = vpack.c.b16 %v2024, %v2020
    %v3521 = vpack.c.b16 %v2029, %v2025
    %v3522 = vpack.c.b16 %v2030, %v2026
    %v3523 = vpack.c.b16 %v2031, %v2027
    %v3524 = vpack.c.b16 %v2032, %v2028
    %v3525 = vpack.c.b16 %v2037, %v2033
    %v3526 = vpack.c.b16 %v2038, %v2034
    %v3527 = vpack.c.b16 %v2039, %v2035
    %v3528 = vpack.c.b16 %v2040, %v2036
    %v3529 = vpack.c.b16 %v2045, %v2041
    %v3530 = vpack.c.b16 %v2046, %v2042
    %v3531 = vpack.c.b16 %v2047, %v2043
    %v3532 = vpack.c.b16 %v2048, %v2044
    %v3533 = vpack.c.b16 %v2053, %v2049
    %v3534 = vpack.c.b16 %v2054, %v2050
    %v3535 = vpack.c.b16 %v2055, %v2051
    %v3536 = vpack.c.b16 %v2056, %v2052
    %v3537 = vpack.c.b16 %v2061, %v2057
    %v3538 = vpack.c.b16 %v2062, %v2058
    %v3539 = vpack.c.b16 %v2063, %v2059
    %v3540 = vpack.c.b16 %v2064, %v2060
    %v3541 = vpack.c.b16 %v2069, %v2065
    %v3542 = vpack.c.b16 %v2070, %v2066
    %v3543 = vpack.c.b16 %v2071, %v2067
    %v3544 = vpack.c.b16 %v2072, %v2068
    %v3545 = vpack.c.b16 %v2077, %v2073
    %v3546 = vpack.c.b16 %v2078, %v2074
    %v3547 = vpack.c.b16 %v2079, %v2075
    %v3548 = vpack.c.b16 %v2080, %v2076
    %v3549 = vpack.c.b16 %v2085, %v2081
    %v3550 = vpack.c.b16 %v2086, %v2082
    %v3551 = vpack.c.b16 %v2087, %v2083
    %v3552 = vpack.c.b16 %v2088, %v2084
    %v3553 = vpack.c.b16 %v2093, %v2089
    %v3554 = vpack.c.b16 %v2094, %v2090
    %v3555 = vpack.c.b16 %v2095, %v2091
    %v3556 = vpack.c.b16 %v2096, %v2092
    %v3557 = vpack.c.b16 %v2101, %v2097
    %v3558 = vpack.c.b16 %v2102, %v2098
    %v3559 = vpack.c.b16 %v2103, %v2099
    %v3560 = vpack.c.b16 %v2104, %v2100
    %v3561 = vpack.c.b16 %v2109, %v2105
    %v3562 = vpack.c.b16 %v2110, %v2106
    %v3563 = vpack.c.b16 %v2111, %v2107
    %v3564 = vpack.c.b16 %v2112, %v2108
    %v3565 = vpack.c.b16 %v2117, %v2113
    %v3566 = vpack.c.b16 %v2118, %v2114
    %v3567 = vpack.c.b16 %v2119, %v2115
    %v3568 = vpack.c.b16 %v2120, %v2116
    %v3569 = vpack.c.b16 %v2125, %v2121
    %v3570 = vpack.c.b16 %v2126, %v2122
    %v3571 = vpack.c.b16 %v2127, %v2123
    %v3572 = vpack.c.b16 %v2128, %v2124
    %v3573 = vpack.c.b16 %v2133, %v2129
    %v3574 = vpack.c.b16 %v2134, %v2130
    %v3575 = vpack.c.b16 %v2135, %v2131
    %v3576 = vpack.c.b16 %v2136, %v2132
    %v3577 = vpack.c.b16 %v2141, %v2137
    %v3578 = vpack.c.b16 %v2142, %v2138
    %v3579 = vpack.c.b16 %v2143, %v2139
    %v3580 = vpack.c.b16 %v2144, %v2140
    %v3581 = vpack.c.b16 %v2149, %v2145
    %v3582 = vpack.c.b16 %v2150, %v2146
    %v3583 = vpack.c.b16 %v2151, %v2147
    %v3584 = vpack.c.b16 %v2152, %v2148
    %v3585 = vpack.c.b16 %v2157, %v2153
    %v3586 = vpack.c.b16 %v2158, %v2154
    %v3587 = vpack.c.b16 %v2159, %v2155
    %v3588 = vpack.c.b16 %v2160, %v2156
    %v3589 = vpack.c.b16 %v2165, %v2161
    %v3590 = vpack.c.b16 %v2166, %v2162
    %v3591 = vpack.c.b16 %v2167, %v2163
    %v3592 = vpack.c.b16 %v2168, %v2164
    %v3593 = vpack.c.b16 %v2173, %v2169
    %v3594 = vpack.c.b16 %v2174, %v2170
    %v3595 = vpack.c.b16 %v2175, %v2171
    %v3596 = vpack.c.b16 %v2176, %v2172
    %v3597 = vpack.c.b16 %v2181, %v2177
    %v3598 = vpack.c.b16 %v2182, %v2178
    %v3599 = vpack.c.b16 %v2183, %v2179
    %v3600 = vpack.c.b16 %v2184, %v2180
    %v3601 = vpack.c.b16 %v2189, %v2185
    %v3602 = vpack.c.b16 %v2190, %v2186
    %v3603 = vpack.c.b16 %v2191, %v2187
    %v3604 = vpack.c.b16 %v2192, %v2188
    %v3605 = vpack.c.b16 %v2197, %v2193
    %v3606 = vpack.c.b16 %v2198, %v2194
    %v3607 = vpack.c.b16 %v2199, %v2195
    %v3608 = vpack.c.b16 %v2200, %v2196
    %v3609 = vpack.c.b16 %v2205, %v2201
    %v3610 = vpack.c.b16 %v2206, %v2202
    %v3611 = vpack.c.b16 %v2207, %v2203
    %v3612 = vpack.c.b16 %v2208, %v2204
    %v3613 = vpack.c.b16 %v2213, %v2209
    %v3614 = vpack.c.b16 %v2214, %v2210
    %v3615 = vpack.c.b16 %v2215, %v2211
    %v3616 = vpack.c.b16 %v2216, %v2212
    %v3617 = vpack.c.b16 %v2221, %v2217
    %v3618 = vpack.c.b16 %v2222, %v2218
    %v3619 = vpack.c.b16 %v2223, %v2219
    %v3620 = vpack.c.b16 %v2224, %v2220
    %v3621 = vpack.c.b16 %v2229, %v2225
    %v3622 = vpack.c.b16 %v2230, %v2226
    %v3623 = vpack.c.b16 %v2231, %v2227
    %v3624 = vpack.c.b16 %v2232, %v2228
    %v3625 = vpack.c.b16 %v2237, %v2233
    %v3626 = vpack.c.b16 %v2238, %v2234
    %v3627 = vpack.c.b16 %v2239, %v2235
    %v3628 = vpack.c.b16 %v2240, %v2236
    %v3629 = vpack.c.b16 %v2245, %v2241
    %v3630 = vpack.c.b16 %v2246, %v2242
    %v3631 = vpack.c.b16 %v2247, %v2243
    %v3632 = vpack.c.b16 %v2248, %v2244
    %v3633 = vpack.c.b16 %v2253, %v2249
    %v3634 = vpack.c.b16 %v2254, %v2250
    %v3635 = vpack.c.b16 %v2255, %v2251
    %v3636 = vpack.c.b16 %v2256, %v2252
    %v3637 = vpack.c.b16 %v2261, %v2257
    %v3638 = vpack.c.b16 %v2262, %v2258
    %v3639 = vpack.c.b16 %v2263, %v2259
    %v3640 = vpack.c.b16 %v2264, %v2260
    %v3641 = vpack.c.b16 %v2269, %v2265
    %v3642 = vpack.c.b16 %v2270, %v2266
    %v3643 = vpack.c.b16 %v2271, %v2267
    %v3644 = vpack.c.b16 %v2272, %v2268
    %v3645 = vpack.c.b16 %v2277, %v2273
    %v3646 = vpack.c.b16 %v2278, %v2274
    %v3647 = vpack.c.b16 %v2279, %v2275
    %v3648 = vpack.c.b16 %v2280, %v2276
    %v3649 = vpack.c.b16 %v2285, %v2281
    %v3650 = vpack.c.b16 %v2286, %v2282
    %v3651 = vpack.c.b16 %v2287, %v2283
    %v3652 = vpack.c.b16 %v2288, %v2284
    %v3653 = vpack.c.b16 %v2293, %v2289
    %v3654 = vpack.c.b16 %v2294, %v2290
    %v3655 = vpack.c.b16 %v2295, %v2291
    %v3656 = vpack.c.b16 %v2296, %v2292
    %v3657 = vpack.c.b16 %v2301, %v2297
    %v3658 = vpack.c.b16 %v2302, %v2298
    %v3659 = vpack.c.b16 %v2303, %v2299
    %v3660 = vpack.c.b16 %v2304, %v2300
    %v3661 = vpack.c.b16 %v2309, %v2305
    %v3662 = vpack.c.b16 %v2310, %v2306
    %v3663 = vpack.c.b16 %v2311, %v2307
    %v3664 = vpack.c.b16 %v2312, %v2308
    %v3665 = vpack.c.b16 %v2317, %v2313
    %v3666 = vpack.c.b16 %v2318, %v2314
    %v3667 = vpack.c.b16 %v2319, %v2315
    %v3668 = vpack.c.b16 %v2320, %v2316
    %v3669 = vpack.c.b16 %v2325, %v2321
    %v3670 = vpack.c.b16 %v2326, %v2322
    %v3671 = vpack.c.b16 %v2327, %v2323
    %v3672 = vpack.c.b16 %v2328, %v2324
    %v3673 = vpack.c.b16 %v2333, %v2329
    %v3674 = vpack.c.b16 %v2334, %v2330
    %v3675 = vpack.c.b16 %v2335, %v2331
    %v3676 = vpack.c.b16 %v2336, %v2332
    %v3677 = vpack.c.b16 %v2341, %v2337
    %v3678 = vpack.c.b16 %v2342, %v2338
    %v3679 = vpack.c.b16 %v2343, %v2339
    %v3680 = vpack.c.b16 %v2344, %v2340
    %v3681 = vpack.c.b16 %v2349, %v2345
    %v3682 = vpack.c.b16 %v2350, %v2346
    %v3683 = vpack.c.b16 %v2351, %v2347
    %v3684 = vpack.c.b16 %v2352, %v2348
    %v3685 = vpack.c.b16 %v2357, %v2353
    %v3686 = vpack.c.b16 %v2358, %v2354
    %v3687 = vpack.c.b16 %v2359, %v2355
    %v3688 = vpack.c.b16 %v2360, %v2356
    %v3689 = vpack.c.b16 %v2365, %v2361
    %v3690 = vpack.c.b16 %v2366, %v2362
    %v3691 = vpack.c.b16 %v2367, %v2363
    %v3692 = vpack.c.b16 %v2368, %v2364
    %v3693 = vpack.c.b16 %v2373, %v2369
    %v3694 = vpack.c.b16 %v2374, %v2370
    %v3695 = vpack.c.b16 %v2375, %v2371
    %v3696 = vpack.c.b16 %v2376, %v2372
    %v3697 = vpack.c.b16 %v2381, %v2377
    %v3698 = vpack.c.b16 %v2382, %v2378
    %v3699 = vpack.c.b16 %v2383, %v2379
    %v3700 = vpack.c.b16 %v2384, %v2380
    %v3701 = vpack.c.b16 %v2389, %v2385
    %v3702 = vpack.c.b16 %v2390, %v2386
    %v3703 = vpack.c.b16 %v2391, %v2387
    %v3704 = vpack.c.b16 %v2392, %v2388
    %v3705 = vpack.c.b16 %v2397, %v2393
    %v3706 = vpack.c.b16 %v2398, %v2394
    %v3707 = vpack.c.b16 %v2399, %v2395
    %v3708 = vpack.c.b16 %v2400, %v2396
    %v3709 = vpack.c.b16 %v2405, %v2401
    %v3710 = vpack.c.b16 %v2406, %v2402
    %v3711 = vpack.c.b16 %v2407, %v2403
    %v3712 = vpack.c.b16 %v2408, %v2404
    %v3713 = vpack.c.b16 %v2413, %v2409
    %v3714 = vpack.c.b16 %v2414, %v2410
    %v3715 = vpack.c.b16 %v2415, %v2411
    %v3716 = vpack.c.b16 %v2416, %v2412
    %v3717 = vpack.c.b16 %v2421, %v2417
    %v3718 = vpack.c.b16 %v2422, %v2418
    %v3719 = vpack.c.b16 %v2423, %v2419
    %v3720 = vpack.c.b16 %v2424, %v2420
    %v3721 = vpack.c.b16 %v2429, %v2425
    %v3722 = vpack.c.b16 %v2430, %v2426
    %v3723 = vpack.c.b16 %v2431, %v2427
    %v3724 = vpack.c.b16 %v2432, %v2428
    %v3725 = vpack.c.b16 %v2437, %v2433
    %v3726 = vpack.c.b16 %v2438, %v2434
    %v3727 = vpack.c.b16 %v2439, %v2435
    %v3728 = vpack.c.b16 %v2440, %v2436
    %v3729 = vpack.c.b16 %v2445, %v2441
    %v3730 = vpack.c.b16 %v2446, %v2442
    %v3731 = vpack.c.b16 %v2447, %v2443
    %v3732 = vpack.c.b16 %v2448, %v2444
    %v3733 = vpack.c.b16 %v2453, %v2449
    %v3734 = vpack.c.b16 %v2454, %v2450
    %v3735 = vpack.c.b16 %v2455, %v2451
    %v3736 = vpack.c.b16 %v2456, %v2452
    %v3737 = vpack.c.b16 %v2461, %v2457
    %v3738 = vpack.c.b16 %v2462, %v2458
    %v3739 = vpack.c.b16 %v2463, %v2459
    %v3740 = vpack.c.b16 %v2464, %v2460
    %v3741 = vpack.c.b16 %v2469, %v2465
    %v3742 = vpack.c.b16 %v2470, %v2466
    %v3743 = vpack.c.b16 %v2471, %v2467
    %v3744 = vpack.c.b16 %v2472, %v2468
    %v3745 = vpack.c.b16 %v2477, %v2473
    %v3746 = vpack.c.b16 %v2478, %v2474
    %v3747 = vpack.c.b16 %v2479, %v2475
    %v3748 = vpack.c.b16 %v2480, %v2476
    %v3749 = vpack.c.b16 %v2485, %v2481
    %v3750 = vpack.c.b16 %v2486, %v2482
    %v3751 = vpack.c.b16 %v2487, %v2483
    %v3752 = vpack.c.b16 %v2488, %v2484
    %v3753 = vpack.c.b16 %v2493, %v2489
    %v3754 = vpack.c.b16 %v2494, %v2490
    %v3755 = vpack.c.b16 %v2495, %v2491
    %v3756 = vpack.c.b16 %v2496, %v2492
    %v3757 = vpack.c.b16 %v2501, %v2497
    %v3758 = vpack.c.b16 %v2502, %v2498
    %v3759 = vpack.c.b16 %v2503, %v2499
    %v3760 = vpack.c.b16 %v2504, %v2500
    %v3761 = vpack.c.b16 %v2509, %v2505
    %v3762 = vpack.c.b16 %v2510, %v2506
    %v3763 = vpack.c.b16 %v2511, %v2507
    %v3764 = vpack.c.b16 %v2512, %v2508
    %v3765 = vpack.c.b16 %v2517, %v2513
    %v3766 = vpack.c.b16 %v2518, %v2514
    %v3767 = vpack.c.b16 %v2519, %v2515
    %v3768 = vpack.c.b16 %v2520, %v2516
    %v3769 = vpack.c.b16 %v2525, %v2521
    %v3770 = vpack.c.b16 %v2526, %v2522
    %v3771 = vpack.c.b16 %v2527, %v2523
    %v3772 = vpack.c.b16 %v2528, %v2524
    %v3773 = vpack.c.b16 %v2533, %v2529
    %v3774 = vpack.c.b16 %v2534, %v2530
    %v3775 = vpack.c.b16 %v2535, %v2531
    %v3776 = vpack.c.b16 %v2536, %v2532
    %v3777 = vpack.c.b16 %v2541, %v2537
    %v3778 = vpack.c.b16 %v2542, %v2538
    %v3779 = vpack.c.b16 %v2543, %v2539
    %v3780 = vpack.c.b16 %v2544, %v2540
    %v3781 = vpack.c.b16 %v2549, %v2545
    %v3782 = vpack.c.b16 %v2550, %v2546
    %v3783 = vpack.c.b16 %v2551, %v2547
    %v3784 = vpack.c.b16 %v2552, %v2548
    %v3785 = vpack.c.b16 %v2557, %v2553
    %v3786 = vpack.c.b16 %v2558, %v2554
    %v3787 = vpack.c.b16 %v2559, %v2555
    %v3788 = vpack.c.b16 %v2560, %v2556
    %v3789 = vpack.c.b16 %v2565, %v2561
    %v3790 = vpack.c.b16 %v2566, %v2562
    %v3791 = vpack.c.b16 %v2567, %v2563
    %v3792 = vpack.c.b16 %v2568, %v2564
    %v3793 = vpack.c.b16 %v2573, %v2569
    %v3794 = vpack.c.b16 %v2574, %v2570
    %v3795 = vpack.c.b16 %v2575, %v2571
    %v3796 = vpack.c.b16 %v2576, %v2572
    %v3797 = vpack.c.b16 %v2581, %v2577
    %v3798 = vpack.c.b16 %v2582, %v2578
    %v3799 = vpack.c.b16 %v2583, %v2579
    %v3800 = vpack.c.b16 %v2584, %v2580
    %v3801 = vpack.c.b16 %v2589, %v2585
    %v3802 = vpack.c.b16 %v2590, %v2586
    %v3803 = vpack.c.b16 %v2591, %v2587
    %v3804 = vpack.c.b16 %v2592, %v2588
    %v3805 = vpack.c.b16 %v2597, %v2593
    %v3806 = vpack.c.b16 %v2598, %v2594
    %v3807 = vpack.c.b16 %v2599, %v2595
    %v3808 = vpack.c.b16 %v2600, %v2596
    %v3809 = vpack.c.b16 %v2605, %v2601
    %v3810 = vpack.c.b16 %v2606, %v2602
    %v3811 = vpack.c.b16 %v2607, %v2603
    %v3812 = vpack.c.b16 %v2608, %v2604
    %v3813 = vpack.c.b16 %v2613, %v2609
    %v3814 = vpack.c.b16 %v2614, %v2610
    %v3815 = vpack.c.b16 %v2615, %v2611
    %v3816 = vpack.c.b16 %v2616, %v2612
    %v3817 = vpack.c.b16 %v2621, %v2617
    %v3818 = vpack.c.b16 %v2622, %v2618
    %v3819 = vpack.c.b16 %v2623, %v2619
    %v3820 = vpack.c.b16 %v2624, %v2620
    %v3821 = vpack.c.b16 %v2629, %v2625
    %v3822 = vpack.c.b16 %v2630, %v2626
    %v3823 = vpack.c.b16 %v2631, %v2627
    %v3824 = vpack.c.b16 %v2632, %v2628
    %v3825 = vpack.c.b16 %v2637, %v2633
    %v3826 = vpack.c.b16 %v2638, %v2634
    %v3827 = vpack.c.b16 %v2639, %v2635
    %v3828 = vpack.c.b16 %v2640, %v2636
    %v3829 = vpack.c.b16 %v2645, %v2641
    %v3830 = vpack.c.b16 %v2646, %v2642
    %v3831 = vpack.c.b16 %v2647, %v2643
    %v3832 = vpack.c.b16 %v2648, %v2644
    %v3833 = vpack.c.b16 %v2653, %v2649
    %v3834 = vpack.c.b16 %v2654, %v2650
    %v3835 = vpack.c.b16 %v2655, %v2651
    %v3836 = vpack.c.b16 %v2656, %v2652
    %v3837 = vpack.c.b16 %v2661, %v2657
    %v3838 = vpack.c.b16 %v2662, %v2658
    %v3839 = vpack.c.b16 %v2663, %v2659
    %v3840 = vpack.c.b16 %v2664, %v2660
    %v3841 = vpack.c.b16 %v2669, %v2665
    %v3842 = vpack.c.b16 %v2670, %v2666
    %v3843 = vpack.c.b16 %v2671, %v2667
    %v3844 = vpack.c.b16 %v2672, %v2668
    %v3845 = vpack.c.b16 %v2677, %v2673
    %v3846 = vpack.c.b16 %v2678, %v2674
    %v3847 = vpack.c.b16 %v2679, %v2675
    %v3848 = vpack.c.b16 %v2680, %v2676
    %v3849 = vpack.c.b16 %v2685, %v2681
    %v3850 = vpack.c.b16 %v2686, %v2682
    %v3851 = vpack.c.b16 %v2687, %v2683
    %v3852 = vpack.c.b16 %v2688, %v2684
    %v3853 = vpack.c.b16 %v2693, %v2689
    %v3854 = vpack.c.b16 %v2694, %v2690
    %v3855 = vpack.c.b16 %v2695, %v2691
    %v3856 = vpack.c.b16 %v2696, %v2692
    %v3857 = vpack.c.b16 %v2701, %v2697
    %v3858 = vpack.c.b16 %v2702, %v2698
    %v3859 = vpack.c.b16 %v2703, %v2699
    %v3860 = vpack.c.b16 %v2704, %v2700
    %v3861 = vpack.c.b16 %v2709, %v2705
    %v3862 = vpack.c.b16 %v2710, %v2706
    %v3863 = vpack.c.b16 %v2711, %v2707
    %v3864 = vpack.c.b16 %v2712, %v2708
    %v3865 = vpack.c.b16 %v2717, %v2713
    %v3866 = vpack.c.b16 %v2718, %v2714
    %v3867 = vpack.c.b16 %v2719, %v2715
    %v3868 = vpack.c.b16 %v2720, %v2716
    %v3869 = vpack.c.b16 %v2725, %v2721
    %v3870 = vpack.c.b16 %v2726, %v2722
    %v3871 = vpack.c.b16 %v2727, %v2723
    %v3872 = vpack.c.b16 %v2728, %v2724
    %v3873 = vpack.c.b16 %v2733, %v2729
    %v3874 = vpack.c.b16 %v2734, %v2730
    %v3875 = vpack.c.b16 %v2735, %v2731
    %v3876 = vpack.c.b16 %v2736, %v2732
    %v3877 = vpack.c.b16 %v2741, %v2737
    %v3878 = vpack.c.b16 %v2742, %v2738
    %v3879 = vpack.c.b16 %v2743, %v2739
    %v3880 = vpack.c.b16 %v2744, %v2740
    %v3881 = vpack.c.b16 %v2749, %v2745
    %v3882 = vpack.c.b16 %v2750, %v2746
    %v3883 = vpack.c.b16 %v2751, %v2747
    %v3884 = vpack.c.b16 %v2752, %v2748
    %v3885 = vpack.c.b16 %v2757, %v2753
    %v3886 = vpack.c.b16 %v2758, %v2754
    %v3887 = vpack.c.b16 %v2759, %v2755
    %v3888 = vpack.c.b16 %v2760, %v2756
    %v3889 = vpack.c.b16 %v2765, %v2761
    %v3890 = vpack.c.b16 %v2766, %v2762
    %v3891 = vpack.c.b16 %v2767, %v2763
    %v3892 = vpack.c.b16 %v2768, %v2764
    %v3893 = vpack.c.b16 %v2773, %v2769
    %v3894 = vpack.c.b16 %v2774, %v2770
    %v3895 = vpack.c.b16 %v2775, %v2771
    %v3896 = vpack.c.b16 %v2776, %v2772
    %v3897 = vpack.c.b16 %v2781, %v2777
    %v3898 = vpack.c.b16 %v2782, %v2778
    %v3899 = vpack.c.b16 %v2783, %v2779
    %v3900 = vpack.c.b16 %v2784, %v2780
    %v3901 = vpack.c.b16 %v2789, %v2785
    %v3902 = vpack.c.b16 %v2790, %v2786
    %v3903 = vpack.c.b16 %v2791, %v2787
    %v3904 = vpack.c.b16 %v2792, %v2788
    %v3905 = vpack.c.b16 %v2797, %v2793
    %v3906 = vpack.c.b16 %v2798, %v2794
    %v3907 = vpack.c.b16 %v2799, %v2795
    %v3908 = vpack.c.b16 %v2800, %v2796
    %v3909 = vpack.c.b16 %v2805, %v2801
    %v3910 = vpack.c.b16 %v2806, %v2802
    %v3911 = vpack.c.b16 %v2807, %v2803
    %v3912 = vpack.c.b16 %v2808, %v2804
    %v3913 = vpack.c.b16 %v2813, %v2809
    %v3914 = vpack.c.b16 %v2814, %v2810
    %v3915 = vpack.c.b16 %v2815, %v2811
    %v3916 = vpack.c.b16 %v2816, %v2812
    %v3917 = vpack.c.b16 %v2821, %v2817
    %v3918 = vpack.c.b16 %v2822, %v2818
    %v3919 = vpack.c.b16 %v2823, %v2819
    %v3920 = vpack.c.b16 %v2824, %v2820
    %v3921 = vpack.c.b16 %v2829, %v2825
    %v3922 = vpack.c.b16 %v2830, %v2826
    %v3923 = vpack.c.b16 %v2831, %v2827
    %v3924 = vpack.c.b16 %v2832, %v2828
    %v3925 = vpack.c.b16 %v2837, %v2833
    %v3926 = vpack.c.b16 %v2838, %v2834
    %v3927 = vpack.c.b16 %v2839, %v2835
    %v3928 = vpack.c.b16 %v2840, %v2836
    %v3929 = vpack.c.b16 %v2845, %v2841
    %v3930 = vpack.c.b16 %v2846, %v2842
    %v3931 = vpack.c.b16 %v2847, %v2843
    %v3932 = vpack.c.b16 %v2848, %v2844
    %v3933 = vpack.c.b16 %v2853, %v2849
    %v3934 = vpack.c.b16 %v2854, %v2850
    %v3935 = vpack.c.b16 %v2855, %v2851
    %v3936 = vpack.c.b16 %v2856, %v2852
    %v3937 = vpack.c.b16 %v2861, %v2857
    %v3938 = vpack.c.b16 %v2862, %v2858
    %v3939 = vpack.c.b16 %v2863, %v2859
    %v3940 = vpack.c.b16 %v2864, %v2860
    %v3941 = vpack.c.b16 %v2869, %v2865
    %v3942 = vpack.c.b16 %v2870, %v2866
    %v3943 = vpack.c.b16 %v2871, %v2867
    %v3944 = vpack.c.b16 %v2872, %v2868
    %v3945 = vpack.c.b16 %v2877, %v2873
    %v3946 = vpack.c.b16 %v2878, %v2874
    %v3947 = vpack.c.b16 %v2879, %v2875
    %v3948 = vpack.c.b16 %v2880, %v2876
    %v3949 = vpack.c.b16 %v2885, %v2881
    %v3950 = vpack.c.b16 %v2886, %v2882
    %v3951 = vpack.c.b16 %v2887, %v2883
    %v3952 = vpack.c.b16 %v2888, %v2884
    %v3953 = vpack.c.b16 %v2893, %v2889
    %v3954 = vpack.c.b16 %v2894, %v2890
    %v3955 = vpack.c.b16 %v2895, %v2891
    %v3956 = vpack.c.b16 %v2896, %v2892
    %v3957 = vpack.c.b16 %v2901, %v2897
    %v3958 = vpack.c.b16 %v2902, %v2898
    %v3959 = vpack.c.b16 %v2903, %v2899
    %v3960 = vpack.c.b16 %v2904, %v2900
    %v3961 = vpack.c.b16 %v2909, %v2905
    %v3962 = vpack.c.b16 %v2910, %v2906
    %v3963 = vpack.c.b16 %v2911, %v2907
    %v3964 = vpack.c.b16 %v2912, %v2908
    %v3965 = vpack.c.b16 %v2917, %v2913
    %v3966 = vpack.c.b16 %v2918, %v2914
    %v3967 = vpack.c.b16 %v2919, %v2915
    %v3968 = vpack.c.b16 %v2920, %v2916
    %v3969 = vpack.c.b16 %v2925, %v2921
    %v3970 = vpack.c.b16 %v2926, %v2922
    %v3971 = vpack.c.b16 %v2927, %v2923
    %v3972 = vpack.c.b16 %v2928, %v2924
    %v3973 = vpack.c.b16 %v2933, %v2929
    %v3974 = vpack.c.b16 %v2934, %v2930
    %v3975 = vpack.c.b16 %v2935, %v2931
    %v3976 = vpack.c.b16 %v2936, %v2932
    %v3977 = vpack.c.b16 %v2941, %v2937
    %v3978 = vpack.c.b16 %v2942, %v2938
    %v3979 = vpack.c.b16 %v2943, %v2939
    %v3980 = vpack.c.b16 %v2944, %v2940
    %v3981 = vpack.c.b16 %v2949, %v2945
    %v3982 = vpack.c.b16 %v2950, %v2946
    %v3983 = vpack.c.b16 %v2951, %v2947
    %v3984 = vpack.c.b16 %v2952, %v2948
    %v3985 = vpack.c.b16 %v2957, %v2953
    %v3986 = vpack.c.b16 %v2958, %v2954
    %v3987 = vpack.c.b16 %v2959, %v2955
    %v3988 = vpack.c.b16 %v2960, %v2956
    %v3989 = vpack.c.b16 %v2965, %v2961
    %v3990 = vpack.c.b16 %v2966, %v2962
    %v3991 = vpack.c.b16 %v2967, %v2963
    %v3992 = vpack.c.b16 %v2968, %v2964
    %v3993 = vpack.c.b16 %v2973, %v2969
    %v3994 = vpack.c.b16 %v2974, %v2970
    %v3995 = vpack.c.b16 %v2975, %v2971
    %v3996 = vpack.c.b16 %v2976, %v2972
    %v3997 = vpack.c.b16 %v2981, %v2977
    %v3998 = vpack.c.b16 %v2982, %v2978
    %v3999 = vpack.c.b16 %v2983, %v2979
    %v4000 = vpack.c.b16 %v2984, %v2980
    %v4001 = vpack.c.b16 %v2989, %v2985
    %v4002 = vpack.c.b16 %v2990, %v2986
    %v4003 = vpack.c.b16 %v2991, %v2987
    %v4004 = vpack.c.b16 %v2992, %v2988
    %v4005 = vpack.c.b16 %v2997, %v2993
    %v4006 = vpack.c.b16 %v2998, %v2994
    %v4007 = vpack.c.b16 %v2999, %v2995
    %v4008 = vpack.c.b16 %v3000, %v2996
    %v4009 = vpack.c.b16 %v3005, %v3001
    %v4010 = vpack.c.b16 %v3006, %v3002
    %v4011 = vpack.c.b16 %v3007, %v3003
    %v4012 = vpack.c.b16 %v3008, %v3004
    %v4013 = vpack.c.b16 %v3013, %v3009
    %v4014 = vpack.c.b16 %v3014, %v3010
    %v4015 = vpack.c.b16 %v3015, %v3011
    %v4016 = vpack.c.b16 %v3016, %v3012
    %v4017 = vpack.c.b16 %v3021, %v3017
    %v4018 = vpack.c.b16 %v3022, %v3018
    %v4019 = vpack.c.b16 %v3023, %v3019
    %v4020 = vpack.c.b16 %v3024, %v3020
    %v4021 = vpack.c.b16 %v3029, %v3025
    %v4022 = vpack.c.b16 %v3030, %v3026
    %v4023 = vpack.c.b16 %v3031, %v3027
    %v4024 = vpack.c.b16 %v3032, %v3028
    %v4025 = vpack.c.b16 %v3037, %v3033
    %v4026 = vpack.c.b16 %v3038, %v3034
    %v4027 = vpack.c.b16 %v3039, %v3035
    %v4028 = vpack.c.b16 %v3040, %v3036
    %v4029 = vpack.c.b16 %v3045, %v3041
    %v4030 = vpack.c.b16 %v3046, %v3042
    %v4031 = vpack.c.b16 %v3047, %v3043
    %v4032 = vpack.c.b16 %v3048, %v3044
    %v4033 = vpack.c.b16 %v3053, %v3049
    %v4034 = vpack.c.b16 %v3054, %v3050
    %v4035 = vpack.c.b16 %v3055, %v3051
    %v4036 = vpack.c.b16 %v3056, %v3052
    %v4037 = vpack.c.b16 %v3061, %v3057
    %v4038 = vpack.c.b16 %v3062, %v3058
    %v4039 = vpack.c.b16 %v3063, %v3059
    %v4040 = vpack.c.b16 %v3064, %v3060
    %v4041 = vpack.c.b16 %v3069, %v3065
    %v4042 = vpack.c.b16 %v3070, %v3066
    %v4043 = vpack.c.b16 %v3071, %v3067
    %v4044 = vpack.c.b16 %v3072, %v3068
    %v4045 = vpack.c.b16 %v3077, %v3073
    %v4046 = vpack.c.b16 %v3078, %v3074
    %v4047 = vpack.c.b16 %v3079, %v3075
    %v4048 = vpack.c.b16 %v3080, %v3076
    %v4049 = vpack.c.b16 %v3085, %v3081
    %v4050 = vpack.c.b16 %v3086, %v3082
    %v4051 = vpack.c.b16 %v3087, %v3083
    %v4052 = vpack.c.b16 %v3088, %v3084
    %v4053 = vpack.c.b16 %v3093, %v3089
    %v4054 = vpack.c.b16 %v3094, %v3090
    %v4055 = vpack.c.b16 %v3095, %v3091
    %v4056 = vpack.c.b16 %v3096, %v3092
    %v4057 = vpack.c.b16 %v3101, %v3097
    %v4058 = vpack.c.b16 %v3102, %v3098
    %v4059 = vpack.c.b16 %v3103, %v3099
    %v4060 = vpack.c.b16 %v3104, %v3100
    %v4061 = vpack.c.b16 %v3109, %v3105
    %v4062 = vpack.c.b16 %v3110, %v3106
    %v4063 = vpack.c.b16 %v3111, %v3107
    %v4064 = vpack.c.b16 %v3112, %v3108
    %v4065 = vpack.c.b16 %v3117, %v3113
    %v4066 = vpack.c.b16 %v3118, %v3114
    %v4067 = vpack.c.b16 %v3119, %v3115
    %v4068 = vpack.c.b16 %v3120, %v3116
    %v4069 = vpack.c.b16 %v3125, %v3121
    %v4070 = vpack.c.b16 %v3126, %v3122
    %v4071 = vpack.c.b16 %v3127, %v3123
    %v4072 = vpack.c.b16 %v3128, %v3124
    %v4073 = vpack.c.b16 %v3133, %v3129
    %v4074 = vpack.c.b16 %v3134, %v3130
    %v4075 = vpack.c.b16 %v3135, %v3131
    %v4076 = vpack.c.b16 %v3136, %v3132
    %v4077 = vpack.c.b16 %v3141, %v3137
    %v4078 = vpack.c.b16 %v3142, %v3138
    %v4079 = vpack.c.b16 %v3143, %v3139
    %v4080 = vpack.c.b16 %v3144, %v3140
    %v4081 = vpack.c.b16 %v3149, %v3145
    %v4082 = vpack.c.b16 %v3150, %v3146
    %v4083 = vpack.c.b16 %v3151, %v3147
    %v4084 = vpack.c.b16 %v3152, %v3148
    %v4085 = vpack.c.b16 %v3157, %v3153
    %v4086 = vpack.c.b16 %v3158, %v3154
    %v4087 = vpack.c.b16 %v3159, %v3155
    %v4088 = vpack.c.b16 %v3160, %v3156
    %v4089 = vpack.c.b16 %v3165, %v3161
    %v4090 = vpack.c.b16 %v3166, %v3162
    %v4091 = vpack.c.b16 %v3167, %v3163
    %v4092 = vpack.c.b16 %v3168, %v3164
    %v4093 = vpack.c.b16 %v3173, %v3169
    %v4094 = vpack.c.b16 %v3174, %v3170
    %v4095 = vpack.c.b16 %v3175, %v3171
    %v4096 = vpack.c.b16 %v3176, %v3172
    %v4097 = vpack.c.b16 %v3181, %v3177
    %v4098 = vpack.c.b16 %v3182, %v3178
    %v4099 = vpack.c.b16 %v3183, %v3179
    %v4100 = vpack.c.b16 %v3184, %v3180
    %v4101 = vpack.c.b16 %v3189, %v3185
    %v4102 = vpack.c.b16 %v3190, %v3186
    %v4103 = vpack.c.b16 %v3191, %v3187
    %v4104 = vpack.c.b16 %v3192, %v3188
    %v4105 = vpack.c.b16 %v3197, %v3193
    %v4106 = vpack.c.b16 %v3198, %v3194
    %v4107 = vpack.c.b16 %v3199, %v3195
    %v4108 = vpack.c.b16 %v3200, %v3196
    %v4109 = vpack.c.b16 %v3205, %v3201
    %v4110 = vpack.c.b16 %v3206, %v3202
    %v4111 = vpack.c.b16 %v3207, %v3203
    %v4112 = vpack.c.b16 %v3208, %v3204
    %v4113 = vpack.c.b16 %v3213, %v3209
    %v4114 = vpack.c.b16 %v3214, %v3210
    %v4115 = vpack.c.b16 %v3215, %v3211
    %v4116 = vpack.c.b16 %v3216, %v3212
    %v4117 = vpack.c.b16 %v3221, %v3217
    %v4118 = vpack.c.b16 %v3222, %v3218
    %v4119 = vpack.c.b16 %v3223, %v3219
    %v4120 = vpack.c.b16 %v3224, %v3220
    %v4121 = vpack.c.b16 %v3229, %v3225
    %v4122 = vpack.c.b16 %v3230, %v3226
    %v4123 = vpack.c.b16 %v3231, %v3227
    %v4124 = vpack.c.b16 %v3232, %v3228
    %v4125 = vpack.c.b16 %v3237, %v3233
    %v4126 = vpack.c.b16 %v3238, %v3234
    %v4127 = vpack.c.b16 %v3239, %v3235
    %v4128 = vpack.c.b16 %v3240, %v3236
    %v4129 = vpack.c.b16 %v3245, %v3241
    %v4130 = vpack.c.b16 %v3246, %v3242
    %v4131 = vpack.c.b16 %v3247, %v3243
    %v4132 = vpack.c.b16 %v3248, %v3244
    %v4133 = vpack.c.b16 %v3253, %v3249
    %v4134 = vpack.c.b16 %v3254, %v3250
    %v4135 = vpack.c.b16 %v3255, %v3251
    %v4136 = vpack.c.b16 %v3256, %v3252
    %v4137 = vpack.c.b16 %v3261, %v3257
    %v4138 = vpack.c.b16 %v3262, %v3258
    %v4139 = vpack.c.b16 %v3263, %v3259
    %v4140 = vpack.c.b16 %v3264, %v3260
    %v4141 = vpack.c.b16 %v3269, %v3265
    %v4142 = vpack.c.b16 %v3270, %v3266
    %v4143 = vpack.c.b16 %v3271, %v3267
    %v4144 = vpack.c.b16 %v3272, %v3268
    %v4145 = vpack.c.b16 %v3277, %v3273
    %v4146 = vpack.c.b16 %v3278, %v3274
    %v4147 = vpack.c.b16 %v3279, %v3275
    %v4148 = vpack.c.b16 %v3280, %v3276
    %v4149 = vpack.c.b16 %v3285, %v3281
    %v4150 = vpack.c.b16 %v3286, %v3282
    %v4151 = vpack.c.b16 %v3287, %v3283
    %v4152 = vpack.c.b16 %v3288, %v3284
    %v4153 = vpack.c.b16 %v3293, %v3289
    %v4154 = vpack.c.b16 %v3294, %v3290
    %v4155 = vpack.c.b16 %v3295, %v3291
    %v4156 = vpack.c.b16 %v3296, %v3292
    %v4157 = vpack.c.b16 %v3301, %v3297
    %v4158 = vpack.c.b16 %v3302, %v3298
    %v4159 = vpack.c.b16 %v3303, %v3299
    %v4160 = vpack.c.b16 %v3304, %v3300
    %v4161 = vpack.c.b16 %v3309, %v3305
    %v4162 = vpack.c.b16 %v3310, %v3306
    %v4163 = vpack.c.b16 %v3311, %v3307
    %v4164 = vpack.c.b16 %v3312, %v3308
    %v4165 = vpack.c.b16 %v3317, %v3313
    %v4166 = vpack.c.b16 %v3318, %v3314
    %v4167 = vpack.c.b16 %v3319, %v3315
    %v4168 = vpack.c.b16 %v3320, %v3316
    %v4169 = vpack.c.b16 %v3325, %v3321
    %v4170 = vpack.c.b16 %v3326, %v3322
    %v4171 = vpack.c.b16 %v3327, %v3323
    %v4172 = vpack.c.b16 %v3328, %v3324
    %v4173 = vpack.c.b16 %v3333, %v3329
    %v4174 = vpack.c.b16 %v3334, %v3330
    %v4175 = vpack.c.b16 %v3335, %v3331
    %v4176 = vpack.c.b16 %v3336, %v3332
    %v4177 = vpack.c.b16 %v3341, %v3337
    %v4178 = vpack.c.b16 %v3342, %v3338
    %v4179 = vpack.c.b16 %v3343, %v3339
    %v4180 = vpack.c.b16 %v3344, %v3340
    %v4181 = vpack.c.b16 %v3349, %v3345
    %v4182 = vpack.c.b16 %v3350, %v3346
    %v4183 = vpack.c.b16 %v3351, %v3347
    %v4184 = vpack.c.b16 %v3352, %v3348
    %v4185 = vpack.c.b16 %v3357, %v3353
    %v4186 = vpack.c.b16 %v3358, %v3354
    %v4187 = vpack.c.b16 %v3359, %v3355
    %v4188 = vpack.c.b16 %v3360, %v3356
    %v4189 = vpack.c.b16 %v3365, %v3361
    %v4190 = vpack.c.b16 %v3366, %v3362
    %v4191 = vpack.c.b16 %v3367, %v3363
    %v4192 = vpack.c.b16 %v3368, %v3364
    %v4193 = vpack.c.b16 %v3373, %v3369
    %v4194 = vpack.c.b16 %v3374, %v3370
    %v4195 = vpack.c.b16 %v3375, %v3371
    %v4196 = vpack.c.b16 %v3376, %v3372
    %v4197 = vpack.c.b16 %v3381, %v3377
    %v4198 = vpack.c.b16 %v3382, %v3378
    %v4199 = vpack.c.b16 %v3383, %v3379
    %v4200 = vpack.c.b16 %v3384, %v3380
    %v4201 = vpack.c.b16 %v3389, %v3385
    %v4202 = vpack.c.b16 %v3390, %v3386
    %v4203 = vpack.c.b16 %v3391, %v3387
    %v4204 = vpack.c.b16 %v3392, %v3388
    %v4205 = vpack.c.b16 %v3397, %v3393
    %v4206 = vpack.c.b16 %v3398, %v3394
    %v4207 = vpack.c.b16 %v3399, %v3395
    %v4208 = vpack.c.b16 %v3400, %v3396
    %v4209 = vpack.c.b16 %v3405, %v3401
    %v4210 = vpack.c.b16 %v3406, %v3402
    %v4211 = vpack.c.b16 %v3407, %v3403
    %v4212 = vpack.c.b16 %v3408, %v3404
    %v4213 = vpack.c.b16 %v3413, %v3409
    %v4214 = vpack.c.b16 %v3414, %v3410
    %v4215 = vpack.c.b16 %v3415, %v3411
    %v4216 = vpack.c.b16 %v3416, %v3412
    %5017 = vmatprep.subr.bf16.mxu0 %v3418
    %5018 = vmatpush1.bf16.msra.mxu0 %v3417
    %5019 = vmatprep.subr.bf16.mxu0 %v3422
    %5020 = vmatpush1.bf16.msra.mxu0 %v3421
    %5021 = vmatprep.subr.bf16.mxu0 %v3426
    %5022 = vmatpush1.bf16.msra.mxu0 %v3425
    %5023 = vmatprep.subr.bf16.mxu0 %v3430
    %5024 = vmatpush1.bf16.msra.mxu0 %v3429
    %5025 = vmatprep.subr.bf16.mxu0 %v3434
    %5026 = vmatpush1.bf16.msra.mxu0 %v3433
    %5027 = vmatprep.subr.bf16.mxu0 %v3438
    %5028 = vmatpush1.bf16.msra.mxu0 %v3437
    %5029 = vmatprep.subr.bf16.mxu0 %v3442
    %5030 = vmatpush1.bf16.msra.mxu0 %v3441
    %5031 = vmatprep.subr.bf16.mxu0 %v3446
    %5032 = vmatpush1.bf16.msra.mxu0 %v3445
    %5033 = vmatprep.subr.bf16.mxu0 %v3450
    %5034 = vmatpush1.bf16.msra.mxu0 %v3449
    %5035 = vmatprep.subr.bf16.mxu0 %v3454
    %5036 = vmatpush1.bf16.msra.mxu0 %v3453
    %5037 = vmatprep.subr.bf16.mxu0 %v3458
    %5038 = vmatpush1.bf16.msra.mxu0 %v3457
    %5039 = vmatprep.subr.bf16.mxu0 %v3462
    %5040 = vmatpush1.bf16.msra.mxu0 %v3461
    %5041 = vmatprep.subr.bf16.mxu0 %v3466
    %5042 = vmatpush1.bf16.msra.mxu0 %v3465
    %5043 = vmatprep.subr.bf16.mxu0 %v3470
    %5044 = vmatpush1.bf16.msra.mxu0 %v3469
    %5045 = vmatprep.subr.bf16.mxu0 %v3474
    %5046 = vmatpush1.bf16.msra.mxu0 %v3473
    %5047 = vmatprep.subr.bf16.mxu0 %v3478
    %5048 = vmatpush1.bf16.msra.mxu0 %v3477
    %5049 = vmatprep.mubr.bf16.mxu0 %v171
    %5050 = vmatmul.mubr.bf16.gmra.mrb[0].mxu0 %v170
    %v5051 = vpop.f32.mrb[0].mxu0
    %v5052 = vadd.f32 %v1000, %v5051
    %v5053 = vpop.f32.mrb[0].mxu0
    %v5054 = vadd.f32 %v1004, %v5053
    %v5055 = vpop.f32.mrb[0].mxu0
    %v5056 = vpop.f32.mrb[0].mxu0
    %5057 = vdwg.mxu0
    %5058 = vmatprep.subr.bf16.mxu0 %v3482
    %5059 = vmatpush1.bf16.msra.mxu0 %v3481
    %5060 = vmatprep.subr.bf16.mxu0 %v3486
    %5061 = vmatpush1.bf16.msra.mxu0 %v3485
    %5062 = vmatprep.subr.bf16.mxu0 %v3490
    %5063 = vmatpush1.bf16.msra.mxu0 %v3489
    %5064 = vmatprep.subr.bf16.mxu0 %v3494
    %5065 = vmatpush1.bf16.msra.mxu0 %v3493
    %5066 = vmatprep.subr.bf16.mxu0 %v3498
    %5067 = vmatpush1.bf16.msra.mxu0 %v3497
    %5068 = vmatprep.subr.bf16.mxu0 %v3502
    %5069 = vmatpush1.bf16.msra.mxu0 %v3501
    %5070 = vmatprep.subr.bf16.mxu0 %v3506
    %5071 = vmatpush1.bf16.msra.mxu0 %v3505
    %5072 = vmatprep.subr.bf16.mxu0 %v3510
    %5073 = vmatpush1.bf16.msra.mxu0 %v3509
    %5074 = vmatprep.subr.bf16.mxu0 %v3514
    %5075 = vmatpush1.bf16.msra.mxu0 %v3513
    %5076 = vmatprep.subr.bf16.mxu0 %v3518
    %5077 = vmatpush1.bf16.msra.mxu0 %v3517
    %5078 = vmatprep.subr.bf16.mxu0 %v3522
    %5079 = vmatpush1.bf16.msra.mxu0 %v3521
    %5080 = vmatprep.subr.bf16.mxu0 %v3526
    %5081 = vmatpush1.bf16.msra.mxu0 %v3525
    %5082 = vmatprep.subr.bf16.mxu0 %v3530
    %5083 = vmatpush1.bf16.msra.mxu0 %v3529
    %5084 = vmatprep.subr.bf16.mxu0 %v3534
    %5085 = vmatpush1.bf16.msra.mxu0 %v3533
    %5086 = vmatprep.subr.bf16.mxu0 %v3538
    %5087 = vmatpush1.bf16.msra.mxu0 %v3537
    %5088 = vmatprep.subr.bf16.mxu0 %v3542
    %5089 = vmatpush1.bf16.msra.mxu0 %v3541
    %5090 = vmatprep.mubr.bf16.mxu0 %v173
    %5091 = vmatmul.mubr.bf16.gmra.mrb[0].mxu0 %v172
    %v5092 = vpop.f32.mrb[0].mxu0
    %v5093 = vadd.f32 %v5052, %v5092
    %v5094 = vpop.f32.mrb[0].mxu0
    %v5095 = vadd.f32 %v5054, %v5094
    %v5096 = vpop.f32.mrb[0].mxu0
    %v5097 = vpop.f32.mrb[0].mxu0
    %5098 = vdwg.mxu0
    %5099 = vmatprep.subr.bf16.mxu0 %v3546
    %5100 = vmatpush1.bf16.msra.mxu0 %v3545
    %5101 = vmatprep.subr.bf16.mxu0 %v3550
    %5102 = vmatpush1.bf16.msra.mxu0 %v3549
    %5103 = vmatprep.subr.bf16.mxu0 %v3554
    %5104 = vmatpush1.bf16.msra.mxu0 %v3553
    %5105 = vmatprep.subr.bf16.mxu0 %v3558
    %5106 = vmatpush1.bf16.msra.mxu0 %v3557
    %5107 = vmatprep.subr.bf16.mxu0 %v3562
    %5108 = vmatpush1.bf16.msra.mxu0 %v3561
    %5109 = vmatprep.subr.bf16.mxu0 %v3566
    %5110 = vmatpush1.bf16.msra.mxu0 %v3565
    %5111 = vmatprep.subr.bf16.mxu0 %v3570
    %5112 = vmatpush1.bf16.msra.mxu0 %v3569
    %5113 = vmatprep.subr.bf16.mxu0 %v3574
    %5114 = vmatpush1.bf16.msra.mxu0 %v3573
    %5115 = vmatprep.subr.bf16.mxu0 %v3578
    %5116 = vmatpush1.bf16.msra.mxu0 %v3577
    %5117 = vmatprep.subr.bf16.mxu0 %v3582
    %5118 = vmatpush1.bf16.msra.mxu0 %v3581
    %5119 = vmatprep.subr.bf16.mxu0 %v3586
    %5120 = vmatpush1.bf16.msra.mxu0 %v3585
    %5121 = vmatprep.subr.bf16.mxu0 %v3590
    %5122 = vmatpush1.bf16.msra.mxu0 %v3589
    %5123 = vmatprep.subr.bf16.mxu0 %v3594
    %5124 = vmatpush1.bf16.msra.mxu0 %v3593
    %5125 = vmatprep.subr.bf16.mxu0 %v3598
    %5126 = vmatpush1.bf16.msra.mxu0 %v3597
    %5127 = vmatprep.subr.bf16.mxu0 %v3602
    %5128 = vmatpush1.bf16.msra.mxu0 %v3601
    %5129 = vmatprep.subr.bf16.mxu0 %v3606
    %5130 = vmatpush1.bf16.msra.mxu0 %v3605
    %5131 = vmatprep.mubr.bf16.mxu0 %v175
    %5132 = vmatmul.mubr.bf16.gmra.mrb[0].mxu0 %v174
    %v5133 = vpop.f32.mrb[0].mxu0
    %v5134 = vadd.f32 %v5093, %v5133
    %v5135 = vpop.f32.mrb[0].mxu0
    %v5136 = vadd.f32 %v5095, %v5135
    %v5137 = vpop.f32.mrb[0].mxu0
    %v5138 = vpop.f32.mrb[0].mxu0
    %5139 = vdwg.mxu0
    %5140 = vmatprep.subr.bf16.mxu0 %v3610
    %5141 = vmatpush1.bf16.msra.mxu0 %v3609
    %5142 = vmatprep.subr.bf16.mxu0 %v3614
    %5143 = vmatpush1.bf16.msra.mxu0 %v3613
    %5144 = vmatprep.subr.bf16.mxu0 %v3618
    %5145 = vmatpush1.bf16.msra.mxu0 %v3617
    %5146 = vmatprep.subr.bf16.mxu0 %v3622
    %5147 = vmatpush1.bf16.msra.mxu0 %v3621
    %5148 = vmatprep.subr.bf16.mxu0 %v3626
    %5149 = vmatpush1.bf16.msra.mxu0 %v3625
    %5150 = vmatprep.subr.bf16.mxu0 %v3630
    %5151 = vmatpush1.bf16.msra.mxu0 %v3629
    %5152 = vmatprep.subr.bf16.mxu0 %v3634
    %5153 = vmatpush1.bf16.msra.mxu0 %v3633
    %5154 = vmatprep.subr.bf16.mxu0 %v3638
    %5155 = vmatpush1.bf16.msra.mxu0 %v3637
    %5156 = vmatprep.subr.bf16.mxu0 %v3642
    %5157 = vmatpush1.bf16.msra.mxu0 %v3641
    %5158 = vmatprep.subr.bf16.mxu0 %v3646
    %5159 = vmatpush1.bf16.msra.mxu0 %v3645
    %5160 = vmatprep.subr.bf16.mxu0 %v3650
    %5161 = vmatpush1.bf16.msra.mxu0 %v3649
    %5162 = vmatprep.subr.bf16.mxu0 %v3654
    %5163 = vmatpush1.bf16.msra.mxu0 %v3653
    %5164 = vmatprep.subr.bf16.mxu0 %v3658
    %5165 = vmatpush1.bf16.msra.mxu0 %v3657
    %5166 = vmatprep.subr.bf16.mxu0 %v3662
    %5167 = vmatpush1.bf16.msra.mxu0 %v3661
    %5168 = vmatprep.subr.bf16.mxu0 %v3666
    %5169 = vmatpush1.bf16.msra.mxu0 %v3665
    %5170 = vmatprep.subr.bf16.mxu0 %v3670
    %5171 = vmatpush1.bf16.msra.mxu0 %v3669
    %5172 = vmatprep.mubr.bf16.mxu0 %v177
    %5173 = vmatmul.mubr.bf16.gmra.mrb[0].mxu0 %v176
    %v5174 = vpop.f32.mrb[0].mxu0
    %v5175 = vadd.f32 %v5134, %v5174
    %v5176 = vpop.f32.mrb[0].mxu0
    %v5177 = vadd.f32 %v5136, %v5176
    %v5178 = vpop.f32.mrb[0].mxu0
    %v5179 = vpop.f32.mrb[0].mxu0
    %5180 = vdwg.mxu0
    %5181 = vmatprep.subr.bf16.mxu0 %v3674
    %5182 = vmatpush1.bf16.msra.mxu0 %v3673
    %5183 = vmatprep.subr.bf16.mxu0 %v3678
    %5184 = vmatpush1.bf16.msra.mxu0 %v3677
    %5185 = vmatprep.subr.bf16.mxu0 %v3682
    %5186 = vmatpush1.bf16.msra.mxu0 %v3681
    %5187 = vmatprep.subr.bf16.mxu0 %v3686
    %5188 = vmatpush1.bf16.msra.mxu0 %v3685
    %5189 = vmatprep.subr.bf16.mxu0 %v3690
    %5190 = vmatpush1.bf16.msra.mxu0 %v3689
    %5191 = vmatprep.subr.bf16.mxu0 %v3694
    %5192 = vmatpush1.bf16.msra.mxu0 %v3693
    %5193 = vmatprep.subr.bf16.mxu0 %v3698
    %5194 = vmatpush1.bf16.msra.mxu0 %v3697
    %5195 = vmatprep.subr.bf16.mxu0 %v3702
    %5196 = vmatpush1.bf16.msra.mxu0 %v3701
    %5197 = vmatprep.subr.bf16.mxu0 %v3706
    %5198 = vmatpush1.bf16.msra.mxu0 %v3705
    %5199 = vmatprep.subr.bf16.mxu0 %v3710
    %5200 = vmatpush1.bf16.msra.mxu0 %v3709
    %5201 = vmatprep.subr.bf16.mxu0 %v3714
    %5202 = vmatpush1.bf16.msra.mxu0 %v3713
    %5203 = vmatprep.subr.bf16.mxu0 %v3718
    %5204 = vmatpush1.bf16.msra.mxu0 %v3717
    %5205 = vmatprep.subr.bf16.mxu0 %v3722
    %5206 = vmatpush1.bf16.msra.mxu0 %v3721
    %5207 = vmatprep.subr.bf16.mxu0 %v3726
    %5208 = vmatpush1.bf16.msra.mxu0 %v3725
    %5209 = vmatprep.subr.bf16.mxu0 %v3730
    %5210 = vmatpush1.bf16.msra.mxu0 %v3729
    %5211 = vmatprep.subr.bf16.mxu0 %v3734
    %5212 = vmatpush1.bf16.msra.mxu0 %v3733
    %5213 = vmatprep.mubr.bf16.mxu0 %v179
    %5214 = vmatmul.mubr.bf16.gmra.mrb[0].mxu0 %v178
    %v5215 = vpop.f32.mrb[0].mxu0
    %v5216 = vadd.f32 %v5175, %v5215
    %v5217 = vpop.f32.mrb[0].mxu0
    %v5218 = vadd.f32 %v5177, %v5217
    %v5219 = vpop.f32.mrb[0].mxu0
    %v5220 = vpop.f32.mrb[0].mxu0
    %5221 = vdwg.mxu0
    %5222 = vmatprep.subr.bf16.mxu0 %v3738
    %5223 = vmatpush1.bf16.msra.mxu0 %v3737
    %5224 = vmatprep.subr.bf16.mxu0 %v3742
    %5225 = vmatpush1.bf16.msra.mxu0 %v3741
    %5226 = vmatprep.subr.bf16.mxu0 %v3746
    %5227 = vmatpush1.bf16.msra.mxu0 %v3745
    %5228 = vmatprep.subr.bf16.mxu0 %v3750
    %5229 = vmatpush1.bf16.msra.mxu0 %v3749
    %5230 = vmatprep.subr.bf16.mxu0 %v3754
    %5231 = vmatpush1.bf16.msra.mxu0 %v3753
    %5232 = vmatprep.subr.bf16.mxu0 %v3758
    %5233 = vmatpush1.bf16.msra.mxu0 %v3757
    %5234 = vmatprep.subr.bf16.mxu0 %v3762
    %5235 = vmatpush1.bf16.msra.mxu0 %v3761
    %5236 = vmatprep.subr.bf16.mxu0 %v3766
    %5237 = vmatpush1.bf16.msra.mxu0 %v3765
    %5238 = vmatprep.subr.bf16.mxu0 %v3770
    %5239 = vmatpush1.bf16.msra.mxu0 %v3769
    %5240 = vmatprep.subr.bf16.mxu0 %v3774
    %5241 = vmatpush1.bf16.msra.mxu0 %v3773
    %5242 = vmatprep.subr.bf16.mxu0 %v3778
    %5243 = vmatpush1.bf16.msra.mxu0 %v3777
    %5244 = vmatprep.subr.bf16.mxu0 %v3782
    %5245 = vmatpush1.bf16.msra.mxu0 %v3781
    %5246 = vmatprep.subr.bf16.mxu0 %v3786
    %5247 = vmatpush1.bf16.msra.mxu0 %v3785
    %5248 = vmatprep.subr.bf16.mxu0 %v3790
    %5249 = vmatpush1.bf16.msra.mxu0 %v3789
    %5250 = vmatprep.subr.bf16.mxu0 %v3794
    %5251 = vmatpush1.bf16.msra.mxu0 %v3793
    %5252 = vmatprep.subr.bf16.mxu0 %v3798
    %5253 = vmatpush1.bf16.msra.mxu0 %v3797
    %5254 = vmatprep.mubr.bf16.mxu0 %v181
    %5255 = vmatmul.mubr.bf16.gmra.mrb[0].mxu0 %v180
    %v5256 = vpop.f32.mrb[0].mxu0
    %v5257 = vadd.f32 %v5216, %v5256
    %v5258 = vpop.f32.mrb[0].mxu0
    %v5259 = vadd.f32 %v5218, %v5258
    %v5260 = vpop.f32.mrb[0].mxu0
    %v5261 = vpop.f32.mrb[0].mxu0
    %5262 = vdwg.mxu0
    %5263 = vmatprep.subr.bf16.mxu0 %v3802
    %5264 = vmatpush1.bf16.msra.mxu0 %v3801
    %5265 = vmatprep.subr.bf16.mxu0 %v3806
    %5266 = vmatpush1.bf16.msra.mxu0 %v3805
    %5267 = vmatprep.subr.bf16.mxu0 %v3810
    %5268 = vmatpush1.bf16.msra.mxu0 %v3809
    %5269 = vmatprep.subr.bf16.mxu0 %v3814
    %5270 = vmatpush1.bf16.msra.mxu0 %v3813
    %5271 = vmatprep.subr.bf16.mxu0 %v3818
    %5272 = vmatpush1.bf16.msra.mxu0 %v3817
    %5273 = vmatprep.subr.bf16.mxu0 %v3822
    %5274 = vmatpush1.bf16.msra.mxu0 %v3821
    %5275 = vmatprep.subr.bf16.mxu0 %v3826
    %5276 = vmatpush1.bf16.msra.mxu0 %v3825
    %5277 = vmatprep.subr.bf16.mxu0 %v3830
    %5278 = vmatpush1.bf16.msra.mxu0 %v3829
    %5279 = vmatprep.subr.bf16.mxu0 %v3834
    %5280 = vmatpush1.bf16.msra.mxu0 %v3833
    %5281 = vmatprep.subr.bf16.mxu0 %v3838
    %5282 = vmatpush1.bf16.msra.mxu0 %v3837
    %5283 = vmatprep.subr.bf16.mxu0 %v3842
    %5284 = vmatpush1.bf16.msra.mxu0 %v3841
    %5285 = vmatprep.subr.bf16.mxu0 %v3846
    %5286 = vmatpush1.bf16.msra.mxu0 %v3845
    %5287 = vmatprep.subr.bf16.mxu0 %v3850
    %5288 = vmatpush1.bf16.msra.mxu0 %v3849
    %5289 = vmatprep.subr.bf16.mxu0 %v3854
    %5290 = vmatpush1.bf16.msra.mxu0 %v3853
    %5291 = vmatprep.subr.bf16.mxu0 %v3858
    %5292 = vmatpush1.bf16.msra.mxu0 %v3857
    %5293 = vmatprep.subr.bf16.mxu0 %v3862
    %5294 = vmatpush1.bf16.msra.mxu0 %v3861
    %5295 = vmatprep.mubr.bf16.mxu0 %v183
    %5296 = vmatmul.mubr.bf16.gmra.mrb[0].mxu0 %v182
    %v5297 = vpop.f32.mrb[0].mxu0
    %v5298 = vadd.f32 %v5257, %v5297
    %v5299 = vpop.f32.mrb[0].mxu0
    %v5300 = vadd.f32 %v5259, %v5299
    %v5301 = vpop.f32.mrb[0].mxu0
    %v5302 = vpop.f32.mrb[0].mxu0
    %5303 = vdwg.mxu0
    %5304 = vmatprep.subr.bf16.mxu0 %v3866
    %5305 = vmatpush1.bf16.msra.mxu0 %v3865
    %5306 = vmatprep.subr.bf16.mxu0 %v3870
    %5307 = vmatpush1.bf16.msra.mxu0 %v3869
    %5308 = vmatprep.subr.bf16.mxu0 %v3874
    %5309 = vmatpush1.bf16.msra.mxu0 %v3873
    %5310 = vmatprep.subr.bf16.mxu0 %v3878
    %5311 = vmatpush1.bf16.msra.mxu0 %v3877
    %5312 = vmatprep.subr.bf16.mxu0 %v3882
    %5313 = vmatpush1.bf16.msra.mxu0 %v3881
    %5314 = vmatprep.subr.bf16.mxu0 %v3886
    %5315 = vmatpush1.bf16.msra.mxu0 %v3885
    %5316 = vmatprep.subr.bf16.mxu0 %v3890
    %5317 = vmatpush1.bf16.msra.mxu0 %v3889
    %5318 = vmatprep.subr.bf16.mxu0 %v3894
    %5319 = vmatpush1.bf16.msra.mxu0 %v3893
    %5320 = vmatprep.subr.bf16.mxu0 %v3898
    %5321 = vmatpush1.bf16.msra.mxu0 %v3897
    %5322 = vmatprep.subr.bf16.mxu0 %v3902
    %5323 = vmatpush1.bf16.msra.mxu0 %v3901
    %5324 = vmatprep.subr.bf16.mxu0 %v3906
    %5325 = vmatpush1.bf16.msra.mxu0 %v3905
    %5326 = vmatprep.subr.bf16.mxu0 %v3910
    %5327 = vmatpush1.bf16.msra.mxu0 %v3909
    %5328 = vmatprep.subr.bf16.mxu0 %v3914
    %5329 = vmatpush1.bf16.msra.mxu0 %v3913
    %5330 = vmatprep.subr.bf16.mxu0 %v3918
    %5331 = vmatpush1.bf16.msra.mxu0 %v3917
    %5332 = vmatprep.subr.bf16.mxu0 %v3922
    %5333 = vmatpush1.bf16.msra.mxu0 %v3921
    %5334 = vmatprep.subr.bf16.mxu0 %v3926
    %5335 = vmatpush1.bf16.msra.mxu0 %v3925
    %5336 = vmatprep.mubr.bf16.mxu0 %v185
    %5337 = vmatmul.mubr.bf16.gmra.mrb[0].mxu0 %v184
    %v5338 = vpop.f32.mrb[0].mxu0
    %v5339 = vadd.f32 %v5298, %v5338
    %v5340 = vpop.f32.mrb[0].mxu0
    %v5341 = vadd.f32 %v5300, %v5340
    %v5342 = vpop.f32.mrb[0].mxu0
    %v5343 = vpop.f32.mrb[0].mxu0
    %5344 = vdwg.mxu0
    %5345 = vmatprep.subr.bf16.mxu0 %v3930
    %5346 = vmatpush1.bf16.msra.mxu0 %v3929
    %5347 = vmatprep.subr.bf16.mxu0 %v3934
    %5348 = vmatpush1.bf16.msra.mxu0 %v3933
    %5349 = vmatprep.subr.bf16.mxu0 %v3938
    %5350 = vmatpush1.bf16.msra.mxu0 %v3937
    %5351 = vmatprep.subr.bf16.mxu0 %v3942
    %5352 = vmatpush1.bf16.msra.mxu0 %v3941
    %5353 = vmatprep.subr.bf16.mxu0 %v3946
    %5354 = vmatpush1.bf16.msra.mxu0 %v3945
    %5355 = vmatprep.subr.bf16.mxu0 %v3950
    %5356 = vmatpush1.bf16.msra.mxu0 %v3949
    %5357 = vmatprep.subr.bf16.mxu0 %v3954
    %5358 = vmatpush1.bf16.msra.mxu0 %v3953
    %5359 = vmatprep.subr.bf16.mxu0 %v3958
    %5360 = vmatpush1.bf16.msra.mxu0 %v3957
    %5361 = vmatprep.subr.bf16.mxu0 %v3962
    %5362 = vmatpush1.bf16.msra.mxu0 %v3961
    %5363 = vmatprep.subr.bf16.mxu0 %v3966
    %5364 = vmatpush1.bf16.msra.mxu0 %v3965
    %5365 = vmatprep.subr.bf16.mxu0 %v3970
    %5366 = vmatpush1.bf16.msra.mxu0 %v3969
    %5367 = vmatprep.subr.bf16.mxu0 %v3974
    %5368 = vmatpush1.bf16.msra.mxu0 %v3973
    %5369 = vmatprep.subr.bf16.mxu0 %v3978
    %5370 = vmatpush1.bf16.msra.mxu0 %v3977
    %5371 = vmatprep.subr.bf16.mxu0 %v3982
    %5372 = vmatpush1.bf16.msra.mxu0 %v3981
    %5373 = vmatprep.subr.bf16.mxu0 %v3986
    %5374 = vmatpush1.bf16.msra.mxu0 %v3985
    %5375 = vmatprep.subr.bf16.mxu0 %v3990
    %5376 = vmatpush1.bf16.msra.mxu0 %v3989
    %5377 = vmatprep.mubr.bf16.mxu0 %v187
    %5378 = vmatmul.mubr.bf16.gmra.mrb[0].mxu0 %v186
    %v5379 = vpop.f32.mrb[0].mxu0
    %v5380 = vadd.f32 %v5339, %v5379
    %v5381 = vpop.f32.mrb[0].mxu0
    %v5382 = vadd.f32 %v5341, %v5381
    %v5383 = vpop.f32.mrb[0].mxu0
    %v5384 = vpop.f32.mrb[0].mxu0
    %5385 = vdwg.mxu0
    %5386 = vmatprep.subr.bf16.mxu0 %v3994
    %5387 = vmatpush1.bf16.msra.mxu0 %v3993
    %5388 = vmatprep.subr.bf16.mxu0 %v3998
    %5389 = vmatpush1.bf16.msra.mxu0 %v3997
    %5390 = vmatprep.subr.bf16.mxu0 %v4002
    %5391 = vmatpush1.bf16.msra.mxu0 %v4001
    %5392 = vmatprep.subr.bf16.mxu0 %v4006
    %5393 = vmatpush1.bf16.msra.mxu0 %v4005
    %5394 = vmatprep.subr.bf16.mxu0 %v4010
    %5395 = vmatpush1.bf16.msra.mxu0 %v4009
    %5396 = vmatprep.subr.bf16.mxu0 %v4014
    %5397 = vmatpush1.bf16.msra.mxu0 %v4013
    %5398 = vmatprep.subr.bf16.mxu0 %v4018
    %5399 = vmatpush1.bf16.msra.mxu0 %v4017
    %5400 = vmatprep.subr.bf16.mxu0 %v4022
    %5401 = vmatpush1.bf16.msra.mxu0 %v4021
    %5402 = vmatprep.subr.bf16.mxu0 %v4026
    %5403 = vmatpush1.bf16.msra.mxu0 %v4025
    %5404 = vmatprep.subr.bf16.mxu0 %v4030
    %5405 = vmatpush1.bf16.msra.mxu0 %v4029
    %5406 = vmatprep.subr.bf16.mxu0 %v4034
    %5407 = vmatpush1.bf16.msra.mxu0 %v4033
    %5408 = vmatprep.subr.bf16.mxu0 %v4038
    %5409 = vmatpush1.bf16.msra.mxu0 %v4037
    %5410 = vmatprep.subr.bf16.mxu0 %v4042
    %5411 = vmatpush1.bf16.msra.mxu0 %v4041
    %5412 = vmatprep.subr.bf16.mxu0 %v4046
    %5413 = vmatpush1.bf16.msra.mxu0 %v4045
    %5414 = vmatprep.subr.bf16.mxu0 %v4050
    %5415 = vmatpush1.bf16.msra.mxu0 %v4049
    %5416 = vmatprep.subr.bf16.mxu0 %v4054
    %5417 = vmatpush1.bf16.msra.mxu0 %v4053
    %5418 = vmatprep.mubr.bf16.mxu0 %v189
    %5419 = vmatmul.mubr.bf16.gmra.mrb[0].mxu0 %v188
    %v5420 = vpop.f32.mrb[0].mxu0
    %v5421 = vadd.f32 %v5380, %v5420
    %v5422 = vpop.f32.mrb[0].mxu0
    %v5423 = vadd.f32 %v5382, %v5422
    %v5424 = vpop.f32.mrb[0].mxu0
    %v5425 = vpop.f32.mrb[0].mxu0
    %5426 = vdwg.mxu0
    %5427 = vmatprep.subr.bf16.mxu0 %v4058
    %5428 = vmatpush1.bf16.msra.mxu0 %v4057
    %5429 = vmatprep.subr.bf16.mxu0 %v4062
    %5430 = vmatpush1.bf16.msra.mxu0 %v4061
    %5431 = vmatprep.subr.bf16.mxu0 %v4066
    %5432 = vmatpush1.bf16.msra.mxu0 %v4065
    %5433 = vmatprep.subr.bf16.mxu0 %v4070
    %5434 = vmatpush1.bf16.msra.mxu0 %v4069
    %5435 = vmatprep.subr.bf16.mxu0 %v4074
    %5436 = vmatpush1.bf16.msra.mxu0 %v4073
    %5437 = vmatprep.subr.bf16.mxu0 %v4078
    %5438 = vmatpush1.bf16.msra.mxu0 %v4077
    %5439 = vmatprep.subr.bf16.mxu0 %v4082
    %5440 = vmatpush1.bf16.msra.mxu0 %v4081
    %5441 = vmatprep.subr.bf16.mxu0 %v4086
    %5442 = vmatpush1.bf16.msra.mxu0 %v4085
    %5443 = vmatprep.subr.bf16.mxu0 %v4090
    %5444 = vmatpush1.bf16.msra.mxu0 %v4089
    %5445 = vmatprep.subr.bf16.mxu0 %v4094
    %5446 = vmatpush1.bf16.msra.mxu0 %v4093
    %5447 = vmatprep.subr.bf16.mxu0 %v4098
    %5448 = vmatpush1.bf16.msra.mxu0 %v4097
    %5449 = vmatprep.subr.bf16.mxu0 %v4102
    %5450 = vmatpush1.bf16.msra.mxu0 %v4101
    %5451 = vmatprep.subr.bf16.mxu0 %v4106
    %5452 = vmatpush1.bf16.msra.mxu0 %v4105
    %5453 = vmatprep.subr.bf16.mxu0 %v4110
    %5454 = vmatpush1.bf16.msra.mxu0 %v4109
    %5455 = vmatprep.subr.bf16.mxu0 %v4114
    %5456 = vmatpush1.bf16.msra.mxu0 %v4113
    %5457 = vmatprep.subr.bf16.mxu0 %v4118
    %5458 = vmatpush1.bf16.msra.mxu0 %v4117
    %5459 = vmatprep.mubr.bf16.mxu0 %v191
    %5460 = vmatmul.mubr.bf16.gmra.mrb[0].mxu0 %v190
    %v5461 = vpop.f32.mrb[0].mxu0
    %v5462 = vadd.f32 %v5421, %v5461
    %v5463 = vpop.f32.mrb[0].mxu0
    %v5464 = vadd.f32 %v5423, %v5463
    %v5465 = vpop.f32.mrb[0].mxu0
    %v5466 = vpop.f32.mrb[0].mxu0
    %5467 = vdwg.mxu0
    %5468 = vmatprep.subr.bf16.mxu0 %v4122
    %5469 = vmatpush1.bf16.msra.mxu0 %v4121
    %5470 = vmatprep.subr.bf16.mxu0 %v4126
    %5471 = vmatpush1.bf16.msra.mxu0 %v4125
    %5472 = vmatprep.subr.bf16.mxu0 %v4130
    %5473 = vmatpush1.bf16.msra.mxu0 %v4129
    %5474 = vmatprep.subr.bf16.mxu0 %v4134
    %5475 = vmatpush1.bf16.msra.mxu0 %v4133
    %5476 = vmatprep.subr.bf16.mxu0 %v4138
    %5477 = vmatpush1.bf16.msra.mxu0 %v4137
    %5478 = vmatprep.subr.bf16.mxu0 %v4142
    %5479 = vmatpush1.bf16.msra.mxu0 %v4141
    %5480 = vmatprep.subr.bf16.mxu0 %v4146
    %5481 = vmatpush1.bf16.msra.mxu0 %v4145
    %5482 = vmatprep.subr.bf16.mxu0 %v4150
    %5483 = vmatpush1.bf16.msra.mxu0 %v4149
    %5484 = vmatprep.subr.bf16.mxu0 %v4154
    %5485 = vmatpush1.bf16.msra.mxu0 %v4153
    %5486 = vmatprep.subr.bf16.mxu0 %v4158
    %5487 = vmatpush1.bf16.msra.mxu0 %v4157
    %5488 = vmatprep.subr.bf16.mxu0 %v4162
    %5489 = vmatpush1.bf16.msra.mxu0 %v4161
    %5490 = vmatprep.subr.bf16.mxu0 %v4166
    %5491 = vmatpush1.bf16.msra.mxu0 %v4165
    %5492 = vmatprep.subr.bf16.mxu0 %v4170
    %5493 = vmatpush1.bf16.msra.mxu0 %v4169
    %5494 = vmatprep.subr.bf16.mxu0 %v4174
    %5495 = vmatpush1.bf16.msra.mxu0 %v4173
    %5496 = vmatprep.subr.bf16.mxu0 %v4178
    %5497 = vmatpush1.bf16.msra.mxu0 %v4177
    %5498 = vmatprep.subr.bf16.mxu0 %v4182
    %5499 = vmatpush1.bf16.msra.mxu0 %v4181
    %5500 = vmatprep.mubr.bf16.mxu0 %v193
    %5501 = vmatmul.mubr.bf16.gmra.mrb[0].mxu0 %v192
    %v5502 = vpop.f32.mrb[0].mxu0
    %v5503 = vadd.f32 %v5462, %v5502
    %v5504 = vpop.f32.mrb[0].mxu0
    %v5505 = vadd.f32 %v5464, %v5504
    %v5506 = vpop.f32.mrb[0].mxu0
    %v5507 = vpop.f32.mrb[0].mxu0
    %5508 = vdwg.mxu0
    %5509 = vmatprep.subr.bf16.mxu0 %v4186
    %5510 = vmatpush1.bf16.msra.mxu0 %v4185
    %5511 = vmatprep.subr.bf16.mxu0 %v4190
    %5512 = vmatpush1.bf16.msra.mxu0 %v4189
    %5513 = vmatprep.subr.bf16.mxu0 %v4194
    %5514 = vmatpush1.bf16.msra.mxu0 %v4193
    %5515 = vmatprep.subr.bf16.mxu0 %v4198
    %5516 = vmatpush1.bf16.msra.mxu0 %v4197
    %5517 = vmatprep.subr.bf16.mxu0 %v4202
    %5518 = vmatpush1.bf16.msra.mxu0 %v4201
    %5519 = vmatprep.subr.bf16.mxu0 %v4206
    %5520 = vmatpush1.bf16.msra.mxu0 %v4205
    %5521 = vmatprep.subr.bf16.mxu0 %v4210
    %5522 = vmatpush1.bf16.msra.mxu0 %v4209
    %5523 = vmatprep.subr.bf16.mxu0 %v4214
    %5524 = vmatpush1.bf16.msra.mxu0 %v4213
    %5525 = vmatprep.subr.bf16.mxu0 0
    %5526 = vmatpush1.bf16.msra.mxu0 0
    %5527 = vmatprep.subr.bf16.mxu0 0
    %5528 = vmatpush1.bf16.msra.mxu0 0
    %5529 = vmatprep.subr.bf16.mxu0 0
    %5530 = vmatpush1.bf16.msra.mxu0 0
    %5531 = vmatprep.subr.bf16.mxu0 0
    %5532 = vmatpush1.bf16.msra.mxu0 0
    %5533 = vmatprep.subr.bf16.mxu0 0
    %5534 = vmatpush1.bf16.msra.mxu0 0
    %5535 = vmatprep.subr.bf16.mxu0 0
    %5536 = vmatpush1.bf16.msra.mxu0 0
    %5537 = vmatprep.subr.bf16.mxu0 0
    %5538 = vmatpush1.bf16.msra.mxu0 0
    %5539 = vmatprep.subr.bf16.mxu0 0
    %5540 = vmatpush1.bf16.msra.mxu0 0
    %5541 = vmatprep.mubr.bf16.mxu0 0
    %5542 = vmatmul.mubr.bf16.gmra.mrb[0].mxu0 %v194
    %v5543 = vpop.f32.mrb[0].mxu0
    %v5544 = vadd.f32 %v5503, %v5543
    %v5545 = vpop.f32.mrb[0].mxu0
    %v5546 = vadd.f32 %v5505, %v5545
    %v5547 = vpop.f32.mrb[0].mxu0
    %v5548 = vpop.f32.mrb[0].mxu0
    %5549 = vdwg.mxu0
    %5550 = vmatprep.subr.bf16.mxu0 %v3420
    %5551 = vmatpush1.bf16.msra.mxu0 %v3419
    %5552 = vmatprep.subr.bf16.mxu0 %v3424
    %5553 = vmatpush1.bf16.msra.mxu0 %v3423
    %5554 = vmatprep.subr.bf16.mxu0 %v3428
    %5555 = vmatpush1.bf16.msra.mxu0 %v3427
    %5556 = vmatprep.subr.bf16.mxu0 %v3432
    %5557 = vmatpush1.bf16.msra.mxu0 %v3431
    %5558 = vmatprep.subr.bf16.mxu0 %v3436
    %5559 = vmatpush1.bf16.msra.mxu0 %v3435
    %5560 = vmatprep.subr.bf16.mxu0 %v3440
    %5561 = vmatpush1.bf16.msra.mxu0 %v3439
    %5562 = vmatprep.subr.bf16.mxu0 %v3444
    %5563 = vmatpush1.bf16.msra.mxu0 %v3443
    %5564 = vmatprep.subr.bf16.mxu0 %v3448
    %5565 = vmatpush1.bf16.msra.mxu0 %v3447
    %5566 = vmatprep.subr.bf16.mxu0 %v3452
    %5567 = vmatpush1.bf16.msra.mxu0 %v3451
    %5568 = vmatprep.subr.bf16.mxu0 %v3456
    %5569 = vmatpush1.bf16.msra.mxu0 %v3455
    %5570 = vmatprep.subr.bf16.mxu0 %v3460
    %5571 = vmatpush1.bf16.msra.mxu0 %v3459
    %5572 = vmatprep.subr.bf16.mxu0 %v3464
    %5573 = vmatpush1.bf16.msra.mxu0 %v3463
    %5574 = vmatprep.subr.bf16.mxu0 %v3468
    %5575 = vmatpush1.bf16.msra.mxu0 %v3467
    %5576 = vmatprep.subr.bf16.mxu0 %v3472
    %5577 = vmatpush1.bf16.msra.mxu0 %v3471
    %5578 = vmatprep.subr.bf16.mxu0 %v3476
    %5579 = vmatpush1.bf16.msra.mxu0 %v3475
    %5580 = vmatprep.subr.bf16.mxu0 %v3480
    %5581 = vmatpush1.bf16.msra.mxu0 %v3479
    %5582 = vmatprep.mubr.bf16.mxu0 %v171
    %5583 = vmatmul.mubr.bf16.gmra.mrb[0].mxu0 %v170
    %v5584 = vpop.f32.mrb[0].mxu0
    %v5585 = vadd.f32 %v1008, %v5584
    %v5586 = vpop.f32.mrb[0].mxu0
    %v5587 = vadd.f32 %v1012, %v5586
    %v5588 = vpop.f32.mrb[0].mxu0
    %v5589 = vpop.f32.mrb[0].mxu0
    %5590 = vdwg.mxu0
    %5591 = vmatprep.subr.bf16.mxu0 %v3484
    %5592 = vmatpush1.bf16.msra.mxu0 %v3483
    %5593 = vmatprep.subr.bf16.mxu0 %v3488
    %5594 = vmatpush1.bf16.msra.mxu0 %v3487
    %5595 = vmatprep.subr.bf16.mxu0 %v3492
    %5596 = vmatpush1.bf16.msra.mxu0 %v3491
    %5597 = vmatprep.subr.bf16.mxu0 %v3496
    %5598 = vmatpush1.bf16.msra.mxu0 %v3495
    %5599 = vmatprep.subr.bf16.mxu0 %v3500
    %5600 = vmatpush1.bf16.msra.mxu0 %v3499
    %5601 = vmatprep.subr.bf16.mxu0 %v3504
    %5602 = vmatpush1.bf16.msra.mxu0 %v3503
    %5603 = vmatprep.subr.bf16.mxu0 %v3508
    %5604 = vmatpush1.bf16.msra.mxu0 %v3507
    %5605 = vmatprep.subr.bf16.mxu0 %v3512
    %5606 = vmatpush1.bf16.msra.mxu0 %v3511
    %5607 = vmatprep.subr.bf16.mxu0 %v3516
    %5608 = vmatpush1.bf16.msra.mxu0 %v3515
    %5609 = vmatprep.subr.bf16.mxu0 %v3520
    %5610 = vmatpush1.bf16.msra.mxu0 %v3519
    %5611 = vmatprep.subr.bf16.mxu0 %v3524
    %5612 = vmatpush1.bf16.msra.mxu0 %v3523
    %5613 = vmatprep.subr.bf16.mxu0 %v3528
    %5614 = vmatpush1.bf16.msra.mxu0 %v3527
    %5615 = vmatprep.subr.bf16.mxu0 %v3532
    %5616 = vmatpush1.bf16.msra.mxu0 %v3531
    %5617 = vmatprep.subr.bf16.mxu0 %v3536
    %5618 = vmatpush1.bf16.msra.mxu0 %v3535
    %5619 = vmatprep.subr.bf16.mxu0 %v3540
    %5620 = vmatpush1.bf16.msra.mxu0 %v3539
    %5621 = vmatprep.subr.bf16.mxu0 %v3544
    %5622 = vmatpush1.bf16.msra.mxu0 %v3543
    %5623 = vmatprep.mubr.bf16.mxu0 %v173
    %5624 = vmatmul.mubr.bf16.gmra.mrb[0].mxu0 %v172
    %v5625 = vpop.f32.mrb[0].mxu0
    %v5626 = vadd.f32 %v5585, %v5625
    %v5627 = vpop.f32.mrb[0].mxu0
    %v5628 = vadd.f32 %v5587, %v5627
    %v5629 = vpop.f32.mrb[0].mxu0
    %v5630 = vpop.f32.mrb[0].mxu0
    %5631 = vdwg.mxu0
    %5632 = vmatprep.subr.bf16.mxu0 %v3548
    %5633 = vmatpush1.bf16.msra.mxu0 %v3547
    %5634 = vmatprep.subr.bf16.mxu0 %v3552
    %5635 = vmatpush1.bf16.msra.mxu0 %v3551
    %5636 = vmatprep.subr.bf16.mxu0 %v3556
    %5637 = vmatpush1.bf16.msra.mxu0 %v3555
    %5638 = vmatprep.subr.bf16.mxu0 %v3560
    %5639 = vmatpush1.bf16.msra.mxu0 %v3559
    %5640 = vmatprep.subr.bf16.mxu0 %v3564
    %5641 = vmatpush1.bf16.msra.mxu0 %v3563
    %5642 = vmatprep.subr.bf16.mxu0 %v3568
    %5643 = vmatpush1.bf16.msra.mxu0 %v3567
    %5644 = vmatprep.subr.bf16.mxu0 %v3572
    %5645 = vmatpush1.bf16.msra.mxu0 %v3571
    %5646 = vmatprep.subr.bf16.mxu0 %v3576
    %5647 = vmatpush1.bf16.msra.mxu0 %v3575
    %5648 = vmatprep.subr.bf16.mxu0 %v3580
    %5649 = vmatpush1.bf16.msra.mxu0 %v3579
    %5650 = vmatprep.subr.bf16.mxu0 %v3584
    %5651 = vmatpush1.bf16.msra.mxu0 %v3583
    %5652 = vmatprep.subr.bf16.mxu0 %v3588
    %5653 = vmatpush1.bf16.msra.mxu0 %v3587
    %5654 = vmatprep.subr.bf16.mxu0 %v3592
    %5655 = vmatpush1.bf16.msra.mxu0 %v3591
    %5656 = vmatprep.subr.bf16.mxu0 %v3596
    %5657 = vmatpush1.bf16.msra.mxu0 %v3595
    %5658 = vmatprep.subr.bf16.mxu0 %v3600
    %5659 = vmatpush1.bf16.msra.mxu0 %v3599
    %5660 = vmatprep.subr.bf16.mxu0 %v3604
    %5661 = vmatpush1.bf16.msra.mxu0 %v3603
    %5662 = vmatprep.subr.bf16.mxu0 %v3608
    %5663 = vmatpush1.bf16.msra.mxu0 %v3607
    %5664 = vmatprep.mubr.bf16.mxu0 %v175
    %5665 = vmatmul.mubr.bf16.gmra.mrb[0].mxu0 %v174
    %v5666 = vpop.f32.mrb[0].mxu0
    %v5667 = vadd.f32 %v5626, %v5666
    %v5668 = vpop.f32.mrb[0].mxu0
    %v5669 = vadd.f32 %v5628, %v5668
    %v5670 = vpop.f32.mrb[0].mxu0
    %v5671 = vpop.f32.mrb[0].mxu0
    %5672 = vdwg.mxu0
    %5673 = vmatprep.subr.bf16.mxu0 %v3612
    %5674 = vmatpush1.bf16.msra.mxu0 %v3611
    %5675 = vmatprep.subr.bf16.mxu0 %v3616
    %5676 = vmatpush1.bf16.msra.mxu0 %v3615
    %5677 = vmatprep.subr.bf16.mxu0 %v3620
    %5678 = vmatpush1.bf16.msra.mxu0 %v3619
    %5679 = vmatprep.subr.bf16.mxu0 %v3624
    %5680 = vmatpush1.bf16.msra.mxu0 %v3623
    %5681 = vmatprep.subr.bf16.mxu0 %v3628
    %5682 = vmatpush1.bf16.msra.mxu0 %v3627
    %5683 = vmatprep.subr.bf16.mxu0 %v3632
    %5684 = vmatpush1.bf16.msra.mxu0 %v3631
    %5685 = vmatprep.subr.bf16.mxu0 %v3636
    %5686 = vmatpush1.bf16.msra.mxu0 %v3635
    %5687 = vmatprep.subr.bf16.mxu0 %v3640
    %5688 = vmatpush1.bf16.msra.mxu0 %v3639
    %5689 = vmatprep.subr.bf16.mxu0 %v3644
    %5690 = vmatpush1.bf16.msra.mxu0 %v3643
    %5691 = vmatprep.subr.bf16.mxu0 %v3648
    %5692 = vmatpush1.bf16.msra.mxu0 %v3647
    %5693 = vmatprep.subr.bf16.mxu0 %v3652
    %5694 = vmatpush1.bf16.msra.mxu0 %v3651
    %5695 = vmatprep.subr.bf16.mxu0 %v3656
    %5696 = vmatpush1.bf16.msra.mxu0 %v3655
    %5697 = vmatprep.subr.bf16.mxu0 %v3660
    %5698 = vmatpush1.bf16.msra.mxu0 %v3659
    %5699 = vmatprep.subr.bf16.mxu0 %v3664
    %5700 = vmatpush1.bf16.msra.mxu0 %v3663
    %5701 = vmatprep.subr.bf16.mxu0 %v3668
    %5702 = vmatpush1.bf16.msra.mxu0 %v3667
    %5703 = vmatprep.subr.bf16.mxu0 %v3672
    %5704 = vmatpush1.bf16.msra.mxu0 %v3671
    %5705 = vmatprep.mubr.bf16.mxu0 %v177
    %5706 = vmatmul.mubr.bf16.gmra.mrb[0].mxu0 %v176
    %v5707 = vpop.f32.mrb[0].mxu0
    %v5708 = vadd.f32 %v5667, %v5707
    %v5709 = vpop.f32.mrb[0].mxu0
    %v5710 = vadd.f32 %v5669, %v5709
    %v5711 = vpop.f32.mrb[0].mxu0
    %v5712 = vpop.f32.mrb[0].mxu0
    %5713 = vdwg.mxu0
    %5714 = vmatprep.subr.bf16.mxu0 %v3676
    %5715 = vmatpush1.bf16.msra.mxu0 %v3675
    %5716 = vmatprep.subr.bf16.mxu0 %v3680
    %5717 = vmatpush1.bf16.msra.mxu0 %v3679
    %5718 = vmatprep.subr.bf16.mxu0 %v3684
    %5719 = vmatpush1.bf16.msra.mxu0 %v3683
    %5720 = vmatprep.subr.bf16.mxu0 %v3688
    %5721 = vmatpush1.bf16.msra.mxu0 %v3687
    %5722 = vmatprep.subr.bf16.mxu0 %v3692
    %5723 = vmatpush1.bf16.msra.mxu0 %v3691
    %5724 = vmatprep.subr.bf16.mxu0 %v3696
    %5725 = vmatpush1.bf16.msra.mxu0 %v3695
    %5726 = vmatprep.subr.bf16.mxu0 %v3700
    %5727 = vmatpush1.bf16.msra.mxu0 %v3699
    %5728 = vmatprep.subr.bf16.mxu0 %v3704
    %5729 = vmatpush1.bf16.msra.mxu0 %v3703
    %5730 = vmatprep.subr.bf16.mxu0 %v3708
    %5731 = vmatpush1.bf16.msra.mxu0 %v3707
    %5732 = vmatprep.subr.bf16.mxu0 %v3712
    %5733 = vmatpush1.bf16.msra.mxu0 %v3711
    %5734 = vmatprep.subr.bf16.mxu0 %v3716
    %5735 = vmatpush1.bf16.msra.mxu0 %v3715
    %5736 = vmatprep.subr.bf16.mxu0 %v3720
    %5737 = vmatpush1.bf16.msra.mxu0 %v3719
    %5738 = vmatprep.subr.bf16.mxu0 %v3724
    %5739 = vmatpush1.bf16.msra.mxu0 %v3723
    %5740 = vmatprep.subr.bf16.mxu0 %v3728
    %5741 = vmatpush1.bf16.msra.mxu0 %v3727
    %5742 = vmatprep.subr.bf16.mxu0 %v3732
    %5743 = vmatpush1.bf16.msra.mxu0 %v3731
    %5744 = vmatprep.subr.bf16.mxu0 %v3736
    %5745 = vmatpush1.bf16.msra.mxu0 %v3735
    %5746 = vmatprep.mubr.bf16.mxu0 %v179
    %5747 = vmatmul.mubr.bf16.gmra.mrb[0].mxu0 %v178
    %v5748 = vpop.f32.mrb[0].mxu0
    %v5749 = vadd.f32 %v5708, %v5748
    %v5750 = vpop.f32.mrb[0].mxu0
    %v5751 = vadd.f32 %v5710, %v5750
    %v5752 = vpop.f32.mrb[0].mxu0
    %v5753 = vpop.f32.mrb[0].mxu0
    %5754 = vdwg.mxu0
    %5755 = vmatprep.subr.bf16.mxu0 %v3740
    %5756 = vmatpush1.bf16.msra.mxu0 %v3739
    %5757 = vmatprep.subr.bf16.mxu0 %v3744
    %5758 = vmatpush1.bf16.msra.mxu0 %v3743
    %5759 = vmatprep.subr.bf16.mxu0 %v3748
    %5760 = vmatpush1.bf16.msra.mxu0 %v3747
    %5761 = vmatprep.subr.bf16.mxu0 %v3752
    %5762 = vmatpush1.bf16.msra.mxu0 %v3751
    %5763 = vmatprep.subr.bf16.mxu0 %v3756
    %5764 = vmatpush1.bf16.msra.mxu0 %v3755
    %5765 = vmatprep.subr.bf16.mxu0 %v3760
    %5766 = vmatpush1.bf16.msra.mxu0 %v3759
    %5767 = vmatprep.subr.bf16.mxu0 %v3764
    %5768 = vmatpush1.bf16.msra.mxu0 %v3763
    %5769 = vmatprep.subr.bf16.mxu0 %v3768
    %5770 = vmatpush1.bf16.msra.mxu0 %v3767
    %5771 = vmatprep.subr.bf16.mxu0 %v3772
    %5772 = vmatpush1.bf16.msra.mxu0 %v3771
    %5773 = vmatprep.subr.bf16.mxu0 %v3776
    %5774 = vmatpush1.bf16.msra.mxu0 %v3775
    %5775 = vmatprep.subr.bf16.mxu0 %v3780
    %5776 = vmatpush1.bf16.msra.mxu0 %v3779
    %5777 = vmatprep.subr.bf16.mxu0 %v3784
    %5778 = vmatpush1.bf16.msra.mxu0 %v3783
    %5779 = vmatprep.subr.bf16.mxu0 %v3788
    %5780 = vmatpush1.bf16.msra.mxu0 %v3787
    %5781 = vmatprep.subr.bf16.mxu0 %v3792
    %5782 = vmatpush1.bf16.msra.mxu0 %v3791
    %5783 = vmatprep.subr.bf16.mxu0 %v3796
    %5784 = vmatpush1.bf16.msra.mxu0 %v3795
    %5785 = vmatprep.subr.bf16.mxu0 %v3800
    %5786 = vmatpush1.bf16.msra.mxu0 %v3799
    %5787 = vmatprep.mubr.bf16.mxu0 %v181
    %5788 = vmatmul.mubr.bf16.gmra.mrb[0].mxu0 %v180
    %v5789 = vpop.f32.mrb[0].mxu0
    %v5790 = vadd.f32 %v5749, %v5789
    %v5791 = vpop.f32.mrb[0].mxu0
    %v5792 = vadd.f32 %v5751, %v5791
    %v5793 = vpop.f32.mrb[0].mxu0
    %v5794 = vpop.f32.mrb[0].mxu0
    %5795 = vdwg.mxu0
    %5796 = vmatprep.subr.bf16.mxu0 %v3804
    %5797 = vmatpush1.bf16.msra.mxu0 %v3803
    %5798 = vmatprep.subr.bf16.mxu0 %v3808
    %5799 = vmatpush1.bf16.msra.mxu0 %v3807
    %5800 = vmatprep.subr.bf16.mxu0 %v3812
    %5801 = vmatpush1.bf16.msra.mxu0 %v3811
    %5802 = vmatprep.subr.bf16.mxu0 %v3816
    %5803 = vmatpush1.bf16.msra.mxu0 %v3815
    %5804 = vmatprep.subr.bf16.mxu0 %v3820
    %5805 = vmatpush1.bf16.msra.mxu0 %v3819
    %5806 = vmatprep.subr.bf16.mxu0 %v3824
    %5807 = vmatpush1.bf16.msra.mxu0 %v3823
    %5808 = vmatprep.subr.bf16.mxu0 %v3828
    %5809 = vmatpush1.bf16.msra.mxu0 %v3827
    %5810 = vmatprep.subr.bf16.mxu0 %v3832
    %5811 = vmatpush1.bf16.msra.mxu0 %v3831
    %5812 = vmatprep.subr.bf16.mxu0 %v3836
    %5813 = vmatpush1.bf16.msra.mxu0 %v3835
    %5814 = vmatprep.subr.bf16.mxu0 %v3840
    %5815 = vmatpush1.bf16.msra.mxu0 %v3839
    %5816 = vmatprep.subr.bf16.mxu0 %v3844
    %5817 = vmatpush1.bf16.msra.mxu0 %v3843
    %5818 = vmatprep.subr.bf16.mxu0 %v3848
    %5819 = vmatpush1.bf16.msra.mxu0 %v3847
    %5820 = vmatprep.subr.bf16.mxu0 %v3852
    %5821 = vmatpush1.bf16.msra.mxu0 %v3851
    %5822 = vmatprep.subr.bf16.mxu0 %v3856
    %5823 = vmatpush1.bf16.msra.mxu0 %v3855
    %5824 = vmatprep.subr.bf16.mxu0 %v3860
    %5825 = vmatpush1.bf16.msra.mxu0 %v3859
    %5826 = vmatprep.subr.bf16.mxu0 %v3864
    %5827 = vmatpush1.bf16.msra.mxu0 %v3863
    %5828 = vmatprep.mubr.bf16.mxu0 %v183
    %5829 = vmatmul.mubr.bf16.gmra.mrb[0].mxu0 %v182
    %v5830 = vpop.f32.mrb[0].mxu0
    %v5831 = vadd.f32 %v5790, %v5830
    %v5832 = vpop.f32.mrb[0].mxu0
    %v5833 = vadd.f32 %v5792, %v5832
    %v5834 = vpop.f32.mrb[0].mxu0
    %v5835 = vpop.f32.mrb[0].mxu0
    %5836 = vdwg.mxu0
    %5837 = vmatprep.subr.bf16.mxu0 %v3868
    %5838 = vmatpush1.bf16.msra.mxu0 %v3867
    %5839 = vmatprep.subr.bf16.mxu0 %v3872
    %5840 = vmatpush1.bf16.msra.mxu0 %v3871
    %5841 = vmatprep.subr.bf16.mxu0 %v3876
    %5842 = vmatpush1.bf16.msra.mxu0 %v3875
    %5843 = vmatprep.subr.bf16.mxu0 %v3880
    %5844 = vmatpush1.bf16.msra.mxu0 %v3879
    %5845 = vmatprep.subr.bf16.mxu0 %v3884
    %5846 = vmatpush1.bf16.msra.mxu0 %v3883
    %5847 = vmatprep.subr.bf16.mxu0 %v3888
    %5848 = vmatpush1.bf16.msra.mxu0 %v3887
    %5849 = vmatprep.subr.bf16.mxu0 %v3892
    %5850 = vmatpush1.bf16.msra.mxu0 %v3891
    %5851 = vmatprep.subr.bf16.mxu0 %v3896
    %5852 = vmatpush1.bf16.msra.mxu0 %v3895
    %5853 = vmatprep.subr.bf16.mxu0 %v3900
    %5854 = vmatpush1.bf16.msra.mxu0 %v3899
    %5855 = vmatprep.subr.bf16.mxu0 %v3904
    %5856 = vmatpush1.bf16.msra.mxu0 %v3903
    %5857 = vmatprep.subr.bf16.mxu0 %v3908
    %5858 = vmatpush1.bf16.msra.mxu0 %v3907
    %5859 = vmatprep.subr.bf16.mxu0 %v3912
    %5860 = vmatpush1.bf16.msra.mxu0 %v3911
    %5861 = vmatprep.subr.bf16.mxu0 %v3916
    %5862 = vmatpush1.bf16.msra.mxu0 %v3915
    %5863 = vmatprep.subr.bf16.mxu0 %v3920
    %5864 = vmatpush1.bf16.msra.mxu0 %v3919
    %5865 = vmatprep.subr.bf16.mxu0 %v3924
    %5866 = vmatpush1.bf16.msra.mxu0 %v3923
    %5867 = vmatprep.subr.bf16.mxu0 %v3928
    %5868 = vmatpush1.bf16.msra.mxu0 %v3927
    %5869 = vmatprep.mubr.bf16.mxu0 %v185
    %5870 = vmatmul.mubr.bf16.gmra.mrb[0].mxu0 %v184
    %v5871 = vpop.f32.mrb[0].mxu0
    %v5872 = vadd.f32 %v5831, %v5871
    %v5873 = vpop.f32.mrb[0].mxu0
    %v5874 = vadd.f32 %v5833, %v5873
    %v5875 = vpop.f32.mrb[0].mxu0
    %v5876 = vpop.f32.mrb[0].mxu0
    %5877 = vdwg.mxu0
    %5878 = vmatprep.subr.bf16.mxu0 %v3932
    %5879 = vmatpush1.bf16.msra.mxu0 %v3931
    %5880 = vmatprep.subr.bf16.mxu0 %v3936
    %5881 = vmatpush1.bf16.msra.mxu0 %v3935
    %5882 = vmatprep.subr.bf16.mxu0 %v3940
    %5883 = vmatpush1.bf16.msra.mxu0 %v3939
    %5884 = vmatprep.subr.bf16.mxu0 %v3944
    %5885 = vmatpush1.bf16.msra.mxu0 %v3943
    %5886 = vmatprep.subr.bf16.mxu0 %v3948
    %5887 = vmatpush1.bf16.msra.mxu0 %v3947
    %5888 = vmatprep.subr.bf16.mxu0 %v3952
    %5889 = vmatpush1.bf16.msra.mxu0 %v3951
    %5890 = vmatprep.subr.bf16.mxu0 %v3956
    %5891 = vmatpush1.bf16.msra.mxu0 %v3955
    %5892 = vmatprep.subr.bf16.mxu0 %v3960
    %5893 = vmatpush1.bf16.msra.mxu0 %v3959
    %5894 = vmatprep.subr.bf16.mxu0 %v3964
    %5895 = vmatpush1.bf16.msra.mxu0 %v3963
    %5896 = vmatprep.subr.bf16.mxu0 %v3968
    %5897 = vmatpush1.bf16.msra.mxu0 %v3967
    %5898 = vmatprep.subr.bf16.mxu0 %v3972
    %5899 = vmatpush1.bf16.msra.mxu0 %v3971
    %5900 = vmatprep.subr.bf16.mxu0 %v3976
    %5901 = vmatpush1.bf16.msra.mxu0 %v3975
    %5902 = vmatprep.subr.bf16.mxu0 %v3980
    %5903 = vmatpush1.bf16.msra.mxu0 %v3979
    %5904 = vmatprep.subr.bf16.mxu0 %v3984
    %5905 = vmatpush1.bf16.msra.mxu0 %v3983
    %5906 = vmatprep.subr.bf16.mxu0 %v3988
    %5907 = vmatpush1.bf16.msra.mxu0 %v3987
    %5908 = vmatprep.subr.bf16.mxu0 %v3992
    %5909 = vmatpush1.bf16.msra.mxu0 %v3991
    %5910 = vmatprep.mubr.bf16.mxu0 %v187
    %5911 = vmatmul.mubr.bf16.gmra.mrb[0].mxu0 %v186
    %v5912 = vpop.f32.mrb[0].mxu0
    %v5913 = vadd.f32 %v5872, %v5912
    %v5914 = vpop.f32.mrb[0].mxu0
    %v5915 = vadd.f32 %v5874, %v5914
    %v5916 = vpop.f32.mrb[0].mxu0
    %v5917 = vpop.f32.mrb[0].mxu0
    %5918 = vdwg.mxu0
    %5919 = vmatprep.subr.bf16.mxu0 %v3996
    %5920 = vmatpush1.bf16.msra.mxu0 %v3995
    %5921 = vmatprep.subr.bf16.mxu0 %v4000
    %5922 = vmatpush1.bf16.msra.mxu0 %v3999
    %5923 = vmatprep.subr.bf16.mxu0 %v4004
    %5924 = vmatpush1.bf16.msra.mxu0 %v4003
    %5925 = vmatprep.subr.bf16.mxu0 %v4008
    %5926 = vmatpush1.bf16.msra.mxu0 %v4007
    %5927 = vmatprep.subr.bf16.mxu0 %v4012
    %5928 = vmatpush1.bf16.msra.mxu0 %v4011
    %5929 = vmatprep.subr.bf16.mxu0 %v4016
    %5930 = vmatpush1.bf16.msra.mxu0 %v4015
    %5931 = vmatprep.subr.bf16.mxu0 %v4020
    %5932 = vmatpush1.bf16.msra.mxu0 %v4019
    %5933 = vmatprep.subr.bf16.mxu0 %v4024
    %5934 = vmatpush1.bf16.msra.mxu0 %v4023
    %5935 = vmatprep.subr.bf16.mxu0 %v4028
    %5936 = vmatpush1.bf16.msra.mxu0 %v4027
    %5937 = vmatprep.subr.bf16.mxu0 %v4032
    %5938 = vmatpush1.bf16.msra.mxu0 %v4031
    %5939 = vmatprep.subr.bf16.mxu0 %v4036
    %5940 = vmatpush1.bf16.msra.mxu0 %v4035
    %5941 = vmatprep.subr.bf16.mxu0 %v4040
    %5942 = vmatpush1.bf16.msra.mxu0 %v4039
    %5943 = vmatprep.subr.bf16.mxu0 %v4044
    %5944 = vmatpush1.bf16.msra.mxu0 %v4043
    %5945 = vmatprep.subr.bf16.mxu0 %v4048
    %5946 = vmatpush1.bf16.msra.mxu0 %v4047
    %5947 = vmatprep.subr.bf16.mxu0 %v4052
    %5948 = vmatpush1.bf16.msra.mxu0 %v4051
    %5949 = vmatprep.subr.bf16.mxu0 %v4056
    %5950 = vmatpush1.bf16.msra.mxu0 %v4055
    %5951 = vmatprep.mubr.bf16.mxu0 %v189
    %5952 = vmatmul.mubr.bf16.gmra.mrb[0].mxu0 %v188
    %v5953 = vpop.f32.mrb[0].mxu0
    %v5954 = vadd.f32 %v5913, %v5953
    %v5955 = vpop.f32.mrb[0].mxu0
    %v5956 = vadd.f32 %v5915, %v5955
    %v5957 = vpop.f32.mrb[0].mxu0
    %v5958 = vpop.f32.mrb[0].mxu0
    %5959 = vdwg.mxu0
    %5960 = vmatprep.subr.bf16.mxu0 %v4060
    %5961 = vmatpush1.bf16.msra.mxu0 %v4059
    %5962 = vmatprep.subr.bf16.mxu0 %v4064
    %5963 = vmatpush1.bf16.msra.mxu0 %v4063
    %5964 = vmatprep.subr.bf16.mxu0 %v4068
    %5965 = vmatpush1.bf16.msra.mxu0 %v4067
    %5966 = vmatprep.subr.bf16.mxu0 %v4072
    %5967 = vmatpush1.bf16.msra.mxu0 %v4071
    %5968 = vmatprep.subr.bf16.mxu0 %v4076
    %5969 = vmatpush1.bf16.msra.mxu0 %v4075
    %5970 = vmatprep.subr.bf16.mxu0 %v4080
    %5971 = vmatpush1.bf16.msra.mxu0 %v4079
    %5972 = vmatprep.subr.bf16.mxu0 %v4084
    %5973 = vmatpush1.bf16.msra.mxu0 %v4083
    %5974 = vmatprep.subr.bf16.mxu0 %v4088
    %5975 = vmatpush1.bf16.msra.mxu0 %v4087
    %5976 = vmatprep.subr.bf16.mxu0 %v4092
    %5977 = vmatpush1.bf16.msra.mxu0 %v4091
    %5978 = vmatprep.subr.bf16.mxu0 %v4096
    %5979 = vmatpush1.bf16.msra.mxu0 %v4095
    %5980 = vmatprep.subr.bf16.mxu0 %v4100
    %5981 = vmatpush1.bf16.msra.mxu0 %v4099
    %5982 = vmatprep.subr.bf16.mxu0 %v4104
    %5983 = vmatpush1.bf16.msra.mxu0 %v4103
    %5984 = vmatprep.subr.bf16.mxu0 %v4108
    %5985 = vmatpush1.bf16.msra.mxu0 %v4107
    %5986 = vmatprep.subr.bf16.mxu0 %v4112
    %5987 = vmatpush1.bf16.msra.mxu0 %v4111
    %5988 = vmatprep.subr.bf16.mxu0 %v4116
    %5989 = vmatpush1.bf16.msra.mxu0 %v4115
    %5990 = vmatprep.subr.bf16.mxu0 %v4120
    %5991 = vmatpush1.bf16.msra.mxu0 %v4119
    %5992 = vmatprep.mubr.bf16.mxu0 %v191
    %5993 = vmatmul.mubr.bf16.gmra.mrb[0].mxu0 %v190
    %v5994 = vpop.f32.mrb[0].mxu0
    %v5995 = vadd.f32 %v5954, %v5994
    %v5996 = vpop.f32.mrb[0].mxu0
    %v5997 = vadd.f32 %v5956, %v5996
    %v5998 = vpop.f32.mrb[0].mxu0
    %v5999 = vpop.f32.mrb[0].mxu0
    %6000 = vdwg.mxu0
    %6001 = vmatprep.subr.bf16.mxu0 %v4124
    %6002 = vmatpush1.bf16.msra.mxu0 %v4123
    %6003 = vmatprep.subr.bf16.mxu0 %v4128
    %6004 = vmatpush1.bf16.msra.mxu0 %v4127
    %6005 = vmatprep.subr.bf16.mxu0 %v4132
    %6006 = vmatpush1.bf16.msra.mxu0 %v4131
    %6007 = vmatprep.subr.bf16.mxu0 %v4136
    %6008 = vmatpush1.bf16.msra.mxu0 %v4135
    %6009 = vmatprep.subr.bf16.mxu0 %v4140
    %6010 = vmatpush1.bf16.msra.mxu0 %v4139
    %6011 = vmatprep.subr.bf16.mxu0 %v4144
    %6012 = vmatpush1.bf16.msra.mxu0 %v4143
    %6013 = vmatprep.subr.bf16.mxu0 %v4148
    %6014 = vmatpush1.bf16.msra.mxu0 %v4147
    %6015 = vmatprep.subr.bf16.mxu0 %v4152
    %6016 = vmatpush1.bf16.msra.mxu0 %v4151
    %6017 = vmatprep.subr.bf16.mxu0 %v4156
    %6018 = vmatpush1.bf16.msra.mxu0 %v4155
    %6019 = vmatprep.subr.bf16.mxu0 %v4160
    %6020 = vmatpush1.bf16.msra.mxu0 %v4159
    %6021 = vmatprep.subr.bf16.mxu0 %v4164
    %6022 = vmatpush1.bf16.msra.mxu0 %v4163
    %6023 = vmatprep.subr.bf16.mxu0 %v4168
    %6024 = vmatpush1.bf16.msra.mxu0 %v4167
    %6025 = vmatprep.subr.bf16.mxu0 %v4172
    %6026 = vmatpush1.bf16.msra.mxu0 %v4171
    %6027 = vmatprep.subr.bf16.mxu0 %v4176
    %6028 = vmatpush1.bf16.msra.mxu0 %v4175
    %6029 = vmatprep.subr.bf16.mxu0 %v4180
    %6030 = vmatpush1.bf16.msra.mxu0 %v4179
    %6031 = vmatprep.subr.bf16.mxu0 %v4184
    %6032 = vmatpush1.bf16.msra.mxu0 %v4183
    %6033 = vmatprep.mubr.bf16.mxu0 %v193
    %6034 = vmatmul.mubr.bf16.gmra.mrb[0].mxu0 %v192
    %v6035 = vpop.f32.mrb[0].mxu0
    %v6036 = vadd.f32 %v5995, %v6035
    %v6037 = vpop.f32.mrb[0].mxu0
    %v6038 = vadd.f32 %v5997, %v6037
    %v6039 = vpop.f32.mrb[0].mxu0
    %v6040 = vpop.f32.mrb[0].mxu0
    %6041 = vdwg.mxu0
    %6042 = vmatprep.subr.bf16.mxu0 %v4188
    %6043 = vmatpush1.bf16.msra.mxu0 %v4187
    %6044 = vmatprep.subr.bf16.mxu0 %v4192
    %6045 = vmatpush1.bf16.msra.mxu0 %v4191
    %6046 = vmatprep.subr.bf16.mxu0 %v4196
    %6047 = vmatpush1.bf16.msra.mxu0 %v4195
    %6048 = vmatprep.subr.bf16.mxu0 %v4200
    %6049 = vmatpush1.bf16.msra.mxu0 %v4199
    %6050 = vmatprep.subr.bf16.mxu0 %v4204
    %6051 = vmatpush1.bf16.msra.mxu0 %v4203
    %6052 = vmatprep.subr.bf16.mxu0 %v4208
    %6053 = vmatpush1.bf16.msra.mxu0 %v4207
    %6054 = vmatprep.subr.bf16.mxu0 %v4212
    %6055 = vmatpush1.bf16.msra.mxu0 %v4211
    %6056 = vmatprep.subr.bf16.mxu0 %v4216
    %6057 = vmatpush1.bf16.msra.mxu0 %v4215
    %6058 = vmatprep.subr.bf16.mxu0 0
    %6059 = vmatpush1.bf16.msra.mxu0 0
    %6060 = vmatprep.subr.bf16.mxu0 0
    %6061 = vmatpush1.bf16.msra.mxu0 0
    %6062 = vmatprep.subr.bf16.mxu0 0
    %6063 = vmatpush1.bf16.msra.mxu0 0
    %6064 = vmatprep.subr.bf16.mxu0 0
    %6065 = vmatpush1.bf16.msra.mxu0 0
    %6066 = vmatprep.subr.bf16.mxu0 0
    %6067 = vmatpush1.bf16.msra.mxu0 0
    %6068 = vmatprep.subr.bf16.mxu0 0
    %6069 = vmatpush1.bf16.msra.mxu0 0
    %6070 = vmatprep.subr.bf16.mxu0 0
    %6071 = vmatpush1.bf16.msra.mxu0 0
    %6072 = vmatprep.subr.bf16.mxu0 0
    %6073 = vmatpush1.bf16.msra.mxu0 0
    %6074 = vmatprep.mubr.bf16.mxu0 0
    %6075 = vmatmul.mubr.bf16.gmra.mrb[0].mxu0 %v194
    %v6076 = vpop.f32.mrb[0].mxu0
    %v6077 = vadd.f32 %v6036, %v6076
    %v6078 = vpop.f32.mrb[0].mxu0
    %v6079 = vadd.f32 %v6038, %v6078
    %v6080 = vpop.f32.mrb[0].mxu0
    %v6081 = vpop.f32.mrb[0].mxu0
    %6082 = vdwg.mxu0
    %v6083 = vmax.f32 %v5544, 0.0
    %v6084 = vmax.f32 %v5546, 0.0
    %v6085 = vmax.f32 %v6077, 0.0
    %v6086 = vmax.f32 %v6079, 0.0
    %v6087 = vpack.c.bf16 %v6083, %v6083
    %v6088 = vpack.c.bf16 %v6084, %v6084
    %v6089 = vpack.c.bf16 %v6085, %v6085
    %v6090 = vpack.c.bf16 %v6086, %v6086
    %v6091 = vld [vmem:[%s3] sm:$0xf]
    %v6092 = vld [vmem:[%s3 + $0x4] sm:$0xf]
    %v6093 = vld [vmem:[%s3 + $0x8] sm:$0xf]
    %v6094 = vld [vmem:[%s3 + $0xc] sm:$0xf]
    %v6095 = vld [vmem:[%s3 + $0x10] sm:$0xf]
    %v6096 = vld [vmem:[%s3 + $0x14] sm:$0xf]
    %v6097 = vld [vmem:[%s3 + $0x18] sm:$0xf]
    %v6098 = vld [vmem:[%s3 + $0x1c] sm:$0xf]
    %v6099 = vld [vmem:[%s3 + $0x20] sm:$0xf]
    %v6100 = vld [vmem:[%s3 + $0x24] sm:$0xf]
    %v6101 = vld [vmem:[%s3 + $0x28] sm:$0xf]
    %v6102 = vld [vmem:[%s3 + $0x2c] sm:$0xf]
    %v6103 = vld [vmem:[%s3 + $0x30] sm:$0xf]
    %v6104 = vld [vmem:[%s3 + $0x34] sm:$0xf]
    %v6105 = vld [vmem:[%s3 + $0x38] sm:$0xf]
    %v6106 = vld [vmem:[%s3 + $0x3c] sm:$0xf]
    %v6107 = vld [vmem:[%s3 + $0x40] sm:$0xf]
    %v6108 = vld [vmem:[%s3 + $0x44] sm:$0xf]
    %v6109 = vld [vmem:[%s3 + $0x48] sm:$0xf]
    %v6110 = vld [vmem:[%s3 + $0x4c] sm:$0xf]
    %v6111 = vld [vmem:[%s3 + $0x50] sm:$0xf]
    %v6112 = vld [vmem:[%s3 + $0x54] sm:$0xf]
    %v6113 = vld [vmem:[%s3 + $0x58] sm:$0xf]
    %v6114 = vld [vmem:[%s3 + $0x5c] sm:$0xf]
    %v6115 = vld [vmem:[%s3 + $0x60] sm:$0xf]
    %v6116 = vld [vmem:[%s3 + $0x64] sm:$0xf]
    %v6117 = vld [vmem:[%s3 + $0x68] sm:$0xf]
    %v6118 = vld [vmem:[%s3 + $0x6c] sm:$0xf]
    %v6119 = vld [vmem:[%s3 + $0x70] sm:$0xf]
    %v6120 = vld [vmem:[%s3 + $0x74] sm:$0xf]
    %v6121 = vld [vmem:[%s3 + $0x78] sm:$0xf]
    %v6122 = vld [vmem:[%s3 + $0x7c] sm:$0xf]
    %v6123 = vld [vmem:[%s3 + $0x80] sm:$0xf]
    %v6124 = vld [vmem:[%s3 + $0x84] sm:$0xf]
    %v6125 = vld [vmem:[%s3 + $0x88] sm:$0xf]
    %v6126 = vld [vmem:[%s3 + $0x8c] sm:$0xf]
    %v6127 = vld [vmem:[%s3 + $0x90] sm:$0xf]
    %v6128 = vld [vmem:[%s3 + $0x94] sm:$0xf]
    %v6129 = vld [vmem:[%s3 + $0x98] sm:$0xf]
    %v6130 = vld [vmem:[%s3 + $0x9c] sm:$0xf]
    %v6131 = vld [vmem:[%s3 + $0xa0] sm:$0xf]
    %v6132 = vld [vmem:[%s3 + $0xa4] sm:$0xf]
    %v6133 = vld [vmem:[%s3 + $0xa8] sm:$0xf]
    %v6134 = vld [vmem:[%s3 + $0xac] sm:$0xf]
    %v6135 = vld [vmem:[%s3 + $0xb0] sm:$0xf]
    %v6136 = vld [vmem:[%s3 + $0xb4] sm:$0xf]
    %v6137 = vld [vmem:[%s3 + $0xb8] sm:$0xf]
    %v6138 = vld [vmem:[%s3 + $0xbc] sm:$0xf]
    %v6139 = vld [vmem:[%s3 + $0xc0] sm:$0xf]
    %v6140 = vld [vmem:[%s3 + $0xc4] sm:$0xf]
    %v6141 = vld [vmem:[%s3 + $0xc8] sm:$0xf]
    %v6142 = vld [vmem:[%s3 + $0xcc] sm:$0xf]
    %v6143 = vld [vmem:[%s3 + $0xd0] sm:$0xf]
    %v6144 = vld [vmem:[%s3 + $0xd4] sm:$0xf]
    %v6145 = vld [vmem:[%s3 + $0xd8] sm:$0xf]
    %v6146 = vld [vmem:[%s3 + $0xdc] sm:$0xf]
    %v6147 = vld [vmem:[%s3 + $0xe0] sm:$0xf]
    %v6148 = vld [vmem:[%s3 + $0xe4] sm:$0xf]
    %v6149 = vld [vmem:[%s3 + $0xe8] sm:$0xf]
    %v6150 = vld [vmem:[%s3 + $0xec] sm:$0xf]
    %v6151 = vld [vmem:[%s3 + $0xf0] sm:$0xf]
    %v6152 = vld [vmem:[%s3 + $0xf4] sm:$0xf]
    %v6153 = vld [vmem:[%s3 + $0xf8] sm:$0xf]
    %v6154 = vld [vmem:[%s3 + $0xfc] sm:$0xf]
    %v6155 = vld [vmem:[%s4] sm:$0x1]
    %v6157 = vlaneseq
    %v6158 = vshrl.u32 %v6157, 7
    %v6159 = vsub.s32 0, %v6158
    %v6160 = vrot.slane %v6155, %v6159
    %v6226 = vunpack.c.l.b16 %v6091
    %v6227 = vunpack.c.l.b16 %v6092
    %v6228 = vunpack.c.l.b16 %v6093
    %v6229 = vunpack.c.l.b16 %v6094
    %v6230 = vunpack.c.l.b16 %v6095
    %v6231 = vunpack.c.l.b16 %v6096
    %v6232 = vunpack.c.l.b16 %v6097
    %v6233 = vunpack.c.l.b16 %v6098
    %v6234 = vunpack.c.l.b16 %v6099
    %v6235 = vunpack.c.l.b16 %v6100
    %v6236 = vunpack.c.l.b16 %v6101
    %v6237 = vunpack.c.l.b16 %v6102
    %v6238 = vunpack.c.l.b16 %v6103
    %v6239 = vunpack.c.l.b16 %v6104
    %v6240 = vunpack.c.l.b16 %v6105
    %v6241 = vunpack.c.l.b16 %v6106
    %v6242 = vunpack.c.l.b16 %v6107
    %v6243 = vunpack.c.l.b16 %v6108
    %v6244 = vunpack.c.l.b16 %v6109
    %v6245 = vunpack.c.l.b16 %v6110
    %v6246 = vunpack.c.l.b16 %v6111
    %v6247 = vunpack.c.l.b16 %v6112
    %v6248 = vunpack.c.l.b16 %v6113
    %v6249 = vunpack.c.l.b16 %v6114
    %v6250 = vunpack.c.l.b16 %v6115
    %v6251 = vunpack.c.l.b16 %v6116
    %v6252 = vunpack.c.l.b16 %v6117
    %v6253 = vunpack.c.l.b16 %v6118
    %v6254 = vunpack.c.l.b16 %v6119
    %v6255 = vunpack.c.l.b16 %v6120
    %v6256 = vunpack.c.l.b16 %v6121
    %v6257 = vunpack.c.l.b16 %v6122
    %v6258 = vunpack.c.l.b16 %v6123
    %v6259 = vunpack.c.l.b16 %v6124
    %v6260 = vunpack.c.l.b16 %v6125
    %v6261 = vunpack.c.l.b16 %v6126
    %v6262 = vunpack.c.l.b16 %v6127
    %v6263 = vunpack.c.l.b16 %v6128
    %v6264 = vunpack.c.l.b16 %v6129
    %v6265 = vunpack.c.l.b16 %v6130
    %v6266 = vunpack.c.l.b16 %v6131
    %v6267 = vunpack.c.l.b16 %v6132
    %v6268 = vunpack.c.l.b16 %v6133
    %v6269 = vunpack.c.l.b16 %v6134
    %v6270 = vunpack.c.l.b16 %v6135
    %v6271 = vunpack.c.l.b16 %v6136
    %v6272 = vunpack.c.l.b16 %v6137
    %v6273 = vunpack.c.l.b16 %v6138
    %v6274 = vunpack.c.l.b16 %v6139
    %v6275 = vunpack.c.l.b16 %v6140
    %v6276 = vunpack.c.l.b16 %v6141
    %v6277 = vunpack.c.l.b16 %v6142
    %v6278 = vunpack.c.l.b16 %v6143
    %v6279 = vunpack.c.l.b16 %v6144
    %v6280 = vunpack.c.l.b16 %v6145
    %v6281 = vunpack.c.l.b16 %v6146
    %v6282 = vunpack.c.l.b16 %v6147
    %v6283 = vunpack.c.l.b16 %v6148
    %v6284 = vunpack.c.l.b16 %v6149
    %v6285 = vunpack.c.l.b16 %v6150
    %v6286 = vunpack.c.l.b16 %v6151
    %v6287 = vunpack.c.l.b16 %v6152
    %v6288 = vunpack.c.l.b16 %v6153
    %v6289 = vunpack.c.l.b16 %v6154
    %v6290 = vpack.c.b16 %v6227, %v6226
    %v6291 = vpack.c.b16 %v6229, %v6228
    %v6292 = vpack.c.b16 %v6231, %v6230
    %v6293 = vpack.c.b16 %v6233, %v6232
    %v6294 = vpack.c.b16 %v6235, %v6234
    %v6295 = vpack.c.b16 %v6237, %v6236
    %v6296 = vpack.c.b16 %v6239, %v6238
    %v6297 = vpack.c.b16 %v6241, %v6240
    %v6298 = vpack.c.b16 %v6243, %v6242
    %v6299 = vpack.c.b16 %v6245, %v6244
    %v6300 = vpack.c.b16 %v6247, %v6246
    %v6301 = vpack.c.b16 %v6249, %v6248
    %v6302 = vpack.c.b16 %v6251, %v6250
    %v6303 = vpack.c.b16 %v6253, %v6252
    %v6304 = vpack.c.b16 %v6255, %v6254
    %v6305 = vpack.c.b16 %v6257, %v6256
    %v6306 = vpack.c.b16 %v6259, %v6258
    %v6307 = vpack.c.b16 %v6261, %v6260
    %v6308 = vpack.c.b16 %v6263, %v6262
    %v6309 = vpack.c.b16 %v6265, %v6264
    %v6310 = vpack.c.b16 %v6267, %v6266
    %v6311 = vpack.c.b16 %v6269, %v6268
    %v6312 = vpack.c.b16 %v6271, %v6270
    %v6313 = vpack.c.b16 %v6273, %v6272
    %v6314 = vpack.c.b16 %v6275, %v6274
    %v6315 = vpack.c.b16 %v6277, %v6276
    %v6316 = vpack.c.b16 %v6279, %v6278
    %v6317 = vpack.c.b16 %v6281, %v6280
    %v6318 = vpack.c.b16 %v6283, %v6282
    %v6319 = vpack.c.b16 %v6285, %v6284
    %v6320 = vpack.c.b16 %v6287, %v6286
    %v6321 = vpack.c.b16 %v6289, %v6288
    %6354 = vmatprep.subr.bf16.mxu0 0
    %6355 = vmatpush1.bf16.msra.mxu0 %v6290
    %6356 = vmatprep.subr.bf16.mxu0 0
    %6357 = vmatpush1.bf16.msra.mxu0 %v6291
    %6358 = vmatprep.subr.bf16.mxu0 0
    %6359 = vmatpush1.bf16.msra.mxu0 %v6292
    %6360 = vmatprep.subr.bf16.mxu0 0
    %6361 = vmatpush1.bf16.msra.mxu0 %v6293
    %6362 = vmatprep.subr.bf16.mxu0 0
    %6363 = vmatpush1.bf16.msra.mxu0 %v6294
    %6364 = vmatprep.subr.bf16.mxu0 0
    %6365 = vmatpush1.bf16.msra.mxu0 %v6295
    %6366 = vmatprep.subr.bf16.mxu0 0
    %6367 = vmatpush1.bf16.msra.mxu0 %v6296
    %6368 = vmatprep.subr.bf16.mxu0 0
    %6369 = vmatpush1.bf16.msra.mxu0 %v6297
    %6370 = vmatprep.subr.bf16.mxu0 0
    %6371 = vmatpush1.bf16.msra.mxu0 %v6298
    %6372 = vmatprep.subr.bf16.mxu0 0
    %6373 = vmatpush1.bf16.msra.mxu0 %v6299
    %6374 = vmatprep.subr.bf16.mxu0 0
    %6375 = vmatpush1.bf16.msra.mxu0 %v6300
    %6376 = vmatprep.subr.bf16.mxu0 0
    %6377 = vmatpush1.bf16.msra.mxu0 %v6301
    %6378 = vmatprep.subr.bf16.mxu0 0
    %6379 = vmatpush1.bf16.msra.mxu0 %v6302
    %6380 = vmatprep.subr.bf16.mxu0 0
    %6381 = vmatpush1.bf16.msra.mxu0 %v6303
    %6382 = vmatprep.subr.bf16.mxu0 0
    %6383 = vmatpush1.bf16.msra.mxu0 %v6304
    %6384 = vmatprep.subr.bf16.mxu0 0
    %6385 = vmatpush1.bf16.msra.mxu0 %v6305
    %6386 = vmatprep.mubr.bf16.mxu0 %v6088
    %6387 = vmatmul.mubr.bf16.gmra.mrb[0].mxu0 %v6087
    %v6388 = vpop.f32.mrb[0].mxu0
    %v6389 = vadd.f32 %v6160, %v6388
    %v6390 = vpop.f32.mrb[0].mxu0
    %v6391 = vpop.f32.mrb[0].mxu0
    %v6392 = vpop.f32.mrb[0].mxu0
    %6393 = vdwg.mxu0
    %6394 = vmatprep.subr.bf16.mxu0 0
    %6395 = vmatpush1.bf16.msra.mxu0 %v6306
    %6396 = vmatprep.subr.bf16.mxu0 0
    %6397 = vmatpush1.bf16.msra.mxu0 %v6307
    %6398 = vmatprep.subr.bf16.mxu0 0
    %6399 = vmatpush1.bf16.msra.mxu0 %v6308
    %6400 = vmatprep.subr.bf16.mxu0 0
    %6401 = vmatpush1.bf16.msra.mxu0 %v6309
    %6402 = vmatprep.subr.bf16.mxu0 0
    %6403 = vmatpush1.bf16.msra.mxu0 %v6310
    %6404 = vmatprep.subr.bf16.mxu0 0
    %6405 = vmatpush1.bf16.msra.mxu0 %v6311
    %6406 = vmatprep.subr.bf16.mxu0 0
    %6407 = vmatpush1.bf16.msra.mxu0 %v6312
    %6408 = vmatprep.subr.bf16.mxu0 0
    %6409 = vmatpush1.bf16.msra.mxu0 %v6313
    %6410 = vmatprep.subr.bf16.mxu0 0
    %6411 = vmatpush1.bf16.msra.mxu0 %v6314
    %6412 = vmatprep.subr.bf16.mxu0 0
    %6413 = vmatpush1.bf16.msra.mxu0 %v6315
    %6414 = vmatprep.subr.bf16.mxu0 0
    %6415 = vmatpush1.bf16.msra.mxu0 %v6316
    %6416 = vmatprep.subr.bf16.mxu0 0
    %6417 = vmatpush1.bf16.msra.mxu0 %v6317
    %6418 = vmatprep.subr.bf16.mxu0 0
    %6419 = vmatpush1.bf16.msra.mxu0 %v6318
    %6420 = vmatprep.subr.bf16.mxu0 0
    %6421 = vmatpush1.bf16.msra.mxu0 %v6319
    %6422 = vmatprep.subr.bf16.mxu0 0
    %6423 = vmatpush1.bf16.msra.mxu0 %v6320
    %6424 = vmatprep.subr.bf16.mxu0 0
    %6425 = vmatpush1.bf16.msra.mxu0 %v6321
    %6426 = vmatprep.mubr.bf16.mxu0 %v6090
    %6427 = vmatmul.mubr.bf16.gmra.mrb[0].mxu0 %v6089
    %v6428 = vpop.f32.mrb[0].mxu0
    %v6429 = vadd.f32 %v6389, %v6428
    %v6430 = vpop.f32.mrb[0].mxu0
    %v6431 = vpop.f32.mrb[0].mxu0
    %v6432 = vpop.f32.mrb[0].mxu0
    %6433 = vdwg.mxu0
    %6434 = vst [vmem:[#allocation2] sm:$0x3] %v6429
    // Predicated region
    $region22: #{qnetwork_forward.7} parent=1 // pred_check
      _
    $region23: #{qnetwork_forward.7} parent=1 // pred_check_branch
      %6436 = sbr.rel (0) target = $region25
    $region24: #{qnetwork_forward.7} parent=1 // pred_region
      %s6438 = ssub.s32 32, 32
      %6439 = vsyncadd [#allocation3], %s6438
      %s6441 = sshll.u32 [#allocation2], 4
      %s6442 = int_to_ptr.vmem [resolvable:$true] %s6441
      %6444 = dma.vmem_to_hbm [thread:$0]  %s6442, 32, %s5, [#allocation3]
    $region25: #{qnetwork_forward.7} parent=1 // pred_fallthru
      _
    // Predicated region
    $region26: #{qnetwork_forward.7} parent=1 // pred_check
      _
    $region27: #{qnetwork_forward.7} parent=1 // pred_check_branch
      %6446 = sbr.rel (0) target = $region29
    $region28: #{qnetwork_forward.7} parent=1 // pred_region
      %6447 = dma.done [#allocation3], 32
    $region29: #{qnetwork_forward.7} parent=1 // pred_fallthru
      _
    %6448 = vsyncpa [#allocation3], 1

</llo_original>
